<compile_context>
chip_gen: v7x
topology: tpu7x:2x2x1
jax: 0.10.0
libtpu: 0.0.40
codegen_flags: <defaults>
</compile_context>

<pallas_src>
import functools

import jax
import jax.numpy as jnp
from jax import lax
from jax.experimental import pallas as pl
from jax.experimental.pallas import tpu as pltpu

FEAT = 2048   # backbone feature dim (ResNet-style)
HID = 256     # backbone.fc output dim
N_OUT = 2     # final fc output dim


def _round_up(x, m):
    return (x + m - 1) // m * m


def _medcnn_kernel(x_ref, w0t_ref, b0_ref, w1_ref, b1_ref, w2_ref, b2_ref,
                   o_ref, acc_ref, *, tile_p, p_true, p_pad):
    # x_ref  : [C, TILE_P]    bf16  (one batch element, one spatial tile)
    # w0t_ref: [FEAT, C]      bf16  (stand-in 1x1 conv weight, transposed)
    # b0_ref : [FEAT, 1]      f32
    # w1_ref : [FEAT, HID]    f32   (backbone.fc)
    # b1_ref : [1, HID]       f32
    # w2_ref : [HID, N_OUT]   f32   (self.fc)
    # b2_ref : [1, N_OUT]     f32
    # o_ref  : [1, 1, N_OUT]  f32
    # acc_ref: [FEAT, TILE_P] f32 scratch, persists across the P grid axis
    p = pl.program_id(1)

    @pl.when(p == 0)
    def _init():
        acc_ref[...] = jnp.zeros_like(acc_ref)

    # 1x1 conv as a single lane-dense MXU matmul: [FEAT, C] @ [C, TILE_P].
    feat = jnp.dot(w0t_ref[...], x_ref[...],
                   preferred_element_type=jnp.float32)        # [FEAT, TILE_P]
    feat = jnp.maximum(feat + b0_ref[...], 0.0)               # bias + ReLU

    if p_pad != p_true:
        # Zero out padded spatial columns so they do not pollute the pool.
        col = lax.broadcasted_iota(jnp.int32, (1, tile_p), 1) + p * tile_p
        feat = jnp.where(col < p_true, feat, 0.0)

    acc_ref[...] += feat        # fused partial spatial sum (elementwise, VPU)

    # Finalize: global avg pool + backbone.fc + dropout(identity) + fc + ReLU.
    @pl.when(p == pl.num_programs(1) - 1)
    def _finalize():
        ones = jnp.ones((1, tile_p), jnp.float32)
        # Sum over the remaining lane axis on the MXU, divide by the true P.
        pooled = lax.dot_general(
            ones, acc_ref[...],
            dimension_numbers=(((1,), (1,)), ((), ())),
            preferred_element_type=jnp.float32) * (1.0 / p_true)   # [1, FEAT]
        h = jnp.dot(pooled, w1_ref[...],
                    preferred_element_type=jnp.float32) + b1_ref[...]  # [1, HID]
        # Dropout(0.2) is identity at inference time.
        logits = jnp.dot(h, w2_ref[...],
                         preferred_element_type=jnp.float32) + b2_ref[...]
        o_ref[0] = jnp.maximum(logits, 0.0)                    # [1, N_OUT]


def medcnn_forward(x_nchw, params, *, tile_p=512):
    B, C, H, W = x_nchw.shape
    P = H * W

    # Free reshape of NCHW (no transpose, no extra HBM pass): [B, C, P].
    x_bcp = x_nchw.reshape(B, C, P)

    tile_p = min(tile_p, _round_up(P, 128))
    p_pad = _round_up(P, tile_p)
    if p_pad != P:
        x_bcp = jnp.pad(x_bcp, ((0, 0), (0, 0), (0, p_pad - P)))
    num_p_tiles = p_pad // tile_p

    # bf16 for the streaming matmul operands; the epilogue stays f32.
    x_bcp = x_bcp.astype(jnp.bfloat16)
    w0t = params["w0"].T.astype(jnp.bfloat16)          # [FEAT, C]
    b0_col = params["b0"].reshape(FEAT, 1)              # [FEAT, 1] f32

    kernel = functools.partial(_medcnn_kernel, tile_p=tile_p,
                               p_true=P, p_pad=p_pad)

    grid_spec = pltpu.PrefetchScalarGridSpec(
        num_scalar_prefetch=0,
        grid=(B, num_p_tiles),
        in_specs=[
            pl.BlockSpec((None, C, tile_p), lambda b, p: (b, 0, p)),
            pl.BlockSpec((FEAT, C), lambda b, p: (0, 0)),
            pl.BlockSpec((FEAT, 1), lambda b, p: (0, 0)),
            pl.BlockSpec((FEAT, HID), lambda b, p: (0, 0)),
            pl.BlockSpec((1, HID), lambda b, p: (0, 0)),
            pl.BlockSpec((HID, N_OUT), lambda b, p: (0, 0)),
            pl.BlockSpec((1, N_OUT), lambda b, p: (0, 0)),
        ],
        out_specs=pl.BlockSpec((1, 1, N_OUT), lambda b, p: (b, 0, 0)),
        scratch_shapes=[pltpu.VMEM((FEAT, tile_p), jnp.float32)],
    )

    out = pl.pallas_call(
        kernel,
        out_shape=jax.ShapeDtypeStruct((B, 1, N_OUT), jnp.float32),
        grid_spec=grid_spec,
        compiler_params=pltpu.CompilerParams(
            dimension_semantics=("parallel", "arbitrary"),
            vmem_limit_bytes=48 * 1024 * 1024,
        ),
    )(x_bcp, w0t, b0_col, params["w1"], params["b1"], params["w2"],
      params["b2"])

    return out.reshape(B, N_OUT)


def medcnn_reference(x_nchw, params):
    """Pure-JAX f32 reference for correctness checking."""
    B, C, H, W = x_nchw.shape
    xr = jnp.transpose(x_nchw, (0, 2, 3, 1)).reshape(B, H * W, C)
    feat = jnp.maximum(
        jnp.einsum("bpc,cf->bpf", xr, params["w0"]) + params["b0"], 0.0)
    pooled = jnp.mean(feat, axis=1)
    h = pooled @ params["w1"] + params["b1"]
    out = h @ params["w2"] + params["b2"]
    return jnp.maximum(out, 0.0)


def init_params(key, c_in):
    ks = jax.random.split(key, 6)
    scale = 0.05
    return {
        "w0": scale * jax.random.normal(ks[0], (c_in, FEAT), jnp.float32),
        "b0": scale * jax.random.normal(ks[1], (1, FEAT), jnp.float32),
        "w1": scale * jax.random.normal(ks[2], (FEAT, HID), jnp.float32),
        "b1": scale * jax.random.normal(ks[3], (1, HID), jnp.float32),
        "w2": scale * jax.random.normal(ks[4], (HID, N_OUT), jnp.float32),
        "b2": scale * jax.random.normal(ks[5], (1, N_OUT), jnp.float32),
    }


if __name__ == "__main__":
    key = jax.random.PRNGKey(0)
    kx, kp = jax.random.split(key)

    B, C, H, W = 2, 4, 16, 16
    x = jax.random.normal(kx, (B, C, H, W), jnp.float32)
    params = init_params(kp, C)

    # tile_p=128 -> 2 spatial tiles, exercising the init/accumulate/finalize
    # path of the P-reduction grid.
    out = jax.block_until_ready(medcnn_forward(x, params, tile_p=128))
    ref = jax.block_until_ready(medcnn_reference(x, params))

    assert out.shape == (B, N_OUT), out.shape
    # bf16 streaming matmul -> relaxed tolerance vs the pure-f32 reference.
    assert jnp.allclose(out, ref, atol=1e-2, rtol=1e-2), (out, ref)
    print("KERNEL_OK")
</pallas_src>

<mosaic_0001>
module attributes {stable_mosaic.version = 11 : i64} {
  func.func @_medcnn_kernel(%arg0: i32, %arg1: i32, %arg2: memref<1x4x128xbf16, #tpu.memory_space<vmem>>, %arg3: memref<2048x4xbf16, #tpu.memory_space<vmem>>, %arg4: memref<2048x1xf32, #tpu.memory_space<vmem>>, %arg5: memref<2048x256xf32, #tpu.memory_space<vmem>>, %arg6: memref<1x256xf32, #tpu.memory_space<vmem>>, %arg7: memref<256x2xf32, #tpu.memory_space<vmem>>, %arg8: memref<1x2xf32, #tpu.memory_space<vmem>>, %arg9: memref<1x1x2xf32, #tpu.memory_space<vmem>>, %arg10: memref<2048x128xf32, #tpu.memory_space<vmem>>) attributes {dimension_semantics = [#tpu.dimension_semantics<parallel>, #tpu.dimension_semantics<arbitrary>], iteration_bounds = array<i64: 2, 2>, scalar_prefetch = 0 : i64, scratch_operands = 1 : i64, tpu.core_type = #tpu.core_type<tc>, window_params = [{transform_indices = @transform_0, window_bounds = array<i64: 1, 4, 128>}, {pipeline_mode = #tpu.pipeline_mode<synchronous>, transform_indices = @transform_1, window_bounds = array<i64: 2048, 4>}, {pipeline_mode = #tpu.pipeline_mode<synchronous>, transform_indices = @transform_2, window_bounds = array<i64: 2048, 1>}, {pipeline_mode = #tpu.pipeline_mode<synchronous>, transform_indices = @transform_3, window_bounds = array<i64: 2048, 256>}, {pipeline_mode = #tpu.pipeline_mode<synchronous>, transform_indices = @transform_4, window_bounds = array<i64: 1, 256>}, {pipeline_mode = #tpu.pipeline_mode<synchronous>, transform_indices = @transform_5, window_bounds = array<i64: 256, 2>}, {pipeline_mode = #tpu.pipeline_mode<synchronous>, transform_indices = @transform_6, window_bounds = array<i64: 1, 2>}, {transform_indices = @transform_7, window_bounds = array<i64: 1, 1, 2>}]} {
    %c0_i32 = arith.constant 0 : i32
    %0 = arith.cmpi eq, %arg1, %c0_i32 : i32
    %1 = arith.extui %0 : i1 to i32
    %c0_i32_0 = arith.constant 0 : i32
    %2 = arith.cmpi ne, %1, %c0_i32_0 : i32
    scf.if %2 {
      %cst_13 = arith.constant 0.000000e+00 : f32
      %18 = vector.broadcast %cst_13 : f32 to vector<2048x128xf32>
      %c0_14 = arith.constant 0 : index
      %c0_15 = arith.constant 0 : index
      %19 = vector.load %arg10[%c0_14, %c0_15] : memref<2048x128xf32, #tpu.memory_space<vmem>>, vector<2048x128xf32>
      tpu.vector_store %arg10[%c0_14, %c0_15], %18 {strides = array<i32>} : memref<2048x128xf32, #tpu.memory_space<vmem>>, vector<2048x128xf32>,
    } else {
    }
    %c0 = arith.constant 0 : index
    %c0_1 = arith.constant 0 : index
    %3 = vector.load %arg3[%c0, %c0_1] : memref<2048x4xbf16, #tpu.memory_space<vmem>>, vector<2048x4xbf16>
    %c0_2 = arith.constant 0 : index
    %c0_3 = arith.constant 0 : index
    %c0_4 = arith.constant 0 : index
    %4 = vector.load %arg2[%c0_2, %c0_3, %c0_4] : memref<1x4x128xbf16, #tpu.memory_space<vmem>>, vector<1x4x128xbf16>
    %5 = vector.shape_cast %4 : vector<1x4x128xbf16> to vector<4x128xbf16>
    %cst = arith.constant dense<0.000000e+00> : vector<2048x128xf32>
    %6 = tpu.matmul %3, %5, %cst {dimension_numbers = #tpu.dot_dimension_numbers<[1], [0], [0], [1], [0, 0, 1, 1], [], []>} : vector<2048x4xbf16>, vector<4x128xbf16>, vector<2048x128xf32> -> vector<2048x128xf32>
    %c0_5 = arith.constant 0 : index
    %c0_6 = arith.constant 0 : index
    %7 = vector.load %arg4[%c0_5, %c0_6] : memref<2048x1xf32, #tpu.memory_space<vmem>>, vector<2048x1xf32>
    %8 = vector.broadcast %7 : vector<2048x1xf32> to vector<2048x128xf32>
    %9 = arith.addf %6, %8 : vector<2048x128xf32>
    %cst_7 = arith.constant 0.000000e+00 : f32
    %10 = vector.broadcast %cst_7 : f32 to vector<2048x128xf32>
    %11 = arith.maximumf %9, %10 : vector<2048x128xf32>
    %c0_8 = arith.constant 0 : index
    %c0_9 = arith.constant 0 : index
    %12 = vector.load %arg10[%c0_8, %c0_9] : memref<2048x128xf32, #tpu.memory_space<vmem>>, vector<2048x128xf32>
    %13 = arith.addf %12, %11 : vector<2048x128xf32>
    %c0_10 = arith.constant 0 : index
    %c0_11 = arith.constant 0 : index
    %14 = vector.load %arg10[%c0_10, %c0_11] : memref<2048x128xf32, #tpu.memory_space<vmem>>, vector<2048x128xf32>
    tpu.vector_store %arg10[%c0_10, %c0_11], %13 {strides = array<i32>} : memref<2048x128xf32, #tpu.memory_space<vmem>>, vector<2048x128xf32>,
    %c1_i32 = arith.constant 1 : i32
    %15 = arith.cmpi eq, %arg1, %c1_i32 : i32
    %16 = arith.extui %15 : i1 to i32
    %c0_i32_12 = arith.constant 0 : i32
    %17 = arith.cmpi ne, %16, %c0_i32_12 : i32
    scf.if %17 {
      %cst_13 = arith.constant 1.000000e+00 : f32
      %18 = vector.broadcast %cst_13 : f32 to vector<1x128xf32>
      %c0_14 = arith.constant 0 : index
      %c0_15 = arith.constant 0 : index
      %19 = vector.load %arg10[%c0_14, %c0_15] : memref<2048x128xf32, #tpu.memory_space<vmem>>, vector<2048x128xf32>
      %cst_16 = arith.constant dense<0.000000e+00> : vector<1x2048xf32>
      %20 = tpu.matmul %18, %19, %cst_16 {dimension_numbers = #tpu.dot_dimension_numbers<[1], [1], [0], [0], [0, 0, 1, 0], [], []>} : vector<1x128xf32>, vector<2048x128xf32>, vector<1x2048xf32> -> vector<1x2048xf32>
      %cst_17 = arith.constant 3.906250e-03 : f32
      %21 = vector.broadcast %cst_17 : f32 to vector<1x2048xf32>
      %22 = arith.mulf %20, %21 : vector<1x2048xf32>
      %c0_18 = arith.constant 0 : index
      %c0_19 = arith.constant 0 : index
      %23 = vector.load %arg5[%c0_18, %c0_19] : memref<2048x256xf32, #tpu.memory_space<vmem>>, vector<2048x256xf32>
      %cst_20 = arith.constant dense<0.000000e+00> : vector<1x256xf32>
      %24 = tpu.matmul %22, %23, %cst_20 {dimension_numbers = #tpu.dot_dimension_numbers<[1], [0], [0], [1], [0, 0, 1, 1], [], []>} : vector<1x2048xf32>, vector<2048x256xf32>, vector<1x256xf32> -> vector<1x256xf32>
      %c0_21 = arith.constant 0 : index
      %c0_22 = arith.constant 0 : index
      %25 = vector.load %arg6[%c0_21, %c0_22] : memref<1x256xf32, #tpu.memory_space<vmem>>, vector<1x256xf32>
      %26 = arith.addf %24, %25 : vector<1x256xf32>
      %c0_23 = arith.constant 0 : index
      %c0_24 = arith.constant 0 : index
      %27 = vector.load %arg7[%c0_23, %c0_24] : memref<256x2xf32, #tpu.memory_space<vmem>>, vector<256x2xf32>
      %cst_25 = arith.constant dense<0.000000e+00> : vector<1x2xf32>
      %28 = tpu.matmul %26, %27, %cst_25 {dimension_numbers = #tpu.dot_dimension_numbers<[1], [0], [0], [1], [0, 0, 1, 1], [], []>} : vector<1x256xf32>, vector<256x2xf32>, vector<1x2xf32> -> vector<1x2xf32>
      %c0_26 = arith.constant 0 : index
      %c0_27 = arith.constant 0 : index
      %29 = vector.load %arg8[%c0_26, %c0_27] : memref<1x2xf32, #tpu.memory_space<vmem>>, vector<1x2xf32>
      %30 = arith.addf %28, %29 : vector<1x2xf32>
      %cst_28 = arith.constant 0.000000e+00 : f32
      %31 = vector.broadcast %cst_28 : f32 to vector<1x2xf32>
      %32 = arith.maximumf %30, %31 : vector<1x2xf32>
      %c0_29 = arith.constant 0 : index
      %c0_30 = arith.constant 0 : index
      %c0_31 = arith.constant 0 : index
      %33 = vector.load %arg9[%c0_29, %c0_30, %c0_31] : memref<1x1x2xf32, #tpu.memory_space<vmem>>, vector<1x1x2xf32>
      %34 = vector.shape_cast %33 : vector<1x1x2xf32> to vector<1x2xf32>
      %35 = vector.shape_cast %32 : vector<1x2xf32> to vector<1x1x2xf32>
      tpu.vector_store %arg9[%c0_29, %c0_30, %c0_31], %35 {strides = array<i32>} : memref<1x1x2xf32, #tpu.memory_space<vmem>>, vector<1x1x2xf32>,
    } else {
    }
    return
  }
  func.func @transform_0(%arg0: i32, %arg1: i32) -> (i32, i32, i32) {
    %c0_i32 = arith.constant 0 : i32
    %c0_i32_0 = arith.constant 0 : i32
    return %arg0, %c0_i32, %arg1 : i32, i32, i32
  }
  func.func @transform_1(%arg0: i32, %arg1: i32) -> (i32, i32) {
    %c0_i32 = arith.constant 0 : i32
    %c0_i32_0 = arith.constant 0 : i32
    %c0_i32_1 = arith.constant 0 : i32
    return %c0_i32, %c0_i32_0 : i32, i32
  }
  func.func @transform_2(%arg0: i32, %arg1: i32) -> (i32, i32) {
    %c0_i32 = arith.constant 0 : i32
    %c0_i32_0 = arith.constant 0 : i32
    %c0_i32_1 = arith.constant 0 : i32
    return %c0_i32, %c0_i32_0 : i32, i32
  }
  func.func @transform_3(%arg0: i32, %arg1: i32) -> (i32, i32) {
    %c0_i32 = arith.constant 0 : i32
    %c0_i32_0 = arith.constant 0 : i32
    %c0_i32_1 = arith.constant 0 : i32
    return %c0_i32, %c0_i32_0 : i32, i32
  }
  func.func @transform_4(%arg0: i32, %arg1: i32) -> (i32, i32) {
    %c0_i32 = arith.constant 0 : i32
    %c0_i32_0 = arith.constant 0 : i32
    %c0_i32_1 = arith.constant 0 : i32
    return %c0_i32, %c0_i32_0 : i32, i32
  }
  func.func @transform_5(%arg0: i32, %arg1: i32) -> (i32, i32) {
    %c0_i32 = arith.constant 0 : i32
    %c0_i32_0 = arith.constant 0 : i32
    %c0_i32_1 = arith.constant 0 : i32
    return %c0_i32, %c0_i32_0 : i32, i32
  }
  func.func @transform_6(%arg0: i32, %arg1: i32) -> (i32, i32) {
    %c0_i32 = arith.constant 0 : i32
    %c0_i32_0 = arith.constant 0 : i32
    %c0_i32_1 = arith.constant 0 : i32
    return %c0_i32, %c0_i32_0 : i32, i32
  }
  func.func @transform_7(%arg0: i32, %arg1: i32) -> (i32, i32, i32) {
    %c0_i32 = arith.constant 0 : i32
    %c0_i32_0 = arith.constant 0 : i32
    %c0_i32_1 = arith.constant 0 : i32
    return %arg0, %c0_i32, %c0_i32_0 : i32, i32, i32
  }
}

</mosaic_0001>

<llo_original>
// kernel: tpu_custom_call.1
$region0: #{tpu_custom_call.1}
  #allocation0 [shape = 'u32[]', space=smem, size = 0x4, offset = 0x4, fixed_abs, tag = 'smem constant byte address 0x4 - core index']
  #allocation1 [shape = 'u32[144,128]{1,0:T(1,128)}', space=vmem, size = 0x12000, scoped, tag = 'internal scratch']
  #allocation2 [shape = 'f32[2048,128]{1,0:T(8,128)}', space=vmem, size = 0x100000, scoped, tag = 'scratch operand']
  %s0 = inlined_call_operand.hbm [shape: bf16[2,4,256], index: 0, kind: input, shape index: {}]
  %s1 = inlined_call_operand.vmem [shape: bf16[2048,4], index: 1, kind: input, shape index: {}]
  %s2 = inlined_call_operand.vmem [shape: f32[2048,1], index: 2, kind: input, shape index: {}]
  %s3 = inlined_call_operand.hbm [shape: f32[2048,256], index: 3, kind: input, shape index: {}]
  %s4 = inlined_call_operand.hbm [shape: f32[1,256], index: 4, kind: input, shape index: {}]
  %s5 = inlined_call_operand.vmem [shape: f32[256,2], index: 5, kind: input, shape index: {}]
  %s6 = inlined_call_operand.hbm [shape: f32[1,2], index: 6, kind: input, shape index: {}]
  %s7 = inlined_call_operand.hbm [shape: f32[2,1,2], index: 7, kind: output, shape index: {}]
  %s8 = sld [smem:[#allocation0]]
  $region85: #{tpu_custom_call.1} parent=0
    _
  %s10 = ssub.s32 1, %s8
  %s11 = scalar_select 0, %s10, %s8
  $region1: #{tpu_custom_call.1} parent=0
    #allocation3 [shape = 'u8[2048]{0}', space=vmem, size = 0x800, scoped, tag = 'input window, operand 0']
    #allocation4 [shape = 's32[2]{0}', space=sflag, size = 0x8, scoped, tag = 'scoped memory for tpu_custom_call.1']
    #allocation5 [shape = 's32[2]{0}', space=sflag, size = 0x8, scoped, tag = 'scoped memory for tpu_custom_call.1']
    #allocation6 [shape = 'u8[2097152]{0}', space=vmem, size = 0x200000, scoped, tag = 'input window, operand 3, single buffered']
    #allocation7 [shape = 's32[1]{0}', space=sflag, size = 0x4, scoped, tag = 'scoped memory for tpu_custom_call.1']
    #allocation8 [shape = 'u8[1024]{0}', space=vmem, size = 0x400, scoped, tag = 'input window, operand 4, single buffered']
    #allocation9 [shape = 'u8[512]{0}', space=vmem, size = 0x400, scoped, tag = 'input window, operand 6, single buffered']
    #allocation10 [shape = 's32[1]{0}', space=sflag, size = 0x4, scoped, tag = 'scoped memory for tpu_custom_call.1']
    #allocation11 [shape = 'u8[1024]{0}', space=vmem, size = 0x400, scoped, tag = 'output window, operand 0']
    %12 = vsyncpa [#allocation4], 0
    %s13 = scalar_lea.sflag [#allocation4], 1
    %14 = vsyncpa %s13, 0
    %15 = vsyncpa [#allocation7], 0
    %16 = vsyncpa [#allocation10], 0
    %17 = vsyncpa [#allocation5], 0
    %s18 = scalar_lea.sflag [#allocation5], 1
    %19 = vsyncpa %s18, 0
    loop: start=0, step=1, limit=6
    $region2: #{tpu_custom_call.1} parent=1 // loop_pre_header
      _
    $region3: #{tpu_custom_call.1} parent=1 // loop_header
      %s21 = sphi 0, %s25
      %p22 = scmp.ge.s32.totalorder %s21, 6
      %s28 = sphi 0, %s40
      %s29 = sphi 0, %s36
      %s30 = sphi 0, %s28
      %s31 = sphi 0, %s29
      %s32 = sphi 0, %s30
      %s33 = sphi 0, %s31
      %s45 = sphi 0, %s47
      %s48 = sphi 0, %s45
      %s49 = sphi 0, %s48
      %s65 = sphi 0, %s49
      %s69 = sphi 0, %s69
      %s71 = sphi 0, %s69
      %s72 = sphi 0, %s71
      %s86 = sphi 0, %s72
      %s90 = sphi 0, %s90
      %s92 = sphi 0, %s90
      %s93 = sphi 0, %s92
      %s107 = sphi 0, %s93
      %s111 = sphi 0, %s111
      %s113 = sphi 0, %s111
      %s114 = sphi 0, %s113
      %s128 = sphi 0, %s114
      %s132 = sphi 0, %s132
      %s134 = sphi 0, %s132
      %s135 = sphi 0, %s134
      %s149 = sphi 0, %s135
      %s153 = sphi 0, %s153
      %s155 = sphi 0, %s153
      %s156 = sphi 0, %s155
      %s170 = sphi 0, %s156
      %s174 = sphi 0, %s174
      %s176 = sphi 0, %s174
      %s177 = sphi 0, %s176
      %s191 = sphi 0, %s177
      %s197 = sphi 0, %s199
      %s200 = sphi 0, %s197
      %s201 = sphi 0, %s200
      %s217 = sphi 0, %s201
    $region4: #{tpu_custom_call.1} parent=1 // loop_header_branch
      %24 = sbr.rel (%p22) target = $region8
    $region5: #{tpu_custom_call.1} parent=1 // loop_body
      %s26 = ssub.s32 %s21, 1
      %s27 = ssub.s32 %s21, 2
      %s34 = sadd.s32 1, %s29
      %p35 = scmp.ge.s32.totalorder %s34, 2
      %s36 = scalar_select %p35, 0, %s34
      %s37 = sadd.s32 1, %s28
      %s38 = scalar_select %p35, %s37, %s28
      %p39 = scmp.ge.s32.totalorder %s38, 2
      %s40 = scalar_select %p39, 0, %s38
      %s41 = ssub.s32 %s28, %s40
      %s42 = ssub.s32 %s29, %s36
      %s43 = sor.u32 %s41, %s42
      %p44 = scmp.eq.s32.totalorder %s43, 0
      %s46 = sadd.s32 %s45, 1
      %s47 = scalar_select %p44, %s45, %s46
      %p50 = pneg %p44
      %p51 = scmp.eq.s32.totalorder %s21, 3
      %p52 = por %p50, %p51
      %p53 = scmp.ne.s32.totalorder %s45, %s48
      %p54 = scmp.eq.s32.totalorder %s21, 0
      %p55 = por %p53, %p54
      %p56 = scmp.ne.s32.totalorder %s45, %s48
      %p57 = scmp.eq.s32.totalorder %s26, 3
      %p58 = por %p56, %p57
      %p59 = scmp.ne.s32.totalorder %s48, %s49
      %p60 = scmp.eq.s32.totalorder %s26, 0
      %p61 = por %p59, %p60
      %p62 = scmp.ne.s32.totalorder %s48, %s49
      %p63 = scmp.eq.s32.totalorder %s27, 3
      %p64 = por %p62, %p63
      %p66 = scmp.ne.s32.totalorder %s49, %s65
      %p67 = scmp.eq.s32.totalorder %s27, 0
      %p68 = por %p66, %p67
      %s70 = sadd.s32 %s69, 1
      %p73 = scmp.eq.s32.totalorder %s21, 3
      %p74 = scmp.ne.s32.totalorder %s69, %s71
      %p75 = scmp.eq.s32.totalorder %s21, 0
      %p76 = por %p74, %p75
      %p77 = scmp.ne.s32.totalorder %s69, %s71
      %p78 = scmp.eq.s32.totalorder %s26, 3
      %p79 = por %p77, %p78
      %p80 = scmp.ne.s32.totalorder %s71, %s72
      %p81 = scmp.eq.s32.totalorder %s26, 0
      %p82 = por %p80, %p81
      %p83 = scmp.ne.s32.totalorder %s71, %s72
      %p84 = scmp.eq.s32.totalorder %s27, 3
      %p85 = por %p83, %p84
      %p87 = scmp.ne.s32.totalorder %s72, %s86
      %p88 = scmp.eq.s32.totalorder %s27, 0
      %p89 = por %p87, %p88
      %s91 = sadd.s32 %s90, 1
      %p94 = scmp.eq.s32.totalorder %s21, 3
      %p95 = scmp.ne.s32.totalorder %s90, %s92
      %p96 = scmp.eq.s32.totalorder %s21, 0
      %p97 = por %p95, %p96
      %p98 = scmp.ne.s32.totalorder %s90, %s92
      %p99 = scmp.eq.s32.totalorder %s26, 3
      %p100 = por %p98, %p99
      %p101 = scmp.ne.s32.totalorder %s92, %s93
      %p102 = scmp.eq.s32.totalorder %s26, 0
      %p103 = por %p101, %p102
      %p104 = scmp.ne.s32.totalorder %s92, %s93
      %p105 = scmp.eq.s32.totalorder %s27, 3
      %p106 = por %p104, %p105
      %p108 = scmp.ne.s32.totalorder %s93, %s107
      %p109 = scmp.eq.s32.totalorder %s27, 0
      %p110 = por %p108, %p109
      %s112 = sadd.s32 %s111, 1
      %p115 = scmp.eq.s32.totalorder %s21, 3
      %p116 = scmp.ne.s32.totalorder %s111, %s113
      %p117 = scmp.eq.s32.totalorder %s21, 0
      %p118 = por %p116, %p117
      %p119 = scmp.ne.s32.totalorder %s111, %s113
      %p120 = scmp.eq.s32.totalorder %s26, 3
      %p121 = por %p119, %p120
      %p122 = scmp.ne.s32.totalorder %s113, %s114
      %p123 = scmp.eq.s32.totalorder %s26, 0
      %p124 = por %p122, %p123
      %p125 = scmp.ne.s32.totalorder %s113, %s114
      %p126 = scmp.eq.s32.totalorder %s27, 3
      %p127 = por %p125, %p126
      %p129 = scmp.ne.s32.totalorder %s114, %s128
      %p130 = scmp.eq.s32.totalorder %s27, 0
      %p131 = por %p129, %p130
      %s133 = sadd.s32 %s132, 1
      %p136 = scmp.eq.s32.totalorder %s21, 3
      %p137 = scmp.ne.s32.totalorder %s132, %s134
      %p138 = scmp.eq.s32.totalorder %s21, 0
      %p139 = por %p137, %p138
      %p140 = scmp.ne.s32.totalorder %s132, %s134
      %p141 = scmp.eq.s32.totalorder %s26, 3
      %p142 = por %p140, %p141
      %p143 = scmp.ne.s32.totalorder %s134, %s135
      %p144 = scmp.eq.s32.totalorder %s26, 0
      %p145 = por %p143, %p144
      %p146 = scmp.ne.s32.totalorder %s134, %s135
      %p147 = scmp.eq.s32.totalorder %s27, 3
      %p148 = por %p146, %p147
      %p150 = scmp.ne.s32.totalorder %s135, %s149
      %p151 = scmp.eq.s32.totalorder %s27, 0
      %p152 = por %p150, %p151
      %s154 = sadd.s32 %s153, 1
      %p157 = scmp.eq.s32.totalorder %s21, 3
      %p158 = scmp.ne.s32.totalorder %s153, %s155
      %p159 = scmp.eq.s32.totalorder %s21, 0
      %p160 = por %p158, %p159
      %p161 = scmp.ne.s32.totalorder %s153, %s155
      %p162 = scmp.eq.s32.totalorder %s26, 3
      %p163 = por %p161, %p162
      %p164 = scmp.ne.s32.totalorder %s155, %s156
      %p165 = scmp.eq.s32.totalorder %s26, 0
      %p166 = por %p164, %p165
      %p167 = scmp.ne.s32.totalorder %s155, %s156
      %p168 = scmp.eq.s32.totalorder %s27, 3
      %p169 = por %p167, %p168
      %p171 = scmp.ne.s32.totalorder %s156, %s170
      %p172 = scmp.eq.s32.totalorder %s27, 0
      %p173 = por %p171, %p172
      %s175 = sadd.s32 %s174, 1
      %p178 = scmp.eq.s32.totalorder %s21, 3
      %p179 = scmp.ne.s32.totalorder %s174, %s176
      %p180 = scmp.eq.s32.totalorder %s21, 0
      %p181 = por %p179, %p180
      %p182 = scmp.ne.s32.totalorder %s174, %s176
      %p183 = scmp.eq.s32.totalorder %s26, 3
      %p184 = por %p182, %p183
      %p185 = scmp.ne.s32.totalorder %s176, %s177
      %p186 = scmp.eq.s32.totalorder %s26, 0
      %p187 = por %p185, %p186
      %p188 = scmp.ne.s32.totalorder %s176, %s177
      %p189 = scmp.eq.s32.totalorder %s27, 3
      %p190 = por %p188, %p189
      %p192 = scmp.ne.s32.totalorder %s177, %s191
      %p193 = scmp.eq.s32.totalorder %s27, 0
      %p194 = por %p192, %p193
      %s195 = ssub.s32 %s28, %s40
      %p196 = scmp.eq.s32.totalorder %s195, 0
      %s198 = sadd.s32 %s197, 1
      %s199 = scalar_select %p196, %s197, %s198
      %p202 = pneg %p196
      %p203 = scmp.eq.s32.totalorder %s21, 3
      %p204 = por %p202, %p203
      %p205 = scmp.ne.s32.totalorder %s197, %s200
      %p206 = scmp.eq.s32.totalorder %s21, 0
      %p207 = por %p205, %p206
      %p208 = scmp.ne.s32.totalorder %s197, %s200
      %p209 = scmp.eq.s32.totalorder %s26, 3
      %p210 = por %p208, %p209
      %p211 = scmp.ne.s32.totalorder %s200, %s201
      %p212 = scmp.eq.s32.totalorder %s26, 0
      %p213 = por %p211, %p212
      %p214 = scmp.ne.s32.totalorder %s200, %s201
      %p215 = scmp.eq.s32.totalorder %s27, 3
      %p216 = por %p214, %p215
      %p218 = scmp.ne.s32.totalorder %s201, %s217
      %p219 = scmp.eq.s32.totalorder %s27, 0
      %p220 = por %p218, %p219
      %p221 = scmp.le.s32.totalorder 1, %s21
      %p222 = scmp.lt.s32.totalorder %s21, 5
      %p223 = pnand %p221, %p222
      %p224 = pneg %p223
      // Predicated region
      $region9: #{tpu_custom_call.1} parent=5 // pred_check
        _
      $region10: #{tpu_custom_call.1} parent=5 // pred_check_branch
        %226 = sbr.rel (%p223) target = $region12
      $region11: #{tpu_custom_call.1} parent=5 // pred_region
        %s227 = ssub.s32 %s21, 1
        // Predicated region
        $region13: #{tpu_custom_call.1} parent=11 // pred_check
          %p228 = pneg %p82
        $region14: #{tpu_custom_call.1} parent=11 // pred_check_branch
          %230 = sbr.rel (%p228) target = $region16
        $region15: #{tpu_custom_call.1} parent=11 // pred_region
          _
        $region16: #{tpu_custom_call.1} parent=11 // pred_fallthru
          _
        // Predicated region
        $region17: #{tpu_custom_call.1} parent=11 // pred_check
          %p231 = pneg %p103
        $region18: #{tpu_custom_call.1} parent=11 // pred_check_branch
          %233 = sbr.rel (%p231) target = $region20
        $region19: #{tpu_custom_call.1} parent=11 // pred_region
          _
        $region20: #{tpu_custom_call.1} parent=11 // pred_fallthru
          _
        // Predicated region
        $region21: #{tpu_custom_call.1} parent=11 // pred_check
          %p234 = pneg %p124
        $region22: #{tpu_custom_call.1} parent=11 // pred_check_branch
          %236 = sbr.rel (%p234) target = $region24
        $region23: #{tpu_custom_call.1} parent=11 // pred_region
          %s238 = ssub.s32 65536, 65536
          %239 = vsyncadd [#allocation7], %s238
          %s240 = sshll.u32 [#allocation6], 4
          %s241 = int_to_ptr.vmem [resolvable:$true] %s240
          %246 = dma.hbm_to_vmem [thread:$0]  %s3, 65536, %s241, [#allocation7], 256, 256, 16
        $region24: #{tpu_custom_call.1} parent=11 // pred_fallthru
          _
        // Predicated region
        $region25: #{tpu_custom_call.1} parent=11 // pred_check
          %p247 = pneg %p145
        $region26: #{tpu_custom_call.1} parent=11 // pred_check_branch
          %249 = sbr.rel (%p247) target = $region28
        $region27: #{tpu_custom_call.1} parent=11 // pred_region
          %s251 = ssub.s32 32, 32
          %252 = vsyncadd [#allocation7], %s251
          %s254 = sshll.u32 [#allocation8], 4
          %s255 = int_to_ptr.vmem [resolvable:$true] %s254
          %257 = dma.hbm_to_vmem [thread:$0]  %s4, 32, %s255, [#allocation7]
        $region28: #{tpu_custom_call.1} parent=11 // pred_fallthru
          _
        // Predicated region
        $region29: #{tpu_custom_call.1} parent=11 // pred_check
          %p258 = pneg %p166
        $region30: #{tpu_custom_call.1} parent=11 // pred_check_branch
          %260 = sbr.rel (%p258) target = $region32
        $region31: #{tpu_custom_call.1} parent=11 // pred_region
          _
        $region32: #{tpu_custom_call.1} parent=11 // pred_fallthru
          _
        // Predicated region
        $region33: #{tpu_custom_call.1} parent=11 // pred_check
          %p261 = pneg %p187
        $region34: #{tpu_custom_call.1} parent=11 // pred_check_branch
          %263 = sbr.rel (%p261) target = $region36
        $region35: #{tpu_custom_call.1} parent=11 // pred_region
          %s265 = ssub.s32 16, 16
          %266 = vsyncadd [#allocation10], %s265
          %s268 = sshll.u32 [#allocation9], 4
          %s269 = int_to_ptr.vmem [resolvable:$true] %s268
          %271 = dma.hbm_to_vmem [thread:$0]  %s6, 16, %s269, [#allocation10]
        $region36: #{tpu_custom_call.1} parent=11 // pred_fallthru
          _
      $region12: #{tpu_custom_call.1} parent=5 // pred_fallthru
        _
      %p272 = scmp.lt.s32.totalorder %s21, 4
      // Predicated region
      $region37: #{tpu_custom_call.1} parent=5 // pred_check
        %p273 = pneg %p272
      $region38: #{tpu_custom_call.1} parent=5 // pred_check_branch
        %275 = sbr.rel (%p273) target = $region40
      $region39: #{tpu_custom_call.1} parent=5 // pred_region
        // Predicated region
        $region41: #{tpu_custom_call.1} parent=39 // pred_check
          %p276 = pneg %p55
        $region42: #{tpu_custom_call.1} parent=39 // pred_check_branch
          %278 = sbr.rel (%p276) target = $region44
        $region43: #{tpu_custom_call.1} parent=39 // pred_region
          %s279 = sand.u32 %s45, 1
          %s280 = scalar_lea.sflag [#allocation4], %s279
          %s281 = sand.u32 %s45, 1
          %s282 = smul.addr %s281, 2
          %s283 = scalar_lea.vmem [#allocation3], %s282
          %s285 = ssub.s32 32, 32
          %286 = vsyncadd %s280, %s285
          %s287 = smul.addr %s28, 2
          %s288 = sadd.s32 %s29, %s287
          %s289 = smul.addr %s288, 32
          %s290 = scalar_lea.hbm %s0, %s289
          %s292 = sshll.u32 %s283, 4
          %s293 = int_to_ptr.vmem [resolvable:$true] %s292
          %295 = dma.hbm_to_vmem [thread:$0]  %s290, 32, %s293, %s280
        $region44: #{tpu_custom_call.1} parent=39 // pred_fallthru
          _
      $region40: #{tpu_custom_call.1} parent=5 // pred_fallthru
        _
      %p296 = scmp.le.s32.totalorder 1, %s21
      %p297 = scmp.lt.s32.totalorder %s21, 5
      %p298 = pnand %p296, %p297
      %p299 = pneg %p298
      // Predicated region
      $region45: #{tpu_custom_call.1} parent=5 // pred_check
        _
      $region46: #{tpu_custom_call.1} parent=5 // pred_check_branch
        %301 = sbr.rel (%p298) target = $region48
      $region47: #{tpu_custom_call.1} parent=5 // pred_region
        %s302 = ssub.s32 %s21, 1
        %s303 = sand.u32 %s48, 1
        %s304 = scalar_lea.sflag [#allocation4], %s303
        %s305 = sand.u32 %s48, 1
        %s306 = smul.addr %s305, 2
        %s307 = scalar_lea.vmem [#allocation3], %s306
        // Predicated region
        $region49: #{tpu_custom_call.1} parent=47 // pred_check
          %p308 = pneg %p61
        $region50: #{tpu_custom_call.1} parent=47 // pred_check_branch
          %310 = sbr.rel (%p308) target = $region52
        $region51: #{tpu_custom_call.1} parent=47 // pred_region
          %311 = dma.done %s304, 32
        $region52: #{tpu_custom_call.1} parent=47 // pred_fallthru
          _
        // Predicated region
        $region53: #{tpu_custom_call.1} parent=47 // pred_check
          %p312 = pneg %p124
        $region54: #{tpu_custom_call.1} parent=47 // pred_check_branch
          %314 = sbr.rel (%p312) target = $region56
        $region55: #{tpu_custom_call.1} parent=47 // pred_region
          %315 = dma.done [#allocation7], 65536
        $region56: #{tpu_custom_call.1} parent=47 // pred_fallthru
          _
        // Predicated region
        $region57: #{tpu_custom_call.1} parent=47 // pred_check
          %p316 = pneg %p145
        $region58: #{tpu_custom_call.1} parent=47 // pred_check_branch
          %318 = sbr.rel (%p316) target = $region60
        $region59: #{tpu_custom_call.1} parent=47 // pred_region
          %319 = dma.done [#allocation7], 32
        $region60: #{tpu_custom_call.1} parent=47 // pred_fallthru
          _
        // Predicated region
        $region61: #{tpu_custom_call.1} parent=47 // pred_check
          %p320 = pneg %p187
        $region62: #{tpu_custom_call.1} parent=47 // pred_check_branch
          %322 = sbr.rel (%p320) target = $region64
        $region63: #{tpu_custom_call.1} parent=47 // pred_region
          %323 = dma.done [#allocation10], 16
        $region64: #{tpu_custom_call.1} parent=47 // pred_fallthru
          _
        %s324 = sand.u32 %s48, 1
        %s325 = scalar_lea.sflag [#allocation4], %s324
        %s326 = sand.u32 %s48, 1
        %s327 = smul.addr %s326, 2
        %s328 = scalar_lea.vmem [#allocation3], %s327
        %p329 = pneg %p61
        %p330 = pneg %p58
        %p331 = pneg %p82
        %p332 = pneg %p79
        %p333 = pneg %p103
        %p334 = pneg %p100
        %p335 = pneg %p124
        %p336 = pneg %p121
        %p337 = pneg %p145
        %p338 = pneg %p142
        %p339 = pneg %p166
        %p340 = pneg %p163
        %p341 = pneg %p187
        %p342 = pneg %p184
        %p343 = pneg %p213
        %p344 = pneg %p210
        %s345 = sand.u32 %s200, 1
        %s346 = scalar_lea.sflag [#allocation5], %s345
        %s347 = sand.u32 %s200, 1
        %s348 = scalar_lea.vmem [#allocation11], %s347
        %p350 = scmp.eq.s32.totalorder %s31, 0
        // Predicated region
        $region65: #{tpu_custom_call.1} parent=47 // pred_check
          %p351 = pneg %p350
        $region66: #{tpu_custom_call.1} parent=47 // pred_check_branch
          %353 = sbr.rel (%p351) target = $region68
        $region67: #{tpu_custom_call.1} parent=47 // pred_region
          %354 = vst [vmem:[#allocation2] sm:$0xff] 0.0
          %355 = vst [vmem:[#allocation2 + $0x8] sm:$0xff] 0.0
          %356 = vst [vmem:[#allocation2 + $0x10] sm:$0xff] 0.0
          %357 = vst [vmem:[#allocation2 + $0x18] sm:$0xff] 0.0
          %358 = vst [vmem:[#allocation2 + $0x20] sm:$0xff] 0.0
          %359 = vst [vmem:[#allocation2 + $0x28] sm:$0xff] 0.0
          %360 = vst [vmem:[#allocation2 + $0x30] sm:$0xff] 0.0
          %361 = vst [vmem:[#allocation2 + $0x38] sm:$0xff] 0.0
          %362 = vst [vmem:[#allocation2 + $0x40] sm:$0xff] 0.0
          %363 = vst [vmem:[#allocation2 + $0x48] sm:$0xff] 0.0
          %364 = vst [vmem:[#allocation2 + $0x50] sm:$0xff] 0.0
          %365 = vst [vmem:[#allocation2 + $0x58] sm:$0xff] 0.0
          %366 = vst [vmem:[#allocation2 + $0x60] sm:$0xff] 0.0
          %367 = vst [vmem:[#allocation2 + $0x68] sm:$0xff] 0.0
          %368 = vst [vmem:[#allocation2 + $0x70] sm:$0xff] 0.0
          %369 = vst [vmem:[#allocation2 + $0x78] sm:$0xff] 0.0
          %370 = vst [vmem:[#allocation2 + $0x80] sm:$0xff] 0.0
          %371 = vst [vmem:[#allocation2 + $0x88] sm:$0xff] 0.0
          %372 = vst [vmem:[#allocation2 + $0x90] sm:$0xff] 0.0
          %373 = vst [vmem:[#allocation2 + $0x98] sm:$0xff] 0.0
          %374 = vst [vmem:[#allocation2 + $0xa0] sm:$0xff] 0.0
          %375 = vst [vmem:[#allocation2 + $0xa8] sm:$0xff] 0.0
          %376 = vst [vmem:[#allocation2 + $0xb0] sm:$0xff] 0.0
          %377 = vst [vmem:[#allocation2 + $0xb8] sm:$0xff] 0.0
          %378 = vst [vmem:[#allocation2 + $0xc0] sm:$0xff] 0.0
          %379 = vst [vmem:[#allocation2 + $0xc8] sm:$0xff] 0.0
          %380 = vst [vmem:[#allocation2 + $0xd0] sm:$0xff] 0.0
          %381 = vst [vmem:[#allocation2 + $0xd8] sm:$0xff] 0.0
          %382 = vst [vmem:[#allocation2 + $0xe0] sm:$0xff] 0.0
          %383 = vst [vmem:[#allocation2 + $0xe8] sm:$0xff] 0.0
          %384 = vst [vmem:[#allocation2 + $0xf0] sm:$0xff] 0.0
          %385 = vst [vmem:[#allocation2 + $0xf8] sm:$0xff] 0.0
          %386 = vst [vmem:[#allocation2 + $0x100] sm:$0xff] 0.0
          %387 = vst [vmem:[#allocation2 + $0x108] sm:$0xff] 0.0
          %388 = vst [vmem:[#allocation2 + $0x110] sm:$0xff] 0.0
          %389 = vst [vmem:[#allocation2 + $0x118] sm:$0xff] 0.0
          %390 = vst [vmem:[#allocation2 + $0x120] sm:$0xff] 0.0
          %391 = vst [vmem:[#allocation2 + $0x128] sm:$0xff] 0.0
          %392 = vst [vmem:[#allocation2 + $0x130] sm:$0xff] 0.0
          %393 = vst [vmem:[#allocation2 + $0x138] sm:$0xff] 0.0
          %394 = vst [vmem:[#allocation2 + $0x140] sm:$0xff] 0.0
          %395 = vst [vmem:[#allocation2 + $0x148] sm:$0xff] 0.0
          %396 = vst [vmem:[#allocation2 + $0x150] sm:$0xff] 0.0
          %397 = vst [vmem:[#allocation2 + $0x158] sm:$0xff] 0.0
          %398 = vst [vmem:[#allocation2 + $0x160] sm:$0xff] 0.0
          %399 = vst [vmem:[#allocation2 + $0x168] sm:$0xff] 0.0
          %400 = vst [vmem:[#allocation2 + $0x170] sm:$0xff] 0.0
          %401 = vst [vmem:[#allocation2 + $0x178] sm:$0xff] 0.0
          %402 = vst [vmem:[#allocation2 + $0x180] sm:$0xff] 0.0
          %403 = vst [vmem:[#allocation2 + $0x188] sm:$0xff] 0.0
          %404 = vst [vmem:[#allocation2 + $0x190] sm:$0xff] 0.0
          %405 = vst [vmem:[#allocation2 + $0x198] sm:$0xff] 0.0
          %406 = vst [vmem:[#allocation2 + $0x1a0] sm:$0xff] 0.0
          %407 = vst [vmem:[#allocation2 + $0x1a8] sm:$0xff] 0.0
          %408 = vst [vmem:[#allocation2 + $0x1b0] sm:$0xff] 0.0
          %409 = vst [vmem:[#allocation2 + $0x1b8] sm:$0xff] 0.0
          %410 = vst [vmem:[#allocation2 + $0x1c0] sm:$0xff] 0.0
          %411 = vst [vmem:[#allocation2 + $0x1c8] sm:$0xff] 0.0
          %412 = vst [vmem:[#allocation2 + $0x1d0] sm:$0xff] 0.0
          %413 = vst [vmem:[#allocation2 + $0x1d8] sm:$0xff] 0.0
          %414 = vst [vmem:[#allocation2 + $0x1e0] sm:$0xff] 0.0
          %415 = vst [vmem:[#allocation2 + $0x1e8] sm:$0xff] 0.0
          %416 = vst [vmem:[#allocation2 + $0x1f0] sm:$0xff] 0.0
          %417 = vst [vmem:[#allocation2 + $0x1f8] sm:$0xff] 0.0
          %418 = vst [vmem:[#allocation2 + $0x200] sm:$0xff] 0.0
          %419 = vst [vmem:[#allocation2 + $0x208] sm:$0xff] 0.0
          %420 = vst [vmem:[#allocation2 + $0x210] sm:$0xff] 0.0
          %421 = vst [vmem:[#allocation2 + $0x218] sm:$0xff] 0.0
          %422 = vst [vmem:[#allocation2 + $0x220] sm:$0xff] 0.0
          %423 = vst [vmem:[#allocation2 + $0x228] sm:$0xff] 0.0
          %424 = vst [vmem:[#allocation2 + $0x230] sm:$0xff] 0.0
          %425 = vst [vmem:[#allocation2 + $0x238] sm:$0xff] 0.0
          %426 = vst [vmem:[#allocation2 + $0x240] sm:$0xff] 0.0
          %427 = vst [vmem:[#allocation2 + $0x248] sm:$0xff] 0.0
          %428 = vst [vmem:[#allocation2 + $0x250] sm:$0xff] 0.0
          %429 = vst [vmem:[#allocation2 + $0x258] sm:$0xff] 0.0
          %430 = vst [vmem:[#allocation2 + $0x260] sm:$0xff] 0.0
          %431 = vst [vmem:[#allocation2 + $0x268] sm:$0xff] 0.0
          %432 = vst [vmem:[#allocation2 + $0x270] sm:$0xff] 0.0
          %433 = vst [vmem:[#allocation2 + $0x278] sm:$0xff] 0.0
          %434 = vst [vmem:[#allocation2 + $0x280] sm:$0xff] 0.0
          %435 = vst [vmem:[#allocation2 + $0x288] sm:$0xff] 0.0
          %436 = vst [vmem:[#allocation2 + $0x290] sm:$0xff] 0.0
          %437 = vst [vmem:[#allocation2 + $0x298] sm:$0xff] 0.0
          %438 = vst [vmem:[#allocation2 + $0x2a0] sm:$0xff] 0.0
          %439 = vst [vmem:[#allocation2 + $0x2a8] sm:$0xff] 0.0
          %440 = vst [vmem:[#allocation2 + $0x2b0] sm:$0xff] 0.0
          %441 = vst [vmem:[#allocation2 + $0x2b8] sm:$0xff] 0.0
          %442 = vst [vmem:[#allocation2 + $0x2c0] sm:$0xff] 0.0
          %443 = vst [vmem:[#allocation2 + $0x2c8] sm:$0xff] 0.0
          %444 = vst [vmem:[#allocation2 + $0x2d0] sm:$0xff] 0.0
          %445 = vst [vmem:[#allocation2 + $0x2d8] sm:$0xff] 0.0
          %446 = vst [vmem:[#allocation2 + $0x2e0] sm:$0xff] 0.0
          %447 = vst [vmem:[#allocation2 + $0x2e8] sm:$0xff] 0.0
          %448 = vst [vmem:[#allocation2 + $0x2f0] sm:$0xff] 0.0
          %449 = vst [vmem:[#allocation2 + $0x2f8] sm:$0xff] 0.0
          %450 = vst [vmem:[#allocation2 + $0x300] sm:$0xff] 0.0
          %451 = vst [vmem:[#allocation2 + $0x308] sm:$0xff] 0.0
          %452 = vst [vmem:[#allocation2 + $0x310] sm:$0xff] 0.0
          %453 = vst [vmem:[#allocation2 + $0x318] sm:$0xff] 0.0
          %454 = vst [vmem:[#allocation2 + $0x320] sm:$0xff] 0.0
          %455 = vst [vmem:[#allocation2 + $0x328] sm:$0xff] 0.0
          %456 = vst [vmem:[#allocation2 + $0x330] sm:$0xff] 0.0
          %457 = vst [vmem:[#allocation2 + $0x338] sm:$0xff] 0.0
          %458 = vst [vmem:[#allocation2 + $0x340] sm:$0xff] 0.0
          %459 = vst [vmem:[#allocation2 + $0x348] sm:$0xff] 0.0
          %460 = vst [vmem:[#allocation2 + $0x350] sm:$0xff] 0.0
          %461 = vst [vmem:[#allocation2 + $0x358] sm:$0xff] 0.0
          %462 = vst [vmem:[#allocation2 + $0x360] sm:$0xff] 0.0
          %463 = vst [vmem:[#allocation2 + $0x368] sm:$0xff] 0.0
          %464 = vst [vmem:[#allocation2 + $0x370] sm:$0xff] 0.0
          %465 = vst [vmem:[#allocation2 + $0x378] sm:$0xff] 0.0
          %466 = vst [vmem:[#allocation2 + $0x380] sm:$0xff] 0.0
          %467 = vst [vmem:[#allocation2 + $0x388] sm:$0xff] 0.0
          %468 = vst [vmem:[#allocation2 + $0x390] sm:$0xff] 0.0
          %469 = vst [vmem:[#allocation2 + $0x398] sm:$0xff] 0.0
          %470 = vst [vmem:[#allocation2 + $0x3a0] sm:$0xff] 0.0
          %471 = vst [vmem:[#allocation2 + $0x3a8] sm:$0xff] 0.0
          %472 = vst [vmem:[#allocation2 + $0x3b0] sm:$0xff] 0.0
          %473 = vst [vmem:[#allocation2 + $0x3b8] sm:$0xff] 0.0
          %474 = vst [vmem:[#allocation2 + $0x3c0] sm:$0xff] 0.0
          %475 = vst [vmem:[#allocation2 + $0x3c8] sm:$0xff] 0.0
          %476 = vst [vmem:[#allocation2 + $0x3d0] sm:$0xff] 0.0
          %477 = vst [vmem:[#allocation2 + $0x3d8] sm:$0xff] 0.0
          %478 = vst [vmem:[#allocation2 + $0x3e0] sm:$0xff] 0.0
          %479 = vst [vmem:[#allocation2 + $0x3e8] sm:$0xff] 0.0
          %480 = vst [vmem:[#allocation2 + $0x3f0] sm:$0xff] 0.0
          %481 = vst [vmem:[#allocation2 + $0x3f8] sm:$0xff] 0.0
          %482 = vst [vmem:[#allocation2 + $0x400] sm:$0xff] 0.0
          %483 = vst [vmem:[#allocation2 + $0x408] sm:$0xff] 0.0
          %484 = vst [vmem:[#allocation2 + $0x410] sm:$0xff] 0.0
          %485 = vst [vmem:[#allocation2 + $0x418] sm:$0xff] 0.0
          %486 = vst [vmem:[#allocation2 + $0x420] sm:$0xff] 0.0
          %487 = vst [vmem:[#allocation2 + $0x428] sm:$0xff] 0.0
          %488 = vst [vmem:[#allocation2 + $0x430] sm:$0xff] 0.0
          %489 = vst [vmem:[#allocation2 + $0x438] sm:$0xff] 0.0
          %490 = vst [vmem:[#allocation2 + $0x440] sm:$0xff] 0.0
          %491 = vst [vmem:[#allocation2 + $0x448] sm:$0xff] 0.0
          %492 = vst [vmem:[#allocation2 + $0x450] sm:$0xff] 0.0
          %493 = vst [vmem:[#allocation2 + $0x458] sm:$0xff] 0.0
          %494 = vst [vmem:[#allocation2 + $0x460] sm:$0xff] 0.0
          %495 = vst [vmem:[#allocation2 + $0x468] sm:$0xff] 0.0
          %496 = vst [vmem:[#allocation2 + $0x470] sm:$0xff] 0.0
          %497 = vst [vmem:[#allocation2 + $0x478] sm:$0xff] 0.0
          %498 = vst [vmem:[#allocation2 + $0x480] sm:$0xff] 0.0
          %499 = vst [vmem:[#allocation2 + $0x488] sm:$0xff] 0.0
          %500 = vst [vmem:[#allocation2 + $0x490] sm:$0xff] 0.0
          %501 = vst [vmem:[#allocation2 + $0x498] sm:$0xff] 0.0
          %502 = vst [vmem:[#allocation2 + $0x4a0] sm:$0xff] 0.0
          %503 = vst [vmem:[#allocation2 + $0x4a8] sm:$0xff] 0.0
          %504 = vst [vmem:[#allocation2 + $0x4b0] sm:$0xff] 0.0
          %505 = vst [vmem:[#allocation2 + $0x4b8] sm:$0xff] 0.0
          %506 = vst [vmem:[#allocation2 + $0x4c0] sm:$0xff] 0.0
          %507 = vst [vmem:[#allocation2 + $0x4c8] sm:$0xff] 0.0
          %508 = vst [vmem:[#allocation2 + $0x4d0] sm:$0xff] 0.0
          %509 = vst [vmem:[#allocation2 + $0x4d8] sm:$0xff] 0.0
          %510 = vst [vmem:[#allocation2 + $0x4e0] sm:$0xff] 0.0
          %511 = vst [vmem:[#allocation2 + $0x4e8] sm:$0xff] 0.0
          %512 = vst [vmem:[#allocation2 + $0x4f0] sm:$0xff] 0.0
          %513 = vst [vmem:[#allocation2 + $0x4f8] sm:$0xff] 0.0
          %514 = vst [vmem:[#allocation2 + $0x500] sm:$0xff] 0.0
          %515 = vst [vmem:[#allocation2 + $0x508] sm:$0xff] 0.0
          %516 = vst [vmem:[#allocation2 + $0x510] sm:$0xff] 0.0
          %517 = vst [vmem:[#allocation2 + $0x518] sm:$0xff] 0.0
          %518 = vst [vmem:[#allocation2 + $0x520] sm:$0xff] 0.0
          %519 = vst [vmem:[#allocation2 + $0x528] sm:$0xff] 0.0
          %520 = vst [vmem:[#allocation2 + $0x530] sm:$0xff] 0.0
          %521 = vst [vmem:[#allocation2 + $0x538] sm:$0xff] 0.0
          %522 = vst [vmem:[#allocation2 + $0x540] sm:$0xff] 0.0
          %523 = vst [vmem:[#allocation2 + $0x548] sm:$0xff] 0.0
          %524 = vst [vmem:[#allocation2 + $0x550] sm:$0xff] 0.0
          %525 = vst [vmem:[#allocation2 + $0x558] sm:$0xff] 0.0
          %526 = vst [vmem:[#allocation2 + $0x560] sm:$0xff] 0.0
          %527 = vst [vmem:[#allocation2 + $0x568] sm:$0xff] 0.0
          %528 = vst [vmem:[#allocation2 + $0x570] sm:$0xff] 0.0
          %529 = vst [vmem:[#allocation2 + $0x578] sm:$0xff] 0.0
          %530 = vst [vmem:[#allocation2 + $0x580] sm:$0xff] 0.0
          %531 = vst [vmem:[#allocation2 + $0x588] sm:$0xff] 0.0
          %532 = vst [vmem:[#allocation2 + $0x590] sm:$0xff] 0.0
          %533 = vst [vmem:[#allocation2 + $0x598] sm:$0xff] 0.0
          %534 = vst [vmem:[#allocation2 + $0x5a0] sm:$0xff] 0.0
          %535 = vst [vmem:[#allocation2 + $0x5a8] sm:$0xff] 0.0
          %536 = vst [vmem:[#allocation2 + $0x5b0] sm:$0xff] 0.0
          %537 = vst [vmem:[#allocation2 + $0x5b8] sm:$0xff] 0.0
          %538 = vst [vmem:[#allocation2 + $0x5c0] sm:$0xff] 0.0
          %539 = vst [vmem:[#allocation2 + $0x5c8] sm:$0xff] 0.0
          %540 = vst [vmem:[#allocation2 + $0x5d0] sm:$0xff] 0.0
          %541 = vst [vmem:[#allocation2 + $0x5d8] sm:$0xff] 0.0
          %542 = vst [vmem:[#allocation2 + $0x5e0] sm:$0xff] 0.0
          %543 = vst [vmem:[#allocation2 + $0x5e8] sm:$0xff] 0.0
          %544 = vst [vmem:[#allocation2 + $0x5f0] sm:$0xff] 0.0
          %545 = vst [vmem:[#allocation2 + $0x5f8] sm:$0xff] 0.0
          %546 = vst [vmem:[#allocation2 + $0x600] sm:$0xff] 0.0
          %547 = vst [vmem:[#allocation2 + $0x608] sm:$0xff] 0.0
          %548 = vst [vmem:[#allocation2 + $0x610] sm:$0xff] 0.0
          %549 = vst [vmem:[#allocation2 + $0x618] sm:$0xff] 0.0
          %550 = vst [vmem:[#allocation2 + $0x620] sm:$0xff] 0.0
          %551 = vst [vmem:[#allocation2 + $0x628] sm:$0xff] 0.0
          %552 = vst [vmem:[#allocation2 + $0x630] sm:$0xff] 0.0
          %553 = vst [vmem:[#allocation2 + $0x638] sm:$0xff] 0.0
          %554 = vst [vmem:[#allocation2 + $0x640] sm:$0xff] 0.0
          %555 = vst [vmem:[#allocation2 + $0x648] sm:$0xff] 0.0
          %556 = vst [vmem:[#allocation2 + $0x650] sm:$0xff] 0.0
          %557 = vst [vmem:[#allocation2 + $0x658] sm:$0xff] 0.0
          %558 = vst [vmem:[#allocation2 + $0x660] sm:$0xff] 0.0
          %559 = vst [vmem:[#allocation2 + $0x668] sm:$0xff] 0.0
          %560 = vst [vmem:[#allocation2 + $0x670] sm:$0xff] 0.0
          %561 = vst [vmem:[#allocation2 + $0x678] sm:$0xff] 0.0
          %562 = vst [vmem:[#allocation2 + $0x680] sm:$0xff] 0.0
          %563 = vst [vmem:[#allocation2 + $0x688] sm:$0xff] 0.0
          %564 = vst [vmem:[#allocation2 + $0x690] sm:$0xff] 0.0
          %565 = vst [vmem:[#allocation2 + $0x698] sm:$0xff] 0.0
          %566 = vst [vmem:[#allocation2 + $0x6a0] sm:$0xff] 0.0
          %567 = vst [vmem:[#allocation2 + $0x6a8] sm:$0xff] 0.0
          %568 = vst [vmem:[#allocation2 + $0x6b0] sm:$0xff] 0.0
          %569 = vst [vmem:[#allocation2 + $0x6b8] sm:$0xff] 0.0
          %570 = vst [vmem:[#allocation2 + $0x6c0] sm:$0xff] 0.0
          %571 = vst [vmem:[#allocation2 + $0x6c8] sm:$0xff] 0.0
          %572 = vst [vmem:[#allocation2 + $0x6d0] sm:$0xff] 0.0
          %573 = vst [vmem:[#allocation2 + $0x6d8] sm:$0xff] 0.0
          %574 = vst [vmem:[#allocation2 + $0x6e0] sm:$0xff] 0.0
          %575 = vst [vmem:[#allocation2 + $0x6e8] sm:$0xff] 0.0
          %576 = vst [vmem:[#allocation2 + $0x6f0] sm:$0xff] 0.0
          %577 = vst [vmem:[#allocation2 + $0x6f8] sm:$0xff] 0.0
          %578 = vst [vmem:[#allocation2 + $0x700] sm:$0xff] 0.0
          %579 = vst [vmem:[#allocation2 + $0x708] sm:$0xff] 0.0
          %580 = vst [vmem:[#allocation2 + $0x710] sm:$0xff] 0.0
          %581 = vst [vmem:[#allocation2 + $0x718] sm:$0xff] 0.0
          %582 = vst [vmem:[#allocation2 + $0x720] sm:$0xff] 0.0
          %583 = vst [vmem:[#allocation2 + $0x728] sm:$0xff] 0.0
          %584 = vst [vmem:[#allocation2 + $0x730] sm:$0xff] 0.0
          %585 = vst [vmem:[#allocation2 + $0x738] sm:$0xff] 0.0
          %586 = vst [vmem:[#allocation2 + $0x740] sm:$0xff] 0.0
          %587 = vst [vmem:[#allocation2 + $0x748] sm:$0xff] 0.0
          %588 = vst [vmem:[#allocation2 + $0x750] sm:$0xff] 0.0
          %589 = vst [vmem:[#allocation2 + $0x758] sm:$0xff] 0.0
          %590 = vst [vmem:[#allocation2 + $0x760] sm:$0xff] 0.0
          %591 = vst [vmem:[#allocation2 + $0x768] sm:$0xff] 0.0
          %592 = vst [vmem:[#allocation2 + $0x770] sm:$0xff] 0.0
          %593 = vst [vmem:[#allocation2 + $0x778] sm:$0xff] 0.0
          %594 = vst [vmem:[#allocation2 + $0x780] sm:$0xff] 0.0
          %595 = vst [vmem:[#allocation2 + $0x788] sm:$0xff] 0.0
          %596 = vst [vmem:[#allocation2 + $0x790] sm:$0xff] 0.0
          %597 = vst [vmem:[#allocation2 + $0x798] sm:$0xff] 0.0
          %598 = vst [vmem:[#allocation2 + $0x7a0] sm:$0xff] 0.0
          %599 = vst [vmem:[#allocation2 + $0x7a8] sm:$0xff] 0.0
          %600 = vst [vmem:[#allocation2 + $0x7b0] sm:$0xff] 0.0
          %601 = vst [vmem:[#allocation2 + $0x7b8] sm:$0xff] 0.0
          %602 = vst [vmem:[#allocation2 + $0x7c0] sm:$0xff] 0.0
          %603 = vst [vmem:[#allocation2 + $0x7c8] sm:$0xff] 0.0
          %604 = vst [vmem:[#allocation2 + $0x7d0] sm:$0xff] 0.0
          %605 = vst [vmem:[#allocation2 + $0x7d8] sm:$0xff] 0.0
          %606 = vst [vmem:[#allocation2 + $0x7e0] sm:$0xff] 0.0
          %607 = vst [vmem:[#allocation2 + $0x7e8] sm:$0xff] 0.0
          %608 = vst [vmem:[#allocation2 + $0x7f0] sm:$0xff] 0.0
          %609 = vst [vmem:[#allocation2 + $0x7f8] sm:$0xff] 0.0
        $region68: #{tpu_custom_call.1} parent=47 // pred_fallthru
          _
        %v610 = vld [vmem:[%s1] sm:$0xf]
        %v611 = vld [vmem:[%s1 + $0x4] sm:$0xf]
        %v612 = vld [vmem:[%s1 + $0x8] sm:$0xf]
        %v613 = vld [vmem:[%s1 + $0xc] sm:$0xf]
        %v614 = vld [vmem:[%s1 + $0x10] sm:$0xf]
        %v615 = vld [vmem:[%s1 + $0x14] sm:$0xf]
        %v616 = vld [vmem:[%s1 + $0x18] sm:$0xf]
        %v617 = vld [vmem:[%s1 + $0x1c] sm:$0xf]
        %v618 = vld [vmem:[%s1 + $0x20] sm:$0xf]
        %v619 = vld [vmem:[%s1 + $0x24] sm:$0xf]
        %v620 = vld [vmem:[%s1 + $0x28] sm:$0xf]
        %v621 = vld [vmem:[%s1 + $0x2c] sm:$0xf]
        %v622 = vld [vmem:[%s1 + $0x30] sm:$0xf]
        %v623 = vld [vmem:[%s1 + $0x34] sm:$0xf]
        %v624 = vld [vmem:[%s1 + $0x38] sm:$0xf]
        %v625 = vld [vmem:[%s1 + $0x3c] sm:$0xf]
        %v626 = vld [vmem:[%s1 + $0x40] sm:$0xf]
        %v627 = vld [vmem:[%s1 + $0x44] sm:$0xf]
        %v628 = vld [vmem:[%s1 + $0x48] sm:$0xf]
        %v629 = vld [vmem:[%s1 + $0x4c] sm:$0xf]
        %v630 = vld [vmem:[%s1 + $0x50] sm:$0xf]
        %v631 = vld [vmem:[%s1 + $0x54] sm:$0xf]
        %v632 = vld [vmem:[%s1 + $0x58] sm:$0xf]
        %v633 = vld [vmem:[%s1 + $0x5c] sm:$0xf]
        %v634 = vld [vmem:[%s1 + $0x60] sm:$0xf]
        %v635 = vld [vmem:[%s1 + $0x64] sm:$0xf]
        %v636 = vld [vmem:[%s1 + $0x68] sm:$0xf]
        %v637 = vld [vmem:[%s1 + $0x6c] sm:$0xf]
        %v638 = vld [vmem:[%s1 + $0x70] sm:$0xf]
        %v639 = vld [vmem:[%s1 + $0x74] sm:$0xf]
        %v640 = vld [vmem:[%s1 + $0x78] sm:$0xf]
        %v641 = vld [vmem:[%s1 + $0x7c] sm:$0xf]
        %v642 = vld [vmem:[%s1 + $0x80] sm:$0xf]
        %v643 = vld [vmem:[%s1 + $0x84] sm:$0xf]
        %v644 = vld [vmem:[%s1 + $0x88] sm:$0xf]
        %v645 = vld [vmem:[%s1 + $0x8c] sm:$0xf]
        %v646 = vld [vmem:[%s1 + $0x90] sm:$0xf]
        %v647 = vld [vmem:[%s1 + $0x94] sm:$0xf]
        %v648 = vld [vmem:[%s1 + $0x98] sm:$0xf]
        %v649 = vld [vmem:[%s1 + $0x9c] sm:$0xf]
        %v650 = vld [vmem:[%s1 + $0xa0] sm:$0xf]
        %v651 = vld [vmem:[%s1 + $0xa4] sm:$0xf]
        %v652 = vld [vmem:[%s1 + $0xa8] sm:$0xf]
        %v653 = vld [vmem:[%s1 + $0xac] sm:$0xf]
        %v654 = vld [vmem:[%s1 + $0xb0] sm:$0xf]
        %v655 = vld [vmem:[%s1 + $0xb4] sm:$0xf]
        %v656 = vld [vmem:[%s1 + $0xb8] sm:$0xf]
        %v657 = vld [vmem:[%s1 + $0xbc] sm:$0xf]
        %v658 = vld [vmem:[%s1 + $0xc0] sm:$0xf]
        %v659 = vld [vmem:[%s1 + $0xc4] sm:$0xf]
        %v660 = vld [vmem:[%s1 + $0xc8] sm:$0xf]
        %v661 = vld [vmem:[%s1 + $0xcc] sm:$0xf]
        %v662 = vld [vmem:[%s1 + $0xd0] sm:$0xf]
        %v663 = vld [vmem:[%s1 + $0xd4] sm:$0xf]
        %v664 = vld [vmem:[%s1 + $0xd8] sm:$0xf]
        %v665 = vld [vmem:[%s1 + $0xdc] sm:$0xf]
        %v666 = vld [vmem:[%s1 + $0xe0] sm:$0xf]
        %v667 = vld [vmem:[%s1 + $0xe4] sm:$0xf]
        %v668 = vld [vmem:[%s1 + $0xe8] sm:$0xf]
        %v669 = vld [vmem:[%s1 + $0xec] sm:$0xf]
        %v670 = vld [vmem:[%s1 + $0xf0] sm:$0xf]
        %v671 = vld [vmem:[%s1 + $0xf4] sm:$0xf]
        %v672 = vld [vmem:[%s1 + $0xf8] sm:$0xf]
        %v673 = vld [vmem:[%s1 + $0xfc] sm:$0xf]
        %v674 = vld [vmem:[%s1 + $0x100] sm:$0xf]
        %v675 = vld [vmem:[%s1 + $0x104] sm:$0xf]
        %v676 = vld [vmem:[%s1 + $0x108] sm:$0xf]
        %v677 = vld [vmem:[%s1 + $0x10c] sm:$0xf]
        %v678 = vld [vmem:[%s1 + $0x110] sm:$0xf]
        %v679 = vld [vmem:[%s1 + $0x114] sm:$0xf]
        %v680 = vld [vmem:[%s1 + $0x118] sm:$0xf]
        %v681 = vld [vmem:[%s1 + $0x11c] sm:$0xf]
        %v682 = vld [vmem:[%s1 + $0x120] sm:$0xf]
        %v683 = vld [vmem:[%s1 + $0x124] sm:$0xf]
        %v684 = vld [vmem:[%s1 + $0x128] sm:$0xf]
        %v685 = vld [vmem:[%s1 + $0x12c] sm:$0xf]
        %v686 = vld [vmem:[%s1 + $0x130] sm:$0xf]
        %v687 = vld [vmem:[%s1 + $0x134] sm:$0xf]
        %v688 = vld [vmem:[%s1 + $0x138] sm:$0xf]
        %v689 = vld [vmem:[%s1 + $0x13c] sm:$0xf]
        %v690 = vld [vmem:[%s1 + $0x140] sm:$0xf]
        %v691 = vld [vmem:[%s1 + $0x144] sm:$0xf]
        %v692 = vld [vmem:[%s1 + $0x148] sm:$0xf]
        %v693 = vld [vmem:[%s1 + $0x14c] sm:$0xf]
        %v694 = vld [vmem:[%s1 + $0x150] sm:$0xf]
        %v695 = vld [vmem:[%s1 + $0x154] sm:$0xf]
        %v696 = vld [vmem:[%s1 + $0x158] sm:$0xf]
        %v697 = vld [vmem:[%s1 + $0x15c] sm:$0xf]
        %v698 = vld [vmem:[%s1 + $0x160] sm:$0xf]
        %v699 = vld [vmem:[%s1 + $0x164] sm:$0xf]
        %v700 = vld [vmem:[%s1 + $0x168] sm:$0xf]
        %v701 = vld [vmem:[%s1 + $0x16c] sm:$0xf]
        %v702 = vld [vmem:[%s1 + $0x170] sm:$0xf]
        %v703 = vld [vmem:[%s1 + $0x174] sm:$0xf]
        %v704 = vld [vmem:[%s1 + $0x178] sm:$0xf]
        %v705 = vld [vmem:[%s1 + $0x17c] sm:$0xf]
        %v706 = vld [vmem:[%s1 + $0x180] sm:$0xf]
        %v707 = vld [vmem:[%s1 + $0x184] sm:$0xf]
        %v708 = vld [vmem:[%s1 + $0x188] sm:$0xf]
        %v709 = vld [vmem:[%s1 + $0x18c] sm:$0xf]
        %v710 = vld [vmem:[%s1 + $0x190] sm:$0xf]
        %v711 = vld [vmem:[%s1 + $0x194] sm:$0xf]
        %v712 = vld [vmem:[%s1 + $0x198] sm:$0xf]
        %v713 = vld [vmem:[%s1 + $0x19c] sm:$0xf]
        %v714 = vld [vmem:[%s1 + $0x1a0] sm:$0xf]
        %v715 = vld [vmem:[%s1 + $0x1a4] sm:$0xf]
        %v716 = vld [vmem:[%s1 + $0x1a8] sm:$0xf]
        %v717 = vld [vmem:[%s1 + $0x1ac] sm:$0xf]
        %v718 = vld [vmem:[%s1 + $0x1b0] sm:$0xf]
        %v719 = vld [vmem:[%s1 + $0x1b4] sm:$0xf]
        %v720 = vld [vmem:[%s1 + $0x1b8] sm:$0xf]
        %v721 = vld [vmem:[%s1 + $0x1bc] sm:$0xf]
        %v722 = vld [vmem:[%s1 + $0x1c0] sm:$0xf]
        %v723 = vld [vmem:[%s1 + $0x1c4] sm:$0xf]
        %v724 = vld [vmem:[%s1 + $0x1c8] sm:$0xf]
        %v725 = vld [vmem:[%s1 + $0x1cc] sm:$0xf]
        %v726 = vld [vmem:[%s1 + $0x1d0] sm:$0xf]
        %v727 = vld [vmem:[%s1 + $0x1d4] sm:$0xf]
        %v728 = vld [vmem:[%s1 + $0x1d8] sm:$0xf]
        %v729 = vld [vmem:[%s1 + $0x1dc] sm:$0xf]
        %v730 = vld [vmem:[%s1 + $0x1e0] sm:$0xf]
        %v731 = vld [vmem:[%s1 + $0x1e4] sm:$0xf]
        %v732 = vld [vmem:[%s1 + $0x1e8] sm:$0xf]
        %v733 = vld [vmem:[%s1 + $0x1ec] sm:$0xf]
        %v734 = vld [vmem:[%s1 + $0x1f0] sm:$0xf]
        %v735 = vld [vmem:[%s1 + $0x1f4] sm:$0xf]
        %v736 = vld [vmem:[%s1 + $0x1f8] sm:$0xf]
        %v737 = vld [vmem:[%s1 + $0x1fc] sm:$0xf]
        %v738 = vld [vmem:[%s1 + $0x200] sm:$0xf]
        %v739 = vld [vmem:[%s1 + $0x204] sm:$0xf]
        %v740 = vld [vmem:[%s1 + $0x208] sm:$0xf]
        %v741 = vld [vmem:[%s1 + $0x20c] sm:$0xf]
        %v742 = vld [vmem:[%s1 + $0x210] sm:$0xf]
        %v743 = vld [vmem:[%s1 + $0x214] sm:$0xf]
        %v744 = vld [vmem:[%s1 + $0x218] sm:$0xf]
        %v745 = vld [vmem:[%s1 + $0x21c] sm:$0xf]
        %v746 = vld [vmem:[%s1 + $0x220] sm:$0xf]
        %v747 = vld [vmem:[%s1 + $0x224] sm:$0xf]
        %v748 = vld [vmem:[%s1 + $0x228] sm:$0xf]
        %v749 = vld [vmem:[%s1 + $0x22c] sm:$0xf]
        %v750 = vld [vmem:[%s1 + $0x230] sm:$0xf]
        %v751 = vld [vmem:[%s1 + $0x234] sm:$0xf]
        %v752 = vld [vmem:[%s1 + $0x238] sm:$0xf]
        %v753 = vld [vmem:[%s1 + $0x23c] sm:$0xf]
        %v754 = vld [vmem:[%s1 + $0x240] sm:$0xf]
        %v755 = vld [vmem:[%s1 + $0x244] sm:$0xf]
        %v756 = vld [vmem:[%s1 + $0x248] sm:$0xf]
        %v757 = vld [vmem:[%s1 + $0x24c] sm:$0xf]
        %v758 = vld [vmem:[%s1 + $0x250] sm:$0xf]
        %v759 = vld [vmem:[%s1 + $0x254] sm:$0xf]
        %v760 = vld [vmem:[%s1 + $0x258] sm:$0xf]
        %v761 = vld [vmem:[%s1 + $0x25c] sm:$0xf]
        %v762 = vld [vmem:[%s1 + $0x260] sm:$0xf]
        %v763 = vld [vmem:[%s1 + $0x264] sm:$0xf]
        %v764 = vld [vmem:[%s1 + $0x268] sm:$0xf]
        %v765 = vld [vmem:[%s1 + $0x26c] sm:$0xf]
        %v766 = vld [vmem:[%s1 + $0x270] sm:$0xf]
        %v767 = vld [vmem:[%s1 + $0x274] sm:$0xf]
        %v768 = vld [vmem:[%s1 + $0x278] sm:$0xf]
        %v769 = vld [vmem:[%s1 + $0x27c] sm:$0xf]
        %v770 = vld [vmem:[%s1 + $0x280] sm:$0xf]
        %v771 = vld [vmem:[%s1 + $0x284] sm:$0xf]
        %v772 = vld [vmem:[%s1 + $0x288] sm:$0xf]
        %v773 = vld [vmem:[%s1 + $0x28c] sm:$0xf]
        %v774 = vld [vmem:[%s1 + $0x290] sm:$0xf]
        %v775 = vld [vmem:[%s1 + $0x294] sm:$0xf]
        %v776 = vld [vmem:[%s1 + $0x298] sm:$0xf]
        %v777 = vld [vmem:[%s1 + $0x29c] sm:$0xf]
        %v778 = vld [vmem:[%s1 + $0x2a0] sm:$0xf]
        %v779 = vld [vmem:[%s1 + $0x2a4] sm:$0xf]
        %v780 = vld [vmem:[%s1 + $0x2a8] sm:$0xf]
        %v781 = vld [vmem:[%s1 + $0x2ac] sm:$0xf]
        %v782 = vld [vmem:[%s1 + $0x2b0] sm:$0xf]
        %v783 = vld [vmem:[%s1 + $0x2b4] sm:$0xf]
        %v784 = vld [vmem:[%s1 + $0x2b8] sm:$0xf]
        %v785 = vld [vmem:[%s1 + $0x2bc] sm:$0xf]
        %v786 = vld [vmem:[%s1 + $0x2c0] sm:$0xf]
        %v787 = vld [vmem:[%s1 + $0x2c4] sm:$0xf]
        %v788 = vld [vmem:[%s1 + $0x2c8] sm:$0xf]
        %v789 = vld [vmem:[%s1 + $0x2cc] sm:$0xf]
        %v790 = vld [vmem:[%s1 + $0x2d0] sm:$0xf]
        %v791 = vld [vmem:[%s1 + $0x2d4] sm:$0xf]
        %v792 = vld [vmem:[%s1 + $0x2d8] sm:$0xf]
        %v793 = vld [vmem:[%s1 + $0x2dc] sm:$0xf]
        %v794 = vld [vmem:[%s1 + $0x2e0] sm:$0xf]
        %v795 = vld [vmem:[%s1 + $0x2e4] sm:$0xf]
        %v796 = vld [vmem:[%s1 + $0x2e8] sm:$0xf]
        %v797 = vld [vmem:[%s1 + $0x2ec] sm:$0xf]
        %v798 = vld [vmem:[%s1 + $0x2f0] sm:$0xf]
        %v799 = vld [vmem:[%s1 + $0x2f4] sm:$0xf]
        %v800 = vld [vmem:[%s1 + $0x2f8] sm:$0xf]
        %v801 = vld [vmem:[%s1 + $0x2fc] sm:$0xf]
        %v802 = vld [vmem:[%s1 + $0x300] sm:$0xf]
        %v803 = vld [vmem:[%s1 + $0x304] sm:$0xf]
        %v804 = vld [vmem:[%s1 + $0x308] sm:$0xf]
        %v805 = vld [vmem:[%s1 + $0x30c] sm:$0xf]
        %v806 = vld [vmem:[%s1 + $0x310] sm:$0xf]
        %v807 = vld [vmem:[%s1 + $0x314] sm:$0xf]
        %v808 = vld [vmem:[%s1 + $0x318] sm:$0xf]
        %v809 = vld [vmem:[%s1 + $0x31c] sm:$0xf]
        %v810 = vld [vmem:[%s1 + $0x320] sm:$0xf]
        %v811 = vld [vmem:[%s1 + $0x324] sm:$0xf]
        %v812 = vld [vmem:[%s1 + $0x328] sm:$0xf]
        %v813 = vld [vmem:[%s1 + $0x32c] sm:$0xf]
        %v814 = vld [vmem:[%s1 + $0x330] sm:$0xf]
        %v815 = vld [vmem:[%s1 + $0x334] sm:$0xf]
        %v816 = vld [vmem:[%s1 + $0x338] sm:$0xf]
        %v817 = vld [vmem:[%s1 + $0x33c] sm:$0xf]
        %v818 = vld [vmem:[%s1 + $0x340] sm:$0xf]
        %v819 = vld [vmem:[%s1 + $0x344] sm:$0xf]
        %v820 = vld [vmem:[%s1 + $0x348] sm:$0xf]
        %v821 = vld [vmem:[%s1 + $0x34c] sm:$0xf]
        %v822 = vld [vmem:[%s1 + $0x350] sm:$0xf]
        %v823 = vld [vmem:[%s1 + $0x354] sm:$0xf]
        %v824 = vld [vmem:[%s1 + $0x358] sm:$0xf]
        %v825 = vld [vmem:[%s1 + $0x35c] sm:$0xf]
        %v826 = vld [vmem:[%s1 + $0x360] sm:$0xf]
        %v827 = vld [vmem:[%s1 + $0x364] sm:$0xf]
        %v828 = vld [vmem:[%s1 + $0x368] sm:$0xf]
        %v829 = vld [vmem:[%s1 + $0x36c] sm:$0xf]
        %v830 = vld [vmem:[%s1 + $0x370] sm:$0xf]
        %v831 = vld [vmem:[%s1 + $0x374] sm:$0xf]
        %v832 = vld [vmem:[%s1 + $0x378] sm:$0xf]
        %v833 = vld [vmem:[%s1 + $0x37c] sm:$0xf]
        %v834 = vld [vmem:[%s1 + $0x380] sm:$0xf]
        %v835 = vld [vmem:[%s1 + $0x384] sm:$0xf]
        %v836 = vld [vmem:[%s1 + $0x388] sm:$0xf]
        %v837 = vld [vmem:[%s1 + $0x38c] sm:$0xf]
        %v838 = vld [vmem:[%s1 + $0x390] sm:$0xf]
        %v839 = vld [vmem:[%s1 + $0x394] sm:$0xf]
        %v840 = vld [vmem:[%s1 + $0x398] sm:$0xf]
        %v841 = vld [vmem:[%s1 + $0x39c] sm:$0xf]
        %v842 = vld [vmem:[%s1 + $0x3a0] sm:$0xf]
        %v843 = vld [vmem:[%s1 + $0x3a4] sm:$0xf]
        %v844 = vld [vmem:[%s1 + $0x3a8] sm:$0xf]
        %v845 = vld [vmem:[%s1 + $0x3ac] sm:$0xf]
        %v846 = vld [vmem:[%s1 + $0x3b0] sm:$0xf]
        %v847 = vld [vmem:[%s1 + $0x3b4] sm:$0xf]
        %v848 = vld [vmem:[%s1 + $0x3b8] sm:$0xf]
        %v849 = vld [vmem:[%s1 + $0x3bc] sm:$0xf]
        %v850 = vld [vmem:[%s1 + $0x3c0] sm:$0xf]
        %v851 = vld [vmem:[%s1 + $0x3c4] sm:$0xf]
        %v852 = vld [vmem:[%s1 + $0x3c8] sm:$0xf]
        %v853 = vld [vmem:[%s1 + $0x3cc] sm:$0xf]
        %v854 = vld [vmem:[%s1 + $0x3d0] sm:$0xf]
        %v855 = vld [vmem:[%s1 + $0x3d4] sm:$0xf]
        %v856 = vld [vmem:[%s1 + $0x3d8] sm:$0xf]
        %v857 = vld [vmem:[%s1 + $0x3dc] sm:$0xf]
        %v858 = vld [vmem:[%s1 + $0x3e0] sm:$0xf]
        %v859 = vld [vmem:[%s1 + $0x3e4] sm:$0xf]
        %v860 = vld [vmem:[%s1 + $0x3e8] sm:$0xf]
        %v861 = vld [vmem:[%s1 + $0x3ec] sm:$0xf]
        %v862 = vld [vmem:[%s1 + $0x3f0] sm:$0xf]
        %v863 = vld [vmem:[%s1 + $0x3f4] sm:$0xf]
        %v864 = vld [vmem:[%s1 + $0x3f8] sm:$0xf]
        %v865 = vld [vmem:[%s1 + $0x3fc] sm:$0xf]
        %v866 = vld [vmem:[%s307] sm:$0x3]
        %v867 = vld [vmem:[%s2] sm:$0xff]
        %v868 = vld [vmem:[%s2 + $0x8] sm:$0xff]
        %v869 = vld [vmem:[%s2 + $0x10] sm:$0xff]
        %v870 = vld [vmem:[%s2 + $0x18] sm:$0xff]
        %v871 = vld [vmem:[%s2 + $0x20] sm:$0xff]
        %v872 = vld [vmem:[%s2 + $0x28] sm:$0xff]
        %v873 = vld [vmem:[%s2 + $0x30] sm:$0xff]
        %v874 = vld [vmem:[%s2 + $0x38] sm:$0xff]
        %v875 = vld [vmem:[%s2 + $0x40] sm:$0xff]
        %v876 = vld [vmem:[%s2 + $0x48] sm:$0xff]
        %v877 = vld [vmem:[%s2 + $0x50] sm:$0xff]
        %v878 = vld [vmem:[%s2 + $0x58] sm:$0xff]
        %v879 = vld [vmem:[%s2 + $0x60] sm:$0xff]
        %v880 = vld [vmem:[%s2 + $0x68] sm:$0xff]
        %v881 = vld [vmem:[%s2 + $0x70] sm:$0xff]
        %v882 = vld [vmem:[%s2 + $0x78] sm:$0xff]
        %v883 = vld [vmem:[%s2 + $0x80] sm:$0xff]
        %v884 = vld [vmem:[%s2 + $0x88] sm:$0xff]
        %v885 = vld [vmem:[%s2 + $0x90] sm:$0xff]
        %v886 = vld [vmem:[%s2 + $0x98] sm:$0xff]
        %v887 = vld [vmem:[%s2 + $0xa0] sm:$0xff]
        %v888 = vld [vmem:[%s2 + $0xa8] sm:$0xff]
        %v889 = vld [vmem:[%s2 + $0xb0] sm:$0xff]
        %v890 = vld [vmem:[%s2 + $0xb8] sm:$0xff]
        %v891 = vld [vmem:[%s2 + $0xc0] sm:$0xff]
        %v892 = vld [vmem:[%s2 + $0xc8] sm:$0xff]
        %v893 = vld [vmem:[%s2 + $0xd0] sm:$0xff]
        %v894 = vld [vmem:[%s2 + $0xd8] sm:$0xff]
        %v895 = vld [vmem:[%s2 + $0xe0] sm:$0xff]
        %v896 = vld [vmem:[%s2 + $0xe8] sm:$0xff]
        %v897 = vld [vmem:[%s2 + $0xf0] sm:$0xff]
        %v898 = vld [vmem:[%s2 + $0xf8] sm:$0xff]
        %v899 = vld [vmem:[%s2 + $0x100] sm:$0xff]
        %v900 = vld [vmem:[%s2 + $0x108] sm:$0xff]
        %v901 = vld [vmem:[%s2 + $0x110] sm:$0xff]
        %v902 = vld [vmem:[%s2 + $0x118] sm:$0xff]
        %v903 = vld [vmem:[%s2 + $0x120] sm:$0xff]
        %v904 = vld [vmem:[%s2 + $0x128] sm:$0xff]
        %v905 = vld [vmem:[%s2 + $0x130] sm:$0xff]
        %v906 = vld [vmem:[%s2 + $0x138] sm:$0xff]
        %v907 = vld [vmem:[%s2 + $0x140] sm:$0xff]
        %v908 = vld [vmem:[%s2 + $0x148] sm:$0xff]
        %v909 = vld [vmem:[%s2 + $0x150] sm:$0xff]
        %v910 = vld [vmem:[%s2 + $0x158] sm:$0xff]
        %v911 = vld [vmem:[%s2 + $0x160] sm:$0xff]
        %v912 = vld [vmem:[%s2 + $0x168] sm:$0xff]
        %v913 = vld [vmem:[%s2 + $0x170] sm:$0xff]
        %v914 = vld [vmem:[%s2 + $0x178] sm:$0xff]
        %v915 = vld [vmem:[%s2 + $0x180] sm:$0xff]
        %v916 = vld [vmem:[%s2 + $0x188] sm:$0xff]
        %v917 = vld [vmem:[%s2 + $0x190] sm:$0xff]
        %v918 = vld [vmem:[%s2 + $0x198] sm:$0xff]
        %v919 = vld [vmem:[%s2 + $0x1a0] sm:$0xff]
        %v920 = vld [vmem:[%s2 + $0x1a8] sm:$0xff]
        %v921 = vld [vmem:[%s2 + $0x1b0] sm:$0xff]
        %v922 = vld [vmem:[%s2 + $0x1b8] sm:$0xff]
        %v923 = vld [vmem:[%s2 + $0x1c0] sm:$0xff]
        %v924 = vld [vmem:[%s2 + $0x1c8] sm:$0xff]
        %v925 = vld [vmem:[%s2 + $0x1d0] sm:$0xff]
        %v926 = vld [vmem:[%s2 + $0x1d8] sm:$0xff]
        %v927 = vld [vmem:[%s2 + $0x1e0] sm:$0xff]
        %v928 = vld [vmem:[%s2 + $0x1e8] sm:$0xff]
        %v929 = vld [vmem:[%s2 + $0x1f0] sm:$0xff]
        %v930 = vld [vmem:[%s2 + $0x1f8] sm:$0xff]
        %v931 = vld [vmem:[%s2 + $0x200] sm:$0xff]
        %v932 = vld [vmem:[%s2 + $0x208] sm:$0xff]
        %v933 = vld [vmem:[%s2 + $0x210] sm:$0xff]
        %v934 = vld [vmem:[%s2 + $0x218] sm:$0xff]
        %v935 = vld [vmem:[%s2 + $0x220] sm:$0xff]
        %v936 = vld [vmem:[%s2 + $0x228] sm:$0xff]
        %v937 = vld [vmem:[%s2 + $0x230] sm:$0xff]
        %v938 = vld [vmem:[%s2 + $0x238] sm:$0xff]
        %v939 = vld [vmem:[%s2 + $0x240] sm:$0xff]
        %v940 = vld [vmem:[%s2 + $0x248] sm:$0xff]
        %v941 = vld [vmem:[%s2 + $0x250] sm:$0xff]
        %v942 = vld [vmem:[%s2 + $0x258] sm:$0xff]
        %v943 = vld [vmem:[%s2 + $0x260] sm:$0xff]
        %v944 = vld [vmem:[%s2 + $0x268] sm:$0xff]
        %v945 = vld [vmem:[%s2 + $0x270] sm:$0xff]
        %v946 = vld [vmem:[%s2 + $0x278] sm:$0xff]
        %v947 = vld [vmem:[%s2 + $0x280] sm:$0xff]
        %v948 = vld [vmem:[%s2 + $0x288] sm:$0xff]
        %v949 = vld [vmem:[%s2 + $0x290] sm:$0xff]
        %v950 = vld [vmem:[%s2 + $0x298] sm:$0xff]
        %v951 = vld [vmem:[%s2 + $0x2a0] sm:$0xff]
        %v952 = vld [vmem:[%s2 + $0x2a8] sm:$0xff]
        %v953 = vld [vmem:[%s2 + $0x2b0] sm:$0xff]
        %v954 = vld [vmem:[%s2 + $0x2b8] sm:$0xff]
        %v955 = vld [vmem:[%s2 + $0x2c0] sm:$0xff]
        %v956 = vld [vmem:[%s2 + $0x2c8] sm:$0xff]
        %v957 = vld [vmem:[%s2 + $0x2d0] sm:$0xff]
        %v958 = vld [vmem:[%s2 + $0x2d8] sm:$0xff]
        %v959 = vld [vmem:[%s2 + $0x2e0] sm:$0xff]
        %v960 = vld [vmem:[%s2 + $0x2e8] sm:$0xff]
        %v961 = vld [vmem:[%s2 + $0x2f0] sm:$0xff]
        %v962 = vld [vmem:[%s2 + $0x2f8] sm:$0xff]
        %v963 = vld [vmem:[%s2 + $0x300] sm:$0xff]
        %v964 = vld [vmem:[%s2 + $0x308] sm:$0xff]
        %v965 = vld [vmem:[%s2 + $0x310] sm:$0xff]
        %v966 = vld [vmem:[%s2 + $0x318] sm:$0xff]
        %v967 = vld [vmem:[%s2 + $0x320] sm:$0xff]
        %v968 = vld [vmem:[%s2 + $0x328] sm:$0xff]
        %v969 = vld [vmem:[%s2 + $0x330] sm:$0xff]
        %v970 = vld [vmem:[%s2 + $0x338] sm:$0xff]
        %v971 = vld [vmem:[%s2 + $0x340] sm:$0xff]
        %v972 = vld [vmem:[%s2 + $0x348] sm:$0xff]
        %v973 = vld [vmem:[%s2 + $0x350] sm:$0xff]
        %v974 = vld [vmem:[%s2 + $0x358] sm:$0xff]
        %v975 = vld [vmem:[%s2 + $0x360] sm:$0xff]
        %v976 = vld [vmem:[%s2 + $0x368] sm:$0xff]
        %v977 = vld [vmem:[%s2 + $0x370] sm:$0xff]
        %v978 = vld [vmem:[%s2 + $0x378] sm:$0xff]
        %v979 = vld [vmem:[%s2 + $0x380] sm:$0xff]
        %v980 = vld [vmem:[%s2 + $0x388] sm:$0xff]
        %v981 = vld [vmem:[%s2 + $0x390] sm:$0xff]
        %v982 = vld [vmem:[%s2 + $0x398] sm:$0xff]
        %v983 = vld [vmem:[%s2 + $0x3a0] sm:$0xff]
        %v984 = vld [vmem:[%s2 + $0x3a8] sm:$0xff]
        %v985 = vld [vmem:[%s2 + $0x3b0] sm:$0xff]
        %v986 = vld [vmem:[%s2 + $0x3b8] sm:$0xff]
        %v987 = vld [vmem:[%s2 + $0x3c0] sm:$0xff]
        %v988 = vld [vmem:[%s2 + $0x3c8] sm:$0xff]
        %v989 = vld [vmem:[%s2 + $0x3d0] sm:$0xff]
        %v990 = vld [vmem:[%s2 + $0x3d8] sm:$0xff]
        %v991 = vld [vmem:[%s2 + $0x3e0] sm:$0xff]
        %v992 = vld [vmem:[%s2 + $0x3e8] sm:$0xff]
        %v993 = vld [vmem:[%s2 + $0x3f0] sm:$0xff]
        %v994 = vld [vmem:[%s2 + $0x3f8] sm:$0xff]
        %v995 = vld [vmem:[%s2 + $0x400] sm:$0xff]
        %v996 = vld [vmem:[%s2 + $0x408] sm:$0xff]
        %v997 = vld [vmem:[%s2 + $0x410] sm:$0xff]
        %v998 = vld [vmem:[%s2 + $0x418] sm:$0xff]
        %v999 = vld [vmem:[%s2 + $0x420] sm:$0xff]
        %v1000 = vld [vmem:[%s2 + $0x428] sm:$0xff]
        %v1001 = vld [vmem:[%s2 + $0x430] sm:$0xff]
        %v1002 = vld [vmem:[%s2 + $0x438] sm:$0xff]
        %v1003 = vld [vmem:[%s2 + $0x440] sm:$0xff]
        %v1004 = vld [vmem:[%s2 + $0x448] sm:$0xff]
        %v1005 = vld [vmem:[%s2 + $0x450] sm:$0xff]
        %v1006 = vld [vmem:[%s2 + $0x458] sm:$0xff]
        %v1007 = vld [vmem:[%s2 + $0x460] sm:$0xff]
        %v1008 = vld [vmem:[%s2 + $0x468] sm:$0xff]
        %v1009 = vld [vmem:[%s2 + $0x470] sm:$0xff]
        %v1010 = vld [vmem:[%s2 + $0x478] sm:$0xff]
        %v1011 = vld [vmem:[%s2 + $0x480] sm:$0xff]
        %v1012 = vld [vmem:[%s2 + $0x488] sm:$0xff]
        %v1013 = vld [vmem:[%s2 + $0x490] sm:$0xff]
        %v1014 = vld [vmem:[%s2 + $0x498] sm:$0xff]
        %v1015 = vld [vmem:[%s2 + $0x4a0] sm:$0xff]
        %v1016 = vld [vmem:[%s2 + $0x4a8] sm:$0xff]
        %v1017 = vld [vmem:[%s2 + $0x4b0] sm:$0xff]
        %v1018 = vld [vmem:[%s2 + $0x4b8] sm:$0xff]
        %v1019 = vld [vmem:[%s2 + $0x4c0] sm:$0xff]
        %v1020 = vld [vmem:[%s2 + $0x4c8] sm:$0xff]
        %v1021 = vld [vmem:[%s2 + $0x4d0] sm:$0xff]
        %v1022 = vld [vmem:[%s2 + $0x4d8] sm:$0xff]
        %v1023 = vld [vmem:[%s2 + $0x4e0] sm:$0xff]
        %v1024 = vld [vmem:[%s2 + $0x4e8] sm:$0xff]
        %v1025 = vld [vmem:[%s2 + $0x4f0] sm:$0xff]
        %v1026 = vld [vmem:[%s2 + $0x4f8] sm:$0xff]
        %v1027 = vld [vmem:[%s2 + $0x500] sm:$0xff]
        %v1028 = vld [vmem:[%s2 + $0x508] sm:$0xff]
        %v1029 = vld [vmem:[%s2 + $0x510] sm:$0xff]
        %v1030 = vld [vmem:[%s2 + $0x518] sm:$0xff]
        %v1031 = vld [vmem:[%s2 + $0x520] sm:$0xff]
        %v1032 = vld [vmem:[%s2 + $0x528] sm:$0xff]
        %v1033 = vld [vmem:[%s2 + $0x530] sm:$0xff]
        %v1034 = vld [vmem:[%s2 + $0x538] sm:$0xff]
        %v1035 = vld [vmem:[%s2 + $0x540] sm:$0xff]
        %v1036 = vld [vmem:[%s2 + $0x548] sm:$0xff]
        %v1037 = vld [vmem:[%s2 + $0x550] sm:$0xff]
        %v1038 = vld [vmem:[%s2 + $0x558] sm:$0xff]
        %v1039 = vld [vmem:[%s2 + $0x560] sm:$0xff]
        %v1040 = vld [vmem:[%s2 + $0x568] sm:$0xff]
        %v1041 = vld [vmem:[%s2 + $0x570] sm:$0xff]
        %v1042 = vld [vmem:[%s2 + $0x578] sm:$0xff]
        %v1043 = vld [vmem:[%s2 + $0x580] sm:$0xff]
        %v1044 = vld [vmem:[%s2 + $0x588] sm:$0xff]
        %v1045 = vld [vmem:[%s2 + $0x590] sm:$0xff]
        %v1046 = vld [vmem:[%s2 + $0x598] sm:$0xff]
        %v1047 = vld [vmem:[%s2 + $0x5a0] sm:$0xff]
        %v1048 = vld [vmem:[%s2 + $0x5a8] sm:$0xff]
        %v1049 = vld [vmem:[%s2 + $0x5b0] sm:$0xff]
        %v1050 = vld [vmem:[%s2 + $0x5b8] sm:$0xff]
        %v1051 = vld [vmem:[%s2 + $0x5c0] sm:$0xff]
        %v1052 = vld [vmem:[%s2 + $0x5c8] sm:$0xff]
        %v1053 = vld [vmem:[%s2 + $0x5d0] sm:$0xff]
        %v1054 = vld [vmem:[%s2 + $0x5d8] sm:$0xff]
        %v1055 = vld [vmem:[%s2 + $0x5e0] sm:$0xff]
        %v1056 = vld [vmem:[%s2 + $0x5e8] sm:$0xff]
        %v1057 = vld [vmem:[%s2 + $0x5f0] sm:$0xff]
        %v1058 = vld [vmem:[%s2 + $0x5f8] sm:$0xff]
        %v1059 = vld [vmem:[%s2 + $0x600] sm:$0xff]
        %v1060 = vld [vmem:[%s2 + $0x608] sm:$0xff]
        %v1061 = vld [vmem:[%s2 + $0x610] sm:$0xff]
        %v1062 = vld [vmem:[%s2 + $0x618] sm:$0xff]
        %v1063 = vld [vmem:[%s2 + $0x620] sm:$0xff]
        %v1064 = vld [vmem:[%s2 + $0x628] sm:$0xff]
        %v1065 = vld [vmem:[%s2 + $0x630] sm:$0xff]
        %v1066 = vld [vmem:[%s2 + $0x638] sm:$0xff]
        %v1067 = vld [vmem:[%s2 + $0x640] sm:$0xff]
        %v1068 = vld [vmem:[%s2 + $0x648] sm:$0xff]
        %v1069 = vld [vmem:[%s2 + $0x650] sm:$0xff]
        %v1070 = vld [vmem:[%s2 + $0x658] sm:$0xff]
        %v1071 = vld [vmem:[%s2 + $0x660] sm:$0xff]
        %v1072 = vld [vmem:[%s2 + $0x668] sm:$0xff]
        %v1073 = vld [vmem:[%s2 + $0x670] sm:$0xff]
        %v1074 = vld [vmem:[%s2 + $0x678] sm:$0xff]
        %v1075 = vld [vmem:[%s2 + $0x680] sm:$0xff]
        %v1076 = vld [vmem:[%s2 + $0x688] sm:$0xff]
        %v1077 = vld [vmem:[%s2 + $0x690] sm:$0xff]
        %v1078 = vld [vmem:[%s2 + $0x698] sm:$0xff]
        %v1079 = vld [vmem:[%s2 + $0x6a0] sm:$0xff]
        %v1080 = vld [vmem:[%s2 + $0x6a8] sm:$0xff]
        %v1081 = vld [vmem:[%s2 + $0x6b0] sm:$0xff]
        %v1082 = vld [vmem:[%s2 + $0x6b8] sm:$0xff]
        %v1083 = vld [vmem:[%s2 + $0x6c0] sm:$0xff]
        %v1084 = vld [vmem:[%s2 + $0x6c8] sm:$0xff]
        %v1085 = vld [vmem:[%s2 + $0x6d0] sm:$0xff]
        %v1086 = vld [vmem:[%s2 + $0x6d8] sm:$0xff]
        %v1087 = vld [vmem:[%s2 + $0x6e0] sm:$0xff]
        %v1088 = vld [vmem:[%s2 + $0x6e8] sm:$0xff]
        %v1089 = vld [vmem:[%s2 + $0x6f0] sm:$0xff]
        %v1090 = vld [vmem:[%s2 + $0x6f8] sm:$0xff]
        %v1091 = vld [vmem:[%s2 + $0x700] sm:$0xff]
        %v1092 = vld [vmem:[%s2 + $0x708] sm:$0xff]
        %v1093 = vld [vmem:[%s2 + $0x710] sm:$0xff]
        %v1094 = vld [vmem:[%s2 + $0x718] sm:$0xff]
        %v1095 = vld [vmem:[%s2 + $0x720] sm:$0xff]
        %v1096 = vld [vmem:[%s2 + $0x728] sm:$0xff]
        %v1097 = vld [vmem:[%s2 + $0x730] sm:$0xff]
        %v1098 = vld [vmem:[%s2 + $0x738] sm:$0xff]
        %v1099 = vld [vmem:[%s2 + $0x740] sm:$0xff]
        %v1100 = vld [vmem:[%s2 + $0x748] sm:$0xff]
        %v1101 = vld [vmem:[%s2 + $0x750] sm:$0xff]
        %v1102 = vld [vmem:[%s2 + $0x758] sm:$0xff]
        %v1103 = vld [vmem:[%s2 + $0x760] sm:$0xff]
        %v1104 = vld [vmem:[%s2 + $0x768] sm:$0xff]
        %v1105 = vld [vmem:[%s2 + $0x770] sm:$0xff]
        %v1106 = vld [vmem:[%s2 + $0x778] sm:$0xff]
        %v1107 = vld [vmem:[%s2 + $0x780] sm:$0xff]
        %v1108 = vld [vmem:[%s2 + $0x788] sm:$0xff]
        %v1109 = vld [vmem:[%s2 + $0x790] sm:$0xff]
        %v1110 = vld [vmem:[%s2 + $0x798] sm:$0xff]
        %v1111 = vld [vmem:[%s2 + $0x7a0] sm:$0xff]
        %v1112 = vld [vmem:[%s2 + $0x7a8] sm:$0xff]
        %v1113 = vld [vmem:[%s2 + $0x7b0] sm:$0xff]
        %v1114 = vld [vmem:[%s2 + $0x7b8] sm:$0xff]
        %v1115 = vld [vmem:[%s2 + $0x7c0] sm:$0xff]
        %v1116 = vld [vmem:[%s2 + $0x7c8] sm:$0xff]
        %v1117 = vld [vmem:[%s2 + $0x7d0] sm:$0xff]
        %v1118 = vld [vmem:[%s2 + $0x7d8] sm:$0xff]
        %v1119 = vld [vmem:[%s2 + $0x7e0] sm:$0xff]
        %v1120 = vld [vmem:[%s2 + $0x7e8] sm:$0xff]
        %v1121 = vld [vmem:[%s2 + $0x7f0] sm:$0xff]
        %v1122 = vld [vmem:[%s2 + $0x7f8] sm:$0xff]
        %1124 = vset.pattern.permute.xlu0 0
        %1125 = vperm.xlu0 %1124, %v867
        %v1126 = vpop.permute.xlu0 %1125
        %1129 = vset.pattern.permute.xlu0 0
        %1130 = vperm.xlu0 %1129, %v868
        %v1131 = vpop.permute.xlu0 %1130
        %1134 = vset.pattern.permute.xlu0 0
        %1135 = vperm.xlu0 %1134, %v869
        %v1136 = vpop.permute.xlu0 %1135
        %1139 = vset.pattern.permute.xlu0 0
        %1140 = vperm.xlu0 %1139, %v870
        %v1141 = vpop.permute.xlu0 %1140
        %1144 = vset.pattern.permute.xlu0 0
        %1145 = vperm.xlu0 %1144, %v871
        %v1146 = vpop.permute.xlu0 %1145
        %1149 = vset.pattern.permute.xlu0 0
        %1150 = vperm.xlu0 %1149, %v872
        %v1151 = vpop.permute.xlu0 %1150
        %1154 = vset.pattern.permute.xlu0 0
        %1155 = vperm.xlu0 %1154, %v873
        %v1156 = vpop.permute.xlu0 %1155
        %1159 = vset.pattern.permute.xlu0 0
        %1160 = vperm.xlu0 %1159, %v874
        %v1161 = vpop.permute.xlu0 %1160
        %1164 = vset.pattern.permute.xlu0 0
        %1165 = vperm.xlu0 %1164, %v875
        %v1166 = vpop.permute.xlu0 %1165
        %1169 = vset.pattern.permute.xlu0 0
        %1170 = vperm.xlu0 %1169, %v876
        %v1171 = vpop.permute.xlu0 %1170
        %1174 = vset.pattern.permute.xlu0 0
        %1175 = vperm.xlu0 %1174, %v877
        %v1176 = vpop.permute.xlu0 %1175
        %1179 = vset.pattern.permute.xlu0 0
        %1180 = vperm.xlu0 %1179, %v878
        %v1181 = vpop.permute.xlu0 %1180
        %1184 = vset.pattern.permute.xlu0 0
        %1185 = vperm.xlu0 %1184, %v879
        %v1186 = vpop.permute.xlu0 %1185
        %1189 = vset.pattern.permute.xlu0 0
        %1190 = vperm.xlu0 %1189, %v880
        %v1191 = vpop.permute.xlu0 %1190
        %1194 = vset.pattern.permute.xlu0 0
        %1195 = vperm.xlu0 %1194, %v881
        %v1196 = vpop.permute.xlu0 %1195
        %1199 = vset.pattern.permute.xlu0 0
        %1200 = vperm.xlu0 %1199, %v882
        %v1201 = vpop.permute.xlu0 %1200
        %1204 = vset.pattern.permute.xlu0 0
        %1205 = vperm.xlu0 %1204, %v883
        %v1206 = vpop.permute.xlu0 %1205
        %1209 = vset.pattern.permute.xlu0 0
        %1210 = vperm.xlu0 %1209, %v884
        %v1211 = vpop.permute.xlu0 %1210
        %1214 = vset.pattern.permute.xlu0 0
        %1215 = vperm.xlu0 %1214, %v885
        %v1216 = vpop.permute.xlu0 %1215
        %1219 = vset.pattern.permute.xlu0 0
        %1220 = vperm.xlu0 %1219, %v886
        %v1221 = vpop.permute.xlu0 %1220
        %1224 = vset.pattern.permute.xlu0 0
        %1225 = vperm.xlu0 %1224, %v887
        %v1226 = vpop.permute.xlu0 %1225
        %1229 = vset.pattern.permute.xlu0 0
        %1230 = vperm.xlu0 %1229, %v888
        %v1231 = vpop.permute.xlu0 %1230
        %1234 = vset.pattern.permute.xlu0 0
        %1235 = vperm.xlu0 %1234, %v889
        %v1236 = vpop.permute.xlu0 %1235
        %1239 = vset.pattern.permute.xlu0 0
        %1240 = vperm.xlu0 %1239, %v890
        %v1241 = vpop.permute.xlu0 %1240
        %1244 = vset.pattern.permute.xlu0 0
        %1245 = vperm.xlu0 %1244, %v891
        %v1246 = vpop.permute.xlu0 %1245
        %1249 = vset.pattern.permute.xlu0 0
        %1250 = vperm.xlu0 %1249, %v892
        %v1251 = vpop.permute.xlu0 %1250
        %1254 = vset.pattern.permute.xlu0 0
        %1255 = vperm.xlu0 %1254, %v893
        %v1256 = vpop.permute.xlu0 %1255
        %1259 = vset.pattern.permute.xlu0 0
        %1260 = vperm.xlu0 %1259, %v894
        %v1261 = vpop.permute.xlu0 %1260
        %1264 = vset.pattern.permute.xlu0 0
        %1265 = vperm.xlu0 %1264, %v895
        %v1266 = vpop.permute.xlu0 %1265
        %1269 = vset.pattern.permute.xlu0 0
        %1270 = vperm.xlu0 %1269, %v896
        %v1271 = vpop.permute.xlu0 %1270
        %1274 = vset.pattern.permute.xlu0 0
        %1275 = vperm.xlu0 %1274, %v897
        %v1276 = vpop.permute.xlu0 %1275
        %1279 = vset.pattern.permute.xlu0 0
        %1280 = vperm.xlu0 %1279, %v898
        %v1281 = vpop.permute.xlu0 %1280
        %1284 = vset.pattern.permute.xlu0 0
        %1285 = vperm.xlu0 %1284, %v899
        %v1286 = vpop.permute.xlu0 %1285
        %1289 = vset.pattern.permute.xlu0 0
        %1290 = vperm.xlu0 %1289, %v900
        %v1291 = vpop.permute.xlu0 %1290
        %1294 = vset.pattern.permute.xlu0 0
        %1295 = vperm.xlu0 %1294, %v901
        %v1296 = vpop.permute.xlu0 %1295
        %1299 = vset.pattern.permute.xlu0 0
        %1300 = vperm.xlu0 %1299, %v902
        %v1301 = vpop.permute.xlu0 %1300
        %1304 = vset.pattern.permute.xlu0 0
        %1305 = vperm.xlu0 %1304, %v903
        %v1306 = vpop.permute.xlu0 %1305
        %1309 = vset.pattern.permute.xlu0 0
        %1310 = vperm.xlu0 %1309, %v904
        %v1311 = vpop.permute.xlu0 %1310
        %1314 = vset.pattern.permute.xlu0 0
        %1315 = vperm.xlu0 %1314, %v905
        %v1316 = vpop.permute.xlu0 %1315
        %1319 = vset.pattern.permute.xlu0 0
        %1320 = vperm.xlu0 %1319, %v906
        %v1321 = vpop.permute.xlu0 %1320
        %1324 = vset.pattern.permute.xlu0 0
        %1325 = vperm.xlu0 %1324, %v907
        %v1326 = vpop.permute.xlu0 %1325
        %1329 = vset.pattern.permute.xlu0 0
        %1330 = vperm.xlu0 %1329, %v908
        %v1331 = vpop.permute.xlu0 %1330
        %1334 = vset.pattern.permute.xlu0 0
        %1335 = vperm.xlu0 %1334, %v909
        %v1336 = vpop.permute.xlu0 %1335
        %1339 = vset.pattern.permute.xlu0 0
        %1340 = vperm.xlu0 %1339, %v910
        %v1341 = vpop.permute.xlu0 %1340
        %1344 = vset.pattern.permute.xlu0 0
        %1345 = vperm.xlu0 %1344, %v911
        %v1346 = vpop.permute.xlu0 %1345
        %1349 = vset.pattern.permute.xlu0 0
        %1350 = vperm.xlu0 %1349, %v912
        %v1351 = vpop.permute.xlu0 %1350
        %1354 = vset.pattern.permute.xlu0 0
        %1355 = vperm.xlu0 %1354, %v913
        %v1356 = vpop.permute.xlu0 %1355
        %1359 = vset.pattern.permute.xlu0 0
        %1360 = vperm.xlu0 %1359, %v914
        %v1361 = vpop.permute.xlu0 %1360
        %1364 = vset.pattern.permute.xlu0 0
        %1365 = vperm.xlu0 %1364, %v915
        %v1366 = vpop.permute.xlu0 %1365
        %1369 = vset.pattern.permute.xlu0 0
        %1370 = vperm.xlu0 %1369, %v916
        %v1371 = vpop.permute.xlu0 %1370
        %1374 = vset.pattern.permute.xlu0 0
        %1375 = vperm.xlu0 %1374, %v917
        %v1376 = vpop.permute.xlu0 %1375
        %1379 = vset.pattern.permute.xlu0 0
        %1380 = vperm.xlu0 %1379, %v918
        %v1381 = vpop.permute.xlu0 %1380
        %1384 = vset.pattern.permute.xlu0 0
        %1385 = vperm.xlu0 %1384, %v919
        %v1386 = vpop.permute.xlu0 %1385
        %1389 = vset.pattern.permute.xlu0 0
        %1390 = vperm.xlu0 %1389, %v920
        %v1391 = vpop.permute.xlu0 %1390
        %1394 = vset.pattern.permute.xlu0 0
        %1395 = vperm.xlu0 %1394, %v921
        %v1396 = vpop.permute.xlu0 %1395
        %1399 = vset.pattern.permute.xlu0 0
        %1400 = vperm.xlu0 %1399, %v922
        %v1401 = vpop.permute.xlu0 %1400
        %1404 = vset.pattern.permute.xlu0 0
        %1405 = vperm.xlu0 %1404, %v923
        %v1406 = vpop.permute.xlu0 %1405
        %1409 = vset.pattern.permute.xlu0 0
        %1410 = vperm.xlu0 %1409, %v924
        %v1411 = vpop.permute.xlu0 %1410
        %1414 = vset.pattern.permute.xlu0 0
        %1415 = vperm.xlu0 %1414, %v925
        %v1416 = vpop.permute.xlu0 %1415
        %1419 = vset.pattern.permute.xlu0 0
        %1420 = vperm.xlu0 %1419, %v926
        %v1421 = vpop.permute.xlu0 %1420
        %1424 = vset.pattern.permute.xlu0 0
        %1425 = vperm.xlu0 %1424, %v927
        %v1426 = vpop.permute.xlu0 %1425
        %1429 = vset.pattern.permute.xlu0 0
        %1430 = vperm.xlu0 %1429, %v928
        %v1431 = vpop.permute.xlu0 %1430
        %1434 = vset.pattern.permute.xlu0 0
        %1435 = vperm.xlu0 %1434, %v929
        %v1436 = vpop.permute.xlu0 %1435
        %1439 = vset.pattern.permute.xlu0 0
        %1440 = vperm.xlu0 %1439, %v930
        %v1441 = vpop.permute.xlu0 %1440
        %1444 = vset.pattern.permute.xlu0 0
        %1445 = vperm.xlu0 %1444, %v931
        %v1446 = vpop.permute.xlu0 %1445
        %1449 = vset.pattern.permute.xlu0 0
        %1450 = vperm.xlu0 %1449, %v932
        %v1451 = vpop.permute.xlu0 %1450
        %1454 = vset.pattern.permute.xlu0 0
        %1455 = vperm.xlu0 %1454, %v933
        %v1456 = vpop.permute.xlu0 %1455
        %1459 = vset.pattern.permute.xlu0 0
        %1460 = vperm.xlu0 %1459, %v934
        %v1461 = vpop.permute.xlu0 %1460
        %1464 = vset.pattern.permute.xlu0 0
        %1465 = vperm.xlu0 %1464, %v935
        %v1466 = vpop.permute.xlu0 %1465
        %1469 = vset.pattern.permute.xlu0 0
        %1470 = vperm.xlu0 %1469, %v936
        %v1471 = vpop.permute.xlu0 %1470
        %1474 = vset.pattern.permute.xlu0 0
        %1475 = vperm.xlu0 %1474, %v937
        %v1476 = vpop.permute.xlu0 %1475
        %1479 = vset.pattern.permute.xlu0 0
        %1480 = vperm.xlu0 %1479, %v938
        %v1481 = vpop.permute.xlu0 %1480
        %1484 = vset.pattern.permute.xlu0 0
        %1485 = vperm.xlu0 %1484, %v939
        %v1486 = vpop.permute.xlu0 %1485
        %1489 = vset.pattern.permute.xlu0 0
        %1490 = vperm.xlu0 %1489, %v940
        %v1491 = vpop.permute.xlu0 %1490
        %1494 = vset.pattern.permute.xlu0 0
        %1495 = vperm.xlu0 %1494, %v941
        %v1496 = vpop.permute.xlu0 %1495
        %1499 = vset.pattern.permute.xlu0 0
        %1500 = vperm.xlu0 %1499, %v942
        %v1501 = vpop.permute.xlu0 %1500
        %1504 = vset.pattern.permute.xlu0 0
        %1505 = vperm.xlu0 %1504, %v943
        %v1506 = vpop.permute.xlu0 %1505
        %1509 = vset.pattern.permute.xlu0 0
        %1510 = vperm.xlu0 %1509, %v944
        %v1511 = vpop.permute.xlu0 %1510
        %1514 = vset.pattern.permute.xlu0 0
        %1515 = vperm.xlu0 %1514, %v945
        %v1516 = vpop.permute.xlu0 %1515
        %1519 = vset.pattern.permute.xlu0 0
        %1520 = vperm.xlu0 %1519, %v946
        %v1521 = vpop.permute.xlu0 %1520
        %1524 = vset.pattern.permute.xlu0 0
        %1525 = vperm.xlu0 %1524, %v947
        %v1526 = vpop.permute.xlu0 %1525
        %1529 = vset.pattern.permute.xlu0 0
        %1530 = vperm.xlu0 %1529, %v948
        %v1531 = vpop.permute.xlu0 %1530
        %1534 = vset.pattern.permute.xlu0 0
        %1535 = vperm.xlu0 %1534, %v949
        %v1536 = vpop.permute.xlu0 %1535
        %1539 = vset.pattern.permute.xlu0 0
        %1540 = vperm.xlu0 %1539, %v950
        %v1541 = vpop.permute.xlu0 %1540
        %1544 = vset.pattern.permute.xlu0 0
        %1545 = vperm.xlu0 %1544, %v951
        %v1546 = vpop.permute.xlu0 %1545
        %1549 = vset.pattern.permute.xlu0 0
        %1550 = vperm.xlu0 %1549, %v952
        %v1551 = vpop.permute.xlu0 %1550
        %1554 = vset.pattern.permute.xlu0 0
        %1555 = vperm.xlu0 %1554, %v953
        %v1556 = vpop.permute.xlu0 %1555
        %1559 = vset.pattern.permute.xlu0 0
        %1560 = vperm.xlu0 %1559, %v954
        %v1561 = vpop.permute.xlu0 %1560
        %1564 = vset.pattern.permute.xlu0 0
        %1565 = vperm.xlu0 %1564, %v955
        %v1566 = vpop.permute.xlu0 %1565
        %1569 = vset.pattern.permute.xlu0 0
        %1570 = vperm.xlu0 %1569, %v956
        %v1571 = vpop.permute.xlu0 %1570
        %1574 = vset.pattern.permute.xlu0 0
        %1575 = vperm.xlu0 %1574, %v957
        %v1576 = vpop.permute.xlu0 %1575
        %1579 = vset.pattern.permute.xlu0 0
        %1580 = vperm.xlu0 %1579, %v958
        %v1581 = vpop.permute.xlu0 %1580
        %1584 = vset.pattern.permute.xlu0 0
        %1585 = vperm.xlu0 %1584, %v959
        %v1586 = vpop.permute.xlu0 %1585
        %1589 = vset.pattern.permute.xlu0 0
        %1590 = vperm.xlu0 %1589, %v960
        %v1591 = vpop.permute.xlu0 %1590
        %1594 = vset.pattern.permute.xlu0 0
        %1595 = vperm.xlu0 %1594, %v961
        %v1596 = vpop.permute.xlu0 %1595
        %1599 = vset.pattern.permute.xlu0 0
        %1600 = vperm.xlu0 %1599, %v962
        %v1601 = vpop.permute.xlu0 %1600
        %1604 = vset.pattern.permute.xlu0 0
        %1605 = vperm.xlu0 %1604, %v963
        %v1606 = vpop.permute.xlu0 %1605
        %1609 = vset.pattern.permute.xlu0 0
        %1610 = vperm.xlu0 %1609, %v964
        %v1611 = vpop.permute.xlu0 %1610
        %1614 = vset.pattern.permute.xlu0 0
        %1615 = vperm.xlu0 %1614, %v965
        %v1616 = vpop.permute.xlu0 %1615
        %1619 = vset.pattern.permute.xlu0 0
        %1620 = vperm.xlu0 %1619, %v966
        %v1621 = vpop.permute.xlu0 %1620
        %1624 = vset.pattern.permute.xlu0 0
        %1625 = vperm.xlu0 %1624, %v967
        %v1626 = vpop.permute.xlu0 %1625
        %1629 = vset.pattern.permute.xlu0 0
        %1630 = vperm.xlu0 %1629, %v968
        %v1631 = vpop.permute.xlu0 %1630
        %1634 = vset.pattern.permute.xlu0 0
        %1635 = vperm.xlu0 %1634, %v969
        %v1636 = vpop.permute.xlu0 %1635
        %1639 = vset.pattern.permute.xlu0 0
        %1640 = vperm.xlu0 %1639, %v970
        %v1641 = vpop.permute.xlu0 %1640
        %1644 = vset.pattern.permute.xlu0 0
        %1645 = vperm.xlu0 %1644, %v971
        %v1646 = vpop.permute.xlu0 %1645
        %1649 = vset.pattern.permute.xlu0 0
        %1650 = vperm.xlu0 %1649, %v972
        %v1651 = vpop.permute.xlu0 %1650
        %1654 = vset.pattern.permute.xlu0 0
        %1655 = vperm.xlu0 %1654, %v973
        %v1656 = vpop.permute.xlu0 %1655
        %1659 = vset.pattern.permute.xlu0 0
        %1660 = vperm.xlu0 %1659, %v974
        %v1661 = vpop.permute.xlu0 %1660
        %1664 = vset.pattern.permute.xlu0 0
        %1665 = vperm.xlu0 %1664, %v975
        %v1666 = vpop.permute.xlu0 %1665
        %1669 = vset.pattern.permute.xlu0 0
        %1670 = vperm.xlu0 %1669, %v976
        %v1671 = vpop.permute.xlu0 %1670
        %1674 = vset.pattern.permute.xlu0 0
        %1675 = vperm.xlu0 %1674, %v977
        %v1676 = vpop.permute.xlu0 %1675
        %1679 = vset.pattern.permute.xlu0 0
        %1680 = vperm.xlu0 %1679, %v978
        %v1681 = vpop.permute.xlu0 %1680
        %1684 = vset.pattern.permute.xlu0 0
        %1685 = vperm.xlu0 %1684, %v979
        %v1686 = vpop.permute.xlu0 %1685
        %1689 = vset.pattern.permute.xlu0 0
        %1690 = vperm.xlu0 %1689, %v980
        %v1691 = vpop.permute.xlu0 %1690
        %1694 = vset.pattern.permute.xlu0 0
        %1695 = vperm.xlu0 %1694, %v981
        %v1696 = vpop.permute.xlu0 %1695
        %1699 = vset.pattern.permute.xlu0 0
        %1700 = vperm.xlu0 %1699, %v982
        %v1701 = vpop.permute.xlu0 %1700
        %1704 = vset.pattern.permute.xlu0 0
        %1705 = vperm.xlu0 %1704, %v983
        %v1706 = vpop.permute.xlu0 %1705
        %1709 = vset.pattern.permute.xlu0 0
        %1710 = vperm.xlu0 %1709, %v984
        %v1711 = vpop.permute.xlu0 %1710
        %1714 = vset.pattern.permute.xlu0 0
        %1715 = vperm.xlu0 %1714, %v985
        %v1716 = vpop.permute.xlu0 %1715
        %1719 = vset.pattern.permute.xlu0 0
        %1720 = vperm.xlu0 %1719, %v986
        %v1721 = vpop.permute.xlu0 %1720
        %1724 = vset.pattern.permute.xlu0 0
        %1725 = vperm.xlu0 %1724, %v987
        %v1726 = vpop.permute.xlu0 %1725
        %1729 = vset.pattern.permute.xlu0 0
        %1730 = vperm.xlu0 %1729, %v988
        %v1731 = vpop.permute.xlu0 %1730
        %1734 = vset.pattern.permute.xlu0 0
        %1735 = vperm.xlu0 %1734, %v989
        %v1736 = vpop.permute.xlu0 %1735
        %1739 = vset.pattern.permute.xlu0 0
        %1740 = vperm.xlu0 %1739, %v990
        %v1741 = vpop.permute.xlu0 %1740
        %1744 = vset.pattern.permute.xlu0 0
        %1745 = vperm.xlu0 %1744, %v991
        %v1746 = vpop.permute.xlu0 %1745
        %1749 = vset.pattern.permute.xlu0 0
        %1750 = vperm.xlu0 %1749, %v992
        %v1751 = vpop.permute.xlu0 %1750
        %1754 = vset.pattern.permute.xlu0 0
        %1755 = vperm.xlu0 %1754, %v993
        %v1756 = vpop.permute.xlu0 %1755
        %1759 = vset.pattern.permute.xlu0 0
        %1760 = vperm.xlu0 %1759, %v994
        %v1761 = vpop.permute.xlu0 %1760
        %1764 = vset.pattern.permute.xlu0 0
        %1765 = vperm.xlu0 %1764, %v995
        %v1766 = vpop.permute.xlu0 %1765
        %1769 = vset.pattern.permute.xlu0 0
        %1770 = vperm.xlu0 %1769, %v996
        %v1771 = vpop.permute.xlu0 %1770
        %1774 = vset.pattern.permute.xlu0 0
        %1775 = vperm.xlu0 %1774, %v997
        %v1776 = vpop.permute.xlu0 %1775
        %1779 = vset.pattern.permute.xlu0 0
        %1780 = vperm.xlu0 %1779, %v998
        %v1781 = vpop.permute.xlu0 %1780
        %1784 = vset.pattern.permute.xlu0 0
        %1785 = vperm.xlu0 %1784, %v999
        %v1786 = vpop.permute.xlu0 %1785
        %1789 = vset.pattern.permute.xlu0 0
        %1790 = vperm.xlu0 %1789, %v1000
        %v1791 = vpop.permute.xlu0 %1790
        %1794 = vset.pattern.permute.xlu0 0
        %1795 = vperm.xlu0 %1794, %v1001
        %v1796 = vpop.permute.xlu0 %1795
        %1799 = vset.pattern.permute.xlu0 0
        %1800 = vperm.xlu0 %1799, %v1002
        %v1801 = vpop.permute.xlu0 %1800
        %1804 = vset.pattern.permute.xlu0 0
        %1805 = vperm.xlu0 %1804, %v1003
        %v1806 = vpop.permute.xlu0 %1805
        %1809 = vset.pattern.permute.xlu0 0
        %1810 = vperm.xlu0 %1809, %v1004
        %v1811 = vpop.permute.xlu0 %1810
        %1814 = vset.pattern.permute.xlu0 0
        %1815 = vperm.xlu0 %1814, %v1005
        %v1816 = vpop.permute.xlu0 %1815
        %1819 = vset.pattern.permute.xlu0 0
        %1820 = vperm.xlu0 %1819, %v1006
        %v1821 = vpop.permute.xlu0 %1820
        %1824 = vset.pattern.permute.xlu0 0
        %1825 = vperm.xlu0 %1824, %v1007
        %v1826 = vpop.permute.xlu0 %1825
        %1829 = vset.pattern.permute.xlu0 0
        %1830 = vperm.xlu0 %1829, %v1008
        %v1831 = vpop.permute.xlu0 %1830
        %1834 = vset.pattern.permute.xlu0 0
        %1835 = vperm.xlu0 %1834, %v1009
        %v1836 = vpop.permute.xlu0 %1835
        %1839 = vset.pattern.permute.xlu0 0
        %1840 = vperm.xlu0 %1839, %v1010
        %v1841 = vpop.permute.xlu0 %1840
        %1844 = vset.pattern.permute.xlu0 0
        %1845 = vperm.xlu0 %1844, %v1011
        %v1846 = vpop.permute.xlu0 %1845
        %1849 = vset.pattern.permute.xlu0 0
        %1850 = vperm.xlu0 %1849, %v1012
        %v1851 = vpop.permute.xlu0 %1850
        %1854 = vset.pattern.permute.xlu0 0
        %1855 = vperm.xlu0 %1854, %v1013
        %v1856 = vpop.permute.xlu0 %1855
        %1859 = vset.pattern.permute.xlu0 0
        %1860 = vperm.xlu0 %1859, %v1014
        %v1861 = vpop.permute.xlu0 %1860
        %1864 = vset.pattern.permute.xlu0 0
        %1865 = vperm.xlu0 %1864, %v1015
        %v1866 = vpop.permute.xlu0 %1865
        %1869 = vset.pattern.permute.xlu0 0
        %1870 = vperm.xlu0 %1869, %v1016
        %v1871 = vpop.permute.xlu0 %1870
        %1874 = vset.pattern.permute.xlu0 0
        %1875 = vperm.xlu0 %1874, %v1017
        %v1876 = vpop.permute.xlu0 %1875
        %1879 = vset.pattern.permute.xlu0 0
        %1880 = vperm.xlu0 %1879, %v1018
        %v1881 = vpop.permute.xlu0 %1880
        %1884 = vset.pattern.permute.xlu0 0
        %1885 = vperm.xlu0 %1884, %v1019
        %v1886 = vpop.permute.xlu0 %1885
        %1889 = vset.pattern.permute.xlu0 0
        %1890 = vperm.xlu0 %1889, %v1020
        %v1891 = vpop.permute.xlu0 %1890
        %1894 = vset.pattern.permute.xlu0 0
        %1895 = vperm.xlu0 %1894, %v1021
        %v1896 = vpop.permute.xlu0 %1895
        %1899 = vset.pattern.permute.xlu0 0
        %1900 = vperm.xlu0 %1899, %v1022
        %v1901 = vpop.permute.xlu0 %1900
        %1904 = vset.pattern.permute.xlu0 0
        %1905 = vperm.xlu0 %1904, %v1023
        %v1906 = vpop.permute.xlu0 %1905
        %1909 = vset.pattern.permute.xlu0 0
        %1910 = vperm.xlu0 %1909, %v1024
        %v1911 = vpop.permute.xlu0 %1910
        %1914 = vset.pattern.permute.xlu0 0
        %1915 = vperm.xlu0 %1914, %v1025
        %v1916 = vpop.permute.xlu0 %1915
        %1919 = vset.pattern.permute.xlu0 0
        %1920 = vperm.xlu0 %1919, %v1026
        %v1921 = vpop.permute.xlu0 %1920
        %1924 = vset.pattern.permute.xlu0 0
        %1925 = vperm.xlu0 %1924, %v1027
        %v1926 = vpop.permute.xlu0 %1925
        %1929 = vset.pattern.permute.xlu0 0
        %1930 = vperm.xlu0 %1929, %v1028
        %v1931 = vpop.permute.xlu0 %1930
        %1934 = vset.pattern.permute.xlu0 0
        %1935 = vperm.xlu0 %1934, %v1029
        %v1936 = vpop.permute.xlu0 %1935
        %1939 = vset.pattern.permute.xlu0 0
        %1940 = vperm.xlu0 %1939, %v1030
        %v1941 = vpop.permute.xlu0 %1940
        %1944 = vset.pattern.permute.xlu0 0
        %1945 = vperm.xlu0 %1944, %v1031
        %v1946 = vpop.permute.xlu0 %1945
        %1949 = vset.pattern.permute.xlu0 0
        %1950 = vperm.xlu0 %1949, %v1032
        %v1951 = vpop.permute.xlu0 %1950
        %1954 = vset.pattern.permute.xlu0 0
        %1955 = vperm.xlu0 %1954, %v1033
        %v1956 = vpop.permute.xlu0 %1955
        %1959 = vset.pattern.permute.xlu0 0
        %1960 = vperm.xlu0 %1959, %v1034
        %v1961 = vpop.permute.xlu0 %1960
        %1964 = vset.pattern.permute.xlu0 0
        %1965 = vperm.xlu0 %1964, %v1035
        %v1966 = vpop.permute.xlu0 %1965
        %1969 = vset.pattern.permute.xlu0 0
        %1970 = vperm.xlu0 %1969, %v1036
        %v1971 = vpop.permute.xlu0 %1970
        %1974 = vset.pattern.permute.xlu0 0
        %1975 = vperm.xlu0 %1974, %v1037
        %v1976 = vpop.permute.xlu0 %1975
        %1979 = vset.pattern.permute.xlu0 0
        %1980 = vperm.xlu0 %1979, %v1038
        %v1981 = vpop.permute.xlu0 %1980
        %1984 = vset.pattern.permute.xlu0 0
        %1985 = vperm.xlu0 %1984, %v1039
        %v1986 = vpop.permute.xlu0 %1985
        %1989 = vset.pattern.permute.xlu0 0
        %1990 = vperm.xlu0 %1989, %v1040
        %v1991 = vpop.permute.xlu0 %1990
        %1994 = vset.pattern.permute.xlu0 0
        %1995 = vperm.xlu0 %1994, %v1041
        %v1996 = vpop.permute.xlu0 %1995
        %1999 = vset.pattern.permute.xlu0 0
        %2000 = vperm.xlu0 %1999, %v1042
        %v2001 = vpop.permute.xlu0 %2000
        %2004 = vset.pattern.permute.xlu0 0
        %2005 = vperm.xlu0 %2004, %v1043
        %v2006 = vpop.permute.xlu0 %2005
        %2009 = vset.pattern.permute.xlu0 0
        %2010 = vperm.xlu0 %2009, %v1044
        %v2011 = vpop.permute.xlu0 %2010
        %2014 = vset.pattern.permute.xlu0 0
        %2015 = vperm.xlu0 %2014, %v1045
        %v2016 = vpop.permute.xlu0 %2015
        %2019 = vset.pattern.permute.xlu0 0
        %2020 = vperm.xlu0 %2019, %v1046
        %v2021 = vpop.permute.xlu0 %2020
        %2024 = vset.pattern.permute.xlu0 0
        %2025 = vperm.xlu0 %2024, %v1047
        %v2026 = vpop.permute.xlu0 %2025
        %2029 = vset.pattern.permute.xlu0 0
        %2030 = vperm.xlu0 %2029, %v1048
        %v2031 = vpop.permute.xlu0 %2030
        %2034 = vset.pattern.permute.xlu0 0
        %2035 = vperm.xlu0 %2034, %v1049
        %v2036 = vpop.permute.xlu0 %2035
        %2039 = vset.pattern.permute.xlu0 0
        %2040 = vperm.xlu0 %2039, %v1050
        %v2041 = vpop.permute.xlu0 %2040
        %2044 = vset.pattern.permute.xlu0 0
        %2045 = vperm.xlu0 %2044, %v1051
        %v2046 = vpop.permute.xlu0 %2045
        %2049 = vset.pattern.permute.xlu0 0
        %2050 = vperm.xlu0 %2049, %v1052
        %v2051 = vpop.permute.xlu0 %2050
        %2054 = vset.pattern.permute.xlu0 0
        %2055 = vperm.xlu0 %2054, %v1053
        %v2056 = vpop.permute.xlu0 %2055
        %2059 = vset.pattern.permute.xlu0 0
        %2060 = vperm.xlu0 %2059, %v1054
        %v2061 = vpop.permute.xlu0 %2060
        %2064 = vset.pattern.permute.xlu0 0
        %2065 = vperm.xlu0 %2064, %v1055
        %v2066 = vpop.permute.xlu0 %2065
        %2069 = vset.pattern.permute.xlu0 0
        %2070 = vperm.xlu0 %2069, %v1056
        %v2071 = vpop.permute.xlu0 %2070
        %2074 = vset.pattern.permute.xlu0 0
        %2075 = vperm.xlu0 %2074, %v1057
        %v2076 = vpop.permute.xlu0 %2075
        %2079 = vset.pattern.permute.xlu0 0
        %2080 = vperm.xlu0 %2079, %v1058
        %v2081 = vpop.permute.xlu0 %2080
        %2084 = vset.pattern.permute.xlu0 0
        %2085 = vperm.xlu0 %2084, %v1059
        %v2086 = vpop.permute.xlu0 %2085
        %2089 = vset.pattern.permute.xlu0 0
        %2090 = vperm.xlu0 %2089, %v1060
        %v2091 = vpop.permute.xlu0 %2090
        %2094 = vset.pattern.permute.xlu0 0
        %2095 = vperm.xlu0 %2094, %v1061
        %v2096 = vpop.permute.xlu0 %2095
        %2099 = vset.pattern.permute.xlu0 0
        %2100 = vperm.xlu0 %2099, %v1062
        %v2101 = vpop.permute.xlu0 %2100
        %2104 = vset.pattern.permute.xlu0 0
        %2105 = vperm.xlu0 %2104, %v1063
        %v2106 = vpop.permute.xlu0 %2105
        %2109 = vset.pattern.permute.xlu0 0
        %2110 = vperm.xlu0 %2109, %v1064
        %v2111 = vpop.permute.xlu0 %2110
        %2114 = vset.pattern.permute.xlu0 0
        %2115 = vperm.xlu0 %2114, %v1065
        %v2116 = vpop.permute.xlu0 %2115
        %2119 = vset.pattern.permute.xlu0 0
        %2120 = vperm.xlu0 %2119, %v1066
        %v2121 = vpop.permute.xlu0 %2120
        %2124 = vset.pattern.permute.xlu0 0
        %2125 = vperm.xlu0 %2124, %v1067
        %v2126 = vpop.permute.xlu0 %2125
        %2129 = vset.pattern.permute.xlu0 0
        %2130 = vperm.xlu0 %2129, %v1068
        %v2131 = vpop.permute.xlu0 %2130
        %2134 = vset.pattern.permute.xlu0 0
        %2135 = vperm.xlu0 %2134, %v1069
        %v2136 = vpop.permute.xlu0 %2135
        %2139 = vset.pattern.permute.xlu0 0
        %2140 = vperm.xlu0 %2139, %v1070
        %v2141 = vpop.permute.xlu0 %2140
        %2144 = vset.pattern.permute.xlu0 0
        %2145 = vperm.xlu0 %2144, %v1071
        %v2146 = vpop.permute.xlu0 %2145
        %2149 = vset.pattern.permute.xlu0 0
        %2150 = vperm.xlu0 %2149, %v1072
        %v2151 = vpop.permute.xlu0 %2150
        %2154 = vset.pattern.permute.xlu0 0
        %2155 = vperm.xlu0 %2154, %v1073
        %v2156 = vpop.permute.xlu0 %2155
        %2159 = vset.pattern.permute.xlu0 0
        %2160 = vperm.xlu0 %2159, %v1074
        %v2161 = vpop.permute.xlu0 %2160
        %2164 = vset.pattern.permute.xlu0 0
        %2165 = vperm.xlu0 %2164, %v1075
        %v2166 = vpop.permute.xlu0 %2165
        %2169 = vset.pattern.permute.xlu0 0
        %2170 = vperm.xlu0 %2169, %v1076
        %v2171 = vpop.permute.xlu0 %2170
        %2174 = vset.pattern.permute.xlu0 0
        %2175 = vperm.xlu0 %2174, %v1077
        %v2176 = vpop.permute.xlu0 %2175
        %2179 = vset.pattern.permute.xlu0 0
        %2180 = vperm.xlu0 %2179, %v1078
        %v2181 = vpop.permute.xlu0 %2180
        %2184 = vset.pattern.permute.xlu0 0
        %2185 = vperm.xlu0 %2184, %v1079
        %v2186 = vpop.permute.xlu0 %2185
        %2189 = vset.pattern.permute.xlu0 0
        %2190 = vperm.xlu0 %2189, %v1080
        %v2191 = vpop.permute.xlu0 %2190
        %2194 = vset.pattern.permute.xlu0 0
        %2195 = vperm.xlu0 %2194, %v1081
        %v2196 = vpop.permute.xlu0 %2195
        %2199 = vset.pattern.permute.xlu0 0
        %2200 = vperm.xlu0 %2199, %v1082
        %v2201 = vpop.permute.xlu0 %2200
        %2204 = vset.pattern.permute.xlu0 0
        %2205 = vperm.xlu0 %2204, %v1083
        %v2206 = vpop.permute.xlu0 %2205
        %2209 = vset.pattern.permute.xlu0 0
        %2210 = vperm.xlu0 %2209, %v1084
        %v2211 = vpop.permute.xlu0 %2210
        %2214 = vset.pattern.permute.xlu0 0
        %2215 = vperm.xlu0 %2214, %v1085
        %v2216 = vpop.permute.xlu0 %2215
        %2219 = vset.pattern.permute.xlu0 0
        %2220 = vperm.xlu0 %2219, %v1086
        %v2221 = vpop.permute.xlu0 %2220
        %2224 = vset.pattern.permute.xlu0 0
        %2225 = vperm.xlu0 %2224, %v1087
        %v2226 = vpop.permute.xlu0 %2225
        %2229 = vset.pattern.permute.xlu0 0
        %2230 = vperm.xlu0 %2229, %v1088
        %v2231 = vpop.permute.xlu0 %2230
        %2234 = vset.pattern.permute.xlu0 0
        %2235 = vperm.xlu0 %2234, %v1089
        %v2236 = vpop.permute.xlu0 %2235
        %2239 = vset.pattern.permute.xlu0 0
        %2240 = vperm.xlu0 %2239, %v1090
        %v2241 = vpop.permute.xlu0 %2240
        %2244 = vset.pattern.permute.xlu0 0
        %2245 = vperm.xlu0 %2244, %v1091
        %v2246 = vpop.permute.xlu0 %2245
        %2249 = vset.pattern.permute.xlu0 0
        %2250 = vperm.xlu0 %2249, %v1092
        %v2251 = vpop.permute.xlu0 %2250
        %2254 = vset.pattern.permute.xlu0 0
        %2255 = vperm.xlu0 %2254, %v1093
        %v2256 = vpop.permute.xlu0 %2255
        %2259 = vset.pattern.permute.xlu0 0
        %2260 = vperm.xlu0 %2259, %v1094
        %v2261 = vpop.permute.xlu0 %2260
        %2264 = vset.pattern.permute.xlu0 0
        %2265 = vperm.xlu0 %2264, %v1095
        %v2266 = vpop.permute.xlu0 %2265
        %2269 = vset.pattern.permute.xlu0 0
        %2270 = vperm.xlu0 %2269, %v1096
        %v2271 = vpop.permute.xlu0 %2270
        %2274 = vset.pattern.permute.xlu0 0
        %2275 = vperm.xlu0 %2274, %v1097
        %v2276 = vpop.permute.xlu0 %2275
        %2279 = vset.pattern.permute.xlu0 0
        %2280 = vperm.xlu0 %2279, %v1098
        %v2281 = vpop.permute.xlu0 %2280
        %2284 = vset.pattern.permute.xlu0 0
        %2285 = vperm.xlu0 %2284, %v1099
        %v2286 = vpop.permute.xlu0 %2285
        %2289 = vset.pattern.permute.xlu0 0
        %2290 = vperm.xlu0 %2289, %v1100
        %v2291 = vpop.permute.xlu0 %2290
        %2294 = vset.pattern.permute.xlu0 0
        %2295 = vperm.xlu0 %2294, %v1101
        %v2296 = vpop.permute.xlu0 %2295
        %2299 = vset.pattern.permute.xlu0 0
        %2300 = vperm.xlu0 %2299, %v1102
        %v2301 = vpop.permute.xlu0 %2300
        %2304 = vset.pattern.permute.xlu0 0
        %2305 = vperm.xlu0 %2304, %v1103
        %v2306 = vpop.permute.xlu0 %2305
        %2309 = vset.pattern.permute.xlu0 0
        %2310 = vperm.xlu0 %2309, %v1104
        %v2311 = vpop.permute.xlu0 %2310
        %2314 = vset.pattern.permute.xlu0 0
        %2315 = vperm.xlu0 %2314, %v1105
        %v2316 = vpop.permute.xlu0 %2315
        %2319 = vset.pattern.permute.xlu0 0
        %2320 = vperm.xlu0 %2319, %v1106
        %v2321 = vpop.permute.xlu0 %2320
        %2324 = vset.pattern.permute.xlu0 0
        %2325 = vperm.xlu0 %2324, %v1107
        %v2326 = vpop.permute.xlu0 %2325
        %2329 = vset.pattern.permute.xlu0 0
        %2330 = vperm.xlu0 %2329, %v1108
        %v2331 = vpop.permute.xlu0 %2330
        %2334 = vset.pattern.permute.xlu0 0
        %2335 = vperm.xlu0 %2334, %v1109
        %v2336 = vpop.permute.xlu0 %2335
        %2339 = vset.pattern.permute.xlu0 0
        %2340 = vperm.xlu0 %2339, %v1110
        %v2341 = vpop.permute.xlu0 %2340
        %2344 = vset.pattern.permute.xlu0 0
        %2345 = vperm.xlu0 %2344, %v1111
        %v2346 = vpop.permute.xlu0 %2345
        %2349 = vset.pattern.permute.xlu0 0
        %2350 = vperm.xlu0 %2349, %v1112
        %v2351 = vpop.permute.xlu0 %2350
        %2354 = vset.pattern.permute.xlu0 0
        %2355 = vperm.xlu0 %2354, %v1113
        %v2356 = vpop.permute.xlu0 %2355
        %2359 = vset.pattern.permute.xlu0 0
        %2360 = vperm.xlu0 %2359, %v1114
        %v2361 = vpop.permute.xlu0 %2360
        %2364 = vset.pattern.permute.xlu0 0
        %2365 = vperm.xlu0 %2364, %v1115
        %v2366 = vpop.permute.xlu0 %2365
        %2369 = vset.pattern.permute.xlu0 0
        %2370 = vperm.xlu0 %2369, %v1116
        %v2371 = vpop.permute.xlu0 %2370
        %2374 = vset.pattern.permute.xlu0 0
        %2375 = vperm.xlu0 %2374, %v1117
        %v2376 = vpop.permute.xlu0 %2375
        %2379 = vset.pattern.permute.xlu0 0
        %2380 = vperm.xlu0 %2379, %v1118
        %v2381 = vpop.permute.xlu0 %2380
        %2384 = vset.pattern.permute.xlu0 0
        %2385 = vperm.xlu0 %2384, %v1119
        %v2386 = vpop.permute.xlu0 %2385
        %2389 = vset.pattern.permute.xlu0 0
        %2390 = vperm.xlu0 %2389, %v1120
        %v2391 = vpop.permute.xlu0 %2390
        %2394 = vset.pattern.permute.xlu0 0
        %2395 = vperm.xlu0 %2394, %v1121
        %v2396 = vpop.permute.xlu0 %2395
        %2399 = vset.pattern.permute.xlu0 0
        %2400 = vperm.xlu0 %2399, %v1122
        %v2401 = vpop.permute.xlu0 %2400
        %v2659 = vunpack.c.l.b16 %v610
        %v2660 = vunpack.c.l.b16 %v611
        %v2661 = vunpack.c.l.b16 %v612
        %v2662 = vunpack.c.l.b16 %v613
        %v2663 = vunpack.c.l.b16 %v614
        %v2664 = vunpack.c.l.b16 %v615
        %v2665 = vunpack.c.l.b16 %v616
        %v2666 = vunpack.c.l.b16 %v617
        %v2667 = vunpack.c.l.b16 %v618
        %v2668 = vunpack.c.l.b16 %v619
        %v2669 = vunpack.c.l.b16 %v620
        %v2670 = vunpack.c.l.b16 %v621
        %v2671 = vunpack.c.l.b16 %v622
        %v2672 = vunpack.c.l.b16 %v623
        %v2673 = vunpack.c.l.b16 %v624
        %v2674 = vunpack.c.l.b16 %v625
        %v2675 = vunpack.c.l.b16 %v626
        %v2676 = vunpack.c.l.b16 %v627
        %v2677 = vunpack.c.l.b16 %v628
        %v2678 = vunpack.c.l.b16 %v629
        %v2679 = vunpack.c.l.b16 %v630
        %v2680 = vunpack.c.l.b16 %v631
        %v2681 = vunpack.c.l.b16 %v632
        %v2682 = vunpack.c.l.b16 %v633
        %v2683 = vunpack.c.l.b16 %v634
        %v2684 = vunpack.c.l.b16 %v635
        %v2685 = vunpack.c.l.b16 %v636
        %v2686 = vunpack.c.l.b16 %v637
        %v2687 = vunpack.c.l.b16 %v638
        %v2688 = vunpack.c.l.b16 %v639
        %v2689 = vunpack.c.l.b16 %v640
        %v2690 = vunpack.c.l.b16 %v641
        %v2691 = vunpack.c.l.b16 %v642
        %v2692 = vunpack.c.l.b16 %v643
        %v2693 = vunpack.c.l.b16 %v644
        %v2694 = vunpack.c.l.b16 %v645
        %v2695 = vunpack.c.l.b16 %v646
        %v2696 = vunpack.c.l.b16 %v647
        %v2697 = vunpack.c.l.b16 %v648
        %v2698 = vunpack.c.l.b16 %v649
        %v2699 = vunpack.c.l.b16 %v650
        %v2700 = vunpack.c.l.b16 %v651
        %v2701 = vunpack.c.l.b16 %v652
        %v2702 = vunpack.c.l.b16 %v653
        %v2703 = vunpack.c.l.b16 %v654
        %v2704 = vunpack.c.l.b16 %v655
        %v2705 = vunpack.c.l.b16 %v656
        %v2706 = vunpack.c.l.b16 %v657
        %v2707 = vunpack.c.l.b16 %v658
        %v2708 = vunpack.c.l.b16 %v659
        %v2709 = vunpack.c.l.b16 %v660
        %v2710 = vunpack.c.l.b16 %v661
        %v2711 = vunpack.c.l.b16 %v662
        %v2712 = vunpack.c.l.b16 %v663
        %v2713 = vunpack.c.l.b16 %v664
        %v2714 = vunpack.c.l.b16 %v665
        %v2715 = vunpack.c.l.b16 %v666
        %v2716 = vunpack.c.l.b16 %v667
        %v2717 = vunpack.c.l.b16 %v668
        %v2718 = vunpack.c.l.b16 %v669
        %v2719 = vunpack.c.l.b16 %v670
        %v2720 = vunpack.c.l.b16 %v671
        %v2721 = vunpack.c.l.b16 %v672
        %v2722 = vunpack.c.l.b16 %v673
        %v2723 = vunpack.c.l.b16 %v674
        %v2724 = vunpack.c.l.b16 %v675
        %v2725 = vunpack.c.l.b16 %v676
        %v2726 = vunpack.c.l.b16 %v677
        %v2727 = vunpack.c.l.b16 %v678
        %v2728 = vunpack.c.l.b16 %v679
        %v2729 = vunpack.c.l.b16 %v680
        %v2730 = vunpack.c.l.b16 %v681
        %v2731 = vunpack.c.l.b16 %v682
        %v2732 = vunpack.c.l.b16 %v683
        %v2733 = vunpack.c.l.b16 %v684
        %v2734 = vunpack.c.l.b16 %v685
        %v2735 = vunpack.c.l.b16 %v686
        %v2736 = vunpack.c.l.b16 %v687
        %v2737 = vunpack.c.l.b16 %v688
        %v2738 = vunpack.c.l.b16 %v689
        %v2739 = vunpack.c.l.b16 %v690
        %v2740 = vunpack.c.l.b16 %v691
        %v2741 = vunpack.c.l.b16 %v692
        %v2742 = vunpack.c.l.b16 %v693
        %v2743 = vunpack.c.l.b16 %v694
        %v2744 = vunpack.c.l.b16 %v695
        %v2745 = vunpack.c.l.b16 %v696
        %v2746 = vunpack.c.l.b16 %v697
        %v2747 = vunpack.c.l.b16 %v698
        %v2748 = vunpack.c.l.b16 %v699
        %v2749 = vunpack.c.l.b16 %v700
        %v2750 = vunpack.c.l.b16 %v701
        %v2751 = vunpack.c.l.b16 %v702
        %v2752 = vunpack.c.l.b16 %v703
        %v2753 = vunpack.c.l.b16 %v704
        %v2754 = vunpack.c.l.b16 %v705
        %v2755 = vunpack.c.l.b16 %v706
        %v2756 = vunpack.c.l.b16 %v707
        %v2757 = vunpack.c.l.b16 %v708
        %v2758 = vunpack.c.l.b16 %v709
        %v2759 = vunpack.c.l.b16 %v710
        %v2760 = vunpack.c.l.b16 %v711
        %v2761 = vunpack.c.l.b16 %v712
        %v2762 = vunpack.c.l.b16 %v713
        %v2763 = vunpack.c.l.b16 %v714
        %v2764 = vunpack.c.l.b16 %v715
        %v2765 = vunpack.c.l.b16 %v716
        %v2766 = vunpack.c.l.b16 %v717
        %v2767 = vunpack.c.l.b16 %v718
        %v2768 = vunpack.c.l.b16 %v719
        %v2769 = vunpack.c.l.b16 %v720
        %v2770 = vunpack.c.l.b16 %v721
        %v2771 = vunpack.c.l.b16 %v722
        %v2772 = vunpack.c.l.b16 %v723
        %v2773 = vunpack.c.l.b16 %v724
        %v2774 = vunpack.c.l.b16 %v725
        %v2775 = vunpack.c.l.b16 %v726
        %v2776 = vunpack.c.l.b16 %v727
        %v2777 = vunpack.c.l.b16 %v728
        %v2778 = vunpack.c.l.b16 %v729
        %v2779 = vunpack.c.l.b16 %v730
        %v2780 = vunpack.c.l.b16 %v731
        %v2781 = vunpack.c.l.b16 %v732
        %v2782 = vunpack.c.l.b16 %v733
        %v2783 = vunpack.c.l.b16 %v734
        %v2784 = vunpack.c.l.b16 %v735
        %v2785 = vunpack.c.l.b16 %v736
        %v2786 = vunpack.c.l.b16 %v737
        %v2787 = vunpack.c.l.b16 %v738
        %v2788 = vunpack.c.l.b16 %v739
        %v2789 = vunpack.c.l.b16 %v740
        %v2790 = vunpack.c.l.b16 %v741
        %v2791 = vunpack.c.l.b16 %v742
        %v2792 = vunpack.c.l.b16 %v743
        %v2793 = vunpack.c.l.b16 %v744
        %v2794 = vunpack.c.l.b16 %v745
        %v2795 = vunpack.c.l.b16 %v746
        %v2796 = vunpack.c.l.b16 %v747
        %v2797 = vunpack.c.l.b16 %v748
        %v2798 = vunpack.c.l.b16 %v749
        %v2799 = vunpack.c.l.b16 %v750
        %v2800 = vunpack.c.l.b16 %v751
        %v2801 = vunpack.c.l.b16 %v752
        %v2802 = vunpack.c.l.b16 %v753
        %v2803 = vunpack.c.l.b16 %v754
        %v2804 = vunpack.c.l.b16 %v755
        %v2805 = vunpack.c.l.b16 %v756
        %v2806 = vunpack.c.l.b16 %v757
        %v2807 = vunpack.c.l.b16 %v758
        %v2808 = vunpack.c.l.b16 %v759
        %v2809 = vunpack.c.l.b16 %v760
        %v2810 = vunpack.c.l.b16 %v761
        %v2811 = vunpack.c.l.b16 %v762
        %v2812 = vunpack.c.l.b16 %v763
        %v2813 = vunpack.c.l.b16 %v764
        %v2814 = vunpack.c.l.b16 %v765
        %v2815 = vunpack.c.l.b16 %v766
        %v2816 = vunpack.c.l.b16 %v767
        %v2817 = vunpack.c.l.b16 %v768
        %v2818 = vunpack.c.l.b16 %v769
        %v2819 = vunpack.c.l.b16 %v770
        %v2820 = vunpack.c.l.b16 %v771
        %v2821 = vunpack.c.l.b16 %v772
        %v2822 = vunpack.c.l.b16 %v773
        %v2823 = vunpack.c.l.b16 %v774
        %v2824 = vunpack.c.l.b16 %v775
        %v2825 = vunpack.c.l.b16 %v776
        %v2826 = vunpack.c.l.b16 %v777
        %v2827 = vunpack.c.l.b16 %v778
        %v2828 = vunpack.c.l.b16 %v779
        %v2829 = vunpack.c.l.b16 %v780
        %v2830 = vunpack.c.l.b16 %v781
        %v2831 = vunpack.c.l.b16 %v782
        %v2832 = vunpack.c.l.b16 %v783
        %v2833 = vunpack.c.l.b16 %v784
        %v2834 = vunpack.c.l.b16 %v785
        %v2835 = vunpack.c.l.b16 %v786
        %v2836 = vunpack.c.l.b16 %v787
        %v2837 = vunpack.c.l.b16 %v788
        %v2838 = vunpack.c.l.b16 %v789
        %v2839 = vunpack.c.l.b16 %v790
        %v2840 = vunpack.c.l.b16 %v791
        %v2841 = vunpack.c.l.b16 %v792
        %v2842 = vunpack.c.l.b16 %v793
        %v2843 = vunpack.c.l.b16 %v794
        %v2844 = vunpack.c.l.b16 %v795
        %v2845 = vunpack.c.l.b16 %v796
        %v2846 = vunpack.c.l.b16 %v797
        %v2847 = vunpack.c.l.b16 %v798
        %v2848 = vunpack.c.l.b16 %v799
        %v2849 = vunpack.c.l.b16 %v800
        %v2850 = vunpack.c.l.b16 %v801
        %v2851 = vunpack.c.l.b16 %v802
        %v2852 = vunpack.c.l.b16 %v803
        %v2853 = vunpack.c.l.b16 %v804
        %v2854 = vunpack.c.l.b16 %v805
        %v2855 = vunpack.c.l.b16 %v806
        %v2856 = vunpack.c.l.b16 %v807
        %v2857 = vunpack.c.l.b16 %v808
        %v2858 = vunpack.c.l.b16 %v809
        %v2859 = vunpack.c.l.b16 %v810
        %v2860 = vunpack.c.l.b16 %v811
        %v2861 = vunpack.c.l.b16 %v812
        %v2862 = vunpack.c.l.b16 %v813
        %v2863 = vunpack.c.l.b16 %v814
        %v2864 = vunpack.c.l.b16 %v815
        %v2865 = vunpack.c.l.b16 %v816
        %v2866 = vunpack.c.l.b16 %v817
        %v2867 = vunpack.c.l.b16 %v818
        %v2868 = vunpack.c.l.b16 %v819
        %v2869 = vunpack.c.l.b16 %v820
        %v2870 = vunpack.c.l.b16 %v821
        %v2871 = vunpack.c.l.b16 %v822
        %v2872 = vunpack.c.l.b16 %v823
        %v2873 = vunpack.c.l.b16 %v824
        %v2874 = vunpack.c.l.b16 %v825
        %v2875 = vunpack.c.l.b16 %v826
        %v2876 = vunpack.c.l.b16 %v827
        %v2877 = vunpack.c.l.b16 %v828
        %v2878 = vunpack.c.l.b16 %v829
        %v2879 = vunpack.c.l.b16 %v830
        %v2880 = vunpack.c.l.b16 %v831
        %v2881 = vunpack.c.l.b16 %v832
        %v2882 = vunpack.c.l.b16 %v833
        %v2883 = vunpack.c.l.b16 %v834
        %v2884 = vunpack.c.l.b16 %v835
        %v2885 = vunpack.c.l.b16 %v836
        %v2886 = vunpack.c.l.b16 %v837
        %v2887 = vunpack.c.l.b16 %v838
        %v2888 = vunpack.c.l.b16 %v839
        %v2889 = vunpack.c.l.b16 %v840
        %v2890 = vunpack.c.l.b16 %v841
        %v2891 = vunpack.c.l.b16 %v842
        %v2892 = vunpack.c.l.b16 %v843
        %v2893 = vunpack.c.l.b16 %v844
        %v2894 = vunpack.c.l.b16 %v845
        %v2895 = vunpack.c.l.b16 %v846
        %v2896 = vunpack.c.l.b16 %v847
        %v2897 = vunpack.c.l.b16 %v848
        %v2898 = vunpack.c.l.b16 %v849
        %v2899 = vunpack.c.l.b16 %v850
        %v2900 = vunpack.c.l.b16 %v851
        %v2901 = vunpack.c.l.b16 %v852
        %v2902 = vunpack.c.l.b16 %v853
        %v2903 = vunpack.c.l.b16 %v854
        %v2904 = vunpack.c.l.b16 %v855
        %v2905 = vunpack.c.l.b16 %v856
        %v2906 = vunpack.c.l.b16 %v857
        %v2907 = vunpack.c.l.b16 %v858
        %v2908 = vunpack.c.l.b16 %v859
        %v2909 = vunpack.c.l.b16 %v860
        %v2910 = vunpack.c.l.b16 %v861
        %v2911 = vunpack.c.l.b16 %v862
        %v2912 = vunpack.c.l.b16 %v863
        %v2913 = vunpack.c.l.b16 %v864
        %v2914 = vunpack.c.l.b16 %v865
        %v2915 = vpack.c.b16 %v2660, %v2659
        %v2916 = vpack.c.b16 %v2662, %v2661
        %v2917 = vpack.c.b16 %v2664, %v2663
        %v2918 = vpack.c.b16 %v2666, %v2665
        %v2919 = vpack.c.b16 %v2668, %v2667
        %v2920 = vpack.c.b16 %v2670, %v2669
        %v2921 = vpack.c.b16 %v2672, %v2671
        %v2922 = vpack.c.b16 %v2674, %v2673
        %v2923 = vpack.c.b16 %v2676, %v2675
        %v2924 = vpack.c.b16 %v2678, %v2677
        %v2925 = vpack.c.b16 %v2680, %v2679
        %v2926 = vpack.c.b16 %v2682, %v2681
        %v2927 = vpack.c.b16 %v2684, %v2683
        %v2928 = vpack.c.b16 %v2686, %v2685
        %v2929 = vpack.c.b16 %v2688, %v2687
        %v2930 = vpack.c.b16 %v2690, %v2689
        %v2931 = vpack.c.b16 %v2692, %v2691
        %v2932 = vpack.c.b16 %v2694, %v2693
        %v2933 = vpack.c.b16 %v2696, %v2695
        %v2934 = vpack.c.b16 %v2698, %v2697
        %v2935 = vpack.c.b16 %v2700, %v2699
        %v2936 = vpack.c.b16 %v2702, %v2701
        %v2937 = vpack.c.b16 %v2704, %v2703
        %v2938 = vpack.c.b16 %v2706, %v2705
        %v2939 = vpack.c.b16 %v2708, %v2707
        %v2940 = vpack.c.b16 %v2710, %v2709
        %v2941 = vpack.c.b16 %v2712, %v2711
        %v2942 = vpack.c.b16 %v2714, %v2713
        %v2943 = vpack.c.b16 %v2716, %v2715
        %v2944 = vpack.c.b16 %v2718, %v2717
        %v2945 = vpack.c.b16 %v2720, %v2719
        %v2946 = vpack.c.b16 %v2722, %v2721
        %v2947 = vpack.c.b16 %v2724, %v2723
        %v2948 = vpack.c.b16 %v2726, %v2725
        %v2949 = vpack.c.b16 %v2728, %v2727
        %v2950 = vpack.c.b16 %v2730, %v2729
        %v2951 = vpack.c.b16 %v2732, %v2731
        %v2952 = vpack.c.b16 %v2734, %v2733
        %v2953 = vpack.c.b16 %v2736, %v2735
        %v2954 = vpack.c.b16 %v2738, %v2737
        %v2955 = vpack.c.b16 %v2740, %v2739
        %v2956 = vpack.c.b16 %v2742, %v2741
        %v2957 = vpack.c.b16 %v2744, %v2743
        %v2958 = vpack.c.b16 %v2746, %v2745
        %v2959 = vpack.c.b16 %v2748, %v2747
        %v2960 = vpack.c.b16 %v2750, %v2749
        %v2961 = vpack.c.b16 %v2752, %v2751
        %v2962 = vpack.c.b16 %v2754, %v2753
        %v2963 = vpack.c.b16 %v2756, %v2755
        %v2964 = vpack.c.b16 %v2758, %v2757
        %v2965 = vpack.c.b16 %v2760, %v2759
        %v2966 = vpack.c.b16 %v2762, %v2761
        %v2967 = vpack.c.b16 %v2764, %v2763
        %v2968 = vpack.c.b16 %v2766, %v2765
        %v2969 = vpack.c.b16 %v2768, %v2767
        %v2970 = vpack.c.b16 %v2770, %v2769
        %v2971 = vpack.c.b16 %v2772, %v2771
        %v2972 = vpack.c.b16 %v2774, %v2773
        %v2973 = vpack.c.b16 %v2776, %v2775
        %v2974 = vpack.c.b16 %v2778, %v2777
        %v2975 = vpack.c.b16 %v2780, %v2779
        %v2976 = vpack.c.b16 %v2782, %v2781
        %v2977 = vpack.c.b16 %v2784, %v2783
        %v2978 = vpack.c.b16 %v2786, %v2785
        %v2979 = vpack.c.b16 %v2788, %v2787
        %v2980 = vpack.c.b16 %v2790, %v2789
        %v2981 = vpack.c.b16 %v2792, %v2791
        %v2982 = vpack.c.b16 %v2794, %v2793
        %v2983 = vpack.c.b16 %v2796, %v2795
        %v2984 = vpack.c.b16 %v2798, %v2797
        %v2985 = vpack.c.b16 %v2800, %v2799
        %v2986 = vpack.c.b16 %v2802, %v2801
        %v2987 = vpack.c.b16 %v2804, %v2803
        %v2988 = vpack.c.b16 %v2806, %v2805
        %v2989 = vpack.c.b16 %v2808, %v2807
        %v2990 = vpack.c.b16 %v2810, %v2809
        %v2991 = vpack.c.b16 %v2812, %v2811
        %v2992 = vpack.c.b16 %v2814, %v2813
        %v2993 = vpack.c.b16 %v2816, %v2815
        %v2994 = vpack.c.b16 %v2818, %v2817
        %v2995 = vpack.c.b16 %v2820, %v2819
        %v2996 = vpack.c.b16 %v2822, %v2821
        %v2997 = vpack.c.b16 %v2824, %v2823
        %v2998 = vpack.c.b16 %v2826, %v2825
        %v2999 = vpack.c.b16 %v2828, %v2827
        %v3000 = vpack.c.b16 %v2830, %v2829
        %v3001 = vpack.c.b16 %v2832, %v2831
        %v3002 = vpack.c.b16 %v2834, %v2833
        %v3003 = vpack.c.b16 %v2836, %v2835
        %v3004 = vpack.c.b16 %v2838, %v2837
        %v3005 = vpack.c.b16 %v2840, %v2839
        %v3006 = vpack.c.b16 %v2842, %v2841
        %v3007 = vpack.c.b16 %v2844, %v2843
        %v3008 = vpack.c.b16 %v2846, %v2845
        %v3009 = vpack.c.b16 %v2848, %v2847
        %v3010 = vpack.c.b16 %v2850, %v2849
        %v3011 = vpack.c.b16 %v2852, %v2851
        %v3012 = vpack.c.b16 %v2854, %v2853
        %v3013 = vpack.c.b16 %v2856, %v2855
        %v3014 = vpack.c.b16 %v2858, %v2857
        %v3015 = vpack.c.b16 %v2860, %v2859
        %v3016 = vpack.c.b16 %v2862, %v2861
        %v3017 = vpack.c.b16 %v2864, %v2863
        %v3018 = vpack.c.b16 %v2866, %v2865
        %v3019 = vpack.c.b16 %v2868, %v2867
        %v3020 = vpack.c.b16 %v2870, %v2869
        %v3021 = vpack.c.b16 %v2872, %v2871
        %v3022 = vpack.c.b16 %v2874, %v2873
        %v3023 = vpack.c.b16 %v2876, %v2875
        %v3024 = vpack.c.b16 %v2878, %v2877
        %v3025 = vpack.c.b16 %v2880, %v2879
        %v3026 = vpack.c.b16 %v2882, %v2881
        %v3027 = vpack.c.b16 %v2884, %v2883
        %v3028 = vpack.c.b16 %v2886, %v2885
        %v3029 = vpack.c.b16 %v2888, %v2887
        %v3030 = vpack.c.b16 %v2890, %v2889
        %v3031 = vpack.c.b16 %v2892, %v2891
        %v3032 = vpack.c.b16 %v2894, %v2893
        %v3033 = vpack.c.b16 %v2896, %v2895
        %v3034 = vpack.c.b16 %v2898, %v2897
        %v3035 = vpack.c.b16 %v2900, %v2899
        %v3036 = vpack.c.b16 %v2902, %v2901
        %v3037 = vpack.c.b16 %v2904, %v2903
        %v3038 = vpack.c.b16 %v2906, %v2905
        %v3039 = vpack.c.b16 %v2908, %v2907
        %v3040 = vpack.c.b16 %v2910, %v2909
        %v3041 = vpack.c.b16 %v2912, %v2911
        %v3042 = vpack.c.b16 %v2914, %v2913
        %vm3043 = vcmask 31744
        %v3045 = vsel %vm3043, %v2915, 0
        %v3048 = vsel %vm3043, %v2916, 0
        %v3051 = vsel %vm3043, %v2917, 0
        %v3054 = vsel %vm3043, %v2918, 0
        %v3057 = vsel %vm3043, %v2919, 0
        %v3060 = vsel %vm3043, %v2920, 0
        %v3063 = vsel %vm3043, %v2921, 0
        %v3066 = vsel %vm3043, %v2922, 0
        %v3069 = vsel %vm3043, %v2923, 0
        %v3072 = vsel %vm3043, %v2924, 0
        %v3075 = vsel %vm3043, %v2925, 0
        %v3078 = vsel %vm3043, %v2926, 0
        %v3081 = vsel %vm3043, %v2927, 0
        %v3084 = vsel %vm3043, %v2928, 0
        %v3087 = vsel %vm3043, %v2929, 0
        %v3090 = vsel %vm3043, %v2930, 0
        %v3093 = vsel %vm3043, %v2931, 0
        %v3096 = vsel %vm3043, %v2932, 0
        %v3099 = vsel %vm3043, %v2933, 0
        %v3102 = vsel %vm3043, %v2934, 0
        %v3105 = vsel %vm3043, %v2935, 0
        %v3108 = vsel %vm3043, %v2936, 0
        %v3111 = vsel %vm3043, %v2937, 0
        %v3114 = vsel %vm3043, %v2938, 0
        %v3117 = vsel %vm3043, %v2939, 0
        %v3120 = vsel %vm3043, %v2940, 0
        %v3123 = vsel %vm3043, %v2941, 0
        %v3126 = vsel %vm3043, %v2942, 0
        %v3129 = vsel %vm3043, %v2943, 0
        %v3132 = vsel %vm3043, %v2944, 0
        %v3135 = vsel %vm3043, %v2945, 0
        %v3138 = vsel %vm3043, %v2946, 0
        %v3141 = vsel %vm3043, %v2947, 0
        %v3144 = vsel %vm3043, %v2948, 0
        %v3147 = vsel %vm3043, %v2949, 0
        %v3150 = vsel %vm3043, %v2950, 0
        %v3153 = vsel %vm3043, %v2951, 0
        %v3156 = vsel %vm3043, %v2952, 0
        %v3159 = vsel %vm3043, %v2953, 0
        %v3162 = vsel %vm3043, %v2954, 0
        %v3165 = vsel %vm3043, %v2955, 0
        %v3168 = vsel %vm3043, %v2956, 0
        %v3171 = vsel %vm3043, %v2957, 0
        %v3174 = vsel %vm3043, %v2958, 0
        %v3177 = vsel %vm3043, %v2959, 0
        %v3180 = vsel %vm3043, %v2960, 0
        %v3183 = vsel %vm3043, %v2961, 0
        %v3186 = vsel %vm3043, %v2962, 0
        %v3189 = vsel %vm3043, %v2963, 0
        %v3192 = vsel %vm3043, %v2964, 0
        %v3195 = vsel %vm3043, %v2965, 0
        %v3198 = vsel %vm3043, %v2966, 0
        %v3201 = vsel %vm3043, %v2967, 0
        %v3204 = vsel %vm3043, %v2968, 0
        %v3207 = vsel %vm3043, %v2969, 0
        %v3210 = vsel %vm3043, %v2970, 0
        %v3213 = vsel %vm3043, %v2971, 0
        %v3216 = vsel %vm3043, %v2972, 0
        %v3219 = vsel %vm3043, %v2973, 0
        %v3222 = vsel %vm3043, %v2974, 0
        %v3225 = vsel %vm3043, %v2975, 0
        %v3228 = vsel %vm3043, %v2976, 0
        %v3231 = vsel %vm3043, %v2977, 0
        %v3234 = vsel %vm3043, %v2978, 0
        %v3237 = vsel %vm3043, %v2979, 0
        %v3240 = vsel %vm3043, %v2980, 0
        %v3243 = vsel %vm3043, %v2981, 0
        %v3246 = vsel %vm3043, %v2982, 0
        %v3249 = vsel %vm3043, %v2983, 0
        %v3252 = vsel %vm3043, %v2984, 0
        %v3255 = vsel %vm3043, %v2985, 0
        %v3258 = vsel %vm3043, %v2986, 0
        %v3261 = vsel %vm3043, %v2987, 0
        %v3264 = vsel %vm3043, %v2988, 0
        %v3267 = vsel %vm3043, %v2989, 0
        %v3270 = vsel %vm3043, %v2990, 0
        %v3273 = vsel %vm3043, %v2991, 0
        %v3276 = vsel %vm3043, %v2992, 0
        %v3279 = vsel %vm3043, %v2993, 0
        %v3282 = vsel %vm3043, %v2994, 0
        %v3285 = vsel %vm3043, %v2995, 0
        %v3288 = vsel %vm3043, %v2996, 0
        %v3291 = vsel %vm3043, %v2997, 0
        %v3294 = vsel %vm3043, %v2998, 0
        %v3297 = vsel %vm3043, %v2999, 0
        %v3300 = vsel %vm3043, %v3000, 0
        %v3303 = vsel %vm3043, %v3001, 0
        %v3306 = vsel %vm3043, %v3002, 0
        %v3309 = vsel %vm3043, %v3003, 0
        %v3312 = vsel %vm3043, %v3004, 0
        %v3315 = vsel %vm3043, %v3005, 0
        %v3318 = vsel %vm3043, %v3006, 0
        %v3321 = vsel %vm3043, %v3007, 0
        %v3324 = vsel %vm3043, %v3008, 0
        %v3327 = vsel %vm3043, %v3009, 0
        %v3330 = vsel %vm3043, %v3010, 0
        %v3333 = vsel %vm3043, %v3011, 0
        %v3336 = vsel %vm3043, %v3012, 0
        %v3339 = vsel %vm3043, %v3013, 0
        %v3342 = vsel %vm3043, %v3014, 0
        %v3345 = vsel %vm3043, %v3015, 0
        %v3348 = vsel %vm3043, %v3016, 0
        %v3351 = vsel %vm3043, %v3017, 0
        %v3354 = vsel %vm3043, %v3018, 0
        %v3357 = vsel %vm3043, %v3019, 0
        %v3360 = vsel %vm3043, %v3020, 0
        %v3363 = vsel %vm3043, %v3021, 0
        %v3366 = vsel %vm3043, %v3022, 0
        %v3369 = vsel %vm3043, %v3023, 0
        %v3372 = vsel %vm3043, %v3024, 0
        %v3375 = vsel %vm3043, %v3025, 0
        %v3378 = vsel %vm3043, %v3026, 0
        %v3381 = vsel %vm3043, %v3027, 0
        %v3384 = vsel %vm3043, %v3028, 0
        %v3387 = vsel %vm3043, %v3029, 0
        %v3390 = vsel %vm3043, %v3030, 0
        %v3393 = vsel %vm3043, %v3031, 0
        %v3396 = vsel %vm3043, %v3032, 0
        %v3399 = vsel %vm3043, %v3033, 0
        %v3402 = vsel %vm3043, %v3034, 0
        %v3405 = vsel %vm3043, %v3035, 0
        %v3408 = vsel %vm3043, %v3036, 0
        %v3411 = vsel %vm3043, %v3037, 0
        %v3414 = vsel %vm3043, %v3038, 0
        %v3417 = vsel %vm3043, %v3039, 0
        %v3420 = vsel %vm3043, %v3040, 0
        %v3423 = vsel %vm3043, %v3041, 0
        %v3426 = vsel %vm3043, %v3042, 0
        %vm3428 = vcmask 1041408
        %v3430 = vsel %vm3428, %v866, 0
        %3432 = vmatprep.subr.bf16.mxu0 0
        %3433 = vmatpush1.bf16.msra.mxu0 %v3430
        %3434 = vmatprep.subr.bf16.mxu0 0
        %3435 = vmatpush1.bf16.msra.mxu0 0
        %3436 = vmatprep.subr.bf16.mxu0 0
        %3437 = vmatpush1.bf16.msra.mxu0 0
        %3438 = vmatprep.subr.bf16.mxu0 0
        %3439 = vmatpush1.bf16.msra.mxu0 0
        %3440 = vmatprep.subr.bf16.mxu0 0
        %3441 = vmatpush1.bf16.msra.mxu0 0
        %3442 = vmatprep.subr.bf16.mxu0 0
        %3443 = vmatpush1.bf16.msra.mxu0 0
        %3444 = vmatprep.subr.bf16.mxu0 0
        %3445 = vmatpush1.bf16.msra.mxu0 0
        %3446 = vmatprep.subr.bf16.mxu0 0
        %3447 = vmatpush1.bf16.msra.mxu0 0
        %3448 = vmatprep.subr.bf16.mxu0 0
        %3449 = vmatpush1.bf16.msra.mxu0 0
        %3450 = vmatprep.subr.bf16.mxu0 0
        %3451 = vmatpush1.bf16.msra.mxu0 0
        %3452 = vmatprep.subr.bf16.mxu0 0
        %3453 = vmatpush1.bf16.msra.mxu0 0
        %3454 = vmatprep.subr.bf16.mxu0 0
        %3455 = vmatpush1.bf16.msra.mxu0 0
        %3456 = vmatprep.subr.bf16.mxu0 0
        %3457 = vmatpush1.bf16.msra.mxu0 0
        %3458 = vmatprep.subr.bf16.mxu0 0
        %3459 = vmatpush1.bf16.msra.mxu0 0
        %3460 = vmatprep.subr.bf16.mxu0 0
        %3461 = vmatpush1.bf16.msra.mxu0 0
        %3462 = vmatprep.subr.bf16.mxu0 0
        %3463 = vmatpush1.bf16.msra.mxu0 0
        %3464 = vmatprep.mubr.bf16.mxu0 0
        %3465 = vmatmul.mubr.bf16.gmra.mrb[0].mxu0 %v3045
        %v3466 = vpop.f32.mrb[0].mxu0
        %v3467 = vadd.f32 %v1126, %v3466
        %v3468 = vpop.f32.mrb[0].mxu0
        %v3469 = vpop.f32.mrb[0].mxu0
        %v3470 = vadd.f32 %v1131, %v3469
        %v3471 = vpop.f32.mrb[0].mxu0
        %3472 = vmatprep.mubr.bf16.mxu0 0
        %3473 = vmatmul.mubr.bf16.gmra.mrb[0].mxu0 %v3048
        %v3474 = vpop.f32.mrb[0].mxu0
        %v3475 = vadd.f32 %v1136, %v3474
        %v3476 = vpop.f32.mrb[0].mxu0
        %v3477 = vpop.f32.mrb[0].mxu0
        %v3478 = vadd.f32 %v1141, %v3477
        %v3479 = vpop.f32.mrb[0].mxu0
        %3480 = vmatprep.mubr.bf16.mxu0 0
        %3481 = vmatmul.mubr.bf16.gmra.mrb[0].mxu0 %v3051
        %v3482 = vpop.f32.mrb[0].mxu0
        %v3483 = vadd.f32 %v1146, %v3482
        %v3484 = vpop.f32.mrb[0].mxu0
        %v3485 = vpop.f32.mrb[0].mxu0
        %v3486 = vadd.f32 %v1151, %v3485
        %v3487 = vpop.f32.mrb[0].mxu0
        %3488 = vmatprep.mubr.bf16.mxu0 0
        %3489 = vmatmul.mubr.bf16.gmra.mrb[0].mxu0 %v3054
        %v3490 = vpop.f32.mrb[0].mxu0
        %v3491 = vadd.f32 %v1156, %v3490
        %v3492 = vpop.f32.mrb[0].mxu0
        %v3493 = vpop.f32.mrb[0].mxu0
        %v3494 = vadd.f32 %v1161, %v3493
        %v3495 = vpop.f32.mrb[0].mxu0
        %3496 = vmatprep.mubr.bf16.mxu0 0
        %3497 = vmatmul.mubr.bf16.gmra.mrb[0].mxu0 %v3057
        %v3498 = vpop.f32.mrb[0].mxu0
        %v3499 = vadd.f32 %v1166, %v3498
        %v3500 = vpop.f32.mrb[0].mxu0
        %v3501 = vpop.f32.mrb[0].mxu0
        %v3502 = vadd.f32 %v1171, %v3501
        %v3503 = vpop.f32.mrb[0].mxu0
        %3504 = vmatprep.mubr.bf16.mxu0 0
        %3505 = vmatmul.mubr.bf16.gmra.mrb[0].mxu0 %v3060
        %v3506 = vpop.f32.mrb[0].mxu0
        %v3507 = vadd.f32 %v1176, %v3506
        %v3508 = vpop.f32.mrb[0].mxu0
        %v3509 = vpop.f32.mrb[0].mxu0
        %v3510 = vadd.f32 %v1181, %v3509
        %v3511 = vpop.f32.mrb[0].mxu0
        %3512 = vmatprep.mubr.bf16.mxu0 0
        %3513 = vmatmul.mubr.bf16.gmra.mrb[0].mxu0 %v3063
        %v3514 = vpop.f32.mrb[0].mxu0
        %v3515 = vadd.f32 %v1186, %v3514
        %v3516 = vpop.f32.mrb[0].mxu0
        %v3517 = vpop.f32.mrb[0].mxu0
        %v3518 = vadd.f32 %v1191, %v3517
        %v3519 = vpop.f32.mrb[0].mxu0
        %3520 = vmatprep.mubr.bf16.mxu0 0
        %3521 = vmatmul.mubr.bf16.gmra.mrb[0].mxu0 %v3066
        %v3522 = vpop.f32.mrb[0].mxu0
        %v3523 = vadd.f32 %v1196, %v3522
        %v3524 = vpop.f32.mrb[0].mxu0
        %v3525 = vpop.f32.mrb[0].mxu0
        %v3526 = vadd.f32 %v1201, %v3525
        %v3527 = vpop.f32.mrb[0].mxu0
        %3528 = vmatprep.mubr.bf16.mxu0 0
        %3529 = vmatmul.mubr.bf16.gmra.mrb[0].mxu0 %v3069
        %v3530 = vpop.f32.mrb[0].mxu0
        %v3531 = vadd.f32 %v1206, %v3530
        %v3532 = vpop.f32.mrb[0].mxu0
        %v3533 = vpop.f32.mrb[0].mxu0
        %v3534 = vadd.f32 %v1211, %v3533
        %v3535 = vpop.f32.mrb[0].mxu0
        %3536 = vmatprep.mubr.bf16.mxu0 0
        %3537 = vmatmul.mubr.bf16.gmra.mrb[0].mxu0 %v3072
        %v3538 = vpop.f32.mrb[0].mxu0
        %v3539 = vadd.f32 %v1216, %v3538
        %v3540 = vpop.f32.mrb[0].mxu0
        %v3541 = vpop.f32.mrb[0].mxu0
        %v3542 = vadd.f32 %v1221, %v3541
        %v3543 = vpop.f32.mrb[0].mxu0
        %3544 = vmatprep.mubr.bf16.mxu0 0
        %3545 = vmatmul.mubr.bf16.gmra.mrb[0].mxu0 %v3075
        %v3546 = vpop.f32.mrb[0].mxu0
        %v3547 = vadd.f32 %v1226, %v3546
        %v3548 = vpop.f32.mrb[0].mxu0
        %v3549 = vpop.f32.mrb[0].mxu0
        %v3550 = vadd.f32 %v1231, %v3549
        %v3551 = vpop.f32.mrb[0].mxu0
        %3552 = vmatprep.mubr.bf16.mxu0 0
        %3553 = vmatmul.mubr.bf16.gmra.mrb[0].mxu0 %v3078
        %v3554 = vpop.f32.mrb[0].mxu0
        %v3555 = vadd.f32 %v1236, %v3554
        %v3556 = vpop.f32.mrb[0].mxu0
        %v3557 = vpop.f32.mrb[0].mxu0
        %v3558 = vadd.f32 %v1241, %v3557
        %v3559 = vpop.f32.mrb[0].mxu0
        %3560 = vmatprep.mubr.bf16.mxu0 0
        %3561 = vmatmul.mubr.bf16.gmra.mrb[0].mxu0 %v3081
        %v3562 = vpop.f32.mrb[0].mxu0
        %v3563 = vadd.f32 %v1246, %v3562
        %v3564 = vpop.f32.mrb[0].mxu0
        %v3565 = vpop.f32.mrb[0].mxu0
        %v3566 = vadd.f32 %v1251, %v3565
        %v3567 = vpop.f32.mrb[0].mxu0
        %3568 = vmatprep.mubr.bf16.mxu0 0
        %3569 = vmatmul.mubr.bf16.gmra.mrb[0].mxu0 %v3084
        %v3570 = vpop.f32.mrb[0].mxu0
        %v3571 = vadd.f32 %v1256, %v3570
        %v3572 = vpop.f32.mrb[0].mxu0
        %v3573 = vpop.f32.mrb[0].mxu0
        %v3574 = vadd.f32 %v1261, %v3573
        %v3575 = vpop.f32.mrb[0].mxu0
        %3576 = vmatprep.mubr.bf16.mxu0 0
        %3577 = vmatmul.mubr.bf16.gmra.mrb[0].mxu0 %v3087
        %v3578 = vpop.f32.mrb[0].mxu0
        %v3579 = vadd.f32 %v1266, %v3578
        %v3580 = vpop.f32.mrb[0].mxu0
        %v3581 = vpop.f32.mrb[0].mxu0
        %v3582 = vadd.f32 %v1271, %v3581
        %v3583 = vpop.f32.mrb[0].mxu0
        %3584 = vmatprep.mubr.bf16.mxu0 0
        %3585 = vmatmul.mubr.bf16.gmra.mrb[0].mxu0 %v3090
        %v3586 = vpop.f32.mrb[0].mxu0
        %v3587 = vadd.f32 %v1276, %v3586
        %v3588 = vpop.f32.mrb[0].mxu0
        %v3589 = vpop.f32.mrb[0].mxu0
        %v3590 = vadd.f32 %v1281, %v3589
        %v3591 = vpop.f32.mrb[0].mxu0
        %3592 = vmatprep.mubr.bf16.mxu0 0
        %3593 = vmatmul.mubr.bf16.gmra.mrb[0].mxu0 %v3093
        %v3594 = vpop.f32.mrb[0].mxu0
        %v3595 = vadd.f32 %v1286, %v3594
        %v3596 = vpop.f32.mrb[0].mxu0
        %v3597 = vpop.f32.mrb[0].mxu0
        %v3598 = vadd.f32 %v1291, %v3597
        %v3599 = vpop.f32.mrb[0].mxu0
        %3600 = vmatprep.mubr.bf16.mxu0 0
        %3601 = vmatmul.mubr.bf16.gmra.mrb[0].mxu0 %v3096
        %v3602 = vpop.f32.mrb[0].mxu0
        %v3603 = vadd.f32 %v1296, %v3602
        %v3604 = vpop.f32.mrb[0].mxu0
        %v3605 = vpop.f32.mrb[0].mxu0
        %v3606 = vadd.f32 %v1301, %v3605
        %v3607 = vpop.f32.mrb[0].mxu0
        %3608 = vmatprep.mubr.bf16.mxu0 0
        %3609 = vmatmul.mubr.bf16.gmra.mrb[0].mxu0 %v3099
        %v3610 = vpop.f32.mrb[0].mxu0
        %v3611 = vadd.f32 %v1306, %v3610
        %v3612 = vpop.f32.mrb[0].mxu0
        %v3613 = vpop.f32.mrb[0].mxu0
        %v3614 = vadd.f32 %v1311, %v3613
        %v3615 = vpop.f32.mrb[0].mxu0
        %3616 = vmatprep.mubr.bf16.mxu0 0
        %3617 = vmatmul.mubr.bf16.gmra.mrb[0].mxu0 %v3102
        %v3618 = vpop.f32.mrb[0].mxu0
        %v3619 = vadd.f32 %v1316, %v3618
        %v3620 = vpop.f32.mrb[0].mxu0
        %v3621 = vpop.f32.mrb[0].mxu0
        %v3622 = vadd.f32 %v1321, %v3621
        %v3623 = vpop.f32.mrb[0].mxu0
        %3624 = vmatprep.mubr.bf16.mxu0 0
        %3625 = vmatmul.mubr.bf16.gmra.mrb[0].mxu0 %v3105
        %v3626 = vpop.f32.mrb[0].mxu0
        %v3627 = vadd.f32 %v1326, %v3626
        %v3628 = vpop.f32.mrb[0].mxu0
        %v3629 = vpop.f32.mrb[0].mxu0
        %v3630 = vadd.f32 %v1331, %v3629
        %v3631 = vpop.f32.mrb[0].mxu0
        %3632 = vmatprep.mubr.bf16.mxu0 0
        %3633 = vmatmul.mubr.bf16.gmra.mrb[0].mxu0 %v3108
        %v3634 = vpop.f32.mrb[0].mxu0
        %v3635 = vadd.f32 %v1336, %v3634
        %v3636 = vpop.f32.mrb[0].mxu0
        %v3637 = vpop.f32.mrb[0].mxu0
        %v3638 = vadd.f32 %v1341, %v3637
        %v3639 = vpop.f32.mrb[0].mxu0
        %3640 = vmatprep.mubr.bf16.mxu0 0
        %3641 = vmatmul.mubr.bf16.gmra.mrb[0].mxu0 %v3111
        %v3642 = vpop.f32.mrb[0].mxu0
        %v3643 = vadd.f32 %v1346, %v3642
        %v3644 = vpop.f32.mrb[0].mxu0
        %v3645 = vpop.f32.mrb[0].mxu0
        %v3646 = vadd.f32 %v1351, %v3645
        %v3647 = vpop.f32.mrb[0].mxu0
        %3648 = vmatprep.mubr.bf16.mxu0 0
        %3649 = vmatmul.mubr.bf16.gmra.mrb[0].mxu0 %v3114
        %v3650 = vpop.f32.mrb[0].mxu0
        %v3651 = vadd.f32 %v1356, %v3650
        %v3652 = vpop.f32.mrb[0].mxu0
        %v3653 = vpop.f32.mrb[0].mxu0
        %v3654 = vadd.f32 %v1361, %v3653
        %v3655 = vpop.f32.mrb[0].mxu0
        %3656 = vmatprep.mubr.bf16.mxu0 0
        %3657 = vmatmul.mubr.bf16.gmra.mrb[0].mxu0 %v3117
        %v3658 = vpop.f32.mrb[0].mxu0
        %v3659 = vadd.f32 %v1366, %v3658
        %v3660 = vpop.f32.mrb[0].mxu0
        %v3661 = vpop.f32.mrb[0].mxu0
        %v3662 = vadd.f32 %v1371, %v3661
        %v3663 = vpop.f32.mrb[0].mxu0
        %3664 = vmatprep.mubr.bf16.mxu0 0
        %3665 = vmatmul.mubr.bf16.gmra.mrb[0].mxu0 %v3120
        %v3666 = vpop.f32.mrb[0].mxu0
        %v3667 = vadd.f32 %v1376, %v3666
        %v3668 = vpop.f32.mrb[0].mxu0
        %v3669 = vpop.f32.mrb[0].mxu0
        %v3670 = vadd.f32 %v1381, %v3669
        %v3671 = vpop.f32.mrb[0].mxu0
        %3672 = vmatprep.mubr.bf16.mxu0 0
        %3673 = vmatmul.mubr.bf16.gmra.mrb[0].mxu0 %v3123
        %v3674 = vpop.f32.mrb[0].mxu0
        %v3675 = vadd.f32 %v1386, %v3674
        %v3676 = vpop.f32.mrb[0].mxu0
        %v3677 = vpop.f32.mrb[0].mxu0
        %v3678 = vadd.f32 %v1391, %v3677
        %v3679 = vpop.f32.mrb[0].mxu0
        %3680 = vmatprep.mubr.bf16.mxu0 0
        %3681 = vmatmul.mubr.bf16.gmra.mrb[0].mxu0 %v3126
        %v3682 = vpop.f32.mrb[0].mxu0
        %v3683 = vadd.f32 %v1396, %v3682
        %v3684 = vpop.f32.mrb[0].mxu0
        %v3685 = vpop.f32.mrb[0].mxu0
        %v3686 = vadd.f32 %v1401, %v3685
        %v3687 = vpop.f32.mrb[0].mxu0
        %3688 = vmatprep.mubr.bf16.mxu0 0
        %3689 = vmatmul.mubr.bf16.gmra.mrb[0].mxu0 %v3129
        %v3690 = vpop.f32.mrb[0].mxu0
        %v3691 = vadd.f32 %v1406, %v3690
        %v3692 = vpop.f32.mrb[0].mxu0
        %v3693 = vpop.f32.mrb[0].mxu0
        %v3694 = vadd.f32 %v1411, %v3693
        %v3695 = vpop.f32.mrb[0].mxu0
        %3696 = vmatprep.mubr.bf16.mxu0 0
        %3697 = vmatmul.mubr.bf16.gmra.mrb[0].mxu0 %v3132
        %v3698 = vpop.f32.mrb[0].mxu0
        %v3699 = vadd.f32 %v1416, %v3698
        %v3700 = vpop.f32.mrb[0].mxu0
        %v3701 = vpop.f32.mrb[0].mxu0
        %v3702 = vadd.f32 %v1421, %v3701
        %v3703 = vpop.f32.mrb[0].mxu0
        %3704 = vmatprep.mubr.bf16.mxu0 0
        %3705 = vmatmul.mubr.bf16.gmra.mrb[0].mxu0 %v3135
        %v3706 = vpop.f32.mrb[0].mxu0
        %v3707 = vadd.f32 %v1426, %v3706
        %v3708 = vpop.f32.mrb[0].mxu0
        %v3709 = vpop.f32.mrb[0].mxu0
        %v3710 = vadd.f32 %v1431, %v3709
        %v3711 = vpop.f32.mrb[0].mxu0
        %3712 = vmatprep.mubr.bf16.mxu0 0
        %3713 = vmatmul.mubr.bf16.gmra.mrb[0].mxu0 %v3138
        %v3714 = vpop.f32.mrb[0].mxu0
        %v3715 = vadd.f32 %v1436, %v3714
        %v3716 = vpop.f32.mrb[0].mxu0
        %v3717 = vpop.f32.mrb[0].mxu0
        %v3718 = vadd.f32 %v1441, %v3717
        %v3719 = vpop.f32.mrb[0].mxu0
        %3720 = vmatprep.mubr.bf16.mxu0 0
        %3721 = vmatmul.mubr.bf16.gmra.mrb[0].mxu0 %v3141
        %v3722 = vpop.f32.mrb[0].mxu0
        %v3723 = vadd.f32 %v1446, %v3722
        %v3724 = vpop.f32.mrb[0].mxu0
        %v3725 = vpop.f32.mrb[0].mxu0
        %v3726 = vadd.f32 %v1451, %v3725
        %v3727 = vpop.f32.mrb[0].mxu0
        %3728 = vmatprep.mubr.bf16.mxu0 0
        %3729 = vmatmul.mubr.bf16.gmra.mrb[0].mxu0 %v3144
        %v3730 = vpop.f32.mrb[0].mxu0
        %v3731 = vadd.f32 %v1456, %v3730
        %v3732 = vpop.f32.mrb[0].mxu0
        %v3733 = vpop.f32.mrb[0].mxu0
        %v3734 = vadd.f32 %v1461, %v3733
        %v3735 = vpop.f32.mrb[0].mxu0
        %3736 = vmatprep.mubr.bf16.mxu0 0
        %3737 = vmatmul.mubr.bf16.gmra.mrb[0].mxu0 %v3147
        %v3738 = vpop.f32.mrb[0].mxu0
        %v3739 = vadd.f32 %v1466, %v3738
        %v3740 = vpop.f32.mrb[0].mxu0
        %v3741 = vpop.f32.mrb[0].mxu0
        %v3742 = vadd.f32 %v1471, %v3741
        %v3743 = vpop.f32.mrb[0].mxu0
        %3744 = vmatprep.mubr.bf16.mxu0 0
        %3745 = vmatmul.mubr.bf16.gmra.mrb[0].mxu0 %v3150
        %v3746 = vpop.f32.mrb[0].mxu0
        %v3747 = vadd.f32 %v1476, %v3746
        %v3748 = vpop.f32.mrb[0].mxu0
        %v3749 = vpop.f32.mrb[0].mxu0
        %v3750 = vadd.f32 %v1481, %v3749
        %v3751 = vpop.f32.mrb[0].mxu0
        %3752 = vmatprep.mubr.bf16.mxu0 0
        %3753 = vmatmul.mubr.bf16.gmra.mrb[0].mxu0 %v3153
        %v3754 = vpop.f32.mrb[0].mxu0
        %v3755 = vadd.f32 %v1486, %v3754
        %v3756 = vpop.f32.mrb[0].mxu0
        %v3757 = vpop.f32.mrb[0].mxu0
        %v3758 = vadd.f32 %v1491, %v3757
        %v3759 = vpop.f32.mrb[0].mxu0
        %3760 = vmatprep.mubr.bf16.mxu0 0
        %3761 = vmatmul.mubr.bf16.gmra.mrb[0].mxu0 %v3156
        %v3762 = vpop.f32.mrb[0].mxu0
        %v3763 = vadd.f32 %v1496, %v3762
        %v3764 = vpop.f32.mrb[0].mxu0
        %v3765 = vpop.f32.mrb[0].mxu0
        %v3766 = vadd.f32 %v1501, %v3765
        %v3767 = vpop.f32.mrb[0].mxu0
        %3768 = vmatprep.mubr.bf16.mxu0 0
        %3769 = vmatmul.mubr.bf16.gmra.mrb[0].mxu0 %v3159
        %v3770 = vpop.f32.mrb[0].mxu0
        %v3771 = vadd.f32 %v1506, %v3770
        %v3772 = vpop.f32.mrb[0].mxu0
        %v3773 = vpop.f32.mrb[0].mxu0
        %v3774 = vadd.f32 %v1511, %v3773
        %v3775 = vpop.f32.mrb[0].mxu0
        %3776 = vmatprep.mubr.bf16.mxu0 0
        %3777 = vmatmul.mubr.bf16.gmra.mrb[0].mxu0 %v3162
        %v3778 = vpop.f32.mrb[0].mxu0
        %v3779 = vadd.f32 %v1516, %v3778
        %v3780 = vpop.f32.mrb[0].mxu0
        %v3781 = vpop.f32.mrb[0].mxu0
        %v3782 = vadd.f32 %v1521, %v3781
        %v3783 = vpop.f32.mrb[0].mxu0
        %3784 = vmatprep.mubr.bf16.mxu0 0
        %3785 = vmatmul.mubr.bf16.gmra.mrb[0].mxu0 %v3165
        %v3786 = vpop.f32.mrb[0].mxu0
        %v3787 = vadd.f32 %v1526, %v3786
        %v3788 = vpop.f32.mrb[0].mxu0
        %v3789 = vpop.f32.mrb[0].mxu0
        %v3790 = vadd.f32 %v1531, %v3789
        %v3791 = vpop.f32.mrb[0].mxu0
        %3792 = vmatprep.mubr.bf16.mxu0 0
        %3793 = vmatmul.mubr.bf16.gmra.mrb[0].mxu0 %v3168
        %v3794 = vpop.f32.mrb[0].mxu0
        %v3795 = vadd.f32 %v1536, %v3794
        %v3796 = vpop.f32.mrb[0].mxu0
        %v3797 = vpop.f32.mrb[0].mxu0
        %v3798 = vadd.f32 %v1541, %v3797
        %v3799 = vpop.f32.mrb[0].mxu0
        %3800 = vmatprep.mubr.bf16.mxu0 0
        %3801 = vmatmul.mubr.bf16.gmra.mrb[0].mxu0 %v3171
        %v3802 = vpop.f32.mrb[0].mxu0
        %v3803 = vadd.f32 %v1546, %v3802
        %v3804 = vpop.f32.mrb[0].mxu0
        %v3805 = vpop.f32.mrb[0].mxu0
        %v3806 = vadd.f32 %v1551, %v3805
        %v3807 = vpop.f32.mrb[0].mxu0
        %3808 = vmatprep.mubr.bf16.mxu0 0
        %3809 = vmatmul.mubr.bf16.gmra.mrb[0].mxu0 %v3174
        %v3810 = vpop.f32.mrb[0].mxu0
        %v3811 = vadd.f32 %v1556, %v3810
        %v3812 = vpop.f32.mrb[0].mxu0
        %v3813 = vpop.f32.mrb[0].mxu0
        %v3814 = vadd.f32 %v1561, %v3813
        %v3815 = vpop.f32.mrb[0].mxu0
        %3816 = vmatprep.mubr.bf16.mxu0 0
        %3817 = vmatmul.mubr.bf16.gmra.mrb[0].mxu0 %v3177
        %v3818 = vpop.f32.mrb[0].mxu0
        %v3819 = vadd.f32 %v1566, %v3818
        %v3820 = vpop.f32.mrb[0].mxu0
        %v3821 = vpop.f32.mrb[0].mxu0
        %v3822 = vadd.f32 %v1571, %v3821
        %v3823 = vpop.f32.mrb[0].mxu0
        %3824 = vmatprep.mubr.bf16.mxu0 0
        %3825 = vmatmul.mubr.bf16.gmra.mrb[0].mxu0 %v3180
        %v3826 = vpop.f32.mrb[0].mxu0
        %v3827 = vadd.f32 %v1576, %v3826
        %v3828 = vpop.f32.mrb[0].mxu0
        %v3829 = vpop.f32.mrb[0].mxu0
        %v3830 = vadd.f32 %v1581, %v3829
        %v3831 = vpop.f32.mrb[0].mxu0
        %3832 = vmatprep.mubr.bf16.mxu0 0
        %3833 = vmatmul.mubr.bf16.gmra.mrb[0].mxu0 %v3183
        %v3834 = vpop.f32.mrb[0].mxu0
        %v3835 = vadd.f32 %v1586, %v3834
        %v3836 = vpop.f32.mrb[0].mxu0
        %v3837 = vpop.f32.mrb[0].mxu0
        %v3838 = vadd.f32 %v1591, %v3837
        %v3839 = vpop.f32.mrb[0].mxu0
        %3840 = vmatprep.mubr.bf16.mxu0 0
        %3841 = vmatmul.mubr.bf16.gmra.mrb[0].mxu0 %v3186
        %v3842 = vpop.f32.mrb[0].mxu0
        %v3843 = vadd.f32 %v1596, %v3842
        %v3844 = vpop.f32.mrb[0].mxu0
        %v3845 = vpop.f32.mrb[0].mxu0
        %v3846 = vadd.f32 %v1601, %v3845
        %v3847 = vpop.f32.mrb[0].mxu0
        %3848 = vmatprep.mubr.bf16.mxu0 0
        %3849 = vmatmul.mubr.bf16.gmra.mrb[0].mxu0 %v3189
        %v3850 = vpop.f32.mrb[0].mxu0
        %v3851 = vadd.f32 %v1606, %v3850
        %v3852 = vpop.f32.mrb[0].mxu0
        %v3853 = vpop.f32.mrb[0].mxu0
        %v3854 = vadd.f32 %v1611, %v3853
        %v3855 = vpop.f32.mrb[0].mxu0
        %3856 = vmatprep.mubr.bf16.mxu0 0
        %3857 = vmatmul.mubr.bf16.gmra.mrb[0].mxu0 %v3192
        %v3858 = vpop.f32.mrb[0].mxu0
        %v3859 = vadd.f32 %v1616, %v3858
        %v3860 = vpop.f32.mrb[0].mxu0
        %v3861 = vpop.f32.mrb[0].mxu0
        %v3862 = vadd.f32 %v1621, %v3861
        %v3863 = vpop.f32.mrb[0].mxu0
        %3864 = vmatprep.mubr.bf16.mxu0 0
        %3865 = vmatmul.mubr.bf16.gmra.mrb[0].mxu0 %v3195
        %v3866 = vpop.f32.mrb[0].mxu0
        %v3867 = vadd.f32 %v1626, %v3866
        %v3868 = vpop.f32.mrb[0].mxu0
        %v3869 = vpop.f32.mrb[0].mxu0
        %v3870 = vadd.f32 %v1631, %v3869
        %v3871 = vpop.f32.mrb[0].mxu0
        %3872 = vmatprep.mubr.bf16.mxu0 0
        %3873 = vmatmul.mubr.bf16.gmra.mrb[0].mxu0 %v3198
        %v3874 = vpop.f32.mrb[0].mxu0
        %v3875 = vadd.f32 %v1636, %v3874
        %v3876 = vpop.f32.mrb[0].mxu0
        %v3877 = vpop.f32.mrb[0].mxu0
        %v3878 = vadd.f32 %v1641, %v3877
        %v3879 = vpop.f32.mrb[0].mxu0
        %3880 = vmatprep.mubr.bf16.mxu0 0
        %3881 = vmatmul.mubr.bf16.gmra.mrb[0].mxu0 %v3201
        %v3882 = vpop.f32.mrb[0].mxu0
        %v3883 = vadd.f32 %v1646, %v3882
        %v3884 = vpop.f32.mrb[0].mxu0
        %v3885 = vpop.f32.mrb[0].mxu0
        %v3886 = vadd.f32 %v1651, %v3885
        %v3887 = vpop.f32.mrb[0].mxu0
        %3888 = vmatprep.mubr.bf16.mxu0 0
        %3889 = vmatmul.mubr.bf16.gmra.mrb[0].mxu0 %v3204
        %v3890 = vpop.f32.mrb[0].mxu0
        %v3891 = vadd.f32 %v1656, %v3890
        %v3892 = vpop.f32.mrb[0].mxu0
        %v3893 = vpop.f32.mrb[0].mxu0
        %v3894 = vadd.f32 %v1661, %v3893
        %v3895 = vpop.f32.mrb[0].mxu0
        %3896 = vmatprep.mubr.bf16.mxu0 0
        %3897 = vmatmul.mubr.bf16.gmra.mrb[0].mxu0 %v3207
        %v3898 = vpop.f32.mrb[0].mxu0
        %v3899 = vadd.f32 %v1666, %v3898
        %v3900 = vpop.f32.mrb[0].mxu0
        %v3901 = vpop.f32.mrb[0].mxu0
        %v3902 = vadd.f32 %v1671, %v3901
        %v3903 = vpop.f32.mrb[0].mxu0
        %3904 = vmatprep.mubr.bf16.mxu0 0
        %3905 = vmatmul.mubr.bf16.gmra.mrb[0].mxu0 %v3210
        %v3906 = vpop.f32.mrb[0].mxu0
        %v3907 = vadd.f32 %v1676, %v3906
        %v3908 = vpop.f32.mrb[0].mxu0
        %v3909 = vpop.f32.mrb[0].mxu0
        %v3910 = vadd.f32 %v1681, %v3909
        %v3911 = vpop.f32.mrb[0].mxu0
        %3912 = vmatprep.mubr.bf16.mxu0 0
        %3913 = vmatmul.mubr.bf16.gmra.mrb[0].mxu0 %v3213
        %v3914 = vpop.f32.mrb[0].mxu0
        %v3915 = vadd.f32 %v1686, %v3914
        %v3916 = vpop.f32.mrb[0].mxu0
        %v3917 = vpop.f32.mrb[0].mxu0
        %v3918 = vadd.f32 %v1691, %v3917
        %v3919 = vpop.f32.mrb[0].mxu0
        %3920 = vmatprep.mubr.bf16.mxu0 0
        %3921 = vmatmul.mubr.bf16.gmra.mrb[0].mxu0 %v3216
        %v3922 = vpop.f32.mrb[0].mxu0
        %v3923 = vadd.f32 %v1696, %v3922
        %v3924 = vpop.f32.mrb[0].mxu0
        %v3925 = vpop.f32.mrb[0].mxu0
        %v3926 = vadd.f32 %v1701, %v3925
        %v3927 = vpop.f32.mrb[0].mxu0
        %3928 = vmatprep.mubr.bf16.mxu0 0
        %3929 = vmatmul.mubr.bf16.gmra.mrb[0].mxu0 %v3219
        %v3930 = vpop.f32.mrb[0].mxu0
        %v3931 = vadd.f32 %v1706, %v3930
        %v3932 = vpop.f32.mrb[0].mxu0
        %v3933 = vpop.f32.mrb[0].mxu0
        %v3934 = vadd.f32 %v1711, %v3933
        %v3935 = vpop.f32.mrb[0].mxu0
        %3936 = vmatprep.mubr.bf16.mxu0 0
        %3937 = vmatmul.mubr.bf16.gmra.mrb[0].mxu0 %v3222
        %v3938 = vpop.f32.mrb[0].mxu0
        %v3939 = vadd.f32 %v1716, %v3938
        %v3940 = vpop.f32.mrb[0].mxu0
        %v3941 = vpop.f32.mrb[0].mxu0
        %v3942 = vadd.f32 %v1721, %v3941
        %v3943 = vpop.f32.mrb[0].mxu0
        %3944 = vmatprep.mubr.bf16.mxu0 0
        %3945 = vmatmul.mubr.bf16.gmra.mrb[0].mxu0 %v3225
        %v3946 = vpop.f32.mrb[0].mxu0
        %v3947 = vadd.f32 %v1726, %v3946
        %v3948 = vpop.f32.mrb[0].mxu0
        %v3949 = vpop.f32.mrb[0].mxu0
        %v3950 = vadd.f32 %v1731, %v3949
        %v3951 = vpop.f32.mrb[0].mxu0
        %3952 = vmatprep.mubr.bf16.mxu0 0
        %3953 = vmatmul.mubr.bf16.gmra.mrb[0].mxu0 %v3228
        %v3954 = vpop.f32.mrb[0].mxu0
        %v3955 = vadd.f32 %v1736, %v3954
        %v3956 = vpop.f32.mrb[0].mxu0
        %v3957 = vpop.f32.mrb[0].mxu0
        %v3958 = vadd.f32 %v1741, %v3957
        %v3959 = vpop.f32.mrb[0].mxu0
        %3960 = vmatprep.mubr.bf16.mxu0 0
        %3961 = vmatmul.mubr.bf16.gmra.mrb[0].mxu0 %v3231
        %v3962 = vpop.f32.mrb[0].mxu0
        %v3963 = vadd.f32 %v1746, %v3962
        %v3964 = vpop.f32.mrb[0].mxu0
        %v3965 = vpop.f32.mrb[0].mxu0
        %v3966 = vadd.f32 %v1751, %v3965
        %v3967 = vpop.f32.mrb[0].mxu0
        %3968 = vmatprep.mubr.bf16.mxu0 0
        %3969 = vmatmul.mubr.bf16.gmra.mrb[0].mxu0 %v3234
        %v3970 = vpop.f32.mrb[0].mxu0
        %v3971 = vadd.f32 %v1756, %v3970
        %v3972 = vpop.f32.mrb[0].mxu0
        %v3973 = vpop.f32.mrb[0].mxu0
        %v3974 = vadd.f32 %v1761, %v3973
        %v3975 = vpop.f32.mrb[0].mxu0
        %3976 = vmatprep.mubr.bf16.mxu0 0
        %3977 = vmatmul.mubr.bf16.gmra.mrb[0].mxu0 %v3237
        %v3978 = vpop.f32.mrb[0].mxu0
        %v3979 = vadd.f32 %v1766, %v3978
        %v3980 = vpop.f32.mrb[0].mxu0
        %v3981 = vpop.f32.mrb[0].mxu0
        %v3982 = vadd.f32 %v1771, %v3981
        %v3983 = vpop.f32.mrb[0].mxu0
        %3984 = vmatprep.mubr.bf16.mxu0 0
        %3985 = vmatmul.mubr.bf16.gmra.mrb[0].mxu0 %v3240
        %v3986 = vpop.f32.mrb[0].mxu0
        %v3987 = vadd.f32 %v1776, %v3986
        %v3988 = vpop.f32.mrb[0].mxu0
        %v3989 = vpop.f32.mrb[0].mxu0
        %v3990 = vadd.f32 %v1781, %v3989
        %v3991 = vpop.f32.mrb[0].mxu0
        %3992 = vmatprep.mubr.bf16.mxu0 0
        %3993 = vmatmul.mubr.bf16.gmra.mrb[0].mxu0 %v3243
        %v3994 = vpop.f32.mrb[0].mxu0
        %v3995 = vadd.f32 %v1786, %v3994
        %v3996 = vpop.f32.mrb[0].mxu0
        %v3997 = vpop.f32.mrb[0].mxu0
        %v3998 = vadd.f32 %v1791, %v3997
        %v3999 = vpop.f32.mrb[0].mxu0
        %4000 = vmatprep.mubr.bf16.mxu0 0
        %4001 = vmatmul.mubr.bf16.gmra.mrb[0].mxu0 %v3246
        %v4002 = vpop.f32.mrb[0].mxu0
        %v4003 = vadd.f32 %v1796, %v4002
        %v4004 = vpop.f32.mrb[0].mxu0
        %v4005 = vpop.f32.mrb[0].mxu0
        %v4006 = vadd.f32 %v1801, %v4005
        %v4007 = vpop.f32.mrb[0].mxu0
        %4008 = vmatprep.mubr.bf16.mxu0 0
        %4009 = vmatmul.mubr.bf16.gmra.mrb[0].mxu0 %v3249
        %v4010 = vpop.f32.mrb[0].mxu0
        %v4011 = vadd.f32 %v1806, %v4010
        %v4012 = vpop.f32.mrb[0].mxu0
        %v4013 = vpop.f32.mrb[0].mxu0
        %v4014 = vadd.f32 %v1811, %v4013
        %v4015 = vpop.f32.mrb[0].mxu0
        %4016 = vmatprep.mubr.bf16.mxu0 0
        %4017 = vmatmul.mubr.bf16.gmra.mrb[0].mxu0 %v3252
        %v4018 = vpop.f32.mrb[0].mxu0
        %v4019 = vadd.f32 %v1816, %v4018
        %v4020 = vpop.f32.mrb[0].mxu0
        %v4021 = vpop.f32.mrb[0].mxu0
        %v4022 = vadd.f32 %v1821, %v4021
        %v4023 = vpop.f32.mrb[0].mxu0
        %4024 = vmatprep.mubr.bf16.mxu0 0
        %4025 = vmatmul.mubr.bf16.gmra.mrb[0].mxu0 %v3255
        %v4026 = vpop.f32.mrb[0].mxu0
        %v4027 = vadd.f32 %v1826, %v4026
        %v4028 = vpop.f32.mrb[0].mxu0
        %v4029 = vpop.f32.mrb[0].mxu0
        %v4030 = vadd.f32 %v1831, %v4029
        %v4031 = vpop.f32.mrb[0].mxu0
        %4032 = vmatprep.mubr.bf16.mxu0 0
        %4033 = vmatmul.mubr.bf16.gmra.mrb[0].mxu0 %v3258
        %v4034 = vpop.f32.mrb[0].mxu0
        %v4035 = vadd.f32 %v1836, %v4034
        %v4036 = vpop.f32.mrb[0].mxu0
        %v4037 = vpop.f32.mrb[0].mxu0
        %v4038 = vadd.f32 %v1841, %v4037
        %v4039 = vpop.f32.mrb[0].mxu0
        %4040 = vmatprep.mubr.bf16.mxu0 0
        %4041 = vmatmul.mubr.bf16.gmra.mrb[0].mxu0 %v3261
        %v4042 = vpop.f32.mrb[0].mxu0
        %v4043 = vadd.f32 %v1846, %v4042
        %v4044 = vpop.f32.mrb[0].mxu0
        %v4045 = vpop.f32.mrb[0].mxu0
        %v4046 = vadd.f32 %v1851, %v4045
        %v4047 = vpop.f32.mrb[0].mxu0
        %4048 = vmatprep.mubr.bf16.mxu0 0
        %4049 = vmatmul.mubr.bf16.gmra.mrb[0].mxu0 %v3264
        %v4050 = vpop.f32.mrb[0].mxu0
        %v4051 = vadd.f32 %v1856, %v4050
        %v4052 = vpop.f32.mrb[0].mxu0
        %v4053 = vpop.f32.mrb[0].mxu0
        %v4054 = vadd.f32 %v1861, %v4053
        %v4055 = vpop.f32.mrb[0].mxu0
        %4056 = vmatprep.mubr.bf16.mxu0 0
        %4057 = vmatmul.mubr.bf16.gmra.mrb[0].mxu0 %v3267
        %v4058 = vpop.f32.mrb[0].mxu0
        %v4059 = vadd.f32 %v1866, %v4058
        %v4060 = vpop.f32.mrb[0].mxu0
        %v4061 = vpop.f32.mrb[0].mxu0
        %v4062 = vadd.f32 %v1871, %v4061
        %v4063 = vpop.f32.mrb[0].mxu0
        %4064 = vmatprep.mubr.bf16.mxu0 0
        %4065 = vmatmul.mubr.bf16.gmra.mrb[0].mxu0 %v3270
        %v4066 = vpop.f32.mrb[0].mxu0
        %v4067 = vadd.f32 %v1876, %v4066
        %v4068 = vpop.f32.mrb[0].mxu0
        %v4069 = vpop.f32.mrb[0].mxu0
        %v4070 = vadd.f32 %v1881, %v4069
        %v4071 = vpop.f32.mrb[0].mxu0
        %4072 = vmatprep.mubr.bf16.mxu0 0
        %4073 = vmatmul.mubr.bf16.gmra.mrb[0].mxu0 %v3273
        %v4074 = vpop.f32.mrb[0].mxu0
        %v4075 = vadd.f32 %v1886, %v4074
        %v4076 = vpop.f32.mrb[0].mxu0
        %v4077 = vpop.f32.mrb[0].mxu0
        %v4078 = vadd.f32 %v1891, %v4077
        %v4079 = vpop.f32.mrb[0].mxu0
        %4080 = vmatprep.mubr.bf16.mxu0 0
        %4081 = vmatmul.mubr.bf16.gmra.mrb[0].mxu0 %v3276
        %v4082 = vpop.f32.mrb[0].mxu0
        %v4083 = vadd.f32 %v1896, %v4082
        %v4084 = vpop.f32.mrb[0].mxu0
        %v4085 = vpop.f32.mrb[0].mxu0
        %v4086 = vadd.f32 %v1901, %v4085
        %v4087 = vpop.f32.mrb[0].mxu0
        %4088 = vmatprep.mubr.bf16.mxu0 0
        %4089 = vmatmul.mubr.bf16.gmra.mrb[0].mxu0 %v3279
        %v4090 = vpop.f32.mrb[0].mxu0
        %v4091 = vadd.f32 %v1906, %v4090
        %v4092 = vpop.f32.mrb[0].mxu0
        %v4093 = vpop.f32.mrb[0].mxu0
        %v4094 = vadd.f32 %v1911, %v4093
        %v4095 = vpop.f32.mrb[0].mxu0
        %4096 = vmatprep.mubr.bf16.mxu0 0
        %4097 = vmatmul.mubr.bf16.gmra.mrb[0].mxu0 %v3282
        %v4098 = vpop.f32.mrb[0].mxu0
        %v4099 = vadd.f32 %v1916, %v4098
        %v4100 = vpop.f32.mrb[0].mxu0
        %v4101 = vpop.f32.mrb[0].mxu0
        %v4102 = vadd.f32 %v1921, %v4101
        %v4103 = vpop.f32.mrb[0].mxu0
        %4104 = vmatprep.mubr.bf16.mxu0 0
        %4105 = vmatmul.mubr.bf16.gmra.mrb[0].mxu0 %v3285
        %v4106 = vpop.f32.mrb[0].mxu0
        %v4107 = vadd.f32 %v1926, %v4106
        %v4108 = vpop.f32.mrb[0].mxu0
        %v4109 = vpop.f32.mrb[0].mxu0
        %v4110 = vadd.f32 %v1931, %v4109
        %v4111 = vpop.f32.mrb[0].mxu0
        %4112 = vmatprep.mubr.bf16.mxu0 0
        %4113 = vmatmul.mubr.bf16.gmra.mrb[0].mxu0 %v3288
        %v4114 = vpop.f32.mrb[0].mxu0
        %v4115 = vadd.f32 %v1936, %v4114
        %v4116 = vpop.f32.mrb[0].mxu0
        %v4117 = vpop.f32.mrb[0].mxu0
        %v4118 = vadd.f32 %v1941, %v4117
        %v4119 = vpop.f32.mrb[0].mxu0
        %4120 = vmatprep.mubr.bf16.mxu0 0
        %4121 = vmatmul.mubr.bf16.gmra.mrb[0].mxu0 %v3291
        %v4122 = vpop.f32.mrb[0].mxu0
        %v4123 = vadd.f32 %v1946, %v4122
        %v4124 = vpop.f32.mrb[0].mxu0
        %v4125 = vpop.f32.mrb[0].mxu0
        %v4126 = vadd.f32 %v1951, %v4125
        %v4127 = vpop.f32.mrb[0].mxu0
        %4128 = vmatprep.mubr.bf16.mxu0 0
        %4129 = vmatmul.mubr.bf16.gmra.mrb[0].mxu0 %v3294
        %v4130 = vpop.f32.mrb[0].mxu0
        %v4131 = vadd.f32 %v1956, %v4130
        %v4132 = vpop.f32.mrb[0].mxu0
        %v4133 = vpop.f32.mrb[0].mxu0
        %v4134 = vadd.f32 %v1961, %v4133
        %v4135 = vpop.f32.mrb[0].mxu0
        %4136 = vmatprep.mubr.bf16.mxu0 0
        %4137 = vmatmul.mubr.bf16.gmra.mrb[0].mxu0 %v3297
        %v4138 = vpop.f32.mrb[0].mxu0
        %v4139 = vadd.f32 %v1966, %v4138
        %v4140 = vpop.f32.mrb[0].mxu0
        %v4141 = vpop.f32.mrb[0].mxu0
        %v4142 = vadd.f32 %v1971, %v4141
        %v4143 = vpop.f32.mrb[0].mxu0
        %4144 = vmatprep.mubr.bf16.mxu0 0
        %4145 = vmatmul.mubr.bf16.gmra.mrb[0].mxu0 %v3300
        %v4146 = vpop.f32.mrb[0].mxu0
        %v4147 = vadd.f32 %v1976, %v4146
        %v4148 = vpop.f32.mrb[0].mxu0
        %v4149 = vpop.f32.mrb[0].mxu0
        %v4150 = vadd.f32 %v1981, %v4149
        %v4151 = vpop.f32.mrb[0].mxu0
        %4152 = vmatprep.mubr.bf16.mxu0 0
        %4153 = vmatmul.mubr.bf16.gmra.mrb[0].mxu0 %v3303
        %v4154 = vpop.f32.mrb[0].mxu0
        %v4155 = vadd.f32 %v1986, %v4154
        %v4156 = vpop.f32.mrb[0].mxu0
        %v4157 = vpop.f32.mrb[0].mxu0
        %v4158 = vadd.f32 %v1991, %v4157
        %v4159 = vpop.f32.mrb[0].mxu0
        %4160 = vmatprep.mubr.bf16.mxu0 0
        %4161 = vmatmul.mubr.bf16.gmra.mrb[0].mxu0 %v3306
        %v4162 = vpop.f32.mrb[0].mxu0
        %v4163 = vadd.f32 %v1996, %v4162
        %v4164 = vpop.f32.mrb[0].mxu0
        %v4165 = vpop.f32.mrb[0].mxu0
        %v4166 = vadd.f32 %v2001, %v4165
        %v4167 = vpop.f32.mrb[0].mxu0
        %4168 = vmatprep.mubr.bf16.mxu0 0
        %4169 = vmatmul.mubr.bf16.gmra.mrb[0].mxu0 %v3309
        %v4170 = vpop.f32.mrb[0].mxu0
        %v4171 = vadd.f32 %v2006, %v4170
        %v4172 = vpop.f32.mrb[0].mxu0
        %v4173 = vpop.f32.mrb[0].mxu0
        %v4174 = vadd.f32 %v2011, %v4173
        %v4175 = vpop.f32.mrb[0].mxu0
        %4176 = vmatprep.mubr.bf16.mxu0 0
        %4177 = vmatmul.mubr.bf16.gmra.mrb[0].mxu0 %v3312
        %v4178 = vpop.f32.mrb[0].mxu0
        %v4179 = vadd.f32 %v2016, %v4178
        %v4180 = vpop.f32.mrb[0].mxu0
        %v4181 = vpop.f32.mrb[0].mxu0
        %v4182 = vadd.f32 %v2021, %v4181
        %v4183 = vpop.f32.mrb[0].mxu0
        %4184 = vmatprep.mubr.bf16.mxu0 0
        %4185 = vmatmul.mubr.bf16.gmra.mrb[0].mxu0 %v3315
        %v4186 = vpop.f32.mrb[0].mxu0
        %v4187 = vadd.f32 %v2026, %v4186
        %v4188 = vpop.f32.mrb[0].mxu0
        %v4189 = vpop.f32.mrb[0].mxu0
        %v4190 = vadd.f32 %v2031, %v4189
        %v4191 = vpop.f32.mrb[0].mxu0
        %4192 = vmatprep.mubr.bf16.mxu0 0
        %4193 = vmatmul.mubr.bf16.gmra.mrb[0].mxu0 %v3318
        %v4194 = vpop.f32.mrb[0].mxu0
        %v4195 = vadd.f32 %v2036, %v4194
        %v4196 = vpop.f32.mrb[0].mxu0
        %v4197 = vpop.f32.mrb[0].mxu0
        %v4198 = vadd.f32 %v2041, %v4197
        %v4199 = vpop.f32.mrb[0].mxu0
        %4200 = vmatprep.mubr.bf16.mxu0 0
        %4201 = vmatmul.mubr.bf16.gmra.mrb[0].mxu0 %v3321
        %v4202 = vpop.f32.mrb[0].mxu0
        %v4203 = vadd.f32 %v2046, %v4202
        %v4204 = vpop.f32.mrb[0].mxu0
        %v4205 = vpop.f32.mrb[0].mxu0
        %v4206 = vadd.f32 %v2051, %v4205
        %v4207 = vpop.f32.mrb[0].mxu0
        %4208 = vmatprep.mubr.bf16.mxu0 0
        %4209 = vmatmul.mubr.bf16.gmra.mrb[0].mxu0 %v3324
        %v4210 = vpop.f32.mrb[0].mxu0
        %v4211 = vadd.f32 %v2056, %v4210
        %v4212 = vpop.f32.mrb[0].mxu0
        %v4213 = vpop.f32.mrb[0].mxu0
        %v4214 = vadd.f32 %v2061, %v4213
        %v4215 = vpop.f32.mrb[0].mxu0
        %4216 = vmatprep.mubr.bf16.mxu0 0
        %4217 = vmatmul.mubr.bf16.gmra.mrb[0].mxu0 %v3327
        %v4218 = vpop.f32.mrb[0].mxu0
        %v4219 = vadd.f32 %v2066, %v4218
        %v4220 = vpop.f32.mrb[0].mxu0
        %v4221 = vpop.f32.mrb[0].mxu0
        %v4222 = vadd.f32 %v2071, %v4221
        %v4223 = vpop.f32.mrb[0].mxu0
        %4224 = vmatprep.mubr.bf16.mxu0 0
        %4225 = vmatmul.mubr.bf16.gmra.mrb[0].mxu0 %v3330
        %v4226 = vpop.f32.mrb[0].mxu0
        %v4227 = vadd.f32 %v2076, %v4226
        %v4228 = vpop.f32.mrb[0].mxu0
        %v4229 = vpop.f32.mrb[0].mxu0
        %v4230 = vadd.f32 %v2081, %v4229
        %v4231 = vpop.f32.mrb[0].mxu0
        %4232 = vmatprep.mubr.bf16.mxu0 0
        %4233 = vmatmul.mubr.bf16.gmra.mrb[0].mxu0 %v3333
        %v4234 = vpop.f32.mrb[0].mxu0
        %v4235 = vadd.f32 %v2086, %v4234
        %v4236 = vpop.f32.mrb[0].mxu0
        %v4237 = vpop.f32.mrb[0].mxu0
        %v4238 = vadd.f32 %v2091, %v4237
        %v4239 = vpop.f32.mrb[0].mxu0
        %4240 = vmatprep.mubr.bf16.mxu0 0
        %4241 = vmatmul.mubr.bf16.gmra.mrb[0].mxu0 %v3336
        %v4242 = vpop.f32.mrb[0].mxu0
        %v4243 = vadd.f32 %v2096, %v4242
        %v4244 = vpop.f32.mrb[0].mxu0
        %v4245 = vpop.f32.mrb[0].mxu0
        %v4246 = vadd.f32 %v2101, %v4245
        %v4247 = vpop.f32.mrb[0].mxu0
        %4248 = vmatprep.mubr.bf16.mxu0 0
        %4249 = vmatmul.mubr.bf16.gmra.mrb[0].mxu0 %v3339
        %v4250 = vpop.f32.mrb[0].mxu0
        %v4251 = vadd.f32 %v2106, %v4250
        %v4252 = vpop.f32.mrb[0].mxu0
        %v4253 = vpop.f32.mrb[0].mxu0
        %v4254 = vadd.f32 %v2111, %v4253
        %v4255 = vpop.f32.mrb[0].mxu0
        %4256 = vmatprep.mubr.bf16.mxu0 0
        %4257 = vmatmul.mubr.bf16.gmra.mrb[0].mxu0 %v3342
        %v4258 = vpop.f32.mrb[0].mxu0
        %v4259 = vadd.f32 %v2116, %v4258
        %v4260 = vpop.f32.mrb[0].mxu0
        %v4261 = vpop.f32.mrb[0].mxu0
        %v4262 = vadd.f32 %v2121, %v4261
        %v4263 = vpop.f32.mrb[0].mxu0
        %4264 = vmatprep.mubr.bf16.mxu0 0
        %4265 = vmatmul.mubr.bf16.gmra.mrb[0].mxu0 %v3345
        %v4266 = vpop.f32.mrb[0].mxu0
        %v4267 = vadd.f32 %v2126, %v4266
        %v4268 = vpop.f32.mrb[0].mxu0
        %v4269 = vpop.f32.mrb[0].mxu0
        %v4270 = vadd.f32 %v2131, %v4269
        %v4271 = vpop.f32.mrb[0].mxu0
        %4272 = vmatprep.mubr.bf16.mxu0 0
        %4273 = vmatmul.mubr.bf16.gmra.mrb[0].mxu0 %v3348
        %v4274 = vpop.f32.mrb[0].mxu0
        %v4275 = vadd.f32 %v2136, %v4274
        %v4276 = vpop.f32.mrb[0].mxu0
        %v4277 = vpop.f32.mrb[0].mxu0
        %v4278 = vadd.f32 %v2141, %v4277
        %v4279 = vpop.f32.mrb[0].mxu0
        %4280 = vmatprep.mubr.bf16.mxu0 0
        %4281 = vmatmul.mubr.bf16.gmra.mrb[0].mxu0 %v3351
        %v4282 = vpop.f32.mrb[0].mxu0
        %v4283 = vadd.f32 %v2146, %v4282
        %v4284 = vpop.f32.mrb[0].mxu0
        %v4285 = vpop.f32.mrb[0].mxu0
        %v4286 = vadd.f32 %v2151, %v4285
        %v4287 = vpop.f32.mrb[0].mxu0
        %4288 = vmatprep.mubr.bf16.mxu0 0
        %4289 = vmatmul.mubr.bf16.gmra.mrb[0].mxu0 %v3354
        %v4290 = vpop.f32.mrb[0].mxu0
        %v4291 = vadd.f32 %v2156, %v4290
        %v4292 = vpop.f32.mrb[0].mxu0
        %v4293 = vpop.f32.mrb[0].mxu0
        %v4294 = vadd.f32 %v2161, %v4293
        %v4295 = vpop.f32.mrb[0].mxu0
        %4296 = vmatprep.mubr.bf16.mxu0 0
        %4297 = vmatmul.mubr.bf16.gmra.mrb[0].mxu0 %v3357
        %v4298 = vpop.f32.mrb[0].mxu0
        %v4299 = vadd.f32 %v2166, %v4298
        %v4300 = vpop.f32.mrb[0].mxu0
        %v4301 = vpop.f32.mrb[0].mxu0
        %v4302 = vadd.f32 %v2171, %v4301
        %v4303 = vpop.f32.mrb[0].mxu0
        %4304 = vmatprep.mubr.bf16.mxu0 0
        %4305 = vmatmul.mubr.bf16.gmra.mrb[0].mxu0 %v3360
        %v4306 = vpop.f32.mrb[0].mxu0
        %v4307 = vadd.f32 %v2176, %v4306
        %v4308 = vpop.f32.mrb[0].mxu0
        %v4309 = vpop.f32.mrb[0].mxu0
        %v4310 = vadd.f32 %v2181, %v4309
        %v4311 = vpop.f32.mrb[0].mxu0
        %4312 = vmatprep.mubr.bf16.mxu0 0
        %4313 = vmatmul.mubr.bf16.gmra.mrb[0].mxu0 %v3363
        %v4314 = vpop.f32.mrb[0].mxu0
        %v4315 = vadd.f32 %v2186, %v4314
        %v4316 = vpop.f32.mrb[0].mxu0
        %v4317 = vpop.f32.mrb[0].mxu0
        %v4318 = vadd.f32 %v2191, %v4317
        %v4319 = vpop.f32.mrb[0].mxu0
        %4320 = vmatprep.mubr.bf16.mxu0 0
        %4321 = vmatmul.mubr.bf16.gmra.mrb[0].mxu0 %v3366
        %v4322 = vpop.f32.mrb[0].mxu0
        %v4323 = vadd.f32 %v2196, %v4322
        %v4324 = vpop.f32.mrb[0].mxu0
        %v4325 = vpop.f32.mrb[0].mxu0
        %v4326 = vadd.f32 %v2201, %v4325
        %v4327 = vpop.f32.mrb[0].mxu0
        %4328 = vmatprep.mubr.bf16.mxu0 0
        %4329 = vmatmul.mubr.bf16.gmra.mrb[0].mxu0 %v3369
        %v4330 = vpop.f32.mrb[0].mxu0
        %v4331 = vadd.f32 %v2206, %v4330
        %v4332 = vpop.f32.mrb[0].mxu0
        %v4333 = vpop.f32.mrb[0].mxu0
        %v4334 = vadd.f32 %v2211, %v4333
        %v4335 = vpop.f32.mrb[0].mxu0
        %4336 = vmatprep.mubr.bf16.mxu0 0
        %4337 = vmatmul.mubr.bf16.gmra.mrb[0].mxu0 %v3372
        %v4338 = vpop.f32.mrb[0].mxu0
        %v4339 = vadd.f32 %v2216, %v4338
        %v4340 = vpop.f32.mrb[0].mxu0
        %v4341 = vpop.f32.mrb[0].mxu0
        %v4342 = vadd.f32 %v2221, %v4341
        %v4343 = vpop.f32.mrb[0].mxu0
        %4344 = vmatprep.mubr.bf16.mxu0 0
        %4345 = vmatmul.mubr.bf16.gmra.mrb[0].mxu0 %v3375
        %v4346 = vpop.f32.mrb[0].mxu0
        %v4347 = vadd.f32 %v2226, %v4346
        %v4348 = vpop.f32.mrb[0].mxu0
        %v4349 = vpop.f32.mrb[0].mxu0
        %v4350 = vadd.f32 %v2231, %v4349
        %v4351 = vpop.f32.mrb[0].mxu0
        %4352 = vmatprep.mubr.bf16.mxu0 0
        %4353 = vmatmul.mubr.bf16.gmra.mrb[0].mxu0 %v3378
        %v4354 = vpop.f32.mrb[0].mxu0
        %v4355 = vadd.f32 %v2236, %v4354
        %v4356 = vpop.f32.mrb[0].mxu0
        %v4357 = vpop.f32.mrb[0].mxu0
        %v4358 = vadd.f32 %v2241, %v4357
        %v4359 = vpop.f32.mrb[0].mxu0
        %4360 = vmatprep.mubr.bf16.mxu0 0
        %4361 = vmatmul.mubr.bf16.gmra.mrb[0].mxu0 %v3381
        %v4362 = vpop.f32.mrb[0].mxu0
        %v4363 = vadd.f32 %v2246, %v4362
        %v4364 = vpop.f32.mrb[0].mxu0
        %v4365 = vpop.f32.mrb[0].mxu0
        %v4366 = vadd.f32 %v2251, %v4365
        %v4367 = vpop.f32.mrb[0].mxu0
        %4368 = vmatprep.mubr.bf16.mxu0 0
        %4369 = vmatmul.mubr.bf16.gmra.mrb[0].mxu0 %v3384
        %v4370 = vpop.f32.mrb[0].mxu0
        %v4371 = vadd.f32 %v2256, %v4370
        %v4372 = vpop.f32.mrb[0].mxu0
        %v4373 = vpop.f32.mrb[0].mxu0
        %v4374 = vadd.f32 %v2261, %v4373
        %v4375 = vpop.f32.mrb[0].mxu0
        %4376 = vmatprep.mubr.bf16.mxu0 0
        %4377 = vmatmul.mubr.bf16.gmra.mrb[0].mxu0 %v3387
        %v4378 = vpop.f32.mrb[0].mxu0
        %v4379 = vadd.f32 %v2266, %v4378
        %v4380 = vpop.f32.mrb[0].mxu0
        %v4381 = vpop.f32.mrb[0].mxu0
        %v4382 = vadd.f32 %v2271, %v4381
        %v4383 = vpop.f32.mrb[0].mxu0
        %4384 = vmatprep.mubr.bf16.mxu0 0
        %4385 = vmatmul.mubr.bf16.gmra.mrb[0].mxu0 %v3390
        %v4386 = vpop.f32.mrb[0].mxu0
        %v4387 = vadd.f32 %v2276, %v4386
        %v4388 = vpop.f32.mrb[0].mxu0
        %v4389 = vpop.f32.mrb[0].mxu0
        %v4390 = vadd.f32 %v2281, %v4389
        %v4391 = vpop.f32.mrb[0].mxu0
        %4392 = vmatprep.mubr.bf16.mxu0 0
        %4393 = vmatmul.mubr.bf16.gmra.mrb[0].mxu0 %v3393
        %v4394 = vpop.f32.mrb[0].mxu0
        %v4395 = vadd.f32 %v2286, %v4394
        %v4396 = vpop.f32.mrb[0].mxu0
        %v4397 = vpop.f32.mrb[0].mxu0
        %v4398 = vadd.f32 %v2291, %v4397
        %v4399 = vpop.f32.mrb[0].mxu0
        %4400 = vmatprep.mubr.bf16.mxu0 0
        %4401 = vmatmul.mubr.bf16.gmra.mrb[0].mxu0 %v3396
        %v4402 = vpop.f32.mrb[0].mxu0
        %v4403 = vadd.f32 %v2296, %v4402
        %v4404 = vpop.f32.mrb[0].mxu0
        %v4405 = vpop.f32.mrb[0].mxu0
        %v4406 = vadd.f32 %v2301, %v4405
        %v4407 = vpop.f32.mrb[0].mxu0
        %4408 = vmatprep.mubr.bf16.mxu0 0
        %4409 = vmatmul.mubr.bf16.gmra.mrb[0].mxu0 %v3399
        %v4410 = vpop.f32.mrb[0].mxu0
        %v4411 = vadd.f32 %v2306, %v4410
        %v4412 = vpop.f32.mrb[0].mxu0
        %v4413 = vpop.f32.mrb[0].mxu0
        %v4414 = vadd.f32 %v2311, %v4413
        %v4415 = vpop.f32.mrb[0].mxu0
        %4416 = vmatprep.mubr.bf16.mxu0 0
        %4417 = vmatmul.mubr.bf16.gmra.mrb[0].mxu0 %v3402
        %v4418 = vpop.f32.mrb[0].mxu0
        %v4419 = vadd.f32 %v2316, %v4418
        %v4420 = vpop.f32.mrb[0].mxu0
        %v4421 = vpop.f32.mrb[0].mxu0
        %v4422 = vadd.f32 %v2321, %v4421
        %v4423 = vpop.f32.mrb[0].mxu0
        %4424 = vmatprep.mubr.bf16.mxu0 0
        %4425 = vmatmul.mubr.bf16.gmra.mrb[0].mxu0 %v3405
        %v4426 = vpop.f32.mrb[0].mxu0
        %v4427 = vadd.f32 %v2326, %v4426
        %v4428 = vpop.f32.mrb[0].mxu0
        %v4429 = vpop.f32.mrb[0].mxu0
        %v4430 = vadd.f32 %v2331, %v4429
        %v4431 = vpop.f32.mrb[0].mxu0
        %4432 = vmatprep.mubr.bf16.mxu0 0
        %4433 = vmatmul.mubr.bf16.gmra.mrb[0].mxu0 %v3408
        %v4434 = vpop.f32.mrb[0].mxu0
        %v4435 = vadd.f32 %v2336, %v4434
        %v4436 = vpop.f32.mrb[0].mxu0
        %v4437 = vpop.f32.mrb[0].mxu0
        %v4438 = vadd.f32 %v2341, %v4437
        %v4439 = vpop.f32.mrb[0].mxu0
        %4440 = vmatprep.mubr.bf16.mxu0 0
        %4441 = vmatmul.mubr.bf16.gmra.mrb[0].mxu0 %v3411
        %v4442 = vpop.f32.mrb[0].mxu0
        %v4443 = vadd.f32 %v2346, %v4442
        %v4444 = vpop.f32.mrb[0].mxu0
        %v4445 = vpop.f32.mrb[0].mxu0
        %v4446 = vadd.f32 %v2351, %v4445
        %v4447 = vpop.f32.mrb[0].mxu0
        %4448 = vmatprep.mubr.bf16.mxu0 0
        %4449 = vmatmul.mubr.bf16.gmra.mrb[0].mxu0 %v3414
        %v4450 = vpop.f32.mrb[0].mxu0
        %v4451 = vadd.f32 %v2356, %v4450
        %v4452 = vpop.f32.mrb[0].mxu0
        %v4453 = vpop.f32.mrb[0].mxu0
        %v4454 = vadd.f32 %v2361, %v4453
        %v4455 = vpop.f32.mrb[0].mxu0
        %4456 = vmatprep.mubr.bf16.mxu0 0
        %4457 = vmatmul.mubr.bf16.gmra.mrb[0].mxu0 %v3417
        %v4458 = vpop.f32.mrb[0].mxu0
        %v4459 = vadd.f32 %v2366, %v4458
        %v4460 = vpop.f32.mrb[0].mxu0
        %v4461 = vpop.f32.mrb[0].mxu0
        %v4462 = vadd.f32 %v2371, %v4461
        %v4463 = vpop.f32.mrb[0].mxu0
        %4464 = vmatprep.mubr.bf16.mxu0 0
        %4465 = vmatmul.mubr.bf16.gmra.mrb[0].mxu0 %v3420
        %v4466 = vpop.f32.mrb[0].mxu0
        %v4467 = vadd.f32 %v2376, %v4466
        %v4468 = vpop.f32.mrb[0].mxu0
        %v4469 = vpop.f32.mrb[0].mxu0
        %v4470 = vadd.f32 %v2381, %v4469
        %v4471 = vpop.f32.mrb[0].mxu0
        %4472 = vmatprep.mubr.bf16.mxu0 0
        %4473 = vmatmul.mubr.bf16.gmra.mrb[0].mxu0 %v3423
        %v4474 = vpop.f32.mrb[0].mxu0
        %v4475 = vadd.f32 %v2386, %v4474
        %v4476 = vpop.f32.mrb[0].mxu0
        %v4477 = vpop.f32.mrb[0].mxu0
        %v4478 = vadd.f32 %v2391, %v4477
        %v4479 = vpop.f32.mrb[0].mxu0
        %4480 = vmatprep.mubr.bf16.mxu0 0
        %4481 = vmatmul.mubr.bf16.gmra.mrb[0].mxu0 %v3426
        %v4482 = vpop.f32.mrb[0].mxu0
        %v4483 = vadd.f32 %v2396, %v4482
        %v4484 = vpop.f32.mrb[0].mxu0
        %v4485 = vpop.f32.mrb[0].mxu0
        %v4486 = vadd.f32 %v2401, %v4485
        %v4487 = vpop.f32.mrb[0].mxu0
        %4488 = vdwg.mxu0
        %v4489 = vmax.f32 %v3467, 0.0
        %v4490 = vmax.f32 %v3470, 0.0
        %v4491 = vmax.f32 %v3475, 0.0
        %v4492 = vmax.f32 %v3478, 0.0
        %v4493 = vmax.f32 %v3483, 0.0
        %v4494 = vmax.f32 %v3486, 0.0
        %v4495 = vmax.f32 %v3491, 0.0
        %v4496 = vmax.f32 %v3494, 0.0
        %v4497 = vmax.f32 %v3499, 0.0
        %v4498 = vmax.f32 %v3502, 0.0
        %v4499 = vmax.f32 %v3507, 0.0
        %v4500 = vmax.f32 %v3510, 0.0
        %v4501 = vmax.f32 %v3515, 0.0
        %v4502 = vmax.f32 %v3518, 0.0
        %v4503 = vmax.f32 %v3523, 0.0
        %v4504 = vmax.f32 %v3526, 0.0
        %v4505 = vmax.f32 %v3531, 0.0
        %v4506 = vmax.f32 %v3534, 0.0
        %v4507 = vmax.f32 %v3539, 0.0
        %v4508 = vmax.f32 %v3542, 0.0
        %v4509 = vmax.f32 %v3547, 0.0
        %v4510 = vmax.f32 %v3550, 0.0
        %v4511 = vmax.f32 %v3555, 0.0
        %v4512 = vmax.f32 %v3558, 0.0
        %v4513 = vmax.f32 %v3563, 0.0
        %v4514 = vmax.f32 %v3566, 0.0
        %v4515 = vmax.f32 %v3571, 0.0
        %v4516 = vmax.f32 %v3574, 0.0
        %v4517 = vmax.f32 %v3579, 0.0
        %v4518 = vmax.f32 %v3582, 0.0
        %v4519 = vmax.f32 %v3587, 0.0
        %v4520 = vmax.f32 %v3590, 0.0
        %v4521 = vmax.f32 %v3595, 0.0
        %v4522 = vmax.f32 %v3598, 0.0
        %v4523 = vmax.f32 %v3603, 0.0
        %v4524 = vmax.f32 %v3606, 0.0
        %v4525 = vmax.f32 %v3611, 0.0
        %v4526 = vmax.f32 %v3614, 0.0
        %v4527 = vmax.f32 %v3619, 0.0
        %v4528 = vmax.f32 %v3622, 0.0
        %v4529 = vmax.f32 %v3627, 0.0
        %v4530 = vmax.f32 %v3630, 0.0
        %v4531 = vmax.f32 %v3635, 0.0
        %v4532 = vmax.f32 %v3638, 0.0
        %v4533 = vmax.f32 %v3643, 0.0
        %v4534 = vmax.f32 %v3646, 0.0
        %v4535 = vmax.f32 %v3651, 0.0
        %v4536 = vmax.f32 %v3654, 0.0
        %v4537 = vmax.f32 %v3659, 0.0
        %v4538 = vmax.f32 %v3662, 0.0
        %v4539 = vmax.f32 %v3667, 0.0
        %v4540 = vmax.f32 %v3670, 0.0
        %v4541 = vmax.f32 %v3675, 0.0
        %v4542 = vmax.f32 %v3678, 0.0
        %v4543 = vmax.f32 %v3683, 0.0
        %v4544 = vmax.f32 %v3686, 0.0
        %v4545 = vmax.f32 %v3691, 0.0
        %v4546 = vmax.f32 %v3694, 0.0
        %v4547 = vmax.f32 %v3699, 0.0
        %v4548 = vmax.f32 %v3702, 0.0
        %v4549 = vmax.f32 %v3707, 0.0
        %v4550 = vmax.f32 %v3710, 0.0
        %v4551 = vmax.f32 %v3715, 0.0
        %v4552 = vmax.f32 %v3718, 0.0
        %v4553 = vmax.f32 %v3723, 0.0
        %v4554 = vmax.f32 %v3726, 0.0
        %v4555 = vmax.f32 %v3731, 0.0
        %v4556 = vmax.f32 %v3734, 0.0
        %v4557 = vmax.f32 %v3739, 0.0
        %v4558 = vmax.f32 %v3742, 0.0
        %v4559 = vmax.f32 %v3747, 0.0
        %v4560 = vmax.f32 %v3750, 0.0
        %v4561 = vmax.f32 %v3755, 0.0
        %v4562 = vmax.f32 %v3758, 0.0
        %v4563 = vmax.f32 %v3763, 0.0
        %v4564 = vmax.f32 %v3766, 0.0
        %v4565 = vmax.f32 %v3771, 0.0
        %v4566 = vmax.f32 %v3774, 0.0
        %v4567 = vmax.f32 %v3779, 0.0
        %v4568 = vmax.f32 %v3782, 0.0
        %v4569 = vmax.f32 %v3787, 0.0
        %v4570 = vmax.f32 %v3790, 0.0
        %v4571 = vmax.f32 %v3795, 0.0
        %v4572 = vmax.f32 %v3798, 0.0
        %v4573 = vmax.f32 %v3803, 0.0
        %v4574 = vmax.f32 %v3806, 0.0
        %v4575 = vmax.f32 %v3811, 0.0
        %v4576 = vmax.f32 %v3814, 0.0
        %v4577 = vmax.f32 %v3819, 0.0
        %v4578 = vmax.f32 %v3822, 0.0
        %v4579 = vmax.f32 %v3827, 0.0
        %v4580 = vmax.f32 %v3830, 0.0
        %v4581 = vmax.f32 %v3835, 0.0
        %v4582 = vmax.f32 %v3838, 0.0
        %v4583 = vmax.f32 %v3843, 0.0
        %v4584 = vmax.f32 %v3846, 0.0
        %v4585 = vmax.f32 %v3851, 0.0
        %v4586 = vmax.f32 %v3854, 0.0
        %v4587 = vmax.f32 %v3859, 0.0
        %v4588 = vmax.f32 %v3862, 0.0
        %v4589 = vmax.f32 %v3867, 0.0
        %v4590 = vmax.f32 %v3870, 0.0
        %v4591 = vmax.f32 %v3875, 0.0
        %v4592 = vmax.f32 %v3878, 0.0
        %v4593 = vmax.f32 %v3883, 0.0
        %v4594 = vmax.f32 %v3886, 0.0
        %v4595 = vmax.f32 %v3891, 0.0
        %v4596 = vmax.f32 %v3894, 0.0
        %v4597 = vmax.f32 %v3899, 0.0
        %v4598 = vmax.f32 %v3902, 0.0
        %v4599 = vmax.f32 %v3907, 0.0
        %v4600 = vmax.f32 %v3910, 0.0
        %v4601 = vmax.f32 %v3915, 0.0
        %v4602 = vmax.f32 %v3918, 0.0
        %v4603 = vmax.f32 %v3923, 0.0
        %v4604 = vmax.f32 %v3926, 0.0
        %v4605 = vmax.f32 %v3931, 0.0
        %v4606 = vmax.f32 %v3934, 0.0
        %v4607 = vmax.f32 %v3939, 0.0
        %v4608 = vmax.f32 %v3942, 0.0
        %v4609 = vmax.f32 %v3947, 0.0
        %v4610 = vmax.f32 %v3950, 0.0
        %v4611 = vmax.f32 %v3955, 0.0
        %v4612 = vmax.f32 %v3958, 0.0
        %v4613 = vmax.f32 %v3963, 0.0
        %v4614 = vmax.f32 %v3966, 0.0
        %v4615 = vmax.f32 %v3971, 0.0
        %v4616 = vmax.f32 %v3974, 0.0
        %v4617 = vmax.f32 %v3979, 0.0
        %v4618 = vmax.f32 %v3982, 0.0
        %v4619 = vmax.f32 %v3987, 0.0
        %v4620 = vmax.f32 %v3990, 0.0
        %v4621 = vmax.f32 %v3995, 0.0
        %v4622 = vmax.f32 %v3998, 0.0
        %v4623 = vmax.f32 %v4003, 0.0
        %v4624 = vmax.f32 %v4006, 0.0
        %v4625 = vmax.f32 %v4011, 0.0
        %v4626 = vmax.f32 %v4014, 0.0
        %v4627 = vmax.f32 %v4019, 0.0
        %v4628 = vmax.f32 %v4022, 0.0
        %v4629 = vmax.f32 %v4027, 0.0
        %v4630 = vmax.f32 %v4030, 0.0
        %v4631 = vmax.f32 %v4035, 0.0
        %v4632 = vmax.f32 %v4038, 0.0
        %v4633 = vmax.f32 %v4043, 0.0
        %v4634 = vmax.f32 %v4046, 0.0
        %v4635 = vmax.f32 %v4051, 0.0
        %v4636 = vmax.f32 %v4054, 0.0
        %v4637 = vmax.f32 %v4059, 0.0
        %v4638 = vmax.f32 %v4062, 0.0
        %v4639 = vmax.f32 %v4067, 0.0
        %v4640 = vmax.f32 %v4070, 0.0
        %v4641 = vmax.f32 %v4075, 0.0
        %v4642 = vmax.f32 %v4078, 0.0
        %v4643 = vmax.f32 %v4083, 0.0
        %v4644 = vmax.f32 %v4086, 0.0
        %v4645 = vmax.f32 %v4091, 0.0
        %v4646 = vmax.f32 %v4094, 0.0
        %v4647 = vmax.f32 %v4099, 0.0
        %v4648 = vmax.f32 %v4102, 0.0
        %v4649 = vmax.f32 %v4107, 0.0
        %v4650 = vmax.f32 %v4110, 0.0
        %v4651 = vmax.f32 %v4115, 0.0
        %v4652 = vmax.f32 %v4118, 0.0
        %v4653 = vmax.f32 %v4123, 0.0
        %v4654 = vmax.f32 %v4126, 0.0
        %v4655 = vmax.f32 %v4131, 0.0
        %v4656 = vmax.f32 %v4134, 0.0
        %v4657 = vmax.f32 %v4139, 0.0
        %v4658 = vmax.f32 %v4142, 0.0
        %v4659 = vmax.f32 %v4147, 0.0
        %v4660 = vmax.f32 %v4150, 0.0
        %v4661 = vmax.f32 %v4155, 0.0
        %v4662 = vmax.f32 %v4158, 0.0
        %v4663 = vmax.f32 %v4163, 0.0
        %v4664 = vmax.f32 %v4166, 0.0
        %v4665 = vmax.f32 %v4171, 0.0
        %v4666 = vmax.f32 %v4174, 0.0
        %v4667 = vmax.f32 %v4179, 0.0
        %v4668 = vmax.f32 %v4182, 0.0
        %v4669 = vmax.f32 %v4187, 0.0
        %v4670 = vmax.f32 %v4190, 0.0
        %v4671 = vmax.f32 %v4195, 0.0
        %v4672 = vmax.f32 %v4198, 0.0
        %v4673 = vmax.f32 %v4203, 0.0
        %v4674 = vmax.f32 %v4206, 0.0
        %v4675 = vmax.f32 %v4211, 0.0
        %v4676 = vmax.f32 %v4214, 0.0
        %v4677 = vmax.f32 %v4219, 0.0
        %v4678 = vmax.f32 %v4222, 0.0
        %v4679 = vmax.f32 %v4227, 0.0
        %v4680 = vmax.f32 %v4230, 0.0
        %v4681 = vmax.f32 %v4235, 0.0
        %v4682 = vmax.f32 %v4238, 0.0
        %v4683 = vmax.f32 %v4243, 0.0
        %v4684 = vmax.f32 %v4246, 0.0
        %v4685 = vmax.f32 %v4251, 0.0
        %v4686 = vmax.f32 %v4254, 0.0
        %v4687 = vmax.f32 %v4259, 0.0
        %v4688 = vmax.f32 %v4262, 0.0
        %v4689 = vmax.f32 %v4267, 0.0
        %v4690 = vmax.f32 %v4270, 0.0
        %v4691 = vmax.f32 %v4275, 0.0
        %v4692 = vmax.f32 %v4278, 0.0
        %v4693 = vmax.f32 %v4283, 0.0
        %v4694 = vmax.f32 %v4286, 0.0
        %v4695 = vmax.f32 %v4291, 0.0
        %v4696 = vmax.f32 %v4294, 0.0
        %v4697 = vmax.f32 %v4299, 0.0
        %v4698 = vmax.f32 %v4302, 0.0
        %v4699 = vmax.f32 %v4307, 0.0
        %v4700 = vmax.f32 %v4310, 0.0
        %v4701 = vmax.f32 %v4315, 0.0
        %v4702 = vmax.f32 %v4318, 0.0
        %v4703 = vmax.f32 %v4323, 0.0
        %v4704 = vmax.f32 %v4326, 0.0
        %v4705 = vmax.f32 %v4331, 0.0
        %v4706 = vmax.f32 %v4334, 0.0
        %v4707 = vmax.f32 %v4339, 0.0
        %v4708 = vmax.f32 %v4342, 0.0
        %v4709 = vmax.f32 %v4347, 0.0
        %v4710 = vmax.f32 %v4350, 0.0
        %v4711 = vmax.f32 %v4355, 0.0
        %v4712 = vmax.f32 %v4358, 0.0
        %v4713 = vmax.f32 %v4363, 0.0
        %v4714 = vmax.f32 %v4366, 0.0
        %v4715 = vmax.f32 %v4371, 0.0
        %v4716 = vmax.f32 %v4374, 0.0
        %v4717 = vmax.f32 %v4379, 0.0
        %v4718 = vmax.f32 %v4382, 0.0
        %v4719 = vmax.f32 %v4387, 0.0
        %v4720 = vmax.f32 %v4390, 0.0
        %v4721 = vmax.f32 %v4395, 0.0
        %v4722 = vmax.f32 %v4398, 0.0
        %v4723 = vmax.f32 %v4403, 0.0
        %v4724 = vmax.f32 %v4406, 0.0
        %v4725 = vmax.f32 %v4411, 0.0
        %v4726 = vmax.f32 %v4414, 0.0
        %v4727 = vmax.f32 %v4419, 0.0
        %v4728 = vmax.f32 %v4422, 0.0
        %v4729 = vmax.f32 %v4427, 0.0
        %v4730 = vmax.f32 %v4430, 0.0
        %v4731 = vmax.f32 %v4435, 0.0
        %v4732 = vmax.f32 %v4438, 0.0
        %v4733 = vmax.f32 %v4443, 0.0
        %v4734 = vmax.f32 %v4446, 0.0
        %v4735 = vmax.f32 %v4451, 0.0
        %v4736 = vmax.f32 %v4454, 0.0
        %v4737 = vmax.f32 %v4459, 0.0
        %v4738 = vmax.f32 %v4462, 0.0
        %v4739 = vmax.f32 %v4467, 0.0
        %v4740 = vmax.f32 %v4470, 0.0
        %v4741 = vmax.f32 %v4475, 0.0
        %v4742 = vmax.f32 %v4478, 0.0
        %v4743 = vmax.f32 %v4483, 0.0
        %v4744 = vmax.f32 %v4486, 0.0
        %v4745 = vld [vmem:[#allocation2] sm:$0xff]
        %v4746 = vld [vmem:[#allocation2 + $0x8] sm:$0xff]
        %v4747 = vld [vmem:[#allocation2 + $0x10] sm:$0xff]
        %v4748 = vld [vmem:[#allocation2 + $0x18] sm:$0xff]
        %v4749 = vld [vmem:[#allocation2 + $0x20] sm:$0xff]
        %v4750 = vld [vmem:[#allocation2 + $0x28] sm:$0xff]
        %v4751 = vld [vmem:[#allocation2 + $0x30] sm:$0xff]
        %v4752 = vld [vmem:[#allocation2 + $0x38] sm:$0xff]
        %v4753 = vld [vmem:[#allocation2 + $0x40] sm:$0xff]
        %v4754 = vld [vmem:[#allocation2 + $0x48] sm:$0xff]
        %v4755 = vld [vmem:[#allocation2 + $0x50] sm:$0xff]
        %v4756 = vld [vmem:[#allocation2 + $0x58] sm:$0xff]
        %v4757 = vld [vmem:[#allocation2 + $0x60] sm:$0xff]
        %v4758 = vld [vmem:[#allocation2 + $0x68] sm:$0xff]
        %v4759 = vld [vmem:[#allocation2 + $0x70] sm:$0xff]
        %v4760 = vld [vmem:[#allocation2 + $0x78] sm:$0xff]
        %v4761 = vld [vmem:[#allocation2 + $0x80] sm:$0xff]
        %v4762 = vld [vmem:[#allocation2 + $0x88] sm:$0xff]
        %v4763 = vld [vmem:[#allocation2 + $0x90] sm:$0xff]
        %v4764 = vld [vmem:[#allocation2 + $0x98] sm:$0xff]
        %v4765 = vld [vmem:[#allocation2 + $0xa0] sm:$0xff]
        %v4766 = vld [vmem:[#allocation2 + $0xa8] sm:$0xff]
        %v4767 = vld [vmem:[#allocation2 + $0xb0] sm:$0xff]
        %v4768 = vld [vmem:[#allocation2 + $0xb8] sm:$0xff]
        %v4769 = vld [vmem:[#allocation2 + $0xc0] sm:$0xff]
        %v4770 = vld [vmem:[#allocation2 + $0xc8] sm:$0xff]
        %v4771 = vld [vmem:[#allocation2 + $0xd0] sm:$0xff]
        %v4772 = vld [vmem:[#allocation2 + $0xd8] sm:$0xff]
        %v4773 = vld [vmem:[#allocation2 + $0xe0] sm:$0xff]
        %v4774 = vld [vmem:[#allocation2 + $0xe8] sm:$0xff]
        %v4775 = vld [vmem:[#allocation2 + $0xf0] sm:$0xff]
        %v4776 = vld [vmem:[#allocation2 + $0xf8] sm:$0xff]
        %v4777 = vld [vmem:[#allocation2 + $0x100] sm:$0xff]
        %v4778 = vld [vmem:[#allocation2 + $0x108] sm:$0xff]
        %v4779 = vld [vmem:[#allocation2 + $0x110] sm:$0xff]
        %v4780 = vld [vmem:[#allocation2 + $0x118] sm:$0xff]
        %v4781 = vld [vmem:[#allocation2 + $0x120] sm:$0xff]
        %v4782 = vld [vmem:[#allocation2 + $0x128] sm:$0xff]
        %v4783 = vld [vmem:[#allocation2 + $0x130] sm:$0xff]
        %v4784 = vld [vmem:[#allocation2 + $0x138] sm:$0xff]
        %v4785 = vld [vmem:[#allocation2 + $0x140] sm:$0xff]
        %v4786 = vld [vmem:[#allocation2 + $0x148] sm:$0xff]
        %v4787 = vld [vmem:[#allocation2 + $0x150] sm:$0xff]
        %v4788 = vld [vmem:[#allocation2 + $0x158] sm:$0xff]
        %v4789 = vld [vmem:[#allocation2 + $0x160] sm:$0xff]
        %v4790 = vld [vmem:[#allocation2 + $0x168] sm:$0xff]
        %v4791 = vld [vmem:[#allocation2 + $0x170] sm:$0xff]
        %v4792 = vld [vmem:[#allocation2 + $0x178] sm:$0xff]
        %v4793 = vld [vmem:[#allocation2 + $0x180] sm:$0xff]
        %v4794 = vld [vmem:[#allocation2 + $0x188] sm:$0xff]
        %v4795 = vld [vmem:[#allocation2 + $0x190] sm:$0xff]
        %v4796 = vld [vmem:[#allocation2 + $0x198] sm:$0xff]
        %v4797 = vld [vmem:[#allocation2 + $0x1a0] sm:$0xff]
        %v4798 = vld [vmem:[#allocation2 + $0x1a8] sm:$0xff]
        %v4799 = vld [vmem:[#allocation2 + $0x1b0] sm:$0xff]
        %v4800 = vld [vmem:[#allocation2 + $0x1b8] sm:$0xff]
        %v4801 = vld [vmem:[#allocation2 + $0x1c0] sm:$0xff]
        %v4802 = vld [vmem:[#allocation2 + $0x1c8] sm:$0xff]
        %v4803 = vld [vmem:[#allocation2 + $0x1d0] sm:$0xff]
        %v4804 = vld [vmem:[#allocation2 + $0x1d8] sm:$0xff]
        %v4805 = vld [vmem:[#allocation2 + $0x1e0] sm:$0xff]
        %v4806 = vld [vmem:[#allocation2 + $0x1e8] sm:$0xff]
        %v4807 = vld [vmem:[#allocation2 + $0x1f0] sm:$0xff]
        %v4808 = vld [vmem:[#allocation2 + $0x1f8] sm:$0xff]
        %v4809 = vld [vmem:[#allocation2 + $0x200] sm:$0xff]
        %v4810 = vld [vmem:[#allocation2 + $0x208] sm:$0xff]
        %v4811 = vld [vmem:[#allocation2 + $0x210] sm:$0xff]
        %v4812 = vld [vmem:[#allocation2 + $0x218] sm:$0xff]
        %v4813 = vld [vmem:[#allocation2 + $0x220] sm:$0xff]
        %v4814 = vld [vmem:[#allocation2 + $0x228] sm:$0xff]
        %v4815 = vld [vmem:[#allocation2 + $0x230] sm:$0xff]
        %v4816 = vld [vmem:[#allocation2 + $0x238] sm:$0xff]
        %v4817 = vld [vmem:[#allocation2 + $0x240] sm:$0xff]
        %v4818 = vld [vmem:[#allocation2 + $0x248] sm:$0xff]
        %v4819 = vld [vmem:[#allocation2 + $0x250] sm:$0xff]
        %v4820 = vld [vmem:[#allocation2 + $0x258] sm:$0xff]
        %v4821 = vld [vmem:[#allocation2 + $0x260] sm:$0xff]
        %v4822 = vld [vmem:[#allocation2 + $0x268] sm:$0xff]
        %v4823 = vld [vmem:[#allocation2 + $0x270] sm:$0xff]
        %v4824 = vld [vmem:[#allocation2 + $0x278] sm:$0xff]
        %v4825 = vld [vmem:[#allocation2 + $0x280] sm:$0xff]
        %v4826 = vld [vmem:[#allocation2 + $0x288] sm:$0xff]
        %v4827 = vld [vmem:[#allocation2 + $0x290] sm:$0xff]
        %v4828 = vld [vmem:[#allocation2 + $0x298] sm:$0xff]
        %v4829 = vld [vmem:[#allocation2 + $0x2a0] sm:$0xff]
        %v4830 = vld [vmem:[#allocation2 + $0x2a8] sm:$0xff]
        %v4831 = vld [vmem:[#allocation2 + $0x2b0] sm:$0xff]
        %v4832 = vld [vmem:[#allocation2 + $0x2b8] sm:$0xff]
        %v4833 = vld [vmem:[#allocation2 + $0x2c0] sm:$0xff]
        %v4834 = vld [vmem:[#allocation2 + $0x2c8] sm:$0xff]
        %v4835 = vld [vmem:[#allocation2 + $0x2d0] sm:$0xff]
        %v4836 = vld [vmem:[#allocation2 + $0x2d8] sm:$0xff]
        %v4837 = vld [vmem:[#allocation2 + $0x2e0] sm:$0xff]
        %v4838 = vld [vmem:[#allocation2 + $0x2e8] sm:$0xff]
        %v4839 = vld [vmem:[#allocation2 + $0x2f0] sm:$0xff]
        %v4840 = vld [vmem:[#allocation2 + $0x2f8] sm:$0xff]
        %v4841 = vld [vmem:[#allocation2 + $0x300] sm:$0xff]
        %v4842 = vld [vmem:[#allocation2 + $0x308] sm:$0xff]
        %v4843 = vld [vmem:[#allocation2 + $0x310] sm:$0xff]
        %v4844 = vld [vmem:[#allocation2 + $0x318] sm:$0xff]
        %v4845 = vld [vmem:[#allocation2 + $0x320] sm:$0xff]
        %v4846 = vld [vmem:[#allocation2 + $0x328] sm:$0xff]
        %v4847 = vld [vmem:[#allocation2 + $0x330] sm:$0xff]
        %v4848 = vld [vmem:[#allocation2 + $0x338] sm:$0xff]
        %v4849 = vld [vmem:[#allocation2 + $0x340] sm:$0xff]
        %v4850 = vld [vmem:[#allocation2 + $0x348] sm:$0xff]
        %v4851 = vld [vmem:[#allocation2 + $0x350] sm:$0xff]
        %v4852 = vld [vmem:[#allocation2 + $0x358] sm:$0xff]
        %v4853 = vld [vmem:[#allocation2 + $0x360] sm:$0xff]
        %v4854 = vld [vmem:[#allocation2 + $0x368] sm:$0xff]
        %v4855 = vld [vmem:[#allocation2 + $0x370] sm:$0xff]
        %v4856 = vld [vmem:[#allocation2 + $0x378] sm:$0xff]
        %v4857 = vld [vmem:[#allocation2 + $0x380] sm:$0xff]
        %v4858 = vld [vmem:[#allocation2 + $0x388] sm:$0xff]
        %v4859 = vld [vmem:[#allocation2 + $0x390] sm:$0xff]
        %v4860 = vld [vmem:[#allocation2 + $0x398] sm:$0xff]
        %v4861 = vld [vmem:[#allocation2 + $0x3a0] sm:$0xff]
        %v4862 = vld [vmem:[#allocation2 + $0x3a8] sm:$0xff]
        %v4863 = vld [vmem:[#allocation2 + $0x3b0] sm:$0xff]
        %v4864 = vld [vmem:[#allocation2 + $0x3b8] sm:$0xff]
        %v4865 = vld [vmem:[#allocation2 + $0x3c0] sm:$0xff]
        %v4866 = vld [vmem:[#allocation2 + $0x3c8] sm:$0xff]
        %v4867 = vld [vmem:[#allocation2 + $0x3d0] sm:$0xff]
        %v4868 = vld [vmem:[#allocation2 + $0x3d8] sm:$0xff]
        %v4869 = vld [vmem:[#allocation2 + $0x3e0] sm:$0xff]
        %v4870 = vld [vmem:[#allocation2 + $0x3e8] sm:$0xff]
        %v4871 = vld [vmem:[#allocation2 + $0x3f0] sm:$0xff]
        %v4872 = vld [vmem:[#allocation2 + $0x3f8] sm:$0xff]
        %v4873 = vld [vmem:[#allocation2 + $0x400] sm:$0xff]
        %v4874 = vld [vmem:[#allocation2 + $0x408] sm:$0xff]
        %v4875 = vld [vmem:[#allocation2 + $0x410] sm:$0xff]
        %v4876 = vld [vmem:[#allocation2 + $0x418] sm:$0xff]
        %v4877 = vld [vmem:[#allocation2 + $0x420] sm:$0xff]
        %v4878 = vld [vmem:[#allocation2 + $0x428] sm:$0xff]
        %v4879 = vld [vmem:[#allocation2 + $0x430] sm:$0xff]
        %v4880 = vld [vmem:[#allocation2 + $0x438] sm:$0xff]
        %v4881 = vld [vmem:[#allocation2 + $0x440] sm:$0xff]
        %v4882 = vld [vmem:[#allocation2 + $0x448] sm:$0xff]
        %v4883 = vld [vmem:[#allocation2 + $0x450] sm:$0xff]
        %v4884 = vld [vmem:[#allocation2 + $0x458] sm:$0xff]
        %v4885 = vld [vmem:[#allocation2 + $0x460] sm:$0xff]
        %v4886 = vld [vmem:[#allocation2 + $0x468] sm:$0xff]
        %v4887 = vld [vmem:[#allocation2 + $0x470] sm:$0xff]
        %v4888 = vld [vmem:[#allocation2 + $0x478] sm:$0xff]
        %v4889 = vld [vmem:[#allocation2 + $0x480] sm:$0xff]
        %v4890 = vld [vmem:[#allocation2 + $0x488] sm:$0xff]
        %v4891 = vld [vmem:[#allocation2 + $0x490] sm:$0xff]
        %v4892 = vld [vmem:[#allocation2 + $0x498] sm:$0xff]
        %v4893 = vld [vmem:[#allocation2 + $0x4a0] sm:$0xff]
        %v4894 = vld [vmem:[#allocation2 + $0x4a8] sm:$0xff]
        %v4895 = vld [vmem:[#allocation2 + $0x4b0] sm:$0xff]
        %v4896 = vld [vmem:[#allocation2 + $0x4b8] sm:$0xff]
        %v4897 = vld [vmem:[#allocation2 + $0x4c0] sm:$0xff]
        %v4898 = vld [vmem:[#allocation2 + $0x4c8] sm:$0xff]
        %v4899 = vld [vmem:[#allocation2 + $0x4d0] sm:$0xff]
        %v4900 = vld [vmem:[#allocation2 + $0x4d8] sm:$0xff]
        %v4901 = vld [vmem:[#allocation2 + $0x4e0] sm:$0xff]
        %v4902 = vld [vmem:[#allocation2 + $0x4e8] sm:$0xff]
        %v4903 = vld [vmem:[#allocation2 + $0x4f0] sm:$0xff]
        %v4904 = vld [vmem:[#allocation2 + $0x4f8] sm:$0xff]
        %v4905 = vld [vmem:[#allocation2 + $0x500] sm:$0xff]
        %v4906 = vld [vmem:[#allocation2 + $0x508] sm:$0xff]
        %v4907 = vld [vmem:[#allocation2 + $0x510] sm:$0xff]
        %v4908 = vld [vmem:[#allocation2 + $0x518] sm:$0xff]
        %v4909 = vld [vmem:[#allocation2 + $0x520] sm:$0xff]
        %v4910 = vld [vmem:[#allocation2 + $0x528] sm:$0xff]
        %v4911 = vld [vmem:[#allocation2 + $0x530] sm:$0xff]
        %v4912 = vld [vmem:[#allocation2 + $0x538] sm:$0xff]
        %v4913 = vld [vmem:[#allocation2 + $0x540] sm:$0xff]
        %v4914 = vld [vmem:[#allocation2 + $0x548] sm:$0xff]
        %v4915 = vld [vmem:[#allocation2 + $0x550] sm:$0xff]
        %v4916 = vld [vmem:[#allocation2 + $0x558] sm:$0xff]
        %v4917 = vld [vmem:[#allocation2 + $0x560] sm:$0xff]
        %v4918 = vld [vmem:[#allocation2 + $0x568] sm:$0xff]
        %v4919 = vld [vmem:[#allocation2 + $0x570] sm:$0xff]
        %v4920 = vld [vmem:[#allocation2 + $0x578] sm:$0xff]
        %v4921 = vld [vmem:[#allocation2 + $0x580] sm:$0xff]
        %v4922 = vld [vmem:[#allocation2 + $0x588] sm:$0xff]
        %v4923 = vld [vmem:[#allocation2 + $0x590] sm:$0xff]
        %v4924 = vld [vmem:[#allocation2 + $0x598] sm:$0xff]
        %v4925 = vld [vmem:[#allocation2 + $0x5a0] sm:$0xff]
        %v4926 = vld [vmem:[#allocation2 + $0x5a8] sm:$0xff]
        %v4927 = vld [vmem:[#allocation2 + $0x5b0] sm:$0xff]
        %v4928 = vld [vmem:[#allocation2 + $0x5b8] sm:$0xff]
        %v4929 = vld [vmem:[#allocation2 + $0x5c0] sm:$0xff]
        %v4930 = vld [vmem:[#allocation2 + $0x5c8] sm:$0xff]
        %v4931 = vld [vmem:[#allocation2 + $0x5d0] sm:$0xff]
        %v4932 = vld [vmem:[#allocation2 + $0x5d8] sm:$0xff]
        %v4933 = vld [vmem:[#allocation2 + $0x5e0] sm:$0xff]
        %v4934 = vld [vmem:[#allocation2 + $0x5e8] sm:$0xff]
        %v4935 = vld [vmem:[#allocation2 + $0x5f0] sm:$0xff]
        %v4936 = vld [vmem:[#allocation2 + $0x5f8] sm:$0xff]
        %v4937 = vld [vmem:[#allocation2 + $0x600] sm:$0xff]
        %v4938 = vld [vmem:[#allocation2 + $0x608] sm:$0xff]
        %v4939 = vld [vmem:[#allocation2 + $0x610] sm:$0xff]
        %v4940 = vld [vmem:[#allocation2 + $0x618] sm:$0xff]
        %v4941 = vld [vmem:[#allocation2 + $0x620] sm:$0xff]
        %v4942 = vld [vmem:[#allocation2 + $0x628] sm:$0xff]
        %v4943 = vld [vmem:[#allocation2 + $0x630] sm:$0xff]
        %v4944 = vld [vmem:[#allocation2 + $0x638] sm:$0xff]
        %v4945 = vld [vmem:[#allocation2 + $0x640] sm:$0xff]
        %v4946 = vld [vmem:[#allocation2 + $0x648] sm:$0xff]
        %v4947 = vld [vmem:[#allocation2 + $0x650] sm:$0xff]
        %v4948 = vld [vmem:[#allocation2 + $0x658] sm:$0xff]
        %v4949 = vld [vmem:[#allocation2 + $0x660] sm:$0xff]
        %v4950 = vld [vmem:[#allocation2 + $0x668] sm:$0xff]
        %v4951 = vld [vmem:[#allocation2 + $0x670] sm:$0xff]
        %v4952 = vld [vmem:[#allocation2 + $0x678] sm:$0xff]
        %v4953 = vld [vmem:[#allocation2 + $0x680] sm:$0xff]
        %v4954 = vld [vmem:[#allocation2 + $0x688] sm:$0xff]
        %v4955 = vld [vmem:[#allocation2 + $0x690] sm:$0xff]
        %v4956 = vld [vmem:[#allocation2 + $0x698] sm:$0xff]
        %v4957 = vld [vmem:[#allocation2 + $0x6a0] sm:$0xff]
        %v4958 = vld [vmem:[#allocation2 + $0x6a8] sm:$0xff]
        %v4959 = vld [vmem:[#allocation2 + $0x6b0] sm:$0xff]
        %v4960 = vld [vmem:[#allocation2 + $0x6b8] sm:$0xff]
        %v4961 = vld [vmem:[#allocation2 + $0x6c0] sm:$0xff]
        %v4962 = vld [vmem:[#allocation2 + $0x6c8] sm:$0xff]
        %v4963 = vld [vmem:[#allocation2 + $0x6d0] sm:$0xff]
        %v4964 = vld [vmem:[#allocation2 + $0x6d8] sm:$0xff]
        %v4965 = vld [vmem:[#allocation2 + $0x6e0] sm:$0xff]
        %v4966 = vld [vmem:[#allocation2 + $0x6e8] sm:$0xff]
        %v4967 = vld [vmem:[#allocation2 + $0x6f0] sm:$0xff]
        %v4968 = vld [vmem:[#allocation2 + $0x6f8] sm:$0xff]
        %v4969 = vld [vmem:[#allocation2 + $0x700] sm:$0xff]
        %v4970 = vld [vmem:[#allocation2 + $0x708] sm:$0xff]
        %v4971 = vld [vmem:[#allocation2 + $0x710] sm:$0xff]
        %v4972 = vld [vmem:[#allocation2 + $0x718] sm:$0xff]
        %v4973 = vld [vmem:[#allocation2 + $0x720] sm:$0xff]
        %v4974 = vld [vmem:[#allocation2 + $0x728] sm:$0xff]
        %v4975 = vld [vmem:[#allocation2 + $0x730] sm:$0xff]
        %v4976 = vld [vmem:[#allocation2 + $0x738] sm:$0xff]
        %v4977 = vld [vmem:[#allocation2 + $0x740] sm:$0xff]
        %v4978 = vld [vmem:[#allocation2 + $0x748] sm:$0xff]
        %v4979 = vld [vmem:[#allocation2 + $0x750] sm:$0xff]
        %v4980 = vld [vmem:[#allocation2 + $0x758] sm:$0xff]
        %v4981 = vld [vmem:[#allocation2 + $0x760] sm:$0xff]
        %v4982 = vld [vmem:[#allocation2 + $0x768] sm:$0xff]
        %v4983 = vld [vmem:[#allocation2 + $0x770] sm:$0xff]
        %v4984 = vld [vmem:[#allocation2 + $0x778] sm:$0xff]
        %v4985 = vld [vmem:[#allocation2 + $0x780] sm:$0xff]
        %v4986 = vld [vmem:[#allocation2 + $0x788] sm:$0xff]
        %v4987 = vld [vmem:[#allocation2 + $0x790] sm:$0xff]
        %v4988 = vld [vmem:[#allocation2 + $0x798] sm:$0xff]
        %v4989 = vld [vmem:[#allocation2 + $0x7a0] sm:$0xff]
        %v4990 = vld [vmem:[#allocation2 + $0x7a8] sm:$0xff]
        %v4991 = vld [vmem:[#allocation2 + $0x7b0] sm:$0xff]
        %v4992 = vld [vmem:[#allocation2 + $0x7b8] sm:$0xff]
        %v4993 = vld [vmem:[#allocation2 + $0x7c0] sm:$0xff]
        %v4994 = vld [vmem:[#allocation2 + $0x7c8] sm:$0xff]
        %v4995 = vld [vmem:[#allocation2 + $0x7d0] sm:$0xff]
        %v4996 = vld [vmem:[#allocation2 + $0x7d8] sm:$0xff]
        %v4997 = vld [vmem:[#allocation2 + $0x7e0] sm:$0xff]
        %v4998 = vld [vmem:[#allocation2 + $0x7e8] sm:$0xff]
        %v4999 = vld [vmem:[#allocation2 + $0x7f0] sm:$0xff]
        %v5000 = vld [vmem:[#allocation2 + $0x7f8] sm:$0xff]
        %v5001 = vadd.f32 %v4745, %v4489
        %v5002 = vadd.f32 %v4746, %v4490
        %v5003 = vadd.f32 %v4747, %v4491
        %v5004 = vadd.f32 %v4748, %v4492
        %v5005 = vadd.f32 %v4749, %v4493
        %v5006 = vadd.f32 %v4750, %v4494
        %v5007 = vadd.f32 %v4751, %v4495
        %v5008 = vadd.f32 %v4752, %v4496
        %v5009 = vadd.f32 %v4753, %v4497
        %v5010 = vadd.f32 %v4754, %v4498
        %v5011 = vadd.f32 %v4755, %v4499
        %v5012 = vadd.f32 %v4756, %v4500
        %v5013 = vadd.f32 %v4757, %v4501
        %v5014 = vadd.f32 %v4758, %v4502
        %v5015 = vadd.f32 %v4759, %v4503
        %v5016 = vadd.f32 %v4760, %v4504
        %v5017 = vadd.f32 %v4761, %v4505
        %v5018 = vadd.f32 %v4762, %v4506
        %v5019 = vadd.f32 %v4763, %v4507
        %v5020 = vadd.f32 %v4764, %v4508
        %v5021 = vadd.f32 %v4765, %v4509
        %v5022 = vadd.f32 %v4766, %v4510
        %v5023 = vadd.f32 %v4767, %v4511
        %v5024 = vadd.f32 %v4768, %v4512
        %v5025 = vadd.f32 %v4769, %v4513
        %v5026 = vadd.f32 %v4770, %v4514
        %v5027 = vadd.f32 %v4771, %v4515
        %v5028 = vadd.f32 %v4772, %v4516
        %v5029 = vadd.f32 %v4773, %v4517
        %v5030 = vadd.f32 %v4774, %v4518
        %v5031 = vadd.f32 %v4775, %v4519
        %v5032 = vadd.f32 %v4776, %v4520
        %v5033 = vadd.f32 %v4777, %v4521
        %v5034 = vadd.f32 %v4778, %v4522
        %v5035 = vadd.f32 %v4779, %v4523
        %v5036 = vadd.f32 %v4780, %v4524
        %v5037 = vadd.f32 %v4781, %v4525
        %v5038 = vadd.f32 %v4782, %v4526
        %v5039 = vadd.f32 %v4783, %v4527
        %v5040 = vadd.f32 %v4784, %v4528
        %v5041 = vadd.f32 %v4785, %v4529
        %v5042 = vadd.f32 %v4786, %v4530
        %v5043 = vadd.f32 %v4787, %v4531
        %v5044 = vadd.f32 %v4788, %v4532
        %v5045 = vadd.f32 %v4789, %v4533
        %v5046 = vadd.f32 %v4790, %v4534
        %v5047 = vadd.f32 %v4791, %v4535
        %v5048 = vadd.f32 %v4792, %v4536
        %v5049 = vadd.f32 %v4793, %v4537
        %v5050 = vadd.f32 %v4794, %v4538
        %v5051 = vadd.f32 %v4795, %v4539
        %v5052 = vadd.f32 %v4796, %v4540
        %v5053 = vadd.f32 %v4797, %v4541
        %v5054 = vadd.f32 %v4798, %v4542
        %v5055 = vadd.f32 %v4799, %v4543
        %v5056 = vadd.f32 %v4800, %v4544
        %v5057 = vadd.f32 %v4801, %v4545
        %v5058 = vadd.f32 %v4802, %v4546
        %v5059 = vadd.f32 %v4803, %v4547
        %v5060 = vadd.f32 %v4804, %v4548
        %v5061 = vadd.f32 %v4805, %v4549
        %v5062 = vadd.f32 %v4806, %v4550
        %v5063 = vadd.f32 %v4807, %v4551
        %v5064 = vadd.f32 %v4808, %v4552
        %v5065 = vadd.f32 %v4809, %v4553
        %v5066 = vadd.f32 %v4810, %v4554
        %v5067 = vadd.f32 %v4811, %v4555
        %v5068 = vadd.f32 %v4812, %v4556
        %v5069 = vadd.f32 %v4813, %v4557
        %v5070 = vadd.f32 %v4814, %v4558
        %v5071 = vadd.f32 %v4815, %v4559
        %v5072 = vadd.f32 %v4816, %v4560
        %v5073 = vadd.f32 %v4817, %v4561
        %v5074 = vadd.f32 %v4818, %v4562
        %v5075 = vadd.f32 %v4819, %v4563
        %v5076 = vadd.f32 %v4820, %v4564
        %v5077 = vadd.f32 %v4821, %v4565
        %v5078 = vadd.f32 %v4822, %v4566
        %v5079 = vadd.f32 %v4823, %v4567
        %v5080 = vadd.f32 %v4824, %v4568
        %v5081 = vadd.f32 %v4825, %v4569
        %v5082 = vadd.f32 %v4826, %v4570
        %v5083 = vadd.f32 %v4827, %v4571
        %v5084 = vadd.f32 %v4828, %v4572
        %v5085 = vadd.f32 %v4829, %v4573
        %v5086 = vadd.f32 %v4830, %v4574
        %v5087 = vadd.f32 %v4831, %v4575
        %v5088 = vadd.f32 %v4832, %v4576
        %v5089 = vadd.f32 %v4833, %v4577
        %v5090 = vadd.f32 %v4834, %v4578
        %v5091 = vadd.f32 %v4835, %v4579
        %v5092 = vadd.f32 %v4836, %v4580
        %v5093 = vadd.f32 %v4837, %v4581
        %v5094 = vadd.f32 %v4838, %v4582
        %v5095 = vadd.f32 %v4839, %v4583
        %v5096 = vadd.f32 %v4840, %v4584
        %v5097 = vadd.f32 %v4841, %v4585
        %v5098 = vadd.f32 %v4842, %v4586
        %v5099 = vadd.f32 %v4843, %v4587
        %v5100 = vadd.f32 %v4844, %v4588
        %v5101 = vadd.f32 %v4845, %v4589
        %v5102 = vadd.f32 %v4846, %v4590
        %v5103 = vadd.f32 %v4847, %v4591
        %v5104 = vadd.f32 %v4848, %v4592
        %v5105 = vadd.f32 %v4849, %v4593
        %v5106 = vadd.f32 %v4850, %v4594
        %v5107 = vadd.f32 %v4851, %v4595
        %v5108 = vadd.f32 %v4852, %v4596
        %v5109 = vadd.f32 %v4853, %v4597
        %v5110 = vadd.f32 %v4854, %v4598
        %v5111 = vadd.f32 %v4855, %v4599
        %v5112 = vadd.f32 %v4856, %v4600
        %v5113 = vadd.f32 %v4857, %v4601
        %v5114 = vadd.f32 %v4858, %v4602
        %v5115 = vadd.f32 %v4859, %v4603
        %v5116 = vadd.f32 %v4860, %v4604
        %v5117 = vadd.f32 %v4861, %v4605
        %v5118 = vadd.f32 %v4862, %v4606
        %v5119 = vadd.f32 %v4863, %v4607
        %v5120 = vadd.f32 %v4864, %v4608
        %v5121 = vadd.f32 %v4865, %v4609
        %v5122 = vadd.f32 %v4866, %v4610
        %v5123 = vadd.f32 %v4867, %v4611
        %v5124 = vadd.f32 %v4868, %v4612
        %v5125 = vadd.f32 %v4869, %v4613
        %v5126 = vadd.f32 %v4870, %v4614
        %v5127 = vadd.f32 %v4871, %v4615
        %v5128 = vadd.f32 %v4872, %v4616
        %v5129 = vadd.f32 %v4873, %v4617
        %v5130 = vadd.f32 %v4874, %v4618
        %v5131 = vadd.f32 %v4875, %v4619
        %v5132 = vadd.f32 %v4876, %v4620
        %v5133 = vadd.f32 %v4877, %v4621
        %v5134 = vadd.f32 %v4878, %v4622
        %v5135 = vadd.f32 %v4879, %v4623
        %v5136 = vadd.f32 %v4880, %v4624
        %v5137 = vadd.f32 %v4881, %v4625
        %v5138 = vadd.f32 %v4882, %v4626
        %v5139 = vadd.f32 %v4883, %v4627
        %v5140 = vadd.f32 %v4884, %v4628
        %v5141 = vadd.f32 %v4885, %v4629
        %v5142 = vadd.f32 %v4886, %v4630
        %v5143 = vadd.f32 %v4887, %v4631
        %v5144 = vadd.f32 %v4888, %v4632
        %v5145 = vadd.f32 %v4889, %v4633
        %v5146 = vadd.f32 %v4890, %v4634
        %v5147 = vadd.f32 %v4891, %v4635
        %v5148 = vadd.f32 %v4892, %v4636
        %v5149 = vadd.f32 %v4893, %v4637
        %v5150 = vadd.f32 %v4894, %v4638
        %v5151 = vadd.f32 %v4895, %v4639
        %v5152 = vadd.f32 %v4896, %v4640
        %v5153 = vadd.f32 %v4897, %v4641
        %v5154 = vadd.f32 %v4898, %v4642
        %v5155 = vadd.f32 %v4899, %v4643
        %v5156 = vadd.f32 %v4900, %v4644
        %v5157 = vadd.f32 %v4901, %v4645
        %v5158 = vadd.f32 %v4902, %v4646
        %v5159 = vadd.f32 %v4903, %v4647
        %v5160 = vadd.f32 %v4904, %v4648
        %v5161 = vadd.f32 %v4905, %v4649
        %v5162 = vadd.f32 %v4906, %v4650
        %v5163 = vadd.f32 %v4907, %v4651
        %v5164 = vadd.f32 %v4908, %v4652
        %v5165 = vadd.f32 %v4909, %v4653
        %v5166 = vadd.f32 %v4910, %v4654
        %v5167 = vadd.f32 %v4911, %v4655
        %v5168 = vadd.f32 %v4912, %v4656
        %v5169 = vadd.f32 %v4913, %v4657
        %v5170 = vadd.f32 %v4914, %v4658
        %v5171 = vadd.f32 %v4915, %v4659
        %v5172 = vadd.f32 %v4916, %v4660
        %v5173 = vadd.f32 %v4917, %v4661
        %v5174 = vadd.f32 %v4918, %v4662
        %v5175 = vadd.f32 %v4919, %v4663
        %v5176 = vadd.f32 %v4920, %v4664
        %v5177 = vadd.f32 %v4921, %v4665
        %v5178 = vadd.f32 %v4922, %v4666
        %v5179 = vadd.f32 %v4923, %v4667
        %v5180 = vadd.f32 %v4924, %v4668
        %v5181 = vadd.f32 %v4925, %v4669
        %v5182 = vadd.f32 %v4926, %v4670
        %v5183 = vadd.f32 %v4927, %v4671
        %v5184 = vadd.f32 %v4928, %v4672
        %v5185 = vadd.f32 %v4929, %v4673
        %v5186 = vadd.f32 %v4930, %v4674
        %v5187 = vadd.f32 %v4931, %v4675
        %v5188 = vadd.f32 %v4932, %v4676
        %v5189 = vadd.f32 %v4933, %v4677
        %v5190 = vadd.f32 %v4934, %v4678
        %v5191 = vadd.f32 %v4935, %v4679
        %v5192 = vadd.f32 %v4936, %v4680
        %v5193 = vadd.f32 %v4937, %v4681
        %v5194 = vadd.f32 %v4938, %v4682
        %v5195 = vadd.f32 %v4939, %v4683
        %v5196 = vadd.f32 %v4940, %v4684
        %v5197 = vadd.f32 %v4941, %v4685
        %v5198 = vadd.f32 %v4942, %v4686
        %v5199 = vadd.f32 %v4943, %v4687
        %v5200 = vadd.f32 %v4944, %v4688
        %v5201 = vadd.f32 %v4945, %v4689
        %v5202 = vadd.f32 %v4946, %v4690
        %v5203 = vadd.f32 %v4947, %v4691
        %v5204 = vadd.f32 %v4948, %v4692
        %v5205 = vadd.f32 %v4949, %v4693
        %v5206 = vadd.f32 %v4950, %v4694
        %v5207 = vadd.f32 %v4951, %v4695
        %v5208 = vadd.f32 %v4952, %v4696
        %v5209 = vadd.f32 %v4953, %v4697
        %v5210 = vadd.f32 %v4954, %v4698
        %v5211 = vadd.f32 %v4955, %v4699
        %v5212 = vadd.f32 %v4956, %v4700
        %v5213 = vadd.f32 %v4957, %v4701
        %v5214 = vadd.f32 %v4958, %v4702
        %v5215 = vadd.f32 %v4959, %v4703
        %v5216 = vadd.f32 %v4960, %v4704
        %v5217 = vadd.f32 %v4961, %v4705
        %v5218 = vadd.f32 %v4962, %v4706
        %v5219 = vadd.f32 %v4963, %v4707
        %v5220 = vadd.f32 %v4964, %v4708
        %v5221 = vadd.f32 %v4965, %v4709
        %v5222 = vadd.f32 %v4966, %v4710
        %v5223 = vadd.f32 %v4967, %v4711
        %v5224 = vadd.f32 %v4968, %v4712
        %v5225 = vadd.f32 %v4969, %v4713
        %v5226 = vadd.f32 %v4970, %v4714
        %v5227 = vadd.f32 %v4971, %v4715
        %v5228 = vadd.f32 %v4972, %v4716
        %v5229 = vadd.f32 %v4973, %v4717
        %v5230 = vadd.f32 %v4974, %v4718
        %v5231 = vadd.f32 %v4975, %v4719
        %v5232 = vadd.f32 %v4976, %v4720
        %v5233 = vadd.f32 %v4977, %v4721
        %v5234 = vadd.f32 %v4978, %v4722
        %v5235 = vadd.f32 %v4979, %v4723
        %v5236 = vadd.f32 %v4980, %v4724
        %v5237 = vadd.f32 %v4981, %v4725
        %v5238 = vadd.f32 %v4982, %v4726
        %v5239 = vadd.f32 %v4983, %v4727
        %v5240 = vadd.f32 %v4984, %v4728
        %v5241 = vadd.f32 %v4985, %v4729
        %v5242 = vadd.f32 %v4986, %v4730
        %v5243 = vadd.f32 %v4987, %v4731
        %v5244 = vadd.f32 %v4988, %v4732
        %v5245 = vadd.f32 %v4989, %v4733
        %v5246 = vadd.f32 %v4990, %v4734
        %v5247 = vadd.f32 %v4991, %v4735
        %v5248 = vadd.f32 %v4992, %v4736
        %v5249 = vadd.f32 %v4993, %v4737
        %v5250 = vadd.f32 %v4994, %v4738
        %v5251 = vadd.f32 %v4995, %v4739
        %v5252 = vadd.f32 %v4996, %v4740
        %v5253 = vadd.f32 %v4997, %v4741
        %v5254 = vadd.f32 %v4998, %v4742
        %v5255 = vadd.f32 %v4999, %v4743
        %v5256 = vadd.f32 %v5000, %v4744
        %5257 = vst [vmem:[#allocation2] sm:$0xff] %v5001
        %5258 = vst [vmem:[#allocation2 + $0x8] sm:$0xff] %v5002
        %5259 = vst [vmem:[#allocation2 + $0x10] sm:$0xff] %v5003
        %5260 = vst [vmem:[#allocation2 + $0x18] sm:$0xff] %v5004
        %5261 = vst [vmem:[#allocation2 + $0x20] sm:$0xff] %v5005
        %5262 = vst [vmem:[#allocation2 + $0x28] sm:$0xff] %v5006
        %5263 = vst [vmem:[#allocation2 + $0x30] sm:$0xff] %v5007
        %5264 = vst [vmem:[#allocation2 + $0x38] sm:$0xff] %v5008
        %5265 = vst [vmem:[#allocation2 + $0x40] sm:$0xff] %v5009
        %5266 = vst [vmem:[#allocation2 + $0x48] sm:$0xff] %v5010
        %5267 = vst [vmem:[#allocation2 + $0x50] sm:$0xff] %v5011
        %5268 = vst [vmem:[#allocation2 + $0x58] sm:$0xff] %v5012
        %5269 = vst [vmem:[#allocation2 + $0x60] sm:$0xff] %v5013
        %5270 = vst [vmem:[#allocation2 + $0x68] sm:$0xff] %v5014
        %5271 = vst [vmem:[#allocation2 + $0x70] sm:$0xff] %v5015
        %5272 = vst [vmem:[#allocation2 + $0x78] sm:$0xff] %v5016
        %5273 = vst [vmem:[#allocation2 + $0x80] sm:$0xff] %v5017
        %5274 = vst [vmem:[#allocation2 + $0x88] sm:$0xff] %v5018
        %5275 = vst [vmem:[#allocation2 + $0x90] sm:$0xff] %v5019
        %5276 = vst [vmem:[#allocation2 + $0x98] sm:$0xff] %v5020
        %5277 = vst [vmem:[#allocation2 + $0xa0] sm:$0xff] %v5021
        %5278 = vst [vmem:[#allocation2 + $0xa8] sm:$0xff] %v5022
        %5279 = vst [vmem:[#allocation2 + $0xb0] sm:$0xff] %v5023
        %5280 = vst [vmem:[#allocation2 + $0xb8] sm:$0xff] %v5024
        %5281 = vst [vmem:[#allocation2 + $0xc0] sm:$0xff] %v5025
        %5282 = vst [vmem:[#allocation2 + $0xc8] sm:$0xff] %v5026
        %5283 = vst [vmem:[#allocation2 + $0xd0] sm:$0xff] %v5027
        %5284 = vst [vmem:[#allocation2 + $0xd8] sm:$0xff] %v5028
        %5285 = vst [vmem:[#allocation2 + $0xe0] sm:$0xff] %v5029
        %5286 = vst [vmem:[#allocation2 + $0xe8] sm:$0xff] %v5030
        %5287 = vst [vmem:[#allocation2 + $0xf0] sm:$0xff] %v5031
        %5288 = vst [vmem:[#allocation2 + $0xf8] sm:$0xff] %v5032
        %5289 = vst [vmem:[#allocation2 + $0x100] sm:$0xff] %v5033
        %5290 = vst [vmem:[#allocation2 + $0x108] sm:$0xff] %v5034
        %5291 = vst [vmem:[#allocation2 + $0x110] sm:$0xff] %v5035
        %5292 = vst [vmem:[#allocation2 + $0x118] sm:$0xff] %v5036
        %5293 = vst [vmem:[#allocation2 + $0x120] sm:$0xff] %v5037
        %5294 = vst [vmem:[#allocation2 + $0x128] sm:$0xff] %v5038
        %5295 = vst [vmem:[#allocation2 + $0x130] sm:$0xff] %v5039
        %5296 = vst [vmem:[#allocation2 + $0x138] sm:$0xff] %v5040
        %5297 = vst [vmem:[#allocation2 + $0x140] sm:$0xff] %v5041
        %5298 = vst [vmem:[#allocation2 + $0x148] sm:$0xff] %v5042
        %5299 = vst [vmem:[#allocation2 + $0x150] sm:$0xff] %v5043
        %5300 = vst [vmem:[#allocation2 + $0x158] sm:$0xff] %v5044
        %5301 = vst [vmem:[#allocation2 + $0x160] sm:$0xff] %v5045
        %5302 = vst [vmem:[#allocation2 + $0x168] sm:$0xff] %v5046
        %5303 = vst [vmem:[#allocation2 + $0x170] sm:$0xff] %v5047
        %5304 = vst [vmem:[#allocation2 + $0x178] sm:$0xff] %v5048
        %5305 = vst [vmem:[#allocation2 + $0x180] sm:$0xff] %v5049
        %5306 = vst [vmem:[#allocation2 + $0x188] sm:$0xff] %v5050
        %5307 = vst [vmem:[#allocation2 + $0x190] sm:$0xff] %v5051
        %5308 = vst [vmem:[#allocation2 + $0x198] sm:$0xff] %v5052
        %5309 = vst [vmem:[#allocation2 + $0x1a0] sm:$0xff] %v5053
        %5310 = vst [vmem:[#allocation2 + $0x1a8] sm:$0xff] %v5054
        %5311 = vst [vmem:[#allocation2 + $0x1b0] sm:$0xff] %v5055
        %5312 = vst [vmem:[#allocation2 + $0x1b8] sm:$0xff] %v5056
        %5313 = vst [vmem:[#allocation2 + $0x1c0] sm:$0xff] %v5057
        %5314 = vst [vmem:[#allocation2 + $0x1c8] sm:$0xff] %v5058
        %5315 = vst [vmem:[#allocation2 + $0x1d0] sm:$0xff] %v5059
        %5316 = vst [vmem:[#allocation2 + $0x1d8] sm:$0xff] %v5060
        %5317 = vst [vmem:[#allocation2 + $0x1e0] sm:$0xff] %v5061
        %5318 = vst [vmem:[#allocation2 + $0x1e8] sm:$0xff] %v5062
        %5319 = vst [vmem:[#allocation2 + $0x1f0] sm:$0xff] %v5063
        %5320 = vst [vmem:[#allocation2 + $0x1f8] sm:$0xff] %v5064
        %5321 = vst [vmem:[#allocation2 + $0x200] sm:$0xff] %v5065
        %5322 = vst [vmem:[#allocation2 + $0x208] sm:$0xff] %v5066
        %5323 = vst [vmem:[#allocation2 + $0x210] sm:$0xff] %v5067
        %5324 = vst [vmem:[#allocation2 + $0x218] sm:$0xff] %v5068
        %5325 = vst [vmem:[#allocation2 + $0x220] sm:$0xff] %v5069
        %5326 = vst [vmem:[#allocation2 + $0x228] sm:$0xff] %v5070
        %5327 = vst [vmem:[#allocation2 + $0x230] sm:$0xff] %v5071
        %5328 = vst [vmem:[#allocation2 + $0x238] sm:$0xff] %v5072
        %5329 = vst [vmem:[#allocation2 + $0x240] sm:$0xff] %v5073
        %5330 = vst [vmem:[#allocation2 + $0x248] sm:$0xff] %v5074
        %5331 = vst [vmem:[#allocation2 + $0x250] sm:$0xff] %v5075
        %5332 = vst [vmem:[#allocation2 + $0x258] sm:$0xff] %v5076
        %5333 = vst [vmem:[#allocation2 + $0x260] sm:$0xff] %v5077
        %5334 = vst [vmem:[#allocation2 + $0x268] sm:$0xff] %v5078
        %5335 = vst [vmem:[#allocation2 + $0x270] sm:$0xff] %v5079
        %5336 = vst [vmem:[#allocation2 + $0x278] sm:$0xff] %v5080
        %5337 = vst [vmem:[#allocation2 + $0x280] sm:$0xff] %v5081
        %5338 = vst [vmem:[#allocation2 + $0x288] sm:$0xff] %v5082
        %5339 = vst [vmem:[#allocation2 + $0x290] sm:$0xff] %v5083
        %5340 = vst [vmem:[#allocation2 + $0x298] sm:$0xff] %v5084
        %5341 = vst [vmem:[#allocation2 + $0x2a0] sm:$0xff] %v5085
        %5342 = vst [vmem:[#allocation2 + $0x2a8] sm:$0xff] %v5086
        %5343 = vst [vmem:[#allocation2 + $0x2b0] sm:$0xff] %v5087
        %5344 = vst [vmem:[#allocation2 + $0x2b8] sm:$0xff] %v5088
        %5345 = vst [vmem:[#allocation2 + $0x2c0] sm:$0xff] %v5089
        %5346 = vst [vmem:[#allocation2 + $0x2c8] sm:$0xff] %v5090
        %5347 = vst [vmem:[#allocation2 + $0x2d0] sm:$0xff] %v5091
        %5348 = vst [vmem:[#allocation2 + $0x2d8] sm:$0xff] %v5092
        %5349 = vst [vmem:[#allocation2 + $0x2e0] sm:$0xff] %v5093
        %5350 = vst [vmem:[#allocation2 + $0x2e8] sm:$0xff] %v5094
        %5351 = vst [vmem:[#allocation2 + $0x2f0] sm:$0xff] %v5095
        %5352 = vst [vmem:[#allocation2 + $0x2f8] sm:$0xff] %v5096
        %5353 = vst [vmem:[#allocation2 + $0x300] sm:$0xff] %v5097
        %5354 = vst [vmem:[#allocation2 + $0x308] sm:$0xff] %v5098
        %5355 = vst [vmem:[#allocation2 + $0x310] sm:$0xff] %v5099
        %5356 = vst [vmem:[#allocation2 + $0x318] sm:$0xff] %v5100
        %5357 = vst [vmem:[#allocation2 + $0x320] sm:$0xff] %v5101
        %5358 = vst [vmem:[#allocation2 + $0x328] sm:$0xff] %v5102
        %5359 = vst [vmem:[#allocation2 + $0x330] sm:$0xff] %v5103
        %5360 = vst [vmem:[#allocation2 + $0x338] sm:$0xff] %v5104
        %5361 = vst [vmem:[#allocation2 + $0x340] sm:$0xff] %v5105
        %5362 = vst [vmem:[#allocation2 + $0x348] sm:$0xff] %v5106
        %5363 = vst [vmem:[#allocation2 + $0x350] sm:$0xff] %v5107
        %5364 = vst [vmem:[#allocation2 + $0x358] sm:$0xff] %v5108
        %5365 = vst [vmem:[#allocation2 + $0x360] sm:$0xff] %v5109
        %5366 = vst [vmem:[#allocation2 + $0x368] sm:$0xff] %v5110
        %5367 = vst [vmem:[#allocation2 + $0x370] sm:$0xff] %v5111
        %5368 = vst [vmem:[#allocation2 + $0x378] sm:$0xff] %v5112
        %5369 = vst [vmem:[#allocation2 + $0x380] sm:$0xff] %v5113
        %5370 = vst [vmem:[#allocation2 + $0x388] sm:$0xff] %v5114
        %5371 = vst [vmem:[#allocation2 + $0x390] sm:$0xff] %v5115
        %5372 = vst [vmem:[#allocation2 + $0x398] sm:$0xff] %v5116
        %5373 = vst [vmem:[#allocation2 + $0x3a0] sm:$0xff] %v5117
        %5374 = vst [vmem:[#allocation2 + $0x3a8] sm:$0xff] %v5118
        %5375 = vst [vmem:[#allocation2 + $0x3b0] sm:$0xff] %v5119
        %5376 = vst [vmem:[#allocation2 + $0x3b8] sm:$0xff] %v5120
        %5377 = vst [vmem:[#allocation2 + $0x3c0] sm:$0xff] %v5121
        %5378 = vst [vmem:[#allocation2 + $0x3c8] sm:$0xff] %v5122
        %5379 = vst [vmem:[#allocation2 + $0x3d0] sm:$0xff] %v5123
        %5380 = vst [vmem:[#allocation2 + $0x3d8] sm:$0xff] %v5124
        %5381 = vst [vmem:[#allocation2 + $0x3e0] sm:$0xff] %v5125
        %5382 = vst [vmem:[#allocation2 + $0x3e8] sm:$0xff] %v5126
        %5383 = vst [vmem:[#allocation2 + $0x3f0] sm:$0xff] %v5127
        %5384 = vst [vmem:[#allocation2 + $0x3f8] sm:$0xff] %v5128
        %5385 = vst [vmem:[#allocation2 + $0x400] sm:$0xff] %v5129
        %5386 = vst [vmem:[#allocation2 + $0x408] sm:$0xff] %v5130
        %5387 = vst [vmem:[#allocation2 + $0x410] sm:$0xff] %v5131
        %5388 = vst [vmem:[#allocation2 + $0x418] sm:$0xff] %v5132
        %5389 = vst [vmem:[#allocation2 + $0x420] sm:$0xff] %v5133
        %5390 = vst [vmem:[#allocation2 + $0x428] sm:$0xff] %v5134
        %5391 = vst [vmem:[#allocation2 + $0x430] sm:$0xff] %v5135
        %5392 = vst [vmem:[#allocation2 + $0x438] sm:$0xff] %v5136
        %5393 = vst [vmem:[#allocation2 + $0x440] sm:$0xff] %v5137
        %5394 = vst [vmem:[#allocation2 + $0x448] sm:$0xff] %v5138
        %5395 = vst [vmem:[#allocation2 + $0x450] sm:$0xff] %v5139
        %5396 = vst [vmem:[#allocation2 + $0x458] sm:$0xff] %v5140
        %5397 = vst [vmem:[#allocation2 + $0x460] sm:$0xff] %v5141
        %5398 = vst [vmem:[#allocation2 + $0x468] sm:$0xff] %v5142
        %5399 = vst [vmem:[#allocation2 + $0x470] sm:$0xff] %v5143
        %5400 = vst [vmem:[#allocation2 + $0x478] sm:$0xff] %v5144
        %5401 = vst [vmem:[#allocation2 + $0x480] sm:$0xff] %v5145
        %5402 = vst [vmem:[#allocation2 + $0x488] sm:$0xff] %v5146
        %5403 = vst [vmem:[#allocation2 + $0x490] sm:$0xff] %v5147
        %5404 = vst [vmem:[#allocation2 + $0x498] sm:$0xff] %v5148
        %5405 = vst [vmem:[#allocation2 + $0x4a0] sm:$0xff] %v5149
        %5406 = vst [vmem:[#allocation2 + $0x4a8] sm:$0xff] %v5150
        %5407 = vst [vmem:[#allocation2 + $0x4b0] sm:$0xff] %v5151
        %5408 = vst [vmem:[#allocation2 + $0x4b8] sm:$0xff] %v5152
        %5409 = vst [vmem:[#allocation2 + $0x4c0] sm:$0xff] %v5153
        %5410 = vst [vmem:[#allocation2 + $0x4c8] sm:$0xff] %v5154
        %5411 = vst [vmem:[#allocation2 + $0x4d0] sm:$0xff] %v5155
        %5412 = vst [vmem:[#allocation2 + $0x4d8] sm:$0xff] %v5156
        %5413 = vst [vmem:[#allocation2 + $0x4e0] sm:$0xff] %v5157
        %5414 = vst [vmem:[#allocation2 + $0x4e8] sm:$0xff] %v5158
        %5415 = vst [vmem:[#allocation2 + $0x4f0] sm:$0xff] %v5159
        %5416 = vst [vmem:[#allocation2 + $0x4f8] sm:$0xff] %v5160
        %5417 = vst [vmem:[#allocation2 + $0x500] sm:$0xff] %v5161
        %5418 = vst [vmem:[#allocation2 + $0x508] sm:$0xff] %v5162
        %5419 = vst [vmem:[#allocation2 + $0x510] sm:$0xff] %v5163
        %5420 = vst [vmem:[#allocation2 + $0x518] sm:$0xff] %v5164
        %5421 = vst [vmem:[#allocation2 + $0x520] sm:$0xff] %v5165
        %5422 = vst [vmem:[#allocation2 + $0x528] sm:$0xff] %v5166
        %5423 = vst [vmem:[#allocation2 + $0x530] sm:$0xff] %v5167
        %5424 = vst [vmem:[#allocation2 + $0x538] sm:$0xff] %v5168
        %5425 = vst [vmem:[#allocation2 + $0x540] sm:$0xff] %v5169
        %5426 = vst [vmem:[#allocation2 + $0x548] sm:$0xff] %v5170
        %5427 = vst [vmem:[#allocation2 + $0x550] sm:$0xff] %v5171
        %5428 = vst [vmem:[#allocation2 + $0x558] sm:$0xff] %v5172
        %5429 = vst [vmem:[#allocation2 + $0x560] sm:$0xff] %v5173
        %5430 = vst [vmem:[#allocation2 + $0x568] sm:$0xff] %v5174
        %5431 = vst [vmem:[#allocation2 + $0x570] sm:$0xff] %v5175
        %5432 = vst [vmem:[#allocation2 + $0x578] sm:$0xff] %v5176
        %5433 = vst [vmem:[#allocation2 + $0x580] sm:$0xff] %v5177
        %5434 = vst [vmem:[#allocation2 + $0x588] sm:$0xff] %v5178
        %5435 = vst [vmem:[#allocation2 + $0x590] sm:$0xff] %v5179
        %5436 = vst [vmem:[#allocation2 + $0x598] sm:$0xff] %v5180
        %5437 = vst [vmem:[#allocation2 + $0x5a0] sm:$0xff] %v5181
        %5438 = vst [vmem:[#allocation2 + $0x5a8] sm:$0xff] %v5182
        %5439 = vst [vmem:[#allocation2 + $0x5b0] sm:$0xff] %v5183
        %5440 = vst [vmem:[#allocation2 + $0x5b8] sm:$0xff] %v5184
        %5441 = vst [vmem:[#allocation2 + $0x5c0] sm:$0xff] %v5185
        %5442 = vst [vmem:[#allocation2 + $0x5c8] sm:$0xff] %v5186
        %5443 = vst [vmem:[#allocation2 + $0x5d0] sm:$0xff] %v5187
        %5444 = vst [vmem:[#allocation2 + $0x5d8] sm:$0xff] %v5188
        %5445 = vst [vmem:[#allocation2 + $0x5e0] sm:$0xff] %v5189
        %5446 = vst [vmem:[#allocation2 + $0x5e8] sm:$0xff] %v5190
        %5447 = vst [vmem:[#allocation2 + $0x5f0] sm:$0xff] %v5191
        %5448 = vst [vmem:[#allocation2 + $0x5f8] sm:$0xff] %v5192
        %5449 = vst [vmem:[#allocation2 + $0x600] sm:$0xff] %v5193
        %5450 = vst [vmem:[#allocation2 + $0x608] sm:$0xff] %v5194
        %5451 = vst [vmem:[#allocation2 + $0x610] sm:$0xff] %v5195
        %5452 = vst [vmem:[#allocation2 + $0x618] sm:$0xff] %v5196
        %5453 = vst [vmem:[#allocation2 + $0x620] sm:$0xff] %v5197
        %5454 = vst [vmem:[#allocation2 + $0x628] sm:$0xff] %v5198
        %5455 = vst [vmem:[#allocation2 + $0x630] sm:$0xff] %v5199
        %5456 = vst [vmem:[#allocation2 + $0x638] sm:$0xff] %v5200
        %5457 = vst [vmem:[#allocation2 + $0x640] sm:$0xff] %v5201
        %5458 = vst [vmem:[#allocation2 + $0x648] sm:$0xff] %v5202
        %5459 = vst [vmem:[#allocation2 + $0x650] sm:$0xff] %v5203
        %5460 = vst [vmem:[#allocation2 + $0x658] sm:$0xff] %v5204
        %5461 = vst [vmem:[#allocation2 + $0x660] sm:$0xff] %v5205
        %5462 = vst [vmem:[#allocation2 + $0x668] sm:$0xff] %v5206
        %5463 = vst [vmem:[#allocation2 + $0x670] sm:$0xff] %v5207
        %5464 = vst [vmem:[#allocation2 + $0x678] sm:$0xff] %v5208
        %5465 = vst [vmem:[#allocation2 + $0x680] sm:$0xff] %v5209
        %5466 = vst [vmem:[#allocation2 + $0x688] sm:$0xff] %v5210
        %5467 = vst [vmem:[#allocation2 + $0x690] sm:$0xff] %v5211
        %5468 = vst [vmem:[#allocation2 + $0x698] sm:$0xff] %v5212
        %5469 = vst [vmem:[#allocation2 + $0x6a0] sm:$0xff] %v5213
        %5470 = vst [vmem:[#allocation2 + $0x6a8] sm:$0xff] %v5214
        %5471 = vst [vmem:[#allocation2 + $0x6b0] sm:$0xff] %v5215
        %5472 = vst [vmem:[#allocation2 + $0x6b8] sm:$0xff] %v5216
        %5473 = vst [vmem:[#allocation2 + $0x6c0] sm:$0xff] %v5217
        %5474 = vst [vmem:[#allocation2 + $0x6c8] sm:$0xff] %v5218
        %5475 = vst [vmem:[#allocation2 + $0x6d0] sm:$0xff] %v5219
        %5476 = vst [vmem:[#allocation2 + $0x6d8] sm:$0xff] %v5220
        %5477 = vst [vmem:[#allocation2 + $0x6e0] sm:$0xff] %v5221
        %5478 = vst [vmem:[#allocation2 + $0x6e8] sm:$0xff] %v5222
        %5479 = vst [vmem:[#allocation2 + $0x6f0] sm:$0xff] %v5223
        %5480 = vst [vmem:[#allocation2 + $0x6f8] sm:$0xff] %v5224
        %5481 = vst [vmem:[#allocation2 + $0x700] sm:$0xff] %v5225
        %5482 = vst [vmem:[#allocation2 + $0x708] sm:$0xff] %v5226
        %5483 = vst [vmem:[#allocation2 + $0x710] sm:$0xff] %v5227
        %5484 = vst [vmem:[#allocation2 + $0x718] sm:$0xff] %v5228
        %5485 = vst [vmem:[#allocation2 + $0x720] sm:$0xff] %v5229
        %5486 = vst [vmem:[#allocation2 + $0x728] sm:$0xff] %v5230
        %5487 = vst [vmem:[#allocation2 + $0x730] sm:$0xff] %v5231
        %5488 = vst [vmem:[#allocation2 + $0x738] sm:$0xff] %v5232
        %5489 = vst [vmem:[#allocation2 + $0x740] sm:$0xff] %v5233
        %5490 = vst [vmem:[#allocation2 + $0x748] sm:$0xff] %v5234
        %5491 = vst [vmem:[#allocation2 + $0x750] sm:$0xff] %v5235
        %5492 = vst [vmem:[#allocation2 + $0x758] sm:$0xff] %v5236
        %5493 = vst [vmem:[#allocation2 + $0x760] sm:$0xff] %v5237
        %5494 = vst [vmem:[#allocation2 + $0x768] sm:$0xff] %v5238
        %5495 = vst [vmem:[#allocation2 + $0x770] sm:$0xff] %v5239
        %5496 = vst [vmem:[#allocation2 + $0x778] sm:$0xff] %v5240
        %5497 = vst [vmem:[#allocation2 + $0x780] sm:$0xff] %v5241
        %5498 = vst [vmem:[#allocation2 + $0x788] sm:$0xff] %v5242
        %5499 = vst [vmem:[#allocation2 + $0x790] sm:$0xff] %v5243
        %5500 = vst [vmem:[#allocation2 + $0x798] sm:$0xff] %v5244
        %5501 = vst [vmem:[#allocation2 + $0x7a0] sm:$0xff] %v5245
        %5502 = vst [vmem:[#allocation2 + $0x7a8] sm:$0xff] %v5246
        %5503 = vst [vmem:[#allocation2 + $0x7b0] sm:$0xff] %v5247
        %5504 = vst [vmem:[#allocation2 + $0x7b8] sm:$0xff] %v5248
        %5505 = vst [vmem:[#allocation2 + $0x7c0] sm:$0xff] %v5249
        %5506 = vst [vmem:[#allocation2 + $0x7c8] sm:$0xff] %v5250
        %5507 = vst [vmem:[#allocation2 + $0x7d0] sm:$0xff] %v5251
        %5508 = vst [vmem:[#allocation2 + $0x7d8] sm:$0xff] %v5252
        %5509 = vst [vmem:[#allocation2 + $0x7e0] sm:$0xff] %v5253
        %5510 = vst [vmem:[#allocation2 + $0x7e8] sm:$0xff] %v5254
        %5511 = vst [vmem:[#allocation2 + $0x7f0] sm:$0xff] %v5255
        %5512 = vst [vmem:[#allocation2 + $0x7f8] sm:$0xff] %v5256
        %p5513 = scmp.eq.s32.totalorder %s31, 1
        // Predicated region
        $region69: #{tpu_custom_call.1} parent=47 // pred_check
          %p5514 = pneg %p5513
        $region70: #{tpu_custom_call.1} parent=47 // pred_check_branch
          %5516 = sbr.rel (%p5514) target = $region72
        $region71: #{tpu_custom_call.1} parent=47 // pred_region
          %v5517 = vld [vmem:[#allocation2] sm:$0xff]
          %v5518 = vld [vmem:[#allocation2 + $0x8] sm:$0xff]
          %v5519 = vld [vmem:[#allocation2 + $0x10] sm:$0xff]
          %v5520 = vld [vmem:[#allocation2 + $0x18] sm:$0xff]
          %v5521 = vld [vmem:[#allocation2 + $0x20] sm:$0xff]
          %v5522 = vld [vmem:[#allocation2 + $0x28] sm:$0xff]
          %v5523 = vld [vmem:[#allocation2 + $0x30] sm:$0xff]
          %v5524 = vld [vmem:[#allocation2 + $0x38] sm:$0xff]
          %v5525 = vld [vmem:[#allocation2 + $0x40] sm:$0xff]
          %v5526 = vld [vmem:[#allocation2 + $0x48] sm:$0xff]
          %v5527 = vld [vmem:[#allocation2 + $0x50] sm:$0xff]
          %v5528 = vld [vmem:[#allocation2 + $0x58] sm:$0xff]
          %v5529 = vld [vmem:[#allocation2 + $0x60] sm:$0xff]
          %v5530 = vld [vmem:[#allocation2 + $0x68] sm:$0xff]
          %v5531 = vld [vmem:[#allocation2 + $0x70] sm:$0xff]
          %v5532 = vld [vmem:[#allocation2 + $0x78] sm:$0xff]
          %v5533 = vld [vmem:[#allocation2 + $0x80] sm:$0xff]
          %v5534 = vld [vmem:[#allocation2 + $0x88] sm:$0xff]
          %v5535 = vld [vmem:[#allocation2 + $0x90] sm:$0xff]
          %v5536 = vld [vmem:[#allocation2 + $0x98] sm:$0xff]
          %v5537 = vld [vmem:[#allocation2 + $0xa0] sm:$0xff]
          %v5538 = vld [vmem:[#allocation2 + $0xa8] sm:$0xff]
          %v5539 = vld [vmem:[#allocation2 + $0xb0] sm:$0xff]
          %v5540 = vld [vmem:[#allocation2 + $0xb8] sm:$0xff]
          %v5541 = vld [vmem:[#allocation2 + $0xc0] sm:$0xff]
          %v5542 = vld [vmem:[#allocation2 + $0xc8] sm:$0xff]
          %v5543 = vld [vmem:[#allocation2 + $0xd0] sm:$0xff]
          %v5544 = vld [vmem:[#allocation2 + $0xd8] sm:$0xff]
          %v5545 = vld [vmem:[#allocation2 + $0xe0] sm:$0xff]
          %v5546 = vld [vmem:[#allocation2 + $0xe8] sm:$0xff]
          %v5547 = vld [vmem:[#allocation2 + $0xf0] sm:$0xff]
          %v5548 = vld [vmem:[#allocation2 + $0xf8] sm:$0xff]
          %v5549 = vld [vmem:[#allocation2 + $0x100] sm:$0xff]
          %v5550 = vld [vmem:[#allocation2 + $0x108] sm:$0xff]
          %v5551 = vld [vmem:[#allocation2 + $0x110] sm:$0xff]
          %v5552 = vld [vmem:[#allocation2 + $0x118] sm:$0xff]
          %v5553 = vld [vmem:[#allocation2 + $0x120] sm:$0xff]
          %v5554 = vld [vmem:[#allocation2 + $0x128] sm:$0xff]
          %v5555 = vld [vmem:[#allocation2 + $0x130] sm:$0xff]
          %v5556 = vld [vmem:[#allocation2 + $0x138] sm:$0xff]
          %v5557 = vld [vmem:[#allocation2 + $0x140] sm:$0xff]
          %v5558 = vld [vmem:[#allocation2 + $0x148] sm:$0xff]
          %v5559 = vld [vmem:[#allocation2 + $0x150] sm:$0xff]
          %v5560 = vld [vmem:[#allocation2 + $0x158] sm:$0xff]
          %v5561 = vld [vmem:[#allocation2 + $0x160] sm:$0xff]
          %v5562 = vld [vmem:[#allocation2 + $0x168] sm:$0xff]
          %v5563 = vld [vmem:[#allocation2 + $0x170] sm:$0xff]
          %v5564 = vld [vmem:[#allocation2 + $0x178] sm:$0xff]
          %v5565 = vld [vmem:[#allocation2 + $0x180] sm:$0xff]
          %v5566 = vld [vmem:[#allocation2 + $0x188] sm:$0xff]
          %v5567 = vld [vmem:[#allocation2 + $0x190] sm:$0xff]
          %v5568 = vld [vmem:[#allocation2 + $0x198] sm:$0xff]
          %v5569 = vld [vmem:[#allocation2 + $0x1a0] sm:$0xff]
          %v5570 = vld [vmem:[#allocation2 + $0x1a8] sm:$0xff]
          %v5571 = vld [vmem:[#allocation2 + $0x1b0] sm:$0xff]
          %v5572 = vld [vmem:[#allocation2 + $0x1b8] sm:$0xff]
          %v5573 = vld [vmem:[#allocation2 + $0x1c0] sm:$0xff]
          %v5574 = vld [vmem:[#allocation2 + $0x1c8] sm:$0xff]
          %v5575 = vld [vmem:[#allocation2 + $0x1d0] sm:$0xff]
          %v5576 = vld [vmem:[#allocation2 + $0x1d8] sm:$0xff]
          %v5577 = vld [vmem:[#allocation2 + $0x1e0] sm:$0xff]
          %v5578 = vld [vmem:[#allocation2 + $0x1e8] sm:$0xff]
          %v5579 = vld [vmem:[#allocation2 + $0x1f0] sm:$0xff]
          %v5580 = vld [vmem:[#allocation2 + $0x1f8] sm:$0xff]
          %v5581 = vld [vmem:[#allocation2 + $0x200] sm:$0xff]
          %v5582 = vld [vmem:[#allocation2 + $0x208] sm:$0xff]
          %v5583 = vld [vmem:[#allocation2 + $0x210] sm:$0xff]
          %v5584 = vld [vmem:[#allocation2 + $0x218] sm:$0xff]
          %v5585 = vld [vmem:[#allocation2 + $0x220] sm:$0xff]
          %v5586 = vld [vmem:[#allocation2 + $0x228] sm:$0xff]
          %v5587 = vld [vmem:[#allocation2 + $0x230] sm:$0xff]
          %v5588 = vld [vmem:[#allocation2 + $0x238] sm:$0xff]
          %v5589 = vld [vmem:[#allocation2 + $0x240] sm:$0xff]
          %v5590 = vld [vmem:[#allocation2 + $0x248] sm:$0xff]
          %v5591 = vld [vmem:[#allocation2 + $0x250] sm:$0xff]
          %v5592 = vld [vmem:[#allocation2 + $0x258] sm:$0xff]
          %v5593 = vld [vmem:[#allocation2 + $0x260] sm:$0xff]
          %v5594 = vld [vmem:[#allocation2 + $0x268] sm:$0xff]
          %v5595 = vld [vmem:[#allocation2 + $0x270] sm:$0xff]
          %v5596 = vld [vmem:[#allocation2 + $0x278] sm:$0xff]
          %v5597 = vld [vmem:[#allocation2 + $0x280] sm:$0xff]
          %v5598 = vld [vmem:[#allocation2 + $0x288] sm:$0xff]
          %v5599 = vld [vmem:[#allocation2 + $0x290] sm:$0xff]
          %v5600 = vld [vmem:[#allocation2 + $0x298] sm:$0xff]
          %v5601 = vld [vmem:[#allocation2 + $0x2a0] sm:$0xff]
          %v5602 = vld [vmem:[#allocation2 + $0x2a8] sm:$0xff]
          %v5603 = vld [vmem:[#allocation2 + $0x2b0] sm:$0xff]
          %v5604 = vld [vmem:[#allocation2 + $0x2b8] sm:$0xff]
          %v5605 = vld [vmem:[#allocation2 + $0x2c0] sm:$0xff]
          %v5606 = vld [vmem:[#allocation2 + $0x2c8] sm:$0xff]
          %v5607 = vld [vmem:[#allocation2 + $0x2d0] sm:$0xff]
          %v5608 = vld [vmem:[#allocation2 + $0x2d8] sm:$0xff]
          %v5609 = vld [vmem:[#allocation2 + $0x2e0] sm:$0xff]
          %v5610 = vld [vmem:[#allocation2 + $0x2e8] sm:$0xff]
          %v5611 = vld [vmem:[#allocation2 + $0x2f0] sm:$0xff]
          %v5612 = vld [vmem:[#allocation2 + $0x2f8] sm:$0xff]
          %v5613 = vld [vmem:[#allocation2 + $0x300] sm:$0xff]
          %v5614 = vld [vmem:[#allocation2 + $0x308] sm:$0xff]
          %v5615 = vld [vmem:[#allocation2 + $0x310] sm:$0xff]
          %v5616 = vld [vmem:[#allocation2 + $0x318] sm:$0xff]
          %v5617 = vld [vmem:[#allocation2 + $0x320] sm:$0xff]
          %v5618 = vld [vmem:[#allocation2 + $0x328] sm:$0xff]
          %v5619 = vld [vmem:[#allocation2 + $0x330] sm:$0xff]
          %v5620 = vld [vmem:[#allocation2 + $0x338] sm:$0xff]
          %v5621 = vld [vmem:[#allocation2 + $0x340] sm:$0xff]
          %v5622 = vld [vmem:[#allocation2 + $0x348] sm:$0xff]
          %v5623 = vld [vmem:[#allocation2 + $0x350] sm:$0xff]
          %v5624 = vld [vmem:[#allocation2 + $0x358] sm:$0xff]
          %v5625 = vld [vmem:[#allocation2 + $0x360] sm:$0xff]
          %v5626 = vld [vmem:[#allocation2 + $0x368] sm:$0xff]
          %v5627 = vld [vmem:[#allocation2 + $0x370] sm:$0xff]
          %v5628 = vld [vmem:[#allocation2 + $0x378] sm:$0xff]
          %v5629 = vld [vmem:[#allocation2 + $0x380] sm:$0xff]
          %v5630 = vld [vmem:[#allocation2 + $0x388] sm:$0xff]
          %v5631 = vld [vmem:[#allocation2 + $0x390] sm:$0xff]
          %v5632 = vld [vmem:[#allocation2 + $0x398] sm:$0xff]
          %v5633 = vld [vmem:[#allocation2 + $0x3a0] sm:$0xff]
          %v5634 = vld [vmem:[#allocation2 + $0x3a8] sm:$0xff]
          %v5635 = vld [vmem:[#allocation2 + $0x3b0] sm:$0xff]
          %v5636 = vld [vmem:[#allocation2 + $0x3b8] sm:$0xff]
          %v5637 = vld [vmem:[#allocation2 + $0x3c0] sm:$0xff]
          %v5638 = vld [vmem:[#allocation2 + $0x3c8] sm:$0xff]
          %v5639 = vld [vmem:[#allocation2 + $0x3d0] sm:$0xff]
          %v5640 = vld [vmem:[#allocation2 + $0x3d8] sm:$0xff]
          %v5641 = vld [vmem:[#allocation2 + $0x3e0] sm:$0xff]
          %v5642 = vld [vmem:[#allocation2 + $0x3e8] sm:$0xff]
          %v5643 = vld [vmem:[#allocation2 + $0x3f0] sm:$0xff]
          %v5644 = vld [vmem:[#allocation2 + $0x3f8] sm:$0xff]
          %v5645 = vld [vmem:[#allocation2 + $0x400] sm:$0xff]
          %v5646 = vld [vmem:[#allocation2 + $0x408] sm:$0xff]
          %v5647 = vld [vmem:[#allocation2 + $0x410] sm:$0xff]
          %v5648 = vld [vmem:[#allocation2 + $0x418] sm:$0xff]
          %v5649 = vld [vmem:[#allocation2 + $0x420] sm:$0xff]
          %v5650 = vld [vmem:[#allocation2 + $0x428] sm:$0xff]
          %v5651 = vld [vmem:[#allocation2 + $0x430] sm:$0xff]
          %v5652 = vld [vmem:[#allocation2 + $0x438] sm:$0xff]
          %v5653 = vld [vmem:[#allocation2 + $0x440] sm:$0xff]
          %v5654 = vld [vmem:[#allocation2 + $0x448] sm:$0xff]
          %v5655 = vld [vmem:[#allocation2 + $0x450] sm:$0xff]
          %v5656 = vld [vmem:[#allocation2 + $0x458] sm:$0xff]
          %v5657 = vld [vmem:[#allocation2 + $0x460] sm:$0xff]
          %v5658 = vld [vmem:[#allocation2 + $0x468] sm:$0xff]
          %v5659 = vld [vmem:[#allocation2 + $0x470] sm:$0xff]
          %v5660 = vld [vmem:[#allocation2 + $0x478] sm:$0xff]
          %v5661 = vld [vmem:[#allocation2 + $0x480] sm:$0xff]
          %v5662 = vld [vmem:[#allocation2 + $0x488] sm:$0xff]
          %v5663 = vld [vmem:[#allocation2 + $0x490] sm:$0xff]
          %v5664 = vld [vmem:[#allocation2 + $0x498] sm:$0xff]
          %v5665 = vld [vmem:[#allocation2 + $0x4a0] sm:$0xff]
          %v5666 = vld [vmem:[#allocation2 + $0x4a8] sm:$0xff]
          %v5667 = vld [vmem:[#allocation2 + $0x4b0] sm:$0xff]
          %v5668 = vld [vmem:[#allocation2 + $0x4b8] sm:$0xff]
          %v5669 = vld [vmem:[#allocation2 + $0x4c0] sm:$0xff]
          %v5670 = vld [vmem:[#allocation2 + $0x4c8] sm:$0xff]
          %v5671 = vld [vmem:[#allocation2 + $0x4d0] sm:$0xff]
          %v5672 = vld [vmem:[#allocation2 + $0x4d8] sm:$0xff]
          %v5673 = vld [vmem:[#allocation2 + $0x4e0] sm:$0xff]
          %v5674 = vld [vmem:[#allocation2 + $0x4e8] sm:$0xff]
          %v5675 = vld [vmem:[#allocation2 + $0x4f0] sm:$0xff]
          %v5676 = vld [vmem:[#allocation2 + $0x4f8] sm:$0xff]
          %v5677 = vld [vmem:[#allocation2 + $0x500] sm:$0xff]
          %v5678 = vld [vmem:[#allocation2 + $0x508] sm:$0xff]
          %v5679 = vld [vmem:[#allocation2 + $0x510] sm:$0xff]
          %v5680 = vld [vmem:[#allocation2 + $0x518] sm:$0xff]
          %v5681 = vld [vmem:[#allocation2 + $0x520] sm:$0xff]
          %v5682 = vld [vmem:[#allocation2 + $0x528] sm:$0xff]
          %v5683 = vld [vmem:[#allocation2 + $0x530] sm:$0xff]
          %v5684 = vld [vmem:[#allocation2 + $0x538] sm:$0xff]
          %v5685 = vld [vmem:[#allocation2 + $0x540] sm:$0xff]
          %v5686 = vld [vmem:[#allocation2 + $0x548] sm:$0xff]
          %v5687 = vld [vmem:[#allocation2 + $0x550] sm:$0xff]
          %v5688 = vld [vmem:[#allocation2 + $0x558] sm:$0xff]
          %v5689 = vld [vmem:[#allocation2 + $0x560] sm:$0xff]
          %v5690 = vld [vmem:[#allocation2 + $0x568] sm:$0xff]
          %v5691 = vld [vmem:[#allocation2 + $0x570] sm:$0xff]
          %v5692 = vld [vmem:[#allocation2 + $0x578] sm:$0xff]
          %v5693 = vld [vmem:[#allocation2 + $0x580] sm:$0xff]
          %v5694 = vld [vmem:[#allocation2 + $0x588] sm:$0xff]
          %v5695 = vld [vmem:[#allocation2 + $0x590] sm:$0xff]
          %v5696 = vld [vmem:[#allocation2 + $0x598] sm:$0xff]
          %v5697 = vld [vmem:[#allocation2 + $0x5a0] sm:$0xff]
          %v5698 = vld [vmem:[#allocation2 + $0x5a8] sm:$0xff]
          %v5699 = vld [vmem:[#allocation2 + $0x5b0] sm:$0xff]
          %v5700 = vld [vmem:[#allocation2 + $0x5b8] sm:$0xff]
          %v5701 = vld [vmem:[#allocation2 + $0x5c0] sm:$0xff]
          %v5702 = vld [vmem:[#allocation2 + $0x5c8] sm:$0xff]
          %v5703 = vld [vmem:[#allocation2 + $0x5d0] sm:$0xff]
          %v5704 = vld [vmem:[#allocation2 + $0x5d8] sm:$0xff]
          %v5705 = vld [vmem:[#allocation2 + $0x5e0] sm:$0xff]
          %v5706 = vld [vmem:[#allocation2 + $0x5e8] sm:$0xff]
          %v5707 = vld [vmem:[#allocation2 + $0x5f0] sm:$0xff]
          %v5708 = vld [vmem:[#allocation2 + $0x5f8] sm:$0xff]
          %v5709 = vld [vmem:[#allocation2 + $0x600] sm:$0xff]
          %v5710 = vld [vmem:[#allocation2 + $0x608] sm:$0xff]
          %v5711 = vld [vmem:[#allocation2 + $0x610] sm:$0xff]
          %v5712 = vld [vmem:[#allocation2 + $0x618] sm:$0xff]
          %v5713 = vld [vmem:[#allocation2 + $0x620] sm:$0xff]
          %v5714 = vld [vmem:[#allocation2 + $0x628] sm:$0xff]
          %v5715 = vld [vmem:[#allocation2 + $0x630] sm:$0xff]
          %v5716 = vld [vmem:[#allocation2 + $0x638] sm:$0xff]
          %v5717 = vld [vmem:[#allocation2 + $0x640] sm:$0xff]
          %v5718 = vld [vmem:[#allocation2 + $0x648] sm:$0xff]
          %v5719 = vld [vmem:[#allocation2 + $0x650] sm:$0xff]
          %v5720 = vld [vmem:[#allocation2 + $0x658] sm:$0xff]
          %v5721 = vld [vmem:[#allocation2 + $0x660] sm:$0xff]
          %v5722 = vld [vmem:[#allocation2 + $0x668] sm:$0xff]
          %v5723 = vld [vmem:[#allocation2 + $0x670] sm:$0xff]
          %v5724 = vld [vmem:[#allocation2 + $0x678] sm:$0xff]
          %v5725 = vld [vmem:[#allocation2 + $0x680] sm:$0xff]
          %v5726 = vld [vmem:[#allocation2 + $0x688] sm:$0xff]
          %v5727 = vld [vmem:[#allocation2 + $0x690] sm:$0xff]
          %v5728 = vld [vmem:[#allocation2 + $0x698] sm:$0xff]
          %v5729 = vld [vmem:[#allocation2 + $0x6a0] sm:$0xff]
          %v5730 = vld [vmem:[#allocation2 + $0x6a8] sm:$0xff]
          %v5731 = vld [vmem:[#allocation2 + $0x6b0] sm:$0xff]
          %v5732 = vld [vmem:[#allocation2 + $0x6b8] sm:$0xff]
          %v5733 = vld [vmem:[#allocation2 + $0x6c0] sm:$0xff]
          %v5734 = vld [vmem:[#allocation2 + $0x6c8] sm:$0xff]
          %v5735 = vld [vmem:[#allocation2 + $0x6d0] sm:$0xff]
          %v5736 = vld [vmem:[#allocation2 + $0x6d8] sm:$0xff]
          %v5737 = vld [vmem:[#allocation2 + $0x6e0] sm:$0xff]
          %v5738 = vld [vmem:[#allocation2 + $0x6e8] sm:$0xff]
          %v5739 = vld [vmem:[#allocation2 + $0x6f0] sm:$0xff]
          %v5740 = vld [vmem:[#allocation2 + $0x6f8] sm:$0xff]
          %v5741 = vld [vmem:[#allocation2 + $0x700] sm:$0xff]
          %v5742 = vld [vmem:[#allocation2 + $0x708] sm:$0xff]
          %v5743 = vld [vmem:[#allocation2 + $0x710] sm:$0xff]
          %v5744 = vld [vmem:[#allocation2 + $0x718] sm:$0xff]
          %v5745 = vld [vmem:[#allocation2 + $0x720] sm:$0xff]
          %v5746 = vld [vmem:[#allocation2 + $0x728] sm:$0xff]
          %v5747 = vld [vmem:[#allocation2 + $0x730] sm:$0xff]
          %v5748 = vld [vmem:[#allocation2 + $0x738] sm:$0xff]
          %v5749 = vld [vmem:[#allocation2 + $0x740] sm:$0xff]
          %v5750 = vld [vmem:[#allocation2 + $0x748] sm:$0xff]
          %v5751 = vld [vmem:[#allocation2 + $0x750] sm:$0xff]
          %v5752 = vld [vmem:[#allocation2 + $0x758] sm:$0xff]
          %v5753 = vld [vmem:[#allocation2 + $0x760] sm:$0xff]
          %v5754 = vld [vmem:[#allocation2 + $0x768] sm:$0xff]
          %v5755 = vld [vmem:[#allocation2 + $0x770] sm:$0xff]
          %v5756 = vld [vmem:[#allocation2 + $0x778] sm:$0xff]
          %v5757 = vld [vmem:[#allocation2 + $0x780] sm:$0xff]
          %v5758 = vld [vmem:[#allocation2 + $0x788] sm:$0xff]
          %v5759 = vld [vmem:[#allocation2 + $0x790] sm:$0xff]
          %v5760 = vld [vmem:[#allocation2 + $0x798] sm:$0xff]
          %v5761 = vld [vmem:[#allocation2 + $0x7a0] sm:$0xff]
          %v5762 = vld [vmem:[#allocation2 + $0x7a8] sm:$0xff]
          %v5763 = vld [vmem:[#allocation2 + $0x7b0] sm:$0xff]
          %v5764 = vld [vmem:[#allocation2 + $0x7b8] sm:$0xff]
          %v5765 = vld [vmem:[#allocation2 + $0x7c0] sm:$0xff]
          %v5766 = vld [vmem:[#allocation2 + $0x7c8] sm:$0xff]
          %v5767 = vld [vmem:[#allocation2 + $0x7d0] sm:$0xff]
          %v5768 = vld [vmem:[#allocation2 + $0x7d8] sm:$0xff]
          %v5769 = vld [vmem:[#allocation2 + $0x7e0] sm:$0xff]
          %v5770 = vld [vmem:[#allocation2 + $0x7e8] sm:$0xff]
          %v5771 = vld [vmem:[#allocation2 + $0x7f0] sm:$0xff]
          %v5772 = vld [vmem:[#allocation2 + $0x7f8] sm:$0xff]
          %5773 = vmatprep.subr.mxu0 0.0
          %5774 = vmatpush1.xpose.msra.mxu0 %v5517
          %5775 = vmatprep.subr.mxu0 0.0
          %5776 = vmatpush1.xpose.msra.mxu0 %v5518
          %5777 = vmatprep.subr.mxu0 0.0
          %5778 = vmatpush1.xpose.msra.mxu0 %v5519
          %5779 = vmatprep.subr.mxu0 0.0
          %5780 = vmatpush1.xpose.msra.mxu0 %v5520
          %5781 = vmatprep.subr.mxu0 0.0
          %5782 = vmatpush1.xpose.msra.mxu0 %v5521
          %5783 = vmatprep.subr.mxu0 0.0
          %5784 = vmatpush1.xpose.msra.mxu0 %v5522
          %5785 = vmatprep.subr.mxu0 0.0
          %5786 = vmatpush1.xpose.msra.mxu0 %v5523
          %5787 = vmatprep.subr.mxu0 0.0
          %5788 = vmatpush1.xpose.msra.mxu0 %v5524
          %5789 = vmatprep.subr.mxu0 0.0
          %5790 = vmatpush1.xpose.msra.mxu0 %v5525
          %5791 = vmatprep.subr.mxu0 0.0
          %5792 = vmatpush1.xpose.msra.mxu0 %v5526
          %5793 = vmatprep.subr.mxu0 0.0
          %5794 = vmatpush1.xpose.msra.mxu0 %v5527
          %5795 = vmatprep.subr.mxu0 0.0
          %5796 = vmatpush1.xpose.msra.mxu0 %v5528
          %5797 = vmatprep.subr.mxu0 0.0
          %5798 = vmatpush1.xpose.msra.mxu0 %v5529
          %5799 = vmatprep.subr.mxu0 0.0
          %5800 = vmatpush1.xpose.msra.mxu0 %v5530
          %5801 = vmatprep.subr.mxu0 0.0
          %5802 = vmatpush1.xpose.msra.mxu0 %v5531
          %5803 = vmatprep.subr.mxu0 0.0
          %5804 = vmatpush1.xpose.msra.mxu0 %v5532
          %5805 = vmatprep.subr.mxu0 0.0
          %5806 = vmatpush1.xpose.msra.mxu0 %v5533
          %5807 = vmatprep.subr.mxu0 0.0
          %5808 = vmatpush1.xpose.msra.mxu0 %v5534
          %5809 = vmatprep.subr.mxu0 0.0
          %5810 = vmatpush1.xpose.msra.mxu0 %v5535
          %5811 = vmatprep.subr.mxu0 0.0
          %5812 = vmatpush1.xpose.msra.mxu0 %v5536
          %5813 = vmatprep.subr.mxu0 0.0
          %5814 = vmatpush1.xpose.msra.mxu0 %v5537
          %5815 = vmatprep.subr.mxu0 0.0
          %5816 = vmatpush1.xpose.msra.mxu0 %v5538
          %5817 = vmatprep.subr.mxu0 0.0
          %5818 = vmatpush1.xpose.msra.mxu0 %v5539
          %5819 = vmatprep.subr.mxu0 0.0
          %5820 = vmatpush1.xpose.msra.mxu0 %v5540
          %5821 = vmatprep.subr.mxu0 0.0
          %5822 = vmatpush1.xpose.msra.mxu0 %v5541
          %5823 = vmatprep.subr.mxu0 0.0
          %5824 = vmatpush1.xpose.msra.mxu0 %v5542
          %5825 = vmatprep.subr.mxu0 0.0
          %5826 = vmatpush1.xpose.msra.mxu0 %v5543
          %5827 = vmatprep.subr.mxu0 0.0
          %5828 = vmatpush1.xpose.msra.mxu0 %v5544
          %5829 = vmatprep.subr.mxu0 0.0
          %5830 = vmatpush1.xpose.msra.mxu0 %v5545
          %5831 = vmatprep.subr.mxu0 0.0
          %5832 = vmatpush1.xpose.msra.mxu0 %v5546
          %5833 = vmatprep.subr.mxu0 0.0
          %5834 = vmatpush1.xpose.msra.mxu0 %v5547
          %5835 = vmatprep.subr.mxu0 0.0
          %5836 = vmatpush1.xpose.msra.mxu0 %v5548
          %5837 = vmatprep.mubr.f32.mxu0 0.0
          %5838 = vmatmul.mubr.f32.gmra.mrb[0].mxu0 1.0
          %v5839 = vpop.f32.mrb[0].mxu0
          %v5840 = vadd.f32 0.0, %v5839
          %v5841 = vpop.f32.mrb[0].mxu0
          %v5842 = vadd.f32 0.0, %v5841
          %5843 = vdwg.mxu0
          %5844 = vmatprep.subr.mxu0 0.0
          %5845 = vmatpush1.xpose.msra.mxu0 %v5549
          %5846 = vmatprep.subr.mxu0 0.0
          %5847 = vmatpush1.xpose.msra.mxu0 %v5550
          %5848 = vmatprep.subr.mxu0 0.0
          %5849 = vmatpush1.xpose.msra.mxu0 %v5551
          %5850 = vmatprep.subr.mxu0 0.0
          %5851 = vmatpush1.xpose.msra.mxu0 %v5552
          %5852 = vmatprep.subr.mxu0 0.0
          %5853 = vmatpush1.xpose.msra.mxu0 %v5553
          %5854 = vmatprep.subr.mxu0 0.0
          %5855 = vmatpush1.xpose.msra.mxu0 %v5554
          %5856 = vmatprep.subr.mxu0 0.0
          %5857 = vmatpush1.xpose.msra.mxu0 %v5555
          %5858 = vmatprep.subr.mxu0 0.0
          %5859 = vmatpush1.xpose.msra.mxu0 %v5556
          %5860 = vmatprep.subr.mxu0 0.0
          %5861 = vmatpush1.xpose.msra.mxu0 %v5557
          %5862 = vmatprep.subr.mxu0 0.0
          %5863 = vmatpush1.xpose.msra.mxu0 %v5558
          %5864 = vmatprep.subr.mxu0 0.0
          %5865 = vmatpush1.xpose.msra.mxu0 %v5559
          %5866 = vmatprep.subr.mxu0 0.0
          %5867 = vmatpush1.xpose.msra.mxu0 %v5560
          %5868 = vmatprep.subr.mxu0 0.0
          %5869 = vmatpush1.xpose.msra.mxu0 %v5561
          %5870 = vmatprep.subr.mxu0 0.0
          %5871 = vmatpush1.xpose.msra.mxu0 %v5562
          %5872 = vmatprep.subr.mxu0 0.0
          %5873 = vmatpush1.xpose.msra.mxu0 %v5563
          %5874 = vmatprep.subr.mxu0 0.0
          %5875 = vmatpush1.xpose.msra.mxu0 %v5564
          %5876 = vmatprep.subr.mxu0 0.0
          %5877 = vmatpush1.xpose.msra.mxu0 %v5565
          %5878 = vmatprep.subr.mxu0 0.0
          %5879 = vmatpush1.xpose.msra.mxu0 %v5566
          %5880 = vmatprep.subr.mxu0 0.0
          %5881 = vmatpush1.xpose.msra.mxu0 %v5567
          %5882 = vmatprep.subr.mxu0 0.0
          %5883 = vmatpush1.xpose.msra.mxu0 %v5568
          %5884 = vmatprep.subr.mxu0 0.0
          %5885 = vmatpush1.xpose.msra.mxu0 %v5569
          %5886 = vmatprep.subr.mxu0 0.0
          %5887 = vmatpush1.xpose.msra.mxu0 %v5570
          %5888 = vmatprep.subr.mxu0 0.0
          %5889 = vmatpush1.xpose.msra.mxu0 %v5571
          %5890 = vmatprep.subr.mxu0 0.0
          %5891 = vmatpush1.xpose.msra.mxu0 %v5572
          %5892 = vmatprep.subr.mxu0 0.0
          %5893 = vmatpush1.xpose.msra.mxu0 %v5573
          %5894 = vmatprep.subr.mxu0 0.0
          %5895 = vmatpush1.xpose.msra.mxu0 %v5574
          %5896 = vmatprep.subr.mxu0 0.0
          %5897 = vmatpush1.xpose.msra.mxu0 %v5575
          %5898 = vmatprep.subr.mxu0 0.0
          %5899 = vmatpush1.xpose.msra.mxu0 %v5576
          %5900 = vmatprep.subr.mxu0 0.0
          %5901 = vmatpush1.xpose.msra.mxu0 %v5577
          %5902 = vmatprep.subr.mxu0 0.0
          %5903 = vmatpush1.xpose.msra.mxu0 %v5578
          %5904 = vmatprep.subr.mxu0 0.0
          %5905 = vmatpush1.xpose.msra.mxu0 %v5579
          %5906 = vmatprep.subr.mxu0 0.0
          %5907 = vmatpush1.xpose.msra.mxu0 %v5580
          %5908 = vmatprep.mubr.f32.mxu0 0.0
          %5909 = vmatmul.mubr.f32.gmra.mrb[0].mxu0 1.0
          %v5910 = vpop.f32.mrb[0].mxu0
          %v5911 = vadd.f32 0.0, %v5910
          %v5912 = vpop.f32.mrb[0].mxu0
          %v5913 = vadd.f32 0.0, %v5912
          %5914 = vdwg.mxu0
          %5915 = vmatprep.subr.mxu0 0.0
          %5916 = vmatpush1.xpose.msra.mxu0 %v5581
          %5917 = vmatprep.subr.mxu0 0.0
          %5918 = vmatpush1.xpose.msra.mxu0 %v5582
          %5919 = vmatprep.subr.mxu0 0.0
          %5920 = vmatpush1.xpose.msra.mxu0 %v5583
          %5921 = vmatprep.subr.mxu0 0.0
          %5922 = vmatpush1.xpose.msra.mxu0 %v5584
          %5923 = vmatprep.subr.mxu0 0.0
          %5924 = vmatpush1.xpose.msra.mxu0 %v5585
          %5925 = vmatprep.subr.mxu0 0.0
          %5926 = vmatpush1.xpose.msra.mxu0 %v5586
          %5927 = vmatprep.subr.mxu0 0.0
          %5928 = vmatpush1.xpose.msra.mxu0 %v5587
          %5929 = vmatprep.subr.mxu0 0.0
          %5930 = vmatpush1.xpose.msra.mxu0 %v5588
          %5931 = vmatprep.subr.mxu0 0.0
          %5932 = vmatpush1.xpose.msra.mxu0 %v5589
          %5933 = vmatprep.subr.mxu0 0.0
          %5934 = vmatpush1.xpose.msra.mxu0 %v5590
          %5935 = vmatprep.subr.mxu0 0.0
          %5936 = vmatpush1.xpose.msra.mxu0 %v5591
          %5937 = vmatprep.subr.mxu0 0.0
          %5938 = vmatpush1.xpose.msra.mxu0 %v5592
          %5939 = vmatprep.subr.mxu0 0.0
          %5940 = vmatpush1.xpose.msra.mxu0 %v5593
          %5941 = vmatprep.subr.mxu0 0.0
          %5942 = vmatpush1.xpose.msra.mxu0 %v5594
          %5943 = vmatprep.subr.mxu0 0.0
          %5944 = vmatpush1.xpose.msra.mxu0 %v5595
          %5945 = vmatprep.subr.mxu0 0.0
          %5946 = vmatpush1.xpose.msra.mxu0 %v5596
          %5947 = vmatprep.subr.mxu0 0.0
          %5948 = vmatpush1.xpose.msra.mxu0 %v5597
          %5949 = vmatprep.subr.mxu0 0.0
          %5950 = vmatpush1.xpose.msra.mxu0 %v5598
          %5951 = vmatprep.subr.mxu0 0.0
          %5952 = vmatpush1.xpose.msra.mxu0 %v5599
          %5953 = vmatprep.subr.mxu0 0.0
          %5954 = vmatpush1.xpose.msra.mxu0 %v5600
          %5955 = vmatprep.subr.mxu0 0.0
          %5956 = vmatpush1.xpose.msra.mxu0 %v5601
          %5957 = vmatprep.subr.mxu0 0.0
          %5958 = vmatpush1.xpose.msra.mxu0 %v5602
          %5959 = vmatprep.subr.mxu0 0.0
          %5960 = vmatpush1.xpose.msra.mxu0 %v5603
          %5961 = vmatprep.subr.mxu0 0.0
          %5962 = vmatpush1.xpose.msra.mxu0 %v5604
          %5963 = vmatprep.subr.mxu0 0.0
          %5964 = vmatpush1.xpose.msra.mxu0 %v5605
          %5965 = vmatprep.subr.mxu0 0.0
          %5966 = vmatpush1.xpose.msra.mxu0 %v5606
          %5967 = vmatprep.subr.mxu0 0.0
          %5968 = vmatpush1.xpose.msra.mxu0 %v5607
          %5969 = vmatprep.subr.mxu0 0.0
          %5970 = vmatpush1.xpose.msra.mxu0 %v5608
          %5971 = vmatprep.subr.mxu0 0.0
          %5972 = vmatpush1.xpose.msra.mxu0 %v5609
          %5973 = vmatprep.subr.mxu0 0.0
          %5974 = vmatpush1.xpose.msra.mxu0 %v5610
          %5975 = vmatprep.subr.mxu0 0.0
          %5976 = vmatpush1.xpose.msra.mxu0 %v5611
          %5977 = vmatprep.subr.mxu0 0.0
          %5978 = vmatpush1.xpose.msra.mxu0 %v5612
          %5979 = vmatprep.mubr.f32.mxu0 0.0
          %5980 = vmatmul.mubr.f32.gmra.mrb[0].mxu0 1.0
          %v5981 = vpop.f32.mrb[0].mxu0
          %v5982 = vadd.f32 0.0, %v5981
          %v5983 = vpop.f32.mrb[0].mxu0
          %v5984 = vadd.f32 0.0, %v5983
          %5985 = vdwg.mxu0
          %5986 = vmatprep.subr.mxu0 0.0
          %5987 = vmatpush1.xpose.msra.mxu0 %v5613
          %5988 = vmatprep.subr.mxu0 0.0
          %5989 = vmatpush1.xpose.msra.mxu0 %v5614
          %5990 = vmatprep.subr.mxu0 0.0
          %5991 = vmatpush1.xpose.msra.mxu0 %v5615
          %5992 = vmatprep.subr.mxu0 0.0
          %5993 = vmatpush1.xpose.msra.mxu0 %v5616
          %5994 = vmatprep.subr.mxu0 0.0
          %5995 = vmatpush1.xpose.msra.mxu0 %v5617
          %5996 = vmatprep.subr.mxu0 0.0
          %5997 = vmatpush1.xpose.msra.mxu0 %v5618
          %5998 = vmatprep.subr.mxu0 0.0
          %5999 = vmatpush1.xpose.msra.mxu0 %v5619
          %6000 = vmatprep.subr.mxu0 0.0
          %6001 = vmatpush1.xpose.msra.mxu0 %v5620
          %6002 = vmatprep.subr.mxu0 0.0
          %6003 = vmatpush1.xpose.msra.mxu0 %v5621
          %6004 = vmatprep.subr.mxu0 0.0
          %6005 = vmatpush1.xpose.msra.mxu0 %v5622
          %6006 = vmatprep.subr.mxu0 0.0
          %6007 = vmatpush1.xpose.msra.mxu0 %v5623
          %6008 = vmatprep.subr.mxu0 0.0
          %6009 = vmatpush1.xpose.msra.mxu0 %v5624
          %6010 = vmatprep.subr.mxu0 0.0
          %6011 = vmatpush1.xpose.msra.mxu0 %v5625
          %6012 = vmatprep.subr.mxu0 0.0
          %6013 = vmatpush1.xpose.msra.mxu0 %v5626
          %6014 = vmatprep.subr.mxu0 0.0
          %6015 = vmatpush1.xpose.msra.mxu0 %v5627
          %6016 = vmatprep.subr.mxu0 0.0
          %6017 = vmatpush1.xpose.msra.mxu0 %v5628
          %6018 = vmatprep.subr.mxu0 0.0
          %6019 = vmatpush1.xpose.msra.mxu0 %v5629
          %6020 = vmatprep.subr.mxu0 0.0
          %6021 = vmatpush1.xpose.msra.mxu0 %v5630
          %6022 = vmatprep.subr.mxu0 0.0
          %6023 = vmatpush1.xpose.msra.mxu0 %v5631
          %6024 = vmatprep.subr.mxu0 0.0
          %6025 = vmatpush1.xpose.msra.mxu0 %v5632
          %6026 = vmatprep.subr.mxu0 0.0
          %6027 = vmatpush1.xpose.msra.mxu0 %v5633
          %6028 = vmatprep.subr.mxu0 0.0
          %6029 = vmatpush1.xpose.msra.mxu0 %v5634
          %6030 = vmatprep.subr.mxu0 0.0
          %6031 = vmatpush1.xpose.msra.mxu0 %v5635
          %6032 = vmatprep.subr.mxu0 0.0
          %6033 = vmatpush1.xpose.msra.mxu0 %v5636
          %6034 = vmatprep.subr.mxu0 0.0
          %6035 = vmatpush1.xpose.msra.mxu0 %v5637
          %6036 = vmatprep.subr.mxu0 0.0
          %6037 = vmatpush1.xpose.msra.mxu0 %v5638
          %6038 = vmatprep.subr.mxu0 0.0
          %6039 = vmatpush1.xpose.msra.mxu0 %v5639
          %6040 = vmatprep.subr.mxu0 0.0
          %6041 = vmatpush1.xpose.msra.mxu0 %v5640
          %6042 = vmatprep.subr.mxu0 0.0
          %6043 = vmatpush1.xpose.msra.mxu0 %v5641
          %6044 = vmatprep.subr.mxu0 0.0
          %6045 = vmatpush1.xpose.msra.mxu0 %v5642
          %6046 = vmatprep.subr.mxu0 0.0
          %6047 = vmatpush1.xpose.msra.mxu0 %v5643
          %6048 = vmatprep.subr.mxu0 0.0
          %6049 = vmatpush1.xpose.msra.mxu0 %v5644
          %6050 = vmatprep.mubr.f32.mxu0 0.0
          %6051 = vmatmul.mubr.f32.gmra.mrb[0].mxu0 1.0
          %v6052 = vpop.f32.mrb[0].mxu0
          %v6053 = vadd.f32 0.0, %v6052
          %v6054 = vpop.f32.mrb[0].mxu0
          %v6055 = vadd.f32 0.0, %v6054
          %6056 = vdwg.mxu0
          %6057 = vmatprep.subr.mxu0 0.0
          %6058 = vmatpush1.xpose.msra.mxu0 %v5645
          %6059 = vmatprep.subr.mxu0 0.0
          %6060 = vmatpush1.xpose.msra.mxu0 %v5646
          %6061 = vmatprep.subr.mxu0 0.0
          %6062 = vmatpush1.xpose.msra.mxu0 %v5647
          %6063 = vmatprep.subr.mxu0 0.0
          %6064 = vmatpush1.xpose.msra.mxu0 %v5648
          %6065 = vmatprep.subr.mxu0 0.0
          %6066 = vmatpush1.xpose.msra.mxu0 %v5649
          %6067 = vmatprep.subr.mxu0 0.0
          %6068 = vmatpush1.xpose.msra.mxu0 %v5650
          %6069 = vmatprep.subr.mxu0 0.0
          %6070 = vmatpush1.xpose.msra.mxu0 %v5651
          %6071 = vmatprep.subr.mxu0 0.0
          %6072 = vmatpush1.xpose.msra.mxu0 %v5652
          %6073 = vmatprep.subr.mxu0 0.0
          %6074 = vmatpush1.xpose.msra.mxu0 %v5653
          %6075 = vmatprep.subr.mxu0 0.0
          %6076 = vmatpush1.xpose.msra.mxu0 %v5654
          %6077 = vmatprep.subr.mxu0 0.0
          %6078 = vmatpush1.xpose.msra.mxu0 %v5655
          %6079 = vmatprep.subr.mxu0 0.0
          %6080 = vmatpush1.xpose.msra.mxu0 %v5656
          %6081 = vmatprep.subr.mxu0 0.0
          %6082 = vmatpush1.xpose.msra.mxu0 %v5657
          %6083 = vmatprep.subr.mxu0 0.0
          %6084 = vmatpush1.xpose.msra.mxu0 %v5658
          %6085 = vmatprep.subr.mxu0 0.0
          %6086 = vmatpush1.xpose.msra.mxu0 %v5659
          %6087 = vmatprep.subr.mxu0 0.0
          %6088 = vmatpush1.xpose.msra.mxu0 %v5660
          %6089 = vmatprep.subr.mxu0 0.0
          %6090 = vmatpush1.xpose.msra.mxu0 %v5661
          %6091 = vmatprep.subr.mxu0 0.0
          %6092 = vmatpush1.xpose.msra.mxu0 %v5662
          %6093 = vmatprep.subr.mxu0 0.0
          %6094 = vmatpush1.xpose.msra.mxu0 %v5663
          %6095 = vmatprep.subr.mxu0 0.0
          %6096 = vmatpush1.xpose.msra.mxu0 %v5664
          %6097 = vmatprep.subr.mxu0 0.0
          %6098 = vmatpush1.xpose.msra.mxu0 %v5665
          %6099 = vmatprep.subr.mxu0 0.0
          %6100 = vmatpush1.xpose.msra.mxu0 %v5666
          %6101 = vmatprep.subr.mxu0 0.0
          %6102 = vmatpush1.xpose.msra.mxu0 %v5667
          %6103 = vmatprep.subr.mxu0 0.0
          %6104 = vmatpush1.xpose.msra.mxu0 %v5668
          %6105 = vmatprep.subr.mxu0 0.0
          %6106 = vmatpush1.xpose.msra.mxu0 %v5669
          %6107 = vmatprep.subr.mxu0 0.0
          %6108 = vmatpush1.xpose.msra.mxu0 %v5670
          %6109 = vmatprep.subr.mxu0 0.0
          %6110 = vmatpush1.xpose.msra.mxu0 %v5671
          %6111 = vmatprep.subr.mxu0 0.0
          %6112 = vmatpush1.xpose.msra.mxu0 %v5672
          %6113 = vmatprep.subr.mxu0 0.0
          %6114 = vmatpush1.xpose.msra.mxu0 %v5673
          %6115 = vmatprep.subr.mxu0 0.0
          %6116 = vmatpush1.xpose.msra.mxu0 %v5674
          %6117 = vmatprep.subr.mxu0 0.0
          %6118 = vmatpush1.xpose.msra.mxu0 %v5675
          %6119 = vmatprep.subr.mxu0 0.0
          %6120 = vmatpush1.xpose.msra.mxu0 %v5676
          %6121 = vmatprep.mubr.f32.mxu0 0.0
          %6122 = vmatmul.mubr.f32.gmra.mrb[0].mxu0 1.0
          %v6123 = vpop.f32.mrb[0].mxu0
          %v6124 = vadd.f32 0.0, %v6123
          %v6125 = vpop.f32.mrb[0].mxu0
          %v6126 = vadd.f32 0.0, %v6125
          %6127 = vdwg.mxu0
          %6128 = vmatprep.subr.mxu0 0.0
          %6129 = vmatpush1.xpose.msra.mxu0 %v5677
          %6130 = vmatprep.subr.mxu0 0.0
          %6131 = vmatpush1.xpose.msra.mxu0 %v5678
          %6132 = vmatprep.subr.mxu0 0.0
          %6133 = vmatpush1.xpose.msra.mxu0 %v5679
          %6134 = vmatprep.subr.mxu0 0.0
          %6135 = vmatpush1.xpose.msra.mxu0 %v5680
          %6136 = vmatprep.subr.mxu0 0.0
          %6137 = vmatpush1.xpose.msra.mxu0 %v5681
          %6138 = vmatprep.subr.mxu0 0.0
          %6139 = vmatpush1.xpose.msra.mxu0 %v5682
          %6140 = vmatprep.subr.mxu0 0.0
          %6141 = vmatpush1.xpose.msra.mxu0 %v5683
          %6142 = vmatprep.subr.mxu0 0.0
          %6143 = vmatpush1.xpose.msra.mxu0 %v5684
          %6144 = vmatprep.subr.mxu0 0.0
          %6145 = vmatpush1.xpose.msra.mxu0 %v5685
          %6146 = vmatprep.subr.mxu0 0.0
          %6147 = vmatpush1.xpose.msra.mxu0 %v5686
          %6148 = vmatprep.subr.mxu0 0.0
          %6149 = vmatpush1.xpose.msra.mxu0 %v5687
          %6150 = vmatprep.subr.mxu0 0.0
          %6151 = vmatpush1.xpose.msra.mxu0 %v5688
          %6152 = vmatprep.subr.mxu0 0.0
          %6153 = vmatpush1.xpose.msra.mxu0 %v5689
          %6154 = vmatprep.subr.mxu0 0.0
          %6155 = vmatpush1.xpose.msra.mxu0 %v5690
          %6156 = vmatprep.subr.mxu0 0.0
          %6157 = vmatpush1.xpose.msra.mxu0 %v5691
          %6158 = vmatprep.subr.mxu0 0.0
          %6159 = vmatpush1.xpose.msra.mxu0 %v5692
          %6160 = vmatprep.subr.mxu0 0.0
          %6161 = vmatpush1.xpose.msra.mxu0 %v5693
          %6162 = vmatprep.subr.mxu0 0.0
          %6163 = vmatpush1.xpose.msra.mxu0 %v5694
          %6164 = vmatprep.subr.mxu0 0.0
          %6165 = vmatpush1.xpose.msra.mxu0 %v5695
          %6166 = vmatprep.subr.mxu0 0.0
          %6167 = vmatpush1.xpose.msra.mxu0 %v5696
          %6168 = vmatprep.subr.mxu0 0.0
          %6169 = vmatpush1.xpose.msra.mxu0 %v5697
          %6170 = vmatprep.subr.mxu0 0.0
          %6171 = vmatpush1.xpose.msra.mxu0 %v5698
          %6172 = vmatprep.subr.mxu0 0.0
          %6173 = vmatpush1.xpose.msra.mxu0 %v5699
          %6174 = vmatprep.subr.mxu0 0.0
          %6175 = vmatpush1.xpose.msra.mxu0 %v5700
          %6176 = vmatprep.subr.mxu0 0.0
          %6177 = vmatpush1.xpose.msra.mxu0 %v5701
          %6178 = vmatprep.subr.mxu0 0.0
          %6179 = vmatpush1.xpose.msra.mxu0 %v5702
          %6180 = vmatprep.subr.mxu0 0.0
          %6181 = vmatpush1.xpose.msra.mxu0 %v5703
          %6182 = vmatprep.subr.mxu0 0.0
          %6183 = vmatpush1.xpose.msra.mxu0 %v5704
          %6184 = vmatprep.subr.mxu0 0.0
          %6185 = vmatpush1.xpose.msra.mxu0 %v5705
          %6186 = vmatprep.subr.mxu0 0.0
          %6187 = vmatpush1.xpose.msra.mxu0 %v5706
          %6188 = vmatprep.subr.mxu0 0.0
          %6189 = vmatpush1.xpose.msra.mxu0 %v5707
          %6190 = vmatprep.subr.mxu0 0.0
          %6191 = vmatpush1.xpose.msra.mxu0 %v5708
          %6192 = vmatprep.mubr.f32.mxu0 0.0
          %6193 = vmatmul.mubr.f32.gmra.mrb[0].mxu0 1.0
          %v6194 = vpop.f32.mrb[0].mxu0
          %v6195 = vadd.f32 0.0, %v6194
          %v6196 = vpop.f32.mrb[0].mxu0
          %v6197 = vadd.f32 0.0, %v6196
          %6198 = vdwg.mxu0
          %6199 = vmatprep.subr.mxu0 0.0
          %6200 = vmatpush1.xpose.msra.mxu0 %v5709
          %6201 = vmatprep.subr.mxu0 0.0
          %6202 = vmatpush1.xpose.msra.mxu0 %v5710
          %6203 = vmatprep.subr.mxu0 0.0
          %6204 = vmatpush1.xpose.msra.mxu0 %v5711
          %6205 = vmatprep.subr.mxu0 0.0
          %6206 = vmatpush1.xpose.msra.mxu0 %v5712
          %6207 = vmatprep.subr.mxu0 0.0
          %6208 = vmatpush1.xpose.msra.mxu0 %v5713
          %6209 = vmatprep.subr.mxu0 0.0
          %6210 = vmatpush1.xpose.msra.mxu0 %v5714
          %6211 = vmatprep.subr.mxu0 0.0
          %6212 = vmatpush1.xpose.msra.mxu0 %v5715
          %6213 = vmatprep.subr.mxu0 0.0
          %6214 = vmatpush1.xpose.msra.mxu0 %v5716
          %6215 = vmatprep.subr.mxu0 0.0
          %6216 = vmatpush1.xpose.msra.mxu0 %v5717
          %6217 = vmatprep.subr.mxu0 0.0
          %6218 = vmatpush1.xpose.msra.mxu0 %v5718
          %6219 = vmatprep.subr.mxu0 0.0
          %6220 = vmatpush1.xpose.msra.mxu0 %v5719
          %6221 = vmatprep.subr.mxu0 0.0
          %6222 = vmatpush1.xpose.msra.mxu0 %v5720
          %6223 = vmatprep.subr.mxu0 0.0
          %6224 = vmatpush1.xpose.msra.mxu0 %v5721
          %6225 = vmatprep.subr.mxu0 0.0
          %6226 = vmatpush1.xpose.msra.mxu0 %v5722
          %6227 = vmatprep.subr.mxu0 0.0
          %6228 = vmatpush1.xpose.msra.mxu0 %v5723
          %6229 = vmatprep.subr.mxu0 0.0
          %6230 = vmatpush1.xpose.msra.mxu0 %v5724
          %6231 = vmatprep.subr.mxu0 0.0
          %6232 = vmatpush1.xpose.msra.mxu0 %v5725
          %6233 = vmatprep.subr.mxu0 0.0
          %6234 = vmatpush1.xpose.msra.mxu0 %v5726
          %6235 = vmatprep.subr.mxu0 0.0
          %6236 = vmatpush1.xpose.msra.mxu0 %v5727
          %6237 = vmatprep.subr.mxu0 0.0
          %6238 = vmatpush1.xpose.msra.mxu0 %v5728
          %6239 = vmatprep.subr.mxu0 0.0
          %6240 = vmatpush1.xpose.msra.mxu0 %v5729
          %6241 = vmatprep.subr.mxu0 0.0
          %6242 = vmatpush1.xpose.msra.mxu0 %v5730
          %6243 = vmatprep.subr.mxu0 0.0
          %6244 = vmatpush1.xpose.msra.mxu0 %v5731
          %6245 = vmatprep.subr.mxu0 0.0
          %6246 = vmatpush1.xpose.msra.mxu0 %v5732
          %6247 = vmatprep.subr.mxu0 0.0
          %6248 = vmatpush1.xpose.msra.mxu0 %v5733
          %6249 = vmatprep.subr.mxu0 0.0
          %6250 = vmatpush1.xpose.msra.mxu0 %v5734
          %6251 = vmatprep.subr.mxu0 0.0
          %6252 = vmatpush1.xpose.msra.mxu0 %v5735
          %6253 = vmatprep.subr.mxu0 0.0
          %6254 = vmatpush1.xpose.msra.mxu0 %v5736
          %6255 = vmatprep.subr.mxu0 0.0
          %6256 = vmatpush1.xpose.msra.mxu0 %v5737
          %6257 = vmatprep.subr.mxu0 0.0
          %6258 = vmatpush1.xpose.msra.mxu0 %v5738
          %6259 = vmatprep.subr.mxu0 0.0
          %6260 = vmatpush1.xpose.msra.mxu0 %v5739
          %6261 = vmatprep.subr.mxu0 0.0
          %6262 = vmatpush1.xpose.msra.mxu0 %v5740
          %6263 = vmatprep.mubr.f32.mxu0 0.0
          %6264 = vmatmul.mubr.f32.gmra.mrb[0].mxu0 1.0
          %v6265 = vpop.f32.mrb[0].mxu0
          %v6266 = vadd.f32 0.0, %v6265
          %v6267 = vpop.f32.mrb[0].mxu0
          %v6268 = vadd.f32 0.0, %v6267
          %6269 = vdwg.mxu0
          %6270 = vmatprep.subr.mxu0 0.0
          %6271 = vmatpush1.xpose.msra.mxu0 %v5741
          %6272 = vmatprep.subr.mxu0 0.0
          %6273 = vmatpush1.xpose.msra.mxu0 %v5742
          %6274 = vmatprep.subr.mxu0 0.0
          %6275 = vmatpush1.xpose.msra.mxu0 %v5743
          %6276 = vmatprep.subr.mxu0 0.0
          %6277 = vmatpush1.xpose.msra.mxu0 %v5744
          %6278 = vmatprep.subr.mxu0 0.0
          %6279 = vmatpush1.xpose.msra.mxu0 %v5745
          %6280 = vmatprep.subr.mxu0 0.0
          %6281 = vmatpush1.xpose.msra.mxu0 %v5746
          %6282 = vmatprep.subr.mxu0 0.0
          %6283 = vmatpush1.xpose.msra.mxu0 %v5747
          %6284 = vmatprep.subr.mxu0 0.0
          %6285 = vmatpush1.xpose.msra.mxu0 %v5748
          %6286 = vmatprep.subr.mxu0 0.0
          %6287 = vmatpush1.xpose.msra.mxu0 %v5749
          %6288 = vmatprep.subr.mxu0 0.0
          %6289 = vmatpush1.xpose.msra.mxu0 %v5750
          %6290 = vmatprep.subr.mxu0 0.0
          %6291 = vmatpush1.xpose.msra.mxu0 %v5751
          %6292 = vmatprep.subr.mxu0 0.0
          %6293 = vmatpush1.xpose.msra.mxu0 %v5752
          %6294 = vmatprep.subr.mxu0 0.0
          %6295 = vmatpush1.xpose.msra.mxu0 %v5753
          %6296 = vmatprep.subr.mxu0 0.0
          %6297 = vmatpush1.xpose.msra.mxu0 %v5754
          %6298 = vmatprep.subr.mxu0 0.0
          %6299 = vmatpush1.xpose.msra.mxu0 %v5755
          %6300 = vmatprep.subr.mxu0 0.0
          %6301 = vmatpush1.xpose.msra.mxu0 %v5756
          %6302 = vmatprep.subr.mxu0 0.0
          %6303 = vmatpush1.xpose.msra.mxu0 %v5757
          %6304 = vmatprep.subr.mxu0 0.0
          %6305 = vmatpush1.xpose.msra.mxu0 %v5758
          %6306 = vmatprep.subr.mxu0 0.0
          %6307 = vmatpush1.xpose.msra.mxu0 %v5759
          %6308 = vmatprep.subr.mxu0 0.0
          %6309 = vmatpush1.xpose.msra.mxu0 %v5760
          %6310 = vmatprep.subr.mxu0 0.0
          %6311 = vmatpush1.xpose.msra.mxu0 %v5761
          %6312 = vmatprep.subr.mxu0 0.0
          %6313 = vmatpush1.xpose.msra.mxu0 %v5762
          %6314 = vmatprep.subr.mxu0 0.0
          %6315 = vmatpush1.xpose.msra.mxu0 %v5763
          %6316 = vmatprep.subr.mxu0 0.0
          %6317 = vmatpush1.xpose.msra.mxu0 %v5764
          %6318 = vmatprep.subr.mxu0 0.0
          %6319 = vmatpush1.xpose.msra.mxu0 %v5765
          %6320 = vmatprep.subr.mxu0 0.0
          %6321 = vmatpush1.xpose.msra.mxu0 %v5766
          %6322 = vmatprep.subr.mxu0 0.0
          %6323 = vmatpush1.xpose.msra.mxu0 %v5767
          %6324 = vmatprep.subr.mxu0 0.0
          %6325 = vmatpush1.xpose.msra.mxu0 %v5768
          %6326 = vmatprep.subr.mxu0 0.0
          %6327 = vmatpush1.xpose.msra.mxu0 %v5769
          %6328 = vmatprep.subr.mxu0 0.0
          %6329 = vmatpush1.xpose.msra.mxu0 %v5770
          %6330 = vmatprep.subr.mxu0 0.0
          %6331 = vmatpush1.xpose.msra.mxu0 %v5771
          %6332 = vmatprep.subr.mxu0 0.0
          %6333 = vmatpush1.xpose.msra.mxu0 %v5772
          %6334 = vmatprep.mubr.f32.mxu0 0.0
          %6335 = vmatmul.mubr.f32.gmra.mrb[0].mxu0 1.0
          %v6336 = vpop.f32.mrb[0].mxu0
          %v6337 = vadd.f32 0.0, %v6336
          %v6338 = vpop.f32.mrb[0].mxu0
          %v6339 = vadd.f32 0.0, %v6338
          %6340 = vdwg.mxu0
          %v6341 = vmul.f32 %v5840, 0.00390625
          %v6342 = vmul.f32 %v5842, 0.00390625
          %v6343 = vmul.f32 %v5911, 0.00390625
          %v6344 = vmul.f32 %v5913, 0.00390625
          %v6345 = vmul.f32 %v5982, 0.00390625
          %v6346 = vmul.f32 %v5984, 0.00390625
          %v6347 = vmul.f32 %v6053, 0.00390625
          %v6348 = vmul.f32 %v6055, 0.00390625
          %v6349 = vmul.f32 %v6124, 0.00390625
          %v6350 = vmul.f32 %v6126, 0.00390625
          %v6351 = vmul.f32 %v6195, 0.00390625
          %v6352 = vmul.f32 %v6197, 0.00390625
          %v6353 = vmul.f32 %v6266, 0.00390625
          %v6354 = vmul.f32 %v6268, 0.00390625
          %v6355 = vmul.f32 %v6337, 0.00390625
          %v6356 = vmul.f32 %v6339, 0.00390625
          %v6357 = vld [vmem:[#allocation6] sm:$0xff]
          %v6358 = vld [vmem:[#allocation6 + $0x8] sm:$0xff]
          %v6359 = vld [vmem:[#allocation6 + $0x10] sm:$0xff]
          %v6360 = vld [vmem:[#allocation6 + $0x18] sm:$0xff]
          %v6361 = vld [vmem:[#allocation6 + $0x20] sm:$0xff]
          %v6362 = vld [vmem:[#allocation6 + $0x28] sm:$0xff]
          %v6363 = vld [vmem:[#allocation6 + $0x30] sm:$0xff]
          %v6364 = vld [vmem:[#allocation6 + $0x38] sm:$0xff]
          %v6365 = vld [vmem:[#allocation6 + $0x40] sm:$0xff]
          %v6366 = vld [vmem:[#allocation6 + $0x48] sm:$0xff]
          %v6367 = vld [vmem:[#allocation6 + $0x50] sm:$0xff]
          %v6368 = vld [vmem:[#allocation6 + $0x58] sm:$0xff]
          %v6369 = vld [vmem:[#allocation6 + $0x60] sm:$0xff]
          %v6370 = vld [vmem:[#allocation6 + $0x68] sm:$0xff]
          %v6371 = vld [vmem:[#allocation6 + $0x70] sm:$0xff]
          %v6372 = vld [vmem:[#allocation6 + $0x78] sm:$0xff]
          %v6373 = vld [vmem:[#allocation6 + $0x80] sm:$0xff]
          %v6374 = vld [vmem:[#allocation6 + $0x88] sm:$0xff]
          %v6375 = vld [vmem:[#allocation6 + $0x90] sm:$0xff]
          %v6376 = vld [vmem:[#allocation6 + $0x98] sm:$0xff]
          %v6377 = vld [vmem:[#allocation6 + $0xa0] sm:$0xff]
          %v6378 = vld [vmem:[#allocation6 + $0xa8] sm:$0xff]
          %v6379 = vld [vmem:[#allocation6 + $0xb0] sm:$0xff]
          %v6380 = vld [vmem:[#allocation6 + $0xb8] sm:$0xff]
          %v6381 = vld [vmem:[#allocation6 + $0xc0] sm:$0xff]
          %v6382 = vld [vmem:[#allocation6 + $0xc8] sm:$0xff]
          %v6383 = vld [vmem:[#allocation6 + $0xd0] sm:$0xff]
          %v6384 = vld [vmem:[#allocation6 + $0xd8] sm:$0xff]
          %v6385 = vld [vmem:[#allocation6 + $0xe0] sm:$0xff]
          %v6386 = vld [vmem:[#allocation6 + $0xe8] sm:$0xff]
          %v6387 = vld [vmem:[#allocation6 + $0xf0] sm:$0xff]
          %v6388 = vld [vmem:[#allocation6 + $0xf8] sm:$0xff]
          %v6389 = vld [vmem:[#allocation6 + $0x100] sm:$0xff]
          %v6390 = vld [vmem:[#allocation6 + $0x108] sm:$0xff]
          %v6391 = vld [vmem:[#allocation6 + $0x110] sm:$0xff]
          %v6392 = vld [vmem:[#allocation6 + $0x118] sm:$0xff]
          %v6393 = vld [vmem:[#allocation6 + $0x120] sm:$0xff]
          %v6394 = vld [vmem:[#allocation6 + $0x128] sm:$0xff]
          %v6395 = vld [vmem:[#allocation6 + $0x130] sm:$0xff]
          %v6396 = vld [vmem:[#allocation6 + $0x138] sm:$0xff]
          %v6397 = vld [vmem:[#allocation6 + $0x140] sm:$0xff]
          %v6398 = vld [vmem:[#allocation6 + $0x148] sm:$0xff]
          %v6399 = vld [vmem:[#allocation6 + $0x150] sm:$0xff]
          %v6400 = vld [vmem:[#allocation6 + $0x158] sm:$0xff]
          %v6401 = vld [vmem:[#allocation6 + $0x160] sm:$0xff]
          %v6402 = vld [vmem:[#allocation6 + $0x168] sm:$0xff]
          %v6403 = vld [vmem:[#allocation6 + $0x170] sm:$0xff]
          %v6404 = vld [vmem:[#allocation6 + $0x178] sm:$0xff]
          %v6405 = vld [vmem:[#allocation6 + $0x180] sm:$0xff]
          %v6406 = vld [vmem:[#allocation6 + $0x188] sm:$0xff]
          %v6407 = vld [vmem:[#allocation6 + $0x190] sm:$0xff]
          %v6408 = vld [vmem:[#allocation6 + $0x198] sm:$0xff]
          %v6409 = vld [vmem:[#allocation6 + $0x1a0] sm:$0xff]
          %v6410 = vld [vmem:[#allocation6 + $0x1a8] sm:$0xff]
          %v6411 = vld [vmem:[#allocation6 + $0x1b0] sm:$0xff]
          %v6412 = vld [vmem:[#allocation6 + $0x1b8] sm:$0xff]
          %v6413 = vld [vmem:[#allocation6 + $0x1c0] sm:$0xff]
          %v6414 = vld [vmem:[#allocation6 + $0x1c8] sm:$0xff]
          %v6415 = vld [vmem:[#allocation6 + $0x1d0] sm:$0xff]
          %v6416 = vld [vmem:[#allocation6 + $0x1d8] sm:$0xff]
          %v6417 = vld [vmem:[#allocation6 + $0x1e0] sm:$0xff]
          %v6418 = vld [vmem:[#allocation6 + $0x1e8] sm:$0xff]
          %v6419 = vld [vmem:[#allocation6 + $0x1f0] sm:$0xff]
          %v6420 = vld [vmem:[#allocation6 + $0x1f8] sm:$0xff]
          %v6421 = vld [vmem:[#allocation6 + $0x200] sm:$0xff]
          %v6422 = vld [vmem:[#allocation6 + $0x208] sm:$0xff]
          %v6423 = vld [vmem:[#allocation6 + $0x210] sm:$0xff]
          %v6424 = vld [vmem:[#allocation6 + $0x218] sm:$0xff]
          %v6425 = vld [vmem:[#allocation6 + $0x220] sm:$0xff]
          %v6426 = vld [vmem:[#allocation6 + $0x228] sm:$0xff]
          %v6427 = vld [vmem:[#allocation6 + $0x230] sm:$0xff]
          %v6428 = vld [vmem:[#allocation6 + $0x238] sm:$0xff]
          %v6429 = vld [vmem:[#allocation6 + $0x240] sm:$0xff]
          %v6430 = vld [vmem:[#allocation6 + $0x248] sm:$0xff]
          %v6431 = vld [vmem:[#allocation6 + $0x250] sm:$0xff]
          %v6432 = vld [vmem:[#allocation6 + $0x258] sm:$0xff]
          %v6433 = vld [vmem:[#allocation6 + $0x260] sm:$0xff]
          %v6434 = vld [vmem:[#allocation6 + $0x268] sm:$0xff]
          %v6435 = vld [vmem:[#allocation6 + $0x270] sm:$0xff]
          %v6436 = vld [vmem:[#allocation6 + $0x278] sm:$0xff]
          %v6437 = vld [vmem:[#allocation6 + $0x280] sm:$0xff]
          %v6438 = vld [vmem:[#allocation6 + $0x288] sm:$0xff]
          %v6439 = vld [vmem:[#allocation6 + $0x290] sm:$0xff]
          %v6440 = vld [vmem:[#allocation6 + $0x298] sm:$0xff]
          %v6441 = vld [vmem:[#allocation6 + $0x2a0] sm:$0xff]
          %v6442 = vld [vmem:[#allocation6 + $0x2a8] sm:$0xff]
          %v6443 = vld [vmem:[#allocation6 + $0x2b0] sm:$0xff]
          %v6444 = vld [vmem:[#allocation6 + $0x2b8] sm:$0xff]
          %v6445 = vld [vmem:[#allocation6 + $0x2c0] sm:$0xff]
          %v6446 = vld [vmem:[#allocation6 + $0x2c8] sm:$0xff]
          %v6447 = vld [vmem:[#allocation6 + $0x2d0] sm:$0xff]
          %v6448 = vld [vmem:[#allocation6 + $0x2d8] sm:$0xff]
          %v6449 = vld [vmem:[#allocation6 + $0x2e0] sm:$0xff]
          %v6450 = vld [vmem:[#allocation6 + $0x2e8] sm:$0xff]
          %v6451 = vld [vmem:[#allocation6 + $0x2f0] sm:$0xff]
          %v6452 = vld [vmem:[#allocation6 + $0x2f8] sm:$0xff]
          %v6453 = vld [vmem:[#allocation6 + $0x300] sm:$0xff]
          %v6454 = vld [vmem:[#allocation6 + $0x308] sm:$0xff]
          %v6455 = vld [vmem:[#allocation6 + $0x310] sm:$0xff]
          %v6456 = vld [vmem:[#allocation6 + $0x318] sm:$0xff]
          %v6457 = vld [vmem:[#allocation6 + $0x320] sm:$0xff]
          %v6458 = vld [vmem:[#allocation6 + $0x328] sm:$0xff]
          %v6459 = vld [vmem:[#allocation6 + $0x330] sm:$0xff]
          %v6460 = vld [vmem:[#allocation6 + $0x338] sm:$0xff]
          %v6461 = vld [vmem:[#allocation6 + $0x340] sm:$0xff]
          %v6462 = vld [vmem:[#allocation6 + $0x348] sm:$0xff]
          %v6463 = vld [vmem:[#allocation6 + $0x350] sm:$0xff]
          %v6464 = vld [vmem:[#allocation6 + $0x358] sm:$0xff]
          %v6465 = vld [vmem:[#allocation6 + $0x360] sm:$0xff]
          %v6466 = vld [vmem:[#allocation6 + $0x368] sm:$0xff]
          %v6467 = vld [vmem:[#allocation6 + $0x370] sm:$0xff]
          %v6468 = vld [vmem:[#allocation6 + $0x378] sm:$0xff]
          %v6469 = vld [vmem:[#allocation6 + $0x380] sm:$0xff]
          %v6470 = vld [vmem:[#allocation6 + $0x388] sm:$0xff]
          %v6471 = vld [vmem:[#allocation6 + $0x390] sm:$0xff]
          %v6472 = vld [vmem:[#allocation6 + $0x398] sm:$0xff]
          %v6473 = vld [vmem:[#allocation6 + $0x3a0] sm:$0xff]
          %v6474 = vld [vmem:[#allocation6 + $0x3a8] sm:$0xff]
          %v6475 = vld [vmem:[#allocation6 + $0x3b0] sm:$0xff]
          %v6476 = vld [vmem:[#allocation6 + $0x3b8] sm:$0xff]
          %v6477 = vld [vmem:[#allocation6 + $0x3c0] sm:$0xff]
          %v6478 = vld [vmem:[#allocation6 + $0x3c8] sm:$0xff]
          %v6479 = vld [vmem:[#allocation6 + $0x3d0] sm:$0xff]
          %v6480 = vld [vmem:[#allocation6 + $0x3d8] sm:$0xff]
          %v6481 = vld [vmem:[#allocation6 + $0x3e0] sm:$0xff]
          %v6482 = vld [vmem:[#allocation6 + $0x3e8] sm:$0xff]
          %v6483 = vld [vmem:[#allocation6 + $0x3f0] sm:$0xff]
          %v6484 = vld [vmem:[#allocation6 + $0x3f8] sm:$0xff]
          %v6485 = vld [vmem:[#allocation6 + $0x400] sm:$0xff]
          %v6486 = vld [vmem:[#allocation6 + $0x408] sm:$0xff]
          %v6487 = vld [vmem:[#allocation6 + $0x410] sm:$0xff]
          %v6488 = vld [vmem:[#allocation6 + $0x418] sm:$0xff]
          %v6489 = vld [vmem:[#allocation6 + $0x420] sm:$0xff]
          %v6490 = vld [vmem:[#allocation6 + $0x428] sm:$0xff]
          %v6491 = vld [vmem:[#allocation6 + $0x430] sm:$0xff]
          %v6492 = vld [vmem:[#allocation6 + $0x438] sm:$0xff]
          %v6493 = vld [vmem:[#allocation6 + $0x440] sm:$0xff]
          %v6494 = vld [vmem:[#allocation6 + $0x448] sm:$0xff]
          %v6495 = vld [vmem:[#allocation6 + $0x450] sm:$0xff]
          %v6496 = vld [vmem:[#allocation6 + $0x458] sm:$0xff]
          %v6497 = vld [vmem:[#allocation6 + $0x460] sm:$0xff]
          %v6498 = vld [vmem:[#allocation6 + $0x468] sm:$0xff]
          %v6499 = vld [vmem:[#allocation6 + $0x470] sm:$0xff]
          %v6500 = vld [vmem:[#allocation6 + $0x478] sm:$0xff]
          %v6501 = vld [vmem:[#allocation6 + $0x480] sm:$0xff]
          %v6502 = vld [vmem:[#allocation6 + $0x488] sm:$0xff]
          %v6503 = vld [vmem:[#allocation6 + $0x490] sm:$0xff]
          %v6504 = vld [vmem:[#allocation6 + $0x498] sm:$0xff]
          %v6505 = vld [vmem:[#allocation6 + $0x4a0] sm:$0xff]
          %v6506 = vld [vmem:[#allocation6 + $0x4a8] sm:$0xff]
          %v6507 = vld [vmem:[#allocation6 + $0x4b0] sm:$0xff]
          %v6508 = vld [vmem:[#allocation6 + $0x4b8] sm:$0xff]
          %v6509 = vld [vmem:[#allocation6 + $0x4c0] sm:$0xff]
          %v6510 = vld [vmem:[#allocation6 + $0x4c8] sm:$0xff]
          %v6511 = vld [vmem:[#allocation6 + $0x4d0] sm:$0xff]
          %v6512 = vld [vmem:[#allocation6 + $0x4d8] sm:$0xff]
          %v6513 = vld [vmem:[#allocation6 + $0x4e0] sm:$0xff]
          %v6514 = vld [vmem:[#allocation6 + $0x4e8] sm:$0xff]
          %v6515 = vld [vmem:[#allocation6 + $0x4f0] sm:$0xff]
          %v6516 = vld [vmem:[#allocation6 + $0x4f8] sm:$0xff]
          %v6517 = vld [vmem:[#allocation6 + $0x500] sm:$0xff]
          %v6518 = vld [vmem:[#allocation6 + $0x508] sm:$0xff]
          %v6519 = vld [vmem:[#allocation6 + $0x510] sm:$0xff]
          %v6520 = vld [vmem:[#allocation6 + $0x518] sm:$0xff]
          %v6521 = vld [vmem:[#allocation6 + $0x520] sm:$0xff]
          %v6522 = vld [vmem:[#allocation6 + $0x528] sm:$0xff]
          %v6523 = vld [vmem:[#allocation6 + $0x530] sm:$0xff]
          %v6524 = vld [vmem:[#allocation6 + $0x538] sm:$0xff]
          %v6525 = vld [vmem:[#allocation6 + $0x540] sm:$0xff]
          %v6526 = vld [vmem:[#allocation6 + $0x548] sm:$0xff]
          %v6527 = vld [vmem:[#allocation6 + $0x550] sm:$0xff]
          %v6528 = vld [vmem:[#allocation6 + $0x558] sm:$0xff]
          %v6529 = vld [vmem:[#allocation6 + $0x560] sm:$0xff]
          %v6530 = vld [vmem:[#allocation6 + $0x568] sm:$0xff]
          %v6531 = vld [vmem:[#allocation6 + $0x570] sm:$0xff]
          %v6532 = vld [vmem:[#allocation6 + $0x578] sm:$0xff]
          %v6533 = vld [vmem:[#allocation6 + $0x580] sm:$0xff]
          %v6534 = vld [vmem:[#allocation6 + $0x588] sm:$0xff]
          %v6535 = vld [vmem:[#allocation6 + $0x590] sm:$0xff]
          %v6536 = vld [vmem:[#allocation6 + $0x598] sm:$0xff]
          %v6537 = vld [vmem:[#allocation6 + $0x5a0] sm:$0xff]
          %v6538 = vld [vmem:[#allocation6 + $0x5a8] sm:$0xff]
          %v6539 = vld [vmem:[#allocation6 + $0x5b0] sm:$0xff]
          %v6540 = vld [vmem:[#allocation6 + $0x5b8] sm:$0xff]
          %v6541 = vld [vmem:[#allocation6 + $0x5c0] sm:$0xff]
          %v6542 = vld [vmem:[#allocation6 + $0x5c8] sm:$0xff]
          %v6543 = vld [vmem:[#allocation6 + $0x5d0] sm:$0xff]
          %v6544 = vld [vmem:[#allocation6 + $0x5d8] sm:$0xff]
          %v6545 = vld [vmem:[#allocation6 + $0x5e0] sm:$0xff]
          %v6546 = vld [vmem:[#allocation6 + $0x5e8] sm:$0xff]
          %v6547 = vld [vmem:[#allocation6 + $0x5f0] sm:$0xff]
          %v6548 = vld [vmem:[#allocation6 + $0x5f8] sm:$0xff]
          %v6549 = vld [vmem:[#allocation6 + $0x600] sm:$0xff]
          %v6550 = vld [vmem:[#allocation6 + $0x608] sm:$0xff]
          %v6551 = vld [vmem:[#allocation6 + $0x610] sm:$0xff]
          %v6552 = vld [vmem:[#allocation6 + $0x618] sm:$0xff]
          %v6553 = vld [vmem:[#allocation6 + $0x620] sm:$0xff]
          %v6554 = vld [vmem:[#allocation6 + $0x628] sm:$0xff]
          %v6555 = vld [vmem:[#allocation6 + $0x630] sm:$0xff]
          %v6556 = vld [vmem:[#allocation6 + $0x638] sm:$0xff]
          %v6557 = vld [vmem:[#allocation6 + $0x640] sm:$0xff]
          %v6558 = vld [vmem:[#allocation6 + $0x648] sm:$0xff]
          %v6559 = vld [vmem:[#allocation6 + $0x650] sm:$0xff]
          %v6560 = vld [vmem:[#allocation6 + $0x658] sm:$0xff]
          %v6561 = vld [vmem:[#allocation6 + $0x660] sm:$0xff]
          %v6562 = vld [vmem:[#allocation6 + $0x668] sm:$0xff]
          %v6563 = vld [vmem:[#allocation6 + $0x670] sm:$0xff]
          %v6564 = vld [vmem:[#allocation6 + $0x678] sm:$0xff]
          %v6565 = vld [vmem:[#allocation6 + $0x680] sm:$0xff]
          %v6566 = vld [vmem:[#allocation6 + $0x688] sm:$0xff]
          %v6567 = vld [vmem:[#allocation6 + $0x690] sm:$0xff]
          %v6568 = vld [vmem:[#allocation6 + $0x698] sm:$0xff]
          %v6569 = vld [vmem:[#allocation6 + $0x6a0] sm:$0xff]
          %v6570 = vld [vmem:[#allocation6 + $0x6a8] sm:$0xff]
          %v6571 = vld [vmem:[#allocation6 + $0x6b0] sm:$0xff]
          %v6572 = vld [vmem:[#allocation6 + $0x6b8] sm:$0xff]
          %v6573 = vld [vmem:[#allocation6 + $0x6c0] sm:$0xff]
          %v6574 = vld [vmem:[#allocation6 + $0x6c8] sm:$0xff]
          %v6575 = vld [vmem:[#allocation6 + $0x6d0] sm:$0xff]
          %v6576 = vld [vmem:[#allocation6 + $0x6d8] sm:$0xff]
          %v6577 = vld [vmem:[#allocation6 + $0x6e0] sm:$0xff]
          %v6578 = vld [vmem:[#allocation6 + $0x6e8] sm:$0xff]
          %v6579 = vld [vmem:[#allocation6 + $0x6f0] sm:$0xff]
          %v6580 = vld [vmem:[#allocation6 + $0x6f8] sm:$0xff]
          %v6581 = vld [vmem:[#allocation6 + $0x700] sm:$0xff]
          %v6582 = vld [vmem:[#allocation6 + $0x708] sm:$0xff]
          %v6583 = vld [vmem:[#allocation6 + $0x710] sm:$0xff]
          %v6584 = vld [vmem:[#allocation6 + $0x718] sm:$0xff]
          %v6585 = vld [vmem:[#allocation6 + $0x720] sm:$0xff]
          %v6586 = vld [vmem:[#allocation6 + $0x728] sm:$0xff]
          %v6587 = vld [vmem:[#allocation6 + $0x730] sm:$0xff]
          %v6588 = vld [vmem:[#allocation6 + $0x738] sm:$0xff]
          %v6589 = vld [vmem:[#allocation6 + $0x740] sm:$0xff]
          %v6590 = vld [vmem:[#allocation6 + $0x748] sm:$0xff]
          %v6591 = vld [vmem:[#allocation6 + $0x750] sm:$0xff]
          %v6592 = vld [vmem:[#allocation6 + $0x758] sm:$0xff]
          %v6593 = vld [vmem:[#allocation6 + $0x760] sm:$0xff]
          %v6594 = vld [vmem:[#allocation6 + $0x768] sm:$0xff]
          %v6595 = vld [vmem:[#allocation6 + $0x770] sm:$0xff]
          %v6596 = vld [vmem:[#allocation6 + $0x778] sm:$0xff]
          %v6597 = vld [vmem:[#allocation6 + $0x780] sm:$0xff]
          %v6598 = vld [vmem:[#allocation6 + $0x788] sm:$0xff]
          %v6599 = vld [vmem:[#allocation6 + $0x790] sm:$0xff]
          %v6600 = vld [vmem:[#allocation6 + $0x798] sm:$0xff]
          %v6601 = vld [vmem:[#allocation6 + $0x7a0] sm:$0xff]
          %v6602 = vld [vmem:[#allocation6 + $0x7a8] sm:$0xff]
          %v6603 = vld [vmem:[#allocation6 + $0x7b0] sm:$0xff]
          %v6604 = vld [vmem:[#allocation6 + $0x7b8] sm:$0xff]
          %v6605 = vld [vmem:[#allocation6 + $0x7c0] sm:$0xff]
          %v6606 = vld [vmem:[#allocation6 + $0x7c8] sm:$0xff]
          %v6607 = vld [vmem:[#allocation6 + $0x7d0] sm:$0xff]
          %v6608 = vld [vmem:[#allocation6 + $0x7d8] sm:$0xff]
          %v6609 = vld [vmem:[#allocation6 + $0x7e0] sm:$0xff]
          %v6610 = vld [vmem:[#allocation6 + $0x7e8] sm:$0xff]
          %v6611 = vld [vmem:[#allocation6 + $0x7f0] sm:$0xff]
          %v6612 = vld [vmem:[#allocation6 + $0x7f8] sm:$0xff]
          %v6613 = vld [vmem:[#allocation6 + $0x800] sm:$0xff]
          %v6614 = vld [vmem:[#allocation6 + $0x808] sm:$0xff]
          %v6615 = vld [vmem:[#allocation6 + $0x810] sm:$0xff]
          %v6616 = vld [vmem:[#allocation6 + $0x818] sm:$0xff]
          %v6617 = vld [vmem:[#allocation6 + $0x820] sm:$0xff]
          %v6618 = vld [vmem:[#allocation6 + $0x828] sm:$0xff]
          %v6619 = vld [vmem:[#allocation6 + $0x830] sm:$0xff]
          %v6620 = vld [vmem:[#allocation6 + $0x838] sm:$0xff]
          %v6621 = vld [vmem:[#allocation6 + $0x840] sm:$0xff]
          %v6622 = vld [vmem:[#allocation6 + $0x848] sm:$0xff]
          %v6623 = vld [vmem:[#allocation6 + $0x850] sm:$0xff]
          %v6624 = vld [vmem:[#allocation6 + $0x858] sm:$0xff]
          %v6625 = vld [vmem:[#allocation6 + $0x860] sm:$0xff]
          %v6626 = vld [vmem:[#allocation6 + $0x868] sm:$0xff]
          %v6627 = vld [vmem:[#allocation6 + $0x870] sm:$0xff]
          %v6628 = vld [vmem:[#allocation6 + $0x878] sm:$0xff]
          %v6629 = vld [vmem:[#allocation6 + $0x880] sm:$0xff]
          %v6630 = vld [vmem:[#allocation6 + $0x888] sm:$0xff]
          %v6631 = vld [vmem:[#allocation6 + $0x890] sm:$0xff]
          %v6632 = vld [vmem:[#allocation6 + $0x898] sm:$0xff]
          %v6633 = vld [vmem:[#allocation6 + $0x8a0] sm:$0xff]
          %v6634 = vld [vmem:[#allocation6 + $0x8a8] sm:$0xff]
          %v6635 = vld [vmem:[#allocation6 + $0x8b0] sm:$0xff]
          %v6636 = vld [vmem:[#allocation6 + $0x8b8] sm:$0xff]
          %v6637 = vld [vmem:[#allocation6 + $0x8c0] sm:$0xff]
          %v6638 = vld [vmem:[#allocation6 + $0x8c8] sm:$0xff]
          %v6639 = vld [vmem:[#allocation6 + $0x8d0] sm:$0xff]
          %v6640 = vld [vmem:[#allocation6 + $0x8d8] sm:$0xff]
          %v6641 = vld [vmem:[#allocation6 + $0x8e0] sm:$0xff]
          %v6642 = vld [vmem:[#allocation6 + $0x8e8] sm:$0xff]
          %v6643 = vld [vmem:[#allocation6 + $0x8f0] sm:$0xff]
          %v6644 = vld [vmem:[#allocation6 + $0x8f8] sm:$0xff]
          %v6645 = vld [vmem:[#allocation6 + $0x900] sm:$0xff]
          %v6646 = vld [vmem:[#allocation6 + $0x908] sm:$0xff]
          %v6647 = vld [vmem:[#allocation6 + $0x910] sm:$0xff]
          %v6648 = vld [vmem:[#allocation6 + $0x918] sm:$0xff]
          %v6649 = vld [vmem:[#allocation6 + $0x920] sm:$0xff]
          %v6650 = vld [vmem:[#allocation6 + $0x928] sm:$0xff]
          %v6651 = vld [vmem:[#allocation6 + $0x930] sm:$0xff]
          %v6652 = vld [vmem:[#allocation6 + $0x938] sm:$0xff]
          %v6653 = vld [vmem:[#allocation6 + $0x940] sm:$0xff]
          %v6654 = vld [vmem:[#allocation6 + $0x948] sm:$0xff]
          %v6655 = vld [vmem:[#allocation6 + $0x950] sm:$0xff]
          %v6656 = vld [vmem:[#allocation6 + $0x958] sm:$0xff]
          %v6657 = vld [vmem:[#allocation6 + $0x960] sm:$0xff]
          %v6658 = vld [vmem:[#allocation6 + $0x968] sm:$0xff]
          %v6659 = vld [vmem:[#allocation6 + $0x970] sm:$0xff]
          %v6660 = vld [vmem:[#allocation6 + $0x978] sm:$0xff]
          %v6661 = vld [vmem:[#allocation6 + $0x980] sm:$0xff]
          %v6662 = vld [vmem:[#allocation6 + $0x988] sm:$0xff]
          %v6663 = vld [vmem:[#allocation6 + $0x990] sm:$0xff]
          %v6664 = vld [vmem:[#allocation6 + $0x998] sm:$0xff]
          %v6665 = vld [vmem:[#allocation6 + $0x9a0] sm:$0xff]
          %v6666 = vld [vmem:[#allocation6 + $0x9a8] sm:$0xff]
          %v6667 = vld [vmem:[#allocation6 + $0x9b0] sm:$0xff]
          %v6668 = vld [vmem:[#allocation6 + $0x9b8] sm:$0xff]
          %v6669 = vld [vmem:[#allocation6 + $0x9c0] sm:$0xff]
          %v6670 = vld [vmem:[#allocation6 + $0x9c8] sm:$0xff]
          %v6671 = vld [vmem:[#allocation6 + $0x9d0] sm:$0xff]
          %v6672 = vld [vmem:[#allocation6 + $0x9d8] sm:$0xff]
          %v6673 = vld [vmem:[#allocation6 + $0x9e0] sm:$0xff]
          %v6674 = vld [vmem:[#allocation6 + $0x9e8] sm:$0xff]
          %v6675 = vld [vmem:[#allocation6 + $0x9f0] sm:$0xff]
          %v6676 = vld [vmem:[#allocation6 + $0x9f8] sm:$0xff]
          %v6677 = vld [vmem:[#allocation6 + $0xa00] sm:$0xff]
          %v6678 = vld [vmem:[#allocation6 + $0xa08] sm:$0xff]
          %v6679 = vld [vmem:[#allocation6 + $0xa10] sm:$0xff]
          %v6680 = vld [vmem:[#allocation6 + $0xa18] sm:$0xff]
          %v6681 = vld [vmem:[#allocation6 + $0xa20] sm:$0xff]
          %v6682 = vld [vmem:[#allocation6 + $0xa28] sm:$0xff]
          %v6683 = vld [vmem:[#allocation6 + $0xa30] sm:$0xff]
          %v6684 = vld [vmem:[#allocation6 + $0xa38] sm:$0xff]
          %v6685 = vld [vmem:[#allocation6 + $0xa40] sm:$0xff]
          %v6686 = vld [vmem:[#allocation6 + $0xa48] sm:$0xff]
          %v6687 = vld [vmem:[#allocation6 + $0xa50] sm:$0xff]
          %v6688 = vld [vmem:[#allocation6 + $0xa58] sm:$0xff]
          %v6689 = vld [vmem:[#allocation6 + $0xa60] sm:$0xff]
          %v6690 = vld [vmem:[#allocation6 + $0xa68] sm:$0xff]
          %v6691 = vld [vmem:[#allocation6 + $0xa70] sm:$0xff]
          %v6692 = vld [vmem:[#allocation6 + $0xa78] sm:$0xff]
          %v6693 = vld [vmem:[#allocation6 + $0xa80] sm:$0xff]
          %v6694 = vld [vmem:[#allocation6 + $0xa88] sm:$0xff]
          %v6695 = vld [vmem:[#allocation6 + $0xa90] sm:$0xff]
          %v6696 = vld [vmem:[#allocation6 + $0xa98] sm:$0xff]
          %v6697 = vld [vmem:[#allocation6 + $0xaa0] sm:$0xff]
          %v6698 = vld [vmem:[#allocation6 + $0xaa8] sm:$0xff]
          %v6699 = vld [vmem:[#allocation6 + $0xab0] sm:$0xff]
          %v6700 = vld [vmem:[#allocation6 + $0xab8] sm:$0xff]
          %v6701 = vld [vmem:[#allocation6 + $0xac0] sm:$0xff]
          %v6702 = vld [vmem:[#allocation6 + $0xac8] sm:$0xff]
          %v6703 = vld [vmem:[#allocation6 + $0xad0] sm:$0xff]
          %v6704 = vld [vmem:[#allocation6 + $0xad8] sm:$0xff]
          %v6705 = vld [vmem:[#allocation6 + $0xae0] sm:$0xff]
          %v6706 = vld [vmem:[#allocation6 + $0xae8] sm:$0xff]
          %v6707 = vld [vmem:[#allocation6 + $0xaf0] sm:$0xff]
          %v6708 = vld [vmem:[#allocation6 + $0xaf8] sm:$0xff]
          %v6709 = vld [vmem:[#allocation6 + $0xb00] sm:$0xff]
          %v6710 = vld [vmem:[#allocation6 + $0xb08] sm:$0xff]
          %v6711 = vld [vmem:[#allocation6 + $0xb10] sm:$0xff]
          %v6712 = vld [vmem:[#allocation6 + $0xb18] sm:$0xff]
          %v6713 = vld [vmem:[#allocation6 + $0xb20] sm:$0xff]
          %v6714 = vld [vmem:[#allocation6 + $0xb28] sm:$0xff]
          %v6715 = vld [vmem:[#allocation6 + $0xb30] sm:$0xff]
          %v6716 = vld [vmem:[#allocation6 + $0xb38] sm:$0xff]
          %v6717 = vld [vmem:[#allocation6 + $0xb40] sm:$0xff]
          %v6718 = vld [vmem:[#allocation6 + $0xb48] sm:$0xff]
          %v6719 = vld [vmem:[#allocation6 + $0xb50] sm:$0xff]
          %v6720 = vld [vmem:[#allocation6 + $0xb58] sm:$0xff]
          %v6721 = vld [vmem:[#allocation6 + $0xb60] sm:$0xff]
          %v6722 = vld [vmem:[#allocation6 + $0xb68] sm:$0xff]
          %v6723 = vld [vmem:[#allocation6 + $0xb70] sm:$0xff]
          %v6724 = vld [vmem:[#allocation6 + $0xb78] sm:$0xff]
          %v6725 = vld [vmem:[#allocation6 + $0xb80] sm:$0xff]
          %v6726 = vld [vmem:[#allocation6 + $0xb88] sm:$0xff]
          %v6727 = vld [vmem:[#allocation6 + $0xb90] sm:$0xff]
          %v6728 = vld [vmem:[#allocation6 + $0xb98] sm:$0xff]
          %v6729 = vld [vmem:[#allocation6 + $0xba0] sm:$0xff]
          %v6730 = vld [vmem:[#allocation6 + $0xba8] sm:$0xff]
          %v6731 = vld [vmem:[#allocation6 + $0xbb0] sm:$0xff]
          %v6732 = vld [vmem:[#allocation6 + $0xbb8] sm:$0xff]
          %v6733 = vld [vmem:[#allocation6 + $0xbc0] sm:$0xff]
          %v6734 = vld [vmem:[#allocation6 + $0xbc8] sm:$0xff]
          %v6735 = vld [vmem:[#allocation6 + $0xbd0] sm:$0xff]
          %v6736 = vld [vmem:[#allocation6 + $0xbd8] sm:$0xff]
          %v6737 = vld [vmem:[#allocation6 + $0xbe0] sm:$0xff]
          %v6738 = vld [vmem:[#allocation6 + $0xbe8] sm:$0xff]
          %v6739 = vld [vmem:[#allocation6 + $0xbf0] sm:$0xff]
          %v6740 = vld [vmem:[#allocation6 + $0xbf8] sm:$0xff]
          %v6741 = vld [vmem:[#allocation6 + $0xc00] sm:$0xff]
          %v6742 = vld [vmem:[#allocation6 + $0xc08] sm:$0xff]
          %v6743 = vld [vmem:[#allocation6 + $0xc10] sm:$0xff]
          %v6744 = vld [vmem:[#allocation6 + $0xc18] sm:$0xff]
          %v6745 = vld [vmem:[#allocation6 + $0xc20] sm:$0xff]
          %v6746 = vld [vmem:[#allocation6 + $0xc28] sm:$0xff]
          %v6747 = vld [vmem:[#allocation6 + $0xc30] sm:$0xff]
          %v6748 = vld [vmem:[#allocation6 + $0xc38] sm:$0xff]
          %v6749 = vld [vmem:[#allocation6 + $0xc40] sm:$0xff]
          %v6750 = vld [vmem:[#allocation6 + $0xc48] sm:$0xff]
          %v6751 = vld [vmem:[#allocation6 + $0xc50] sm:$0xff]
          %v6752 = vld [vmem:[#allocation6 + $0xc58] sm:$0xff]
          %v6753 = vld [vmem:[#allocation6 + $0xc60] sm:$0xff]
          %v6754 = vld [vmem:[#allocation6 + $0xc68] sm:$0xff]
          %v6755 = vld [vmem:[#allocation6 + $0xc70] sm:$0xff]
          %v6756 = vld [vmem:[#allocation6 + $0xc78] sm:$0xff]
          %v6757 = vld [vmem:[#allocation6 + $0xc80] sm:$0xff]
          %v6758 = vld [vmem:[#allocation6 + $0xc88] sm:$0xff]
          %v6759 = vld [vmem:[#allocation6 + $0xc90] sm:$0xff]
          %v6760 = vld [vmem:[#allocation6 + $0xc98] sm:$0xff]
          %v6761 = vld [vmem:[#allocation6 + $0xca0] sm:$0xff]
          %v6762 = vld [vmem:[#allocation6 + $0xca8] sm:$0xff]
          %v6763 = vld [vmem:[#allocation6 + $0xcb0] sm:$0xff]
          %v6764 = vld [vmem:[#allocation6 + $0xcb8] sm:$0xff]
          %v6765 = vld [vmem:[#allocation6 + $0xcc0] sm:$0xff]
          %v6766 = vld [vmem:[#allocation6 + $0xcc8] sm:$0xff]
          %v6767 = vld [vmem:[#allocation6 + $0xcd0] sm:$0xff]
          %v6768 = vld [vmem:[#allocation6 + $0xcd8] sm:$0xff]
          %v6769 = vld [vmem:[#allocation6 + $0xce0] sm:$0xff]
          %v6770 = vld [vmem:[#allocation6 + $0xce8] sm:$0xff]
          %v6771 = vld [vmem:[#allocation6 + $0xcf0] sm:$0xff]
          %v6772 = vld [vmem:[#allocation6 + $0xcf8] sm:$0xff]
          %v6773 = vld [vmem:[#allocation6 + $0xd00] sm:$0xff]
          %v6774 = vld [vmem:[#allocation6 + $0xd08] sm:$0xff]
          %v6775 = vld [vmem:[#allocation6 + $0xd10] sm:$0xff]
          %v6776 = vld [vmem:[#allocation6 + $0xd18] sm:$0xff]
          %v6777 = vld [vmem:[#allocation6 + $0xd20] sm:$0xff]
          %v6778 = vld [vmem:[#allocation6 + $0xd28] sm:$0xff]
          %v6779 = vld [vmem:[#allocation6 + $0xd30] sm:$0xff]
          %v6780 = vld [vmem:[#allocation6 + $0xd38] sm:$0xff]
          %v6781 = vld [vmem:[#allocation6 + $0xd40] sm:$0xff]
          %v6782 = vld [vmem:[#allocation6 + $0xd48] sm:$0xff]
          %v6783 = vld [vmem:[#allocation6 + $0xd50] sm:$0xff]
          %v6784 = vld [vmem:[#allocation6 + $0xd58] sm:$0xff]
          %v6785 = vld [vmem:[#allocation6 + $0xd60] sm:$0xff]
          %v6786 = vld [vmem:[#allocation6 + $0xd68] sm:$0xff]
          %v6787 = vld [vmem:[#allocation6 + $0xd70] sm:$0xff]
          %v6788 = vld [vmem:[#allocation6 + $0xd78] sm:$0xff]
          %v6789 = vld [vmem:[#allocation6 + $0xd80] sm:$0xff]
          %v6790 = vld [vmem:[#allocation6 + $0xd88] sm:$0xff]
          %v6791 = vld [vmem:[#allocation6 + $0xd90] sm:$0xff]
          %v6792 = vld [vmem:[#allocation6 + $0xd98] sm:$0xff]
          %v6793 = vld [vmem:[#allocation6 + $0xda0] sm:$0xff]
          %v6794 = vld [vmem:[#allocation6 + $0xda8] sm:$0xff]
          %v6795 = vld [vmem:[#allocation6 + $0xdb0] sm:$0xff]
          %v6796 = vld [vmem:[#allocation6 + $0xdb8] sm:$0xff]
          %v6797 = vld [vmem:[#allocation6 + $0xdc0] sm:$0xff]
          %v6798 = vld [vmem:[#allocation6 + $0xdc8] sm:$0xff]
          %v6799 = vld [vmem:[#allocation6 + $0xdd0] sm:$0xff]
          %v6800 = vld [vmem:[#allocation6 + $0xdd8] sm:$0xff]
          %v6801 = vld [vmem:[#allocation6 + $0xde0] sm:$0xff]
          %v6802 = vld [vmem:[#allocation6 + $0xde8] sm:$0xff]
          %v6803 = vld [vmem:[#allocation6 + $0xdf0] sm:$0xff]
          %v6804 = vld [vmem:[#allocation6 + $0xdf8] sm:$0xff]
          %v6805 = vld [vmem:[#allocation6 + $0xe00] sm:$0xff]
          %v6806 = vld [vmem:[#allocation6 + $0xe08] sm:$0xff]
          %v6807 = vld [vmem:[#allocation6 + $0xe10] sm:$0xff]
          %v6808 = vld [vmem:[#allocation6 + $0xe18] sm:$0xff]
          %v6809 = vld [vmem:[#allocation6 + $0xe20] sm:$0xff]
          %v6810 = vld [vmem:[#allocation6 + $0xe28] sm:$0xff]
          %v6811 = vld [vmem:[#allocation6 + $0xe30] sm:$0xff]
          %v6812 = vld [vmem:[#allocation6 + $0xe38] sm:$0xff]
          %v6813 = vld [vmem:[#allocation6 + $0xe40] sm:$0xff]
          %v6814 = vld [vmem:[#allocation6 + $0xe48] sm:$0xff]
          %v6815 = vld [vmem:[#allocation6 + $0xe50] sm:$0xff]
          %v6816 = vld [vmem:[#allocation6 + $0xe58] sm:$0xff]
          %v6817 = vld [vmem:[#allocation6 + $0xe60] sm:$0xff]
          %v6818 = vld [vmem:[#allocation6 + $0xe68] sm:$0xff]
          %v6819 = vld [vmem:[#allocation6 + $0xe70] sm:$0xff]
          %v6820 = vld [vmem:[#allocation6 + $0xe78] sm:$0xff]
          %v6821 = vld [vmem:[#allocation6 + $0xe80] sm:$0xff]
          %v6822 = vld [vmem:[#allocation6 + $0xe88] sm:$0xff]
          %v6823 = vld [vmem:[#allocation6 + $0xe90] sm:$0xff]
          %v6824 = vld [vmem:[#allocation6 + $0xe98] sm:$0xff]
          %v6825 = vld [vmem:[#allocation6 + $0xea0] sm:$0xff]
          %v6826 = vld [vmem:[#allocation6 + $0xea8] sm:$0xff]
          %v6827 = vld [vmem:[#allocation6 + $0xeb0] sm:$0xff]
          %v6828 = vld [vmem:[#allocation6 + $0xeb8] sm:$0xff]
          %v6829 = vld [vmem:[#allocation6 + $0xec0] sm:$0xff]
          %v6830 = vld [vmem:[#allocation6 + $0xec8] sm:$0xff]
          %v6831 = vld [vmem:[#allocation6 + $0xed0] sm:$0xff]
          %v6832 = vld [vmem:[#allocation6 + $0xed8] sm:$0xff]
          %v6833 = vld [vmem:[#allocation6 + $0xee0] sm:$0xff]
          %v6834 = vld [vmem:[#allocation6 + $0xee8] sm:$0xff]
          %v6835 = vld [vmem:[#allocation6 + $0xef0] sm:$0xff]
          %v6836 = vld [vmem:[#allocation6 + $0xef8] sm:$0xff]
          %v6837 = vld [vmem:[#allocation6 + $0xf00] sm:$0xff]
          %v6838 = vld [vmem:[#allocation6 + $0xf08] sm:$0xff]
          %v6839 = vld [vmem:[#allocation6 + $0xf10] sm:$0xff]
          %v6840 = vld [vmem:[#allocation6 + $0xf18] sm:$0xff]
          %v6841 = vld [vmem:[#allocation6 + $0xf20] sm:$0xff]
          %v6842 = vld [vmem:[#allocation6 + $0xf28] sm:$0xff]
          %v6843 = vld [vmem:[#allocation6 + $0xf30] sm:$0xff]
          %v6844 = vld [vmem:[#allocation6 + $0xf38] sm:$0xff]
          %v6845 = vld [vmem:[#allocation6 + $0xf40] sm:$0xff]
          %v6846 = vld [vmem:[#allocation6 + $0xf48] sm:$0xff]
          %v6847 = vld [vmem:[#allocation6 + $0xf50] sm:$0xff]
          %v6848 = vld [vmem:[#allocation6 + $0xf58] sm:$0xff]
          %v6849 = vld [vmem:[#allocation6 + $0xf60] sm:$0xff]
          %v6850 = vld [vmem:[#allocation6 + $0xf68] sm:$0xff]
          %v6851 = vld [vmem:[#allocation6 + $0xf70] sm:$0xff]
          %v6852 = vld [vmem:[#allocation6 + $0xf78] sm:$0xff]
          %v6853 = vld [vmem:[#allocation6 + $0xf80] sm:$0xff]
          %v6854 = vld [vmem:[#allocation6 + $0xf88] sm:$0xff]
          %v6855 = vld [vmem:[#allocation6 + $0xf90] sm:$0xff]
          %v6856 = vld [vmem:[#allocation6 + $0xf98] sm:$0xff]
          %v6857 = vld [vmem:[#allocation6 + $0xfa0] sm:$0xff]
          %v6858 = vld [vmem:[#allocation6 + $0xfa8] sm:$0xff]
          %v6859 = vld [vmem:[#allocation6 + $0xfb0] sm:$0xff]
          %v6860 = vld [vmem:[#allocation6 + $0xfb8] sm:$0xff]
          %v6861 = vld [vmem:[#allocation6 + $0xfc0] sm:$0xff]
          %v6862 = vld [vmem:[#allocation6 + $0xfc8] sm:$0xff]
          %v6863 = vld [vmem:[#allocation6 + $0xfd0] sm:$0xff]
          %v6864 = vld [vmem:[#allocation6 + $0xfd8] sm:$0xff]
          %v6865 = vld [vmem:[#allocation6 + $0xfe0] sm:$0xff]
          %v6866 = vld [vmem:[#allocation6 + $0xfe8] sm:$0xff]
          %v6867 = vld [vmem:[#allocation6 + $0xff0] sm:$0xff]
          %v6868 = vld [vmem:[#allocation6 + $0xff8] sm:$0xff]
          %v6869 = vld [vmem:[#allocation8] sm:$0x3]
          %v6871 = vlaneseq
          %v6872 = vshrl.u32 %v6871, 7
          %v6873 = vsub.s32 0, %v6872
          %v6874 = vrot.slane %v6869, %v6873
          %v6875 = vlaneseq
          %v6876 = vshrl.u32 %v6875, 7
          %v6877 = vsub.s32 1, %v6876
          %v6878 = vrot.slane %v6869, %v6877
          %6881 = vmatprep.subr.mxu0 %v6358
          %6882 = vmatpush1.msra.mxu0 %v6357
          %6883 = vmatprep.subr.mxu0 %v6360
          %6884 = vmatpush1.msra.mxu0 %v6359
          %6885 = vmatprep.subr.mxu0 %v6362
          %6886 = vmatpush1.msra.mxu0 %v6361
          %6887 = vmatprep.subr.mxu0 %v6364
          %6888 = vmatpush1.msra.mxu0 %v6363
          %6889 = vmatprep.subr.mxu0 %v6366
          %6890 = vmatpush1.msra.mxu0 %v6365
          %6891 = vmatprep.subr.mxu0 %v6368
          %6892 = vmatpush1.msra.mxu0 %v6367
          %6893 = vmatprep.subr.mxu0 %v6370
          %6894 = vmatpush1.msra.mxu0 %v6369
          %6895 = vmatprep.subr.mxu0 %v6372
          %6896 = vmatpush1.msra.mxu0 %v6371
          %6897 = vmatprep.subr.mxu0 %v6374
          %6898 = vmatpush1.msra.mxu0 %v6373
          %6899 = vmatprep.subr.mxu0 %v6376
          %6900 = vmatpush1.msra.mxu0 %v6375
          %6901 = vmatprep.subr.mxu0 %v6378
          %6902 = vmatpush1.msra.mxu0 %v6377
          %6903 = vmatprep.subr.mxu0 %v6380
          %6904 = vmatpush1.msra.mxu0 %v6379
          %6905 = vmatprep.subr.mxu0 %v6382
          %6906 = vmatpush1.msra.mxu0 %v6381
          %6907 = vmatprep.subr.mxu0 %v6384
          %6908 = vmatpush1.msra.mxu0 %v6383
          %6909 = vmatprep.subr.mxu0 %v6386
          %6910 = vmatpush1.msra.mxu0 %v6385
          %6911 = vmatprep.subr.mxu0 %v6388
          %6912 = vmatpush1.msra.mxu0 %v6387
          %6913 = vmatprep.subr.mxu0 %v6390
          %6914 = vmatpush1.msra.mxu0 %v6389
          %6915 = vmatprep.subr.mxu0 %v6392
          %6916 = vmatpush1.msra.mxu0 %v6391
          %6917 = vmatprep.subr.mxu0 %v6394
          %6918 = vmatpush1.msra.mxu0 %v6393
          %6919 = vmatprep.subr.mxu0 %v6396
          %6920 = vmatpush1.msra.mxu0 %v6395
          %6921 = vmatprep.subr.mxu0 %v6398
          %6922 = vmatpush1.msra.mxu0 %v6397
          %6923 = vmatprep.subr.mxu0 %v6400
          %6924 = vmatpush1.msra.mxu0 %v6399
          %6925 = vmatprep.subr.mxu0 %v6402
          %6926 = vmatpush1.msra.mxu0 %v6401
          %6927 = vmatprep.subr.mxu0 %v6404
          %6928 = vmatpush1.msra.mxu0 %v6403
          %6929 = vmatprep.subr.mxu0 %v6406
          %6930 = vmatpush1.msra.mxu0 %v6405
          %6931 = vmatprep.subr.mxu0 %v6408
          %6932 = vmatpush1.msra.mxu0 %v6407
          %6933 = vmatprep.subr.mxu0 %v6410
          %6934 = vmatpush1.msra.mxu0 %v6409
          %6935 = vmatprep.subr.mxu0 %v6412
          %6936 = vmatpush1.msra.mxu0 %v6411
          %6937 = vmatprep.subr.mxu0 %v6414
          %6938 = vmatpush1.msra.mxu0 %v6413
          %6939 = vmatprep.subr.mxu0 %v6416
          %6940 = vmatpush1.msra.mxu0 %v6415
          %6941 = vmatprep.subr.mxu0 %v6418
          %6942 = vmatpush1.msra.mxu0 %v6417
          %6943 = vmatprep.subr.mxu0 %v6420
          %6944 = vmatpush1.msra.mxu0 %v6419
          %6945 = vmatprep.mubr.f32.mxu0 %v6342
          %6946 = vmatmul.mubr.f32.gmra.mrb[0].mxu0 %v6341
          %v6947 = vpop.f32.mrb[0].mxu0
          %v6948 = vadd.f32 %v6874, %v6947
          %v6949 = vpop.f32.mrb[0].mxu0
          %v6950 = vadd.f32 %v6878, %v6949
          %6951 = vdwg.mxu0
          %6952 = vmatprep.subr.mxu0 %v6422
          %6953 = vmatpush1.msra.mxu0 %v6421
          %6954 = vmatprep.subr.mxu0 %v6424
          %6955 = vmatpush1.msra.mxu0 %v6423
          %6956 = vmatprep.subr.mxu0 %v6426
          %6957 = vmatpush1.msra.mxu0 %v6425
          %6958 = vmatprep.subr.mxu0 %v6428
          %6959 = vmatpush1.msra.mxu0 %v6427
          %6960 = vmatprep.subr.mxu0 %v6430
          %6961 = vmatpush1.msra.mxu0 %v6429
          %6962 = vmatprep.subr.mxu0 %v6432
          %6963 = vmatpush1.msra.mxu0 %v6431
          %6964 = vmatprep.subr.mxu0 %v6434
          %6965 = vmatpush1.msra.mxu0 %v6433
          %6966 = vmatprep.subr.mxu0 %v6436
          %6967 = vmatpush1.msra.mxu0 %v6435
          %6968 = vmatprep.subr.mxu0 %v6438
          %6969 = vmatpush1.msra.mxu0 %v6437
          %6970 = vmatprep.subr.mxu0 %v6440
          %6971 = vmatpush1.msra.mxu0 %v6439
          %6972 = vmatprep.subr.mxu0 %v6442
          %6973 = vmatpush1.msra.mxu0 %v6441
          %6974 = vmatprep.subr.mxu0 %v6444
          %6975 = vmatpush1.msra.mxu0 %v6443
          %6976 = vmatprep.subr.mxu0 %v6446
          %6977 = vmatpush1.msra.mxu0 %v6445
          %6978 = vmatprep.subr.mxu0 %v6448
          %6979 = vmatpush1.msra.mxu0 %v6447
          %6980 = vmatprep.subr.mxu0 %v6450
          %6981 = vmatpush1.msra.mxu0 %v6449
          %6982 = vmatprep.subr.mxu0 %v6452
          %6983 = vmatpush1.msra.mxu0 %v6451
          %6984 = vmatprep.subr.mxu0 %v6454
          %6985 = vmatpush1.msra.mxu0 %v6453
          %6986 = vmatprep.subr.mxu0 %v6456
          %6987 = vmatpush1.msra.mxu0 %v6455
          %6988 = vmatprep.subr.mxu0 %v6458
          %6989 = vmatpush1.msra.mxu0 %v6457
          %6990 = vmatprep.subr.mxu0 %v6460
          %6991 = vmatpush1.msra.mxu0 %v6459
          %6992 = vmatprep.subr.mxu0 %v6462
          %6993 = vmatpush1.msra.mxu0 %v6461
          %6994 = vmatprep.subr.mxu0 %v6464
          %6995 = vmatpush1.msra.mxu0 %v6463
          %6996 = vmatprep.subr.mxu0 %v6466
          %6997 = vmatpush1.msra.mxu0 %v6465
          %6998 = vmatprep.subr.mxu0 %v6468
          %6999 = vmatpush1.msra.mxu0 %v6467
          %7000 = vmatprep.subr.mxu0 %v6470
          %7001 = vmatpush1.msra.mxu0 %v6469
          %7002 = vmatprep.subr.mxu0 %v6472
          %7003 = vmatpush1.msra.mxu0 %v6471
          %7004 = vmatprep.subr.mxu0 %v6474
          %7005 = vmatpush1.msra.mxu0 %v6473
          %7006 = vmatprep.subr.mxu0 %v6476
          %7007 = vmatpush1.msra.mxu0 %v6475
          %7008 = vmatprep.subr.mxu0 %v6478
          %7009 = vmatpush1.msra.mxu0 %v6477
          %7010 = vmatprep.subr.mxu0 %v6480
          %7011 = vmatpush1.msra.mxu0 %v6479
          %7012 = vmatprep.subr.mxu0 %v6482
          %7013 = vmatpush1.msra.mxu0 %v6481
          %7014 = vmatprep.subr.mxu0 %v6484
          %7015 = vmatpush1.msra.mxu0 %v6483
          %7016 = vmatprep.mubr.f32.mxu0 %v6344
          %7017 = vmatmul.mubr.f32.gmra.mrb[0].mxu0 %v6343
          %v7018 = vpop.f32.mrb[0].mxu0
          %v7019 = vadd.f32 %v6948, %v7018
          %v7020 = vpop.f32.mrb[0].mxu0
          %v7021 = vadd.f32 %v6950, %v7020
          %7022 = vdwg.mxu0
          %7023 = vmatprep.subr.mxu0 %v6486
          %7024 = vmatpush1.msra.mxu0 %v6485
          %7025 = vmatprep.subr.mxu0 %v6488
          %7026 = vmatpush1.msra.mxu0 %v6487
          %7027 = vmatprep.subr.mxu0 %v6490
          %7028 = vmatpush1.msra.mxu0 %v6489
          %7029 = vmatprep.subr.mxu0 %v6492
          %7030 = vmatpush1.msra.mxu0 %v6491
          %7031 = vmatprep.subr.mxu0 %v6494
          %7032 = vmatpush1.msra.mxu0 %v6493
          %7033 = vmatprep.subr.mxu0 %v6496
          %7034 = vmatpush1.msra.mxu0 %v6495
          %7035 = vmatprep.subr.mxu0 %v6498
          %7036 = vmatpush1.msra.mxu0 %v6497
          %7037 = vmatprep.subr.mxu0 %v6500
          %7038 = vmatpush1.msra.mxu0 %v6499
          %7039 = vmatprep.subr.mxu0 %v6502
          %7040 = vmatpush1.msra.mxu0 %v6501
          %7041 = vmatprep.subr.mxu0 %v6504
          %7042 = vmatpush1.msra.mxu0 %v6503
          %7043 = vmatprep.subr.mxu0 %v6506
          %7044 = vmatpush1.msra.mxu0 %v6505
          %7045 = vmatprep.subr.mxu0 %v6508
          %7046 = vmatpush1.msra.mxu0 %v6507
          %7047 = vmatprep.subr.mxu0 %v6510
          %7048 = vmatpush1.msra.mxu0 %v6509
          %7049 = vmatprep.subr.mxu0 %v6512
          %7050 = vmatpush1.msra.mxu0 %v6511
          %7051 = vmatprep.subr.mxu0 %v6514
          %7052 = vmatpush1.msra.mxu0 %v6513
          %7053 = vmatprep.subr.mxu0 %v6516
          %7054 = vmatpush1.msra.mxu0 %v6515
          %7055 = vmatprep.subr.mxu0 %v6518
          %7056 = vmatpush1.msra.mxu0 %v6517
          %7057 = vmatprep.subr.mxu0 %v6520
          %7058 = vmatpush1.msra.mxu0 %v6519
          %7059 = vmatprep.subr.mxu0 %v6522
          %7060 = vmatpush1.msra.mxu0 %v6521
          %7061 = vmatprep.subr.mxu0 %v6524
          %7062 = vmatpush1.msra.mxu0 %v6523
          %7063 = vmatprep.subr.mxu0 %v6526
          %7064 = vmatpush1.msra.mxu0 %v6525
          %7065 = vmatprep.subr.mxu0 %v6528
          %7066 = vmatpush1.msra.mxu0 %v6527
          %7067 = vmatprep.subr.mxu0 %v6530
          %7068 = vmatpush1.msra.mxu0 %v6529
          %7069 = vmatprep.subr.mxu0 %v6532
          %7070 = vmatpush1.msra.mxu0 %v6531
          %7071 = vmatprep.subr.mxu0 %v6534
          %7072 = vmatpush1.msra.mxu0 %v6533
          %7073 = vmatprep.subr.mxu0 %v6536
          %7074 = vmatpush1.msra.mxu0 %v6535
          %7075 = vmatprep.subr.mxu0 %v6538
          %7076 = vmatpush1.msra.mxu0 %v6537
          %7077 = vmatprep.subr.mxu0 %v6540
          %7078 = vmatpush1.msra.mxu0 %v6539
          %7079 = vmatprep.subr.mxu0 %v6542
          %7080 = vmatpush1.msra.mxu0 %v6541
          %7081 = vmatprep.subr.mxu0 %v6544
          %7082 = vmatpush1.msra.mxu0 %v6543
          %7083 = vmatprep.subr.mxu0 %v6546
          %7084 = vmatpush1.msra.mxu0 %v6545
          %7085 = vmatprep.subr.mxu0 %v6548
          %7086 = vmatpush1.msra.mxu0 %v6547
          %7087 = vmatprep.mubr.f32.mxu0 %v6346
          %7088 = vmatmul.mubr.f32.gmra.mrb[0].mxu0 %v6345
          %v7089 = vpop.f32.mrb[0].mxu0
          %v7090 = vadd.f32 %v7019, %v7089
          %v7091 = vpop.f32.mrb[0].mxu0
          %v7092 = vadd.f32 %v7021, %v7091
          %7093 = vdwg.mxu0
          %7094 = vmatprep.subr.mxu0 %v6550
          %7095 = vmatpush1.msra.mxu0 %v6549
          %7096 = vmatprep.subr.mxu0 %v6552
          %7097 = vmatpush1.msra.mxu0 %v6551
          %7098 = vmatprep.subr.mxu0 %v6554
          %7099 = vmatpush1.msra.mxu0 %v6553
          %7100 = vmatprep.subr.mxu0 %v6556
          %7101 = vmatpush1.msra.mxu0 %v6555
          %7102 = vmatprep.subr.mxu0 %v6558
          %7103 = vmatpush1.msra.mxu0 %v6557
          %7104 = vmatprep.subr.mxu0 %v6560
          %7105 = vmatpush1.msra.mxu0 %v6559
          %7106 = vmatprep.subr.mxu0 %v6562
          %7107 = vmatpush1.msra.mxu0 %v6561
          %7108 = vmatprep.subr.mxu0 %v6564
          %7109 = vmatpush1.msra.mxu0 %v6563
          %7110 = vmatprep.subr.mxu0 %v6566
          %7111 = vmatpush1.msra.mxu0 %v6565
          %7112 = vmatprep.subr.mxu0 %v6568
          %7113 = vmatpush1.msra.mxu0 %v6567
          %7114 = vmatprep.subr.mxu0 %v6570
          %7115 = vmatpush1.msra.mxu0 %v6569
          %7116 = vmatprep.subr.mxu0 %v6572
          %7117 = vmatpush1.msra.mxu0 %v6571
          %7118 = vmatprep.subr.mxu0 %v6574
          %7119 = vmatpush1.msra.mxu0 %v6573
          %7120 = vmatprep.subr.mxu0 %v6576
          %7121 = vmatpush1.msra.mxu0 %v6575
          %7122 = vmatprep.subr.mxu0 %v6578
          %7123 = vmatpush1.msra.mxu0 %v6577
          %7124 = vmatprep.subr.mxu0 %v6580
          %7125 = vmatpush1.msra.mxu0 %v6579
          %7126 = vmatprep.subr.mxu0 %v6582
          %7127 = vmatpush1.msra.mxu0 %v6581
          %7128 = vmatprep.subr.mxu0 %v6584
          %7129 = vmatpush1.msra.mxu0 %v6583
          %7130 = vmatprep.subr.mxu0 %v6586
          %7131 = vmatpush1.msra.mxu0 %v6585
          %7132 = vmatprep.subr.mxu0 %v6588
          %7133 = vmatpush1.msra.mxu0 %v6587
          %7134 = vmatprep.subr.mxu0 %v6590
          %7135 = vmatpush1.msra.mxu0 %v6589
          %7136 = vmatprep.subr.mxu0 %v6592
          %7137 = vmatpush1.msra.mxu0 %v6591
          %7138 = vmatprep.subr.mxu0 %v6594
          %7139 = vmatpush1.msra.mxu0 %v6593
          %7140 = vmatprep.subr.mxu0 %v6596
          %7141 = vmatpush1.msra.mxu0 %v6595
          %7142 = vmatprep.subr.mxu0 %v6598
          %7143 = vmatpush1.msra.mxu0 %v6597
          %7144 = vmatprep.subr.mxu0 %v6600
          %7145 = vmatpush1.msra.mxu0 %v6599
          %7146 = vmatprep.subr.mxu0 %v6602
          %7147 = vmatpush1.msra.mxu0 %v6601
          %7148 = vmatprep.subr.mxu0 %v6604
          %7149 = vmatpush1.msra.mxu0 %v6603
          %7150 = vmatprep.subr.mxu0 %v6606
          %7151 = vmatpush1.msra.mxu0 %v6605
          %7152 = vmatprep.subr.mxu0 %v6608
          %7153 = vmatpush1.msra.mxu0 %v6607
          %7154 = vmatprep.subr.mxu0 %v6610
          %7155 = vmatpush1.msra.mxu0 %v6609
          %7156 = vmatprep.subr.mxu0 %v6612
          %7157 = vmatpush1.msra.mxu0 %v6611
          %7158 = vmatprep.mubr.f32.mxu0 %v6348
          %7159 = vmatmul.mubr.f32.gmra.mrb[0].mxu0 %v6347
          %v7160 = vpop.f32.mrb[0].mxu0
          %v7161 = vadd.f32 %v7090, %v7160
          %v7162 = vpop.f32.mrb[0].mxu0
          %v7163 = vadd.f32 %v7092, %v7162
          %7164 = vdwg.mxu0
          %7165 = vmatprep.subr.mxu0 %v6614
          %7166 = vmatpush1.msra.mxu0 %v6613
          %7167 = vmatprep.subr.mxu0 %v6616
          %7168 = vmatpush1.msra.mxu0 %v6615
          %7169 = vmatprep.subr.mxu0 %v6618
          %7170 = vmatpush1.msra.mxu0 %v6617
          %7171 = vmatprep.subr.mxu0 %v6620
          %7172 = vmatpush1.msra.mxu0 %v6619
          %7173 = vmatprep.subr.mxu0 %v6622
          %7174 = vmatpush1.msra.mxu0 %v6621
          %7175 = vmatprep.subr.mxu0 %v6624
          %7176 = vmatpush1.msra.mxu0 %v6623
          %7177 = vmatprep.subr.mxu0 %v6626
          %7178 = vmatpush1.msra.mxu0 %v6625
          %7179 = vmatprep.subr.mxu0 %v6628
          %7180 = vmatpush1.msra.mxu0 %v6627
          %7181 = vmatprep.subr.mxu0 %v6630
          %7182 = vmatpush1.msra.mxu0 %v6629
          %7183 = vmatprep.subr.mxu0 %v6632
          %7184 = vmatpush1.msra.mxu0 %v6631
          %7185 = vmatprep.subr.mxu0 %v6634
          %7186 = vmatpush1.msra.mxu0 %v6633
          %7187 = vmatprep.subr.mxu0 %v6636
          %7188 = vmatpush1.msra.mxu0 %v6635
          %7189 = vmatprep.subr.mxu0 %v6638
          %7190 = vmatpush1.msra.mxu0 %v6637
          %7191 = vmatprep.subr.mxu0 %v6640
          %7192 = vmatpush1.msra.mxu0 %v6639
          %7193 = vmatprep.subr.mxu0 %v6642
          %7194 = vmatpush1.msra.mxu0 %v6641
          %7195 = vmatprep.subr.mxu0 %v6644
          %7196 = vmatpush1.msra.mxu0 %v6643
          %7197 = vmatprep.subr.mxu0 %v6646
          %7198 = vmatpush1.msra.mxu0 %v6645
          %7199 = vmatprep.subr.mxu0 %v6648
          %7200 = vmatpush1.msra.mxu0 %v6647
          %7201 = vmatprep.subr.mxu0 %v6650
          %7202 = vmatpush1.msra.mxu0 %v6649
          %7203 = vmatprep.subr.mxu0 %v6652
          %7204 = vmatpush1.msra.mxu0 %v6651
          %7205 = vmatprep.subr.mxu0 %v6654
          %7206 = vmatpush1.msra.mxu0 %v6653
          %7207 = vmatprep.subr.mxu0 %v6656
          %7208 = vmatpush1.msra.mxu0 %v6655
          %7209 = vmatprep.subr.mxu0 %v6658
          %7210 = vmatpush1.msra.mxu0 %v6657
          %7211 = vmatprep.subr.mxu0 %v6660
          %7212 = vmatpush1.msra.mxu0 %v6659
          %7213 = vmatprep.subr.mxu0 %v6662
          %7214 = vmatpush1.msra.mxu0 %v6661
          %7215 = vmatprep.subr.mxu0 %v6664
          %7216 = vmatpush1.msra.mxu0 %v6663
          %7217 = vmatprep.subr.mxu0 %v6666
          %7218 = vmatpush1.msra.mxu0 %v6665
          %7219 = vmatprep.subr.mxu0 %v6668
          %7220 = vmatpush1.msra.mxu0 %v6667
          %7221 = vmatprep.subr.mxu0 %v6670
          %7222 = vmatpush1.msra.mxu0 %v6669
          %7223 = vmatprep.subr.mxu0 %v6672
          %7224 = vmatpush1.msra.mxu0 %v6671
          %7225 = vmatprep.subr.mxu0 %v6674
          %7226 = vmatpush1.msra.mxu0 %v6673
          %7227 = vmatprep.subr.mxu0 %v6676
          %7228 = vmatpush1.msra.mxu0 %v6675
          %7229 = vmatprep.mubr.f32.mxu0 %v6350
          %7230 = vmatmul.mubr.f32.gmra.mrb[0].mxu0 %v6349
          %v7231 = vpop.f32.mrb[0].mxu0
          %v7232 = vadd.f32 %v7161, %v7231
          %v7233 = vpop.f32.mrb[0].mxu0
          %v7234 = vadd.f32 %v7163, %v7233
          %7235 = vdwg.mxu0
          %7236 = vmatprep.subr.mxu0 %v6678
          %7237 = vmatpush1.msra.mxu0 %v6677
          %7238 = vmatprep.subr.mxu0 %v6680
          %7239 = vmatpush1.msra.mxu0 %v6679
          %7240 = vmatprep.subr.mxu0 %v6682
          %7241 = vmatpush1.msra.mxu0 %v6681
          %7242 = vmatprep.subr.mxu0 %v6684
          %7243 = vmatpush1.msra.mxu0 %v6683
          %7244 = vmatprep.subr.mxu0 %v6686
          %7245 = vmatpush1.msra.mxu0 %v6685
          %7246 = vmatprep.subr.mxu0 %v6688
          %7247 = vmatpush1.msra.mxu0 %v6687
          %7248 = vmatprep.subr.mxu0 %v6690
          %7249 = vmatpush1.msra.mxu0 %v6689
          %7250 = vmatprep.subr.mxu0 %v6692
          %7251 = vmatpush1.msra.mxu0 %v6691
          %7252 = vmatprep.subr.mxu0 %v6694
          %7253 = vmatpush1.msra.mxu0 %v6693
          %7254 = vmatprep.subr.mxu0 %v6696
          %7255 = vmatpush1.msra.mxu0 %v6695
          %7256 = vmatprep.subr.mxu0 %v6698
          %7257 = vmatpush1.msra.mxu0 %v6697
          %7258 = vmatprep.subr.mxu0 %v6700
          %7259 = vmatpush1.msra.mxu0 %v6699
          %7260 = vmatprep.subr.mxu0 %v6702
          %7261 = vmatpush1.msra.mxu0 %v6701
          %7262 = vmatprep.subr.mxu0 %v6704
          %7263 = vmatpush1.msra.mxu0 %v6703
          %7264 = vmatprep.subr.mxu0 %v6706
          %7265 = vmatpush1.msra.mxu0 %v6705
          %7266 = vmatprep.subr.mxu0 %v6708
          %7267 = vmatpush1.msra.mxu0 %v6707
          %7268 = vmatprep.subr.mxu0 %v6710
          %7269 = vmatpush1.msra.mxu0 %v6709
          %7270 = vmatprep.subr.mxu0 %v6712
          %7271 = vmatpush1.msra.mxu0 %v6711
          %7272 = vmatprep.subr.mxu0 %v6714
          %7273 = vmatpush1.msra.mxu0 %v6713
          %7274 = vmatprep.subr.mxu0 %v6716
          %7275 = vmatpush1.msra.mxu0 %v6715
          %7276 = vmatprep.subr.mxu0 %v6718
          %7277 = vmatpush1.msra.mxu0 %v6717
          %7278 = vmatprep.subr.mxu0 %v6720
          %7279 = vmatpush1.msra.mxu0 %v6719
          %7280 = vmatprep.subr.mxu0 %v6722
          %7281 = vmatpush1.msra.mxu0 %v6721
          %7282 = vmatprep.subr.mxu0 %v6724
          %7283 = vmatpush1.msra.mxu0 %v6723
          %7284 = vmatprep.subr.mxu0 %v6726
          %7285 = vmatpush1.msra.mxu0 %v6725
          %7286 = vmatprep.subr.mxu0 %v6728
          %7287 = vmatpush1.msra.mxu0 %v6727
          %7288 = vmatprep.subr.mxu0 %v6730
          %7289 = vmatpush1.msra.mxu0 %v6729
          %7290 = vmatprep.subr.mxu0 %v6732
          %7291 = vmatpush1.msra.mxu0 %v6731
          %7292 = vmatprep.subr.mxu0 %v6734
          %7293 = vmatpush1.msra.mxu0 %v6733
          %7294 = vmatprep.subr.mxu0 %v6736
          %7295 = vmatpush1.msra.mxu0 %v6735
          %7296 = vmatprep.subr.mxu0 %v6738
          %7297 = vmatpush1.msra.mxu0 %v6737
          %7298 = vmatprep.subr.mxu0 %v6740
          %7299 = vmatpush1.msra.mxu0 %v6739
          %7300 = vmatprep.mubr.f32.mxu0 %v6352
          %7301 = vmatmul.mubr.f32.gmra.mrb[0].mxu0 %v6351
          %v7302 = vpop.f32.mrb[0].mxu0
          %v7303 = vadd.f32 %v7232, %v7302
          %v7304 = vpop.f32.mrb[0].mxu0
          %v7305 = vadd.f32 %v7234, %v7304
          %7306 = vdwg.mxu0
          %7307 = vmatprep.subr.mxu0 %v6742
          %7308 = vmatpush1.msra.mxu0 %v6741
          %7309 = vmatprep.subr.mxu0 %v6744
          %7310 = vmatpush1.msra.mxu0 %v6743
          %7311 = vmatprep.subr.mxu0 %v6746
          %7312 = vmatpush1.msra.mxu0 %v6745
          %7313 = vmatprep.subr.mxu0 %v6748
          %7314 = vmatpush1.msra.mxu0 %v6747
          %7315 = vmatprep.subr.mxu0 %v6750
          %7316 = vmatpush1.msra.mxu0 %v6749
          %7317 = vmatprep.subr.mxu0 %v6752
          %7318 = vmatpush1.msra.mxu0 %v6751
          %7319 = vmatprep.subr.mxu0 %v6754
          %7320 = vmatpush1.msra.mxu0 %v6753
          %7321 = vmatprep.subr.mxu0 %v6756
          %7322 = vmatpush1.msra.mxu0 %v6755
          %7323 = vmatprep.subr.mxu0 %v6758
          %7324 = vmatpush1.msra.mxu0 %v6757
          %7325 = vmatprep.subr.mxu0 %v6760
          %7326 = vmatpush1.msra.mxu0 %v6759
          %7327 = vmatprep.subr.mxu0 %v6762
          %7328 = vmatpush1.msra.mxu0 %v6761
          %7329 = vmatprep.subr.mxu0 %v6764
          %7330 = vmatpush1.msra.mxu0 %v6763
          %7331 = vmatprep.subr.mxu0 %v6766
          %7332 = vmatpush1.msra.mxu0 %v6765
          %7333 = vmatprep.subr.mxu0 %v6768
          %7334 = vmatpush1.msra.mxu0 %v6767
          %7335 = vmatprep.subr.mxu0 %v6770
          %7336 = vmatpush1.msra.mxu0 %v6769
          %7337 = vmatprep.subr.mxu0 %v6772
          %7338 = vmatpush1.msra.mxu0 %v6771
          %7339 = vmatprep.subr.mxu0 %v6774
          %7340 = vmatpush1.msra.mxu0 %v6773
          %7341 = vmatprep.subr.mxu0 %v6776
          %7342 = vmatpush1.msra.mxu0 %v6775
          %7343 = vmatprep.subr.mxu0 %v6778
          %7344 = vmatpush1.msra.mxu0 %v6777
          %7345 = vmatprep.subr.mxu0 %v6780
          %7346 = vmatpush1.msra.mxu0 %v6779
          %7347 = vmatprep.subr.mxu0 %v6782
          %7348 = vmatpush1.msra.mxu0 %v6781
          %7349 = vmatprep.subr.mxu0 %v6784
          %7350 = vmatpush1.msra.mxu0 %v6783
          %7351 = vmatprep.subr.mxu0 %v6786
          %7352 = vmatpush1.msra.mxu0 %v6785
          %7353 = vmatprep.subr.mxu0 %v6788
          %7354 = vmatpush1.msra.mxu0 %v6787
          %7355 = vmatprep.subr.mxu0 %v6790
          %7356 = vmatpush1.msra.mxu0 %v6789
          %7357 = vmatprep.subr.mxu0 %v6792
          %7358 = vmatpush1.msra.mxu0 %v6791
          %7359 = vmatprep.subr.mxu0 %v6794
          %7360 = vmatpush1.msra.mxu0 %v6793
          %7361 = vmatprep.subr.mxu0 %v6796
          %7362 = vmatpush1.msra.mxu0 %v6795
          %7363 = vmatprep.subr.mxu0 %v6798
          %7364 = vmatpush1.msra.mxu0 %v6797
          %7365 = vmatprep.subr.mxu0 %v6800
          %7366 = vmatpush1.msra.mxu0 %v6799
          %7367 = vmatprep.subr.mxu0 %v6802
          %7368 = vmatpush1.msra.mxu0 %v6801
          %7369 = vmatprep.subr.mxu0 %v6804
          %7370 = vmatpush1.msra.mxu0 %v6803
          %7371 = vmatprep.mubr.f32.mxu0 %v6354
          %7372 = vmatmul.mubr.f32.gmra.mrb[0].mxu0 %v6353
          %v7373 = vpop.f32.mrb[0].mxu0
          %v7374 = vadd.f32 %v7303, %v7373
          %v7375 = vpop.f32.mrb[0].mxu0
          %v7376 = vadd.f32 %v7305, %v7375
          %7377 = vdwg.mxu0
          %7378 = vmatprep.subr.mxu0 %v6806
          %7379 = vmatpush1.msra.mxu0 %v6805
          %7380 = vmatprep.subr.mxu0 %v6808
          %7381 = vmatpush1.msra.mxu0 %v6807
          %7382 = vmatprep.subr.mxu0 %v6810
          %7383 = vmatpush1.msra.mxu0 %v6809
          %7384 = vmatprep.subr.mxu0 %v6812
          %7385 = vmatpush1.msra.mxu0 %v6811
          %7386 = vmatprep.subr.mxu0 %v6814
          %7387 = vmatpush1.msra.mxu0 %v6813
          %7388 = vmatprep.subr.mxu0 %v6816
          %7389 = vmatpush1.msra.mxu0 %v6815
          %7390 = vmatprep.subr.mxu0 %v6818
          %7391 = vmatpush1.msra.mxu0 %v6817
          %7392 = vmatprep.subr.mxu0 %v6820
          %7393 = vmatpush1.msra.mxu0 %v6819
          %7394 = vmatprep.subr.mxu0 %v6822
          %7395 = vmatpush1.msra.mxu0 %v6821
          %7396 = vmatprep.subr.mxu0 %v6824
          %7397 = vmatpush1.msra.mxu0 %v6823
          %7398 = vmatprep.subr.mxu0 %v6826
          %7399 = vmatpush1.msra.mxu0 %v6825
          %7400 = vmatprep.subr.mxu0 %v6828
          %7401 = vmatpush1.msra.mxu0 %v6827
          %7402 = vmatprep.subr.mxu0 %v6830
          %7403 = vmatpush1.msra.mxu0 %v6829
          %7404 = vmatprep.subr.mxu0 %v6832
          %7405 = vmatpush1.msra.mxu0 %v6831
          %7406 = vmatprep.subr.mxu0 %v6834
          %7407 = vmatpush1.msra.mxu0 %v6833
          %7408 = vmatprep.subr.mxu0 %v6836
          %7409 = vmatpush1.msra.mxu0 %v6835
          %7410 = vmatprep.subr.mxu0 %v6838
          %7411 = vmatpush1.msra.mxu0 %v6837
          %7412 = vmatprep.subr.mxu0 %v6840
          %7413 = vmatpush1.msra.mxu0 %v6839
          %7414 = vmatprep.subr.mxu0 %v6842
          %7415 = vmatpush1.msra.mxu0 %v6841
          %7416 = vmatprep.subr.mxu0 %v6844
          %7417 = vmatpush1.msra.mxu0 %v6843
          %7418 = vmatprep.subr.mxu0 %v6846
          %7419 = vmatpush1.msra.mxu0 %v6845
          %7420 = vmatprep.subr.mxu0 %v6848
          %7421 = vmatpush1.msra.mxu0 %v6847
          %7422 = vmatprep.subr.mxu0 %v6850
          %7423 = vmatpush1.msra.mxu0 %v6849
          %7424 = vmatprep.subr.mxu0 %v6852
          %7425 = vmatpush1.msra.mxu0 %v6851
          %7426 = vmatprep.subr.mxu0 %v6854
          %7427 = vmatpush1.msra.mxu0 %v6853
          %7428 = vmatprep.subr.mxu0 %v6856
          %7429 = vmatpush1.msra.mxu0 %v6855
          %7430 = vmatprep.subr.mxu0 %v6858
          %7431 = vmatpush1.msra.mxu0 %v6857
          %7432 = vmatprep.subr.mxu0 %v6860
          %7433 = vmatpush1.msra.mxu0 %v6859
          %7434 = vmatprep.subr.mxu0 %v6862
          %7435 = vmatpush1.msra.mxu0 %v6861
          %7436 = vmatprep.subr.mxu0 %v6864
          %7437 = vmatpush1.msra.mxu0 %v6863
          %7438 = vmatprep.subr.mxu0 %v6866
          %7439 = vmatpush1.msra.mxu0 %v6865
          %7440 = vmatprep.subr.mxu0 %v6868
          %7441 = vmatpush1.msra.mxu0 %v6867
          %7442 = vmatprep.mubr.f32.mxu0 %v6356
          %7443 = vmatmul.mubr.f32.gmra.mrb[0].mxu0 %v6355
          %v7444 = vpop.f32.mrb[0].mxu0
          %v7445 = vadd.f32 %v7374, %v7444
          %v7446 = vpop.f32.mrb[0].mxu0
          %v7447 = vadd.f32 %v7376, %v7446
          %7448 = vdwg.mxu0
          %v7449 = vld [vmem:[%s5] sm:$0xff]
          %v7450 = vld [vmem:[%s5 + $0x8] sm:$0xff]
          %v7451 = vld [vmem:[%s5 + $0x10] sm:$0xff]
          %v7452 = vld [vmem:[%s5 + $0x18] sm:$0xff]
          %v7453 = vld [vmem:[%s5 + $0x20] sm:$0xff]
          %v7454 = vld [vmem:[%s5 + $0x28] sm:$0xff]
          %v7455 = vld [vmem:[%s5 + $0x30] sm:$0xff]
          %v7456 = vld [vmem:[%s5 + $0x38] sm:$0xff]
          %v7457 = vld [vmem:[%s5 + $0x40] sm:$0xff]
          %v7458 = vld [vmem:[%s5 + $0x48] sm:$0xff]
          %v7459 = vld [vmem:[%s5 + $0x50] sm:$0xff]
          %v7460 = vld [vmem:[%s5 + $0x58] sm:$0xff]
          %v7461 = vld [vmem:[%s5 + $0x60] sm:$0xff]
          %v7462 = vld [vmem:[%s5 + $0x68] sm:$0xff]
          %v7463 = vld [vmem:[%s5 + $0x70] sm:$0xff]
          %v7464 = vld [vmem:[%s5 + $0x78] sm:$0xff]
          %v7465 = vld [vmem:[%s5 + $0x80] sm:$0xff]
          %v7466 = vld [vmem:[%s5 + $0x88] sm:$0xff]
          %v7467 = vld [vmem:[%s5 + $0x90] sm:$0xff]
          %v7468 = vld [vmem:[%s5 + $0x98] sm:$0xff]
          %v7469 = vld [vmem:[%s5 + $0xa0] sm:$0xff]
          %v7470 = vld [vmem:[%s5 + $0xa8] sm:$0xff]
          %v7471 = vld [vmem:[%s5 + $0xb0] sm:$0xff]
          %v7472 = vld [vmem:[%s5 + $0xb8] sm:$0xff]
          %v7473 = vld [vmem:[%s5 + $0xc0] sm:$0xff]
          %v7474 = vld [vmem:[%s5 + $0xc8] sm:$0xff]
          %v7475 = vld [vmem:[%s5 + $0xd0] sm:$0xff]
          %v7476 = vld [vmem:[%s5 + $0xd8] sm:$0xff]
          %v7477 = vld [vmem:[%s5 + $0xe0] sm:$0xff]
          %v7478 = vld [vmem:[%s5 + $0xe8] sm:$0xff]
          %v7479 = vld [vmem:[%s5 + $0xf0] sm:$0xff]
          %v7480 = vld [vmem:[%s5 + $0xf8] sm:$0xff]
          %v7481 = vld [vmem:[#allocation9] sm:$0x1]
          %7482 = vmatprep.subr.mxu0 0.0
          %7483 = vmatpush1.msra.mxu0 %v7449
          %7484 = vmatprep.subr.mxu0 0.0
          %7485 = vmatpush1.msra.mxu0 %v7450
          %7486 = vmatprep.subr.mxu0 0.0
          %7487 = vmatpush1.msra.mxu0 %v7451
          %7488 = vmatprep.subr.mxu0 0.0
          %7489 = vmatpush1.msra.mxu0 %v7452
          %7490 = vmatprep.subr.mxu0 0.0
          %7491 = vmatpush1.msra.mxu0 %v7453
          %7492 = vmatprep.subr.mxu0 0.0
          %7493 = vmatpush1.msra.mxu0 %v7454
          %7494 = vmatprep.subr.mxu0 0.0
          %7495 = vmatpush1.msra.mxu0 %v7455
          %7496 = vmatprep.subr.mxu0 0.0
          %7497 = vmatpush1.msra.mxu0 %v7456
          %7498 = vmatprep.subr.mxu0 0.0
          %7499 = vmatpush1.msra.mxu0 %v7457
          %7500 = vmatprep.subr.mxu0 0.0
          %7501 = vmatpush1.msra.mxu0 %v7458
          %7502 = vmatprep.subr.mxu0 0.0
          %7503 = vmatpush1.msra.mxu0 %v7459
          %7504 = vmatprep.subr.mxu0 0.0
          %7505 = vmatpush1.msra.mxu0 %v7460
          %7506 = vmatprep.subr.mxu0 0.0
          %7507 = vmatpush1.msra.mxu0 %v7461
          %7508 = vmatprep.subr.mxu0 0.0
          %7509 = vmatpush1.msra.mxu0 %v7462
          %7510 = vmatprep.subr.mxu0 0.0
          %7511 = vmatpush1.msra.mxu0 %v7463
          %7512 = vmatprep.subr.mxu0 0.0
          %7513 = vmatpush1.msra.mxu0 %v7464
          %7514 = vmatprep.subr.mxu0 0.0
          %7515 = vmatpush1.msra.mxu0 %v7465
          %7516 = vmatprep.subr.mxu0 0.0
          %7517 = vmatpush1.msra.mxu0 %v7466
          %7518 = vmatprep.subr.mxu0 0.0
          %7519 = vmatpush1.msra.mxu0 %v7467
          %7520 = vmatprep.subr.mxu0 0.0
          %7521 = vmatpush1.msra.mxu0 %v7468
          %7522 = vmatprep.subr.mxu0 0.0
          %7523 = vmatpush1.msra.mxu0 %v7469
          %7524 = vmatprep.subr.mxu0 0.0
          %7525 = vmatpush1.msra.mxu0 %v7470
          %7526 = vmatprep.subr.mxu0 0.0
          %7527 = vmatpush1.msra.mxu0 %v7471
          %7528 = vmatprep.subr.mxu0 0.0
          %7529 = vmatpush1.msra.mxu0 %v7472
          %7530 = vmatprep.subr.mxu0 0.0
          %7531 = vmatpush1.msra.mxu0 %v7473
          %7532 = vmatprep.subr.mxu0 0.0
          %7533 = vmatpush1.msra.mxu0 %v7474
          %7534 = vmatprep.subr.mxu0 0.0
          %7535 = vmatpush1.msra.mxu0 %v7475
          %7536 = vmatprep.subr.mxu0 0.0
          %7537 = vmatpush1.msra.mxu0 %v7476
          %7538 = vmatprep.subr.mxu0 0.0
          %7539 = vmatpush1.msra.mxu0 %v7477
          %7540 = vmatprep.subr.mxu0 0.0
          %7541 = vmatpush1.msra.mxu0 %v7478
          %7542 = vmatprep.subr.mxu0 0.0
          %7543 = vmatpush1.msra.mxu0 %v7479
          %7544 = vmatprep.subr.mxu0 0.0
          %7545 = vmatpush1.msra.mxu0 %v7480
          %7546 = vmatprep.mubr.f32.mxu0 %v7447
          %7547 = vmatmul.mubr.f32.gmra.mrb[0].mxu0 %v7445
          %v7548 = vpop.f32.mrb[0].mxu0
          %v7549 = vadd.f32 %v7481, %v7548
          %v7550 = vpop.f32.mrb[0].mxu0
          %7551 = vdwg.mxu0
          %v7552 = vmax.f32 %v7549, 0.0
          %vm7553 = vcmask 8192
          %7554 = vst.msk [vmem:[%s348] sm:$0x1] %vm7553, %v7552
        $region72: #{tpu_custom_call.1} parent=47 // pred_fallthru
          _
        %s7555 = sand.u32 %s200, 1
        %s7556 = scalar_lea.sflag [#allocation5], %s7555
        %s7557 = sand.u32 %s200, 1
        %s7558 = scalar_lea.vmem [#allocation11], %s7557
        // Predicated region
        $region73: #{tpu_custom_call.1} parent=47 // pred_check
          %p7559 = pneg %p210
        $region74: #{tpu_custom_call.1} parent=47 // pred_check_branch
          %7561 = sbr.rel (%p7559) target = $region76
        $region75: #{tpu_custom_call.1} parent=47 // pred_region
          %s7563 = ssub.s32 16, 16
          %7564 = vsyncadd %s7556, %s7563
          %s7565 = smul.addr %s30, 16
          %s7566 = scalar_lea.hbm %s7, %s7565
          %s7568 = sshll.u32 %s7558, 4
          %s7569 = int_to_ptr.vmem [resolvable:$true] %s7568
          %7571 = dma.vmem_to_hbm [thread:$0]  %s7569, 16, %s7566, %s7556
        $region76: #{tpu_custom_call.1} parent=47 // pred_fallthru
          _
      $region48: #{tpu_custom_call.1} parent=5 // pred_fallthru
        _
      %p7572 = scmp.le.s32.totalorder 2, %s21
      // Predicated region
      $region77: #{tpu_custom_call.1} parent=5 // pred_check
        %p7573 = pneg %p7572
      $region78: #{tpu_custom_call.1} parent=5 // pred_check_branch
        %7575 = sbr.rel (%p7573) target = $region80
      $region79: #{tpu_custom_call.1} parent=5 // pred_region
        %s7576 = ssub.s32 %s21, 2
        // Predicated region
        $region81: #{tpu_custom_call.1} parent=79 // pred_check
          %p7577 = pneg %p216
        $region82: #{tpu_custom_call.1} parent=79 // pred_check_branch
          %7579 = sbr.rel (%p7577) target = $region84
        $region83: #{tpu_custom_call.1} parent=79 // pred_region
          %s7580 = sand.u32 %s201, 1
          %s7581 = scalar_lea.sflag [#allocation5], %s7580
          %s7582 = sand.u32 %s201, 1
          %s7583 = scalar_lea.vmem [#allocation11], %s7582
          %7584 = dma.done %s7581, 16
        $region84: #{tpu_custom_call.1} parent=79 // pred_fallthru
          _
      $region80: #{tpu_custom_call.1} parent=5 // pred_fallthru
        _
    $region6: #{tpu_custom_call.1} parent=1 // loop_footer
      %s25 = sadd.s32 1, %s21
    $region7: #{tpu_custom_call.1} parent=1 // loop_footer_branch
      %20 = sbr.rel target = $region3
    $region8: #{tpu_custom_call.1} parent=1 // loop_exit
      _
    %7585 = vsyncpa [#allocation4], 1
    %s7586 = scalar_lea.sflag [#allocation4], 1
    %7587 = vsyncpa %s7586, 1
    %7588 = vsyncpa [#allocation7], 1
    %7589 = vsyncpa [#allocation10], 1
    %7590 = vsyncpa [#allocation5], 1
    %s7591 = scalar_lea.sflag [#allocation5], 1
    %7592 = vsyncpa %s7591, 1

</llo_original>
